<compile_context>
chip_gen: v6e
topology: v6e:2x2x1
jax: 0.10.0
libtpu: 0.0.40
codegen_flags: <defaults>
</compile_context>

<pallas_src>
import functools

import numpy as np
import jax
import jax.numpy as jnp
from jax.experimental import pallas as pl
from jax.experimental.pallas import tpu as pltpu


def _round_up(x, m):
    return ((x + m - 1) // m) * m


# ----------------------------- Pallas kernels -----------------------------

def conv_stats_kernel(xa_ref, xb_ref, w_ref, mask_ref,
                      out_ref, s1_ref, s2_ref, win_ref, *, offs, tn):
    """3x3x3 conv of one (C, tn) output block + masked partial BN statistics.

    xa_ref:   (C, tn)    block j   of the haloed, flattened, padded activation
    xb_ref:   (C, hb)    block j+1 (halo) of the same array
    w_ref:    (27, C, C) conv taps, w_ref[k][co, ci]
    mask_ref: (1, tn)    bf16, 1.0 where the column is a real interior voxel
    out_ref:  (C, tn)    f32 conv output block
    s1_ref:   (1, C, 1)  masked per-block sum            (for BN mean)
    s2_ref:   (1, C, 1)  masked per-block sum of squares (for BN var)
    win_ref:  (C, tn+hb) VMEM scratch: staged input window so that every tap
              slice below has a *static* lane offset.
    """
    win_ref[:, :tn] = xa_ref[...]
    win_ref[:, tn:] = xb_ref[...]

    acc = jnp.zeros(out_ref.shape, jnp.float32)
    for k, off in enumerate(offs):            # 27 static taps, unrolled
        acc = acc + jnp.dot(w_ref[k], win_ref[:, off:off + tn],
                            preferred_element_type=jnp.float32)
    out_ref[...] = acc

    m = mask_ref[...].astype(jnp.float32)      # (1, tn), broadcasts over C
    am = acc * m                               # masked activation, reused
    s1_ref[0] = jnp.sum(am, axis=1, keepdims=True)
    s2_ref[0] = jnp.sum(am * acc, axis=1, keepdims=True)


def bn_elu_kernel(x_ref, scale_ref, shift_ref, o_ref):
    """Affine batch-norm (precomputed scale/shift) fused with ELU(alpha=1)."""
    y = x_ref[...] * scale_ref[...] + shift_ref[...]
    # exp(min(y,0)) - 1 equals expm1(y) on the selected (y<=0) branch to well
    # below the test tolerance; keeps to the guaranteed Mosaic op set.
    o_ref[...] = jnp.where(y > 0.0, y, jnp.exp(jnp.minimum(y, 0.0)) - 1.0)


# ----------------------------- LUConv forward -------------------------------

def luconv_forward(x_ncdhw, conv_w, conv_b, gamma, beta, eps=1e-5, *,
                   tn=1024, mxu_dtype=jnp.bfloat16):
    """ELU(BatchNorm3d(Conv3d(x))), training-mode (batch) BN statistics.

    x_ncdhw: (N, C, D, H, W).  conv_w: (C, C, 3, 3, 3).  conv_b: (C,) --
    unused: a per-channel constant added before training-mode BN is exactly
    cancelled by the mean subtraction.  gamma, beta: (C,).
    """
    del conv_b  # exactly cancelled by the BN mean subtraction
    N, C, D, H, W = x_ncdhw.shape
    Dp, Hp, Wp = D + 2, H + 2, W + 2
    Mp = N * Dp * Hp * Wp                   # padded volume, flattened
    halo = Hp * Wp + Wp + 1                 # max |flat shift| of a 3x3x3 tap

    HB = _round_up(2 * halo, 128)           # halo block width (lane aligned)
    TN = _round_up(max(tn, HB), HB)         # main block width (multiple of HB)
    assert HB % 128 == 0 and TN % HB == 0 and 2 * halo <= HB <= TN
    nb = pl.cdiv(Mp, TN)                    # number of output blocks
    out_w = nb * TN
    in_w = (nb + 1) * TN                    # one extra zero block for the halo

    # ---- glue: channels-first, zero-pad spatial, flatten, halo-shift ----
    xt = jnp.transpose(x_ncdhw, (1, 0, 2, 3, 4))                  # (C,N,D,H,W)
    xp = jnp.pad(xt, ((0, 0), (0, 0), (1, 1), (1, 1), (1, 1)))    # (C,N,Dp,Hp,Wp)
    xflat = xp.reshape(C, Mp)
    xin = jnp.pad(xflat, ((0, 0), (halo, in_w - halo - Mp)))
    xin = xin.astype(mxu_dtype)

    # conv taps: w_taps[kd*9 + kh*3 + kw][co, ci] = conv_w[co, ci, kd, kh, kw]
    w_taps = jnp.transpose(conv_w, (2, 3, 4, 0, 1)).reshape(27, C, C)
    w_taps = w_taps.astype(mxu_dtype)
    offs = [kd * Hp * Wp + kh * Wp + kw
            for kd in range(3) for kh in range(3) for kw in range(3)]

    # validity mask over output columns (interior voxels of the padded grid);
    # bf16 is exact for {0,1} and halves the mask's HBM stream.
    mask = jnp.pad(jnp.ones((N, D, H, W), jnp.float32),
                   ((0, 0), (1, 1), (1, 1), (1, 1))).reshape(1, Mp)
    mask = jnp.pad(mask, ((0, 0), (0, out_w - Mp))).astype(jnp.bfloat16)

    # ---- Pallas: fused conv (27 shifted matmuls) + partial BN stats ----
    hb_per_tn = TN // HB
    conv_out, s1, s2 = pl.pallas_call(
        functools.partial(conv_stats_kernel, offs=offs, tn=TN),
        out_shape=(jax.ShapeDtypeStruct((C, out_w), jnp.float32),
                   jax.ShapeDtypeStruct((nb, C, 1), jnp.float32),
                   jax.ShapeDtypeStruct((nb, C, 1), jnp.float32)),
        grid=(nb,),
        in_specs=[
            pl.BlockSpec((C, TN), lambda j: (0, j)),
            pl.BlockSpec((C, HB), lambda j: (0, (j + 1) * hb_per_tn)),
            pl.BlockSpec((27, C, C), lambda j: (0, 0, 0)),
            pl.BlockSpec((1, TN), lambda j: (0, j)),
        ],
        out_specs=(
            pl.BlockSpec((C, TN), lambda j: (0, j)),
            pl.BlockSpec((1, C, 1), lambda j: (j, 0, 0)),
            pl.BlockSpec((1, C, 1), lambda j: (j, 0, 0)),
        ),
        scratch_shapes=[pltpu.VMEM((C, TN + HB), mxu_dtype)],
        compiler_params=pltpu.CompilerParams(
            dimension_semantics=("parallel",)),
    )(xin, xin, w_taps, mask)

    # ---- tiny JAX finalize of BN batch statistics (biased var) ----
    count = float(N * D * H * W)
    mean = jnp.sum(s1, axis=0)[:, 0] / count                      # (C,)
    ex2 = jnp.sum(s2, axis=0)[:, 0] / count
    var = jnp.maximum(ex2 - mean * mean, 0.0)
    inv_std = jax.lax.rsqrt(var + eps)
    scale = (gamma * inv_std).astype(jnp.float32).reshape(C, 1)
    shift = (beta - mean * gamma * inv_std).astype(jnp.float32).reshape(C, 1)

    # ---- Pallas: fused BN + ELU, in place over conv_out ----
    out_pad = pl.pallas_call(
        bn_elu_kernel,
        out_shape=jax.ShapeDtypeStruct((C, out_w), jnp.float32),
        grid=(nb,),
        in_specs=[
            pl.BlockSpec((C, TN), lambda j: (0, j)),
            pl.BlockSpec((C, 1), lambda j: (0, 0)),   # constant block index ->
            pl.BlockSpec((C, 1), lambda j: (0, 0)),   # DMA'd only once
        ],
        out_specs=pl.BlockSpec((C, TN), lambda j: (0, j)),
        input_output_aliases={0: 0},
        compiler_params=pltpu.CompilerParams(
            dimension_semantics=("parallel",)),
    )(conv_out, scale, shift)

    # ---- glue: drop halo / garbage columns, back to NCDHW ----
    out = out_pad[:, :Mp].reshape(C, N, Dp, Hp, Wp)[:, :, 1:-1, 1:-1, 1:-1]
    return jnp.transpose(out, (1, 0, 2, 3, 4))


# ----------------------------- reference (for sanity) -----------------------

def luconv_reference(x_ncdhw, conv_w, conv_b, gamma, beta, eps=1e-5,
                     operand_dtype=jnp.float32):
    """Pure-JAX reference (keeps the conv bias to show training-mode BN
    cancels it)."""
    xq = x_ncdhw.astype(operand_dtype).astype(jnp.float32)
    wq = conv_w.astype(operand_dtype).astype(jnp.float32)
    conv = jax.lax.conv_general_dilated(
        xq, wq, window_strides=(1, 1, 1), padding="SAME",
        dimension_numbers=("NCDHW", "OIDHW", "NCDHW"),
        precision=jax.lax.Precision.HIGHEST)
    conv = conv + conv_b.reshape(1, -1, 1, 1, 1)
    mean = jnp.mean(conv, axis=(0, 2, 3, 4), keepdims=True)
    var = jnp.mean((conv - mean) ** 2, axis=(0, 2, 3, 4), keepdims=True)
    y = (conv - mean) * jax.lax.rsqrt(var + eps)
    y = y * gamma.reshape(1, -1, 1, 1, 1) + beta.reshape(1, -1, 1, 1, 1)
    return jnp.where(y > 0.0, y, jnp.expm1(y))


# ----------------------------- main -----------------------------------------

if __name__ == "__main__":
    nchan = 4
    N, D, H, W = 2, 8, 8, 8

    key = jax.random.PRNGKey(0)
    kx, kw, kb, kg, kbt = jax.random.split(key, 5)

    x = jax.random.normal(kx, (N, nchan, D, H, W), dtype=jnp.float32)
    conv_w = 0.1 * jax.random.normal(kw, (nchan, nchan, 3, 3, 3),
                                     dtype=jnp.float32)
    conv_b = 0.1 * jax.random.normal(kb, (nchan,), dtype=jnp.float32)
    gamma = 1.0 + 0.1 * jax.random.normal(kg, (nchan,), dtype=jnp.float32)
    beta = 0.1 * jax.random.normal(kbt, (nchan,), dtype=jnp.float32)

    out = jax.jit(luconv_forward)(x, conv_w, conv_b, gamma, beta)
    out = jax.block_until_ready(out)

    # Compare against a reference computed from the same bf16-rounded MXU
    # operands (the kernel accumulates in f32), so remaining differences are
    # accumulation-order / BN-algebra rounding only.
    ref = jax.block_until_ready(
        luconv_reference(x, conv_w, conv_b, gamma, beta,
                         operand_dtype=jnp.bfloat16))
    np.testing.assert_allclose(np.asarray(out), np.asarray(ref),
                               atol=1e-3, rtol=1e-3)

    print("KERNEL_OK")
</pallas_src>

<mosaic_0001>
module attributes {stable_mosaic.version = 11 : i64} {
  func.func @conv_stats_kernel(%arg0: i32, %arg1: memref<4x1024xbf16, #tpu.memory_space<vmem>>, %arg2: memref<4x256xbf16, #tpu.memory_space<vmem>>, %arg3: memref<27x4x4xbf16, #tpu.memory_space<vmem>>, %arg4: memref<1x1024xbf16, #tpu.memory_space<vmem>>, %arg5: memref<4x1024xf32, #tpu.memory_space<vmem>>, %arg6: memref<1x4x1xf32, #tpu.memory_space<vmem>>, %arg7: memref<1x4x1xf32, #tpu.memory_space<vmem>>, %arg8: memref<4x1280xbf16, #tpu.memory_space<vmem>>) attributes {dimension_semantics = [#tpu.dimension_semantics<parallel>], iteration_bounds = array<i64: 2>, scalar_prefetch = 0 : i64, scratch_operands = 1 : i64, tpu.core_type = #tpu.core_type<tc>, window_params = [{transform_indices = @transform_0, window_bounds = array<i64: 4, 1024>}, {transform_indices = @transform_1, window_bounds = array<i64: 4, 256>}, {pipeline_mode = #tpu.pipeline_mode<synchronous>, transform_indices = @transform_2, window_bounds = array<i64: 27, 4, 4>}, {transform_indices = @transform_3, window_bounds = array<i64: 1, 1024>}, {transform_indices = @transform_4, window_bounds = array<i64: 4, 1024>}, {transform_indices = @transform_5, window_bounds = array<i64: 1, 4, 1>}, {transform_indices = @transform_6, window_bounds = array<i64: 1, 4, 1>}]} {
    %c0 = arith.constant 0 : index
    %c0_0 = arith.constant 0 : index
    %0 = vector.load %arg1[%c0, %c0_0] : memref<4x1024xbf16, #tpu.memory_space<vmem>>, vector<4x1024xbf16>
    %c0_1 = arith.constant 0 : index
    %c0_2 = arith.constant 0 : index
    %1 = vector.load %arg8[%c0_1, %c0_2] : memref<4x1280xbf16, #tpu.memory_space<vmem>>, vector<4x1024xbf16>
    tpu.vector_store %arg8[%c0_1, %c0_2], %0 {strides = array<i32>} : memref<4x1280xbf16, #tpu.memory_space<vmem>>, vector<4x1024xbf16>,
    %c0_3 = arith.constant 0 : index
    %c0_4 = arith.constant 0 : index
    %2 = vector.load %arg2[%c0_3, %c0_4] : memref<4x256xbf16, #tpu.memory_space<vmem>>, vector<4x256xbf16>
    %c0_5 = arith.constant 0 : index
    %c1024 = arith.constant 1024 : index
    %3 = vector.load %arg8[%c0_5, %c1024] : memref<4x1280xbf16, #tpu.memory_space<vmem>>, vector<4x256xbf16>
    tpu.vector_store %arg8[%c0_5, %c1024], %2 {strides = array<i32>} : memref<4x1280xbf16, #tpu.memory_space<vmem>>, vector<4x256xbf16>,
    %cst = arith.constant 0.000000e+00 : f32
    %4 = vector.broadcast %cst : f32 to vector<4x1024xf32>
    %c0_6 = arith.constant 0 : index
    %c0_7 = arith.constant 0 : index
    %c0_8 = arith.constant 0 : index
    %5 = vector.load %arg3[%c0_6, %c0_7, %c0_8] : memref<27x4x4xbf16, #tpu.memory_space<vmem>>, vector<1x4x4xbf16>
    %6 = vector.shape_cast %5 : vector<1x4x4xbf16> to vector<4x4xbf16>
    %c0_9 = arith.constant 0 : index
    %c0_10 = arith.constant 0 : index
    %7 = vector.load %arg8[%c0_9, %c0_10] : memref<4x1280xbf16, #tpu.memory_space<vmem>>, vector<4x1024xbf16>
    %cst_11 = arith.constant dense<0.000000e+00> : vector<4x1024xf32>
    %8 = tpu.matmul %6, %7, %cst_11 {dimension_numbers = #tpu.dot_dimension_numbers<[1], [0], [0], [1], [0, 0, 1, 1], [], []>} : vector<4x4xbf16>, vector<4x1024xbf16>, vector<4x1024xf32> -> vector<4x1024xf32>
    %9 = arith.addf %4, %8 : vector<4x1024xf32>
    %c1 = arith.constant 1 : index
    %c0_12 = arith.constant 0 : index
    %c0_13 = arith.constant 0 : index
    %10 = vector.load %arg3[%c1, %c0_12, %c0_13] : memref<27x4x4xbf16, #tpu.memory_space<vmem>>, vector<1x4x4xbf16>
    %11 = vector.shape_cast %10 : vector<1x4x4xbf16> to vector<4x4xbf16>
    %c0_14 = arith.constant 0 : index
    %c1_15 = arith.constant 1 : index
    %12 = vector.load %arg8[%c0_14, %c1_15] : memref<4x1280xbf16, #tpu.memory_space<vmem>>, vector<4x1024xbf16>
    %cst_16 = arith.constant dense<0.000000e+00> : vector<4x1024xf32>
    %13 = tpu.matmul %11, %12, %cst_16 {dimension_numbers = #tpu.dot_dimension_numbers<[1], [0], [0], [1], [0, 0, 1, 1], [], []>} : vector<4x4xbf16>, vector<4x1024xbf16>, vector<4x1024xf32> -> vector<4x1024xf32>
    %14 = arith.addf %9, %13 : vector<4x1024xf32>
    %c2 = arith.constant 2 : index
    %c0_17 = arith.constant 0 : index
    %c0_18 = arith.constant 0 : index
    %15 = vector.load %arg3[%c2, %c0_17, %c0_18] : memref<27x4x4xbf16, #tpu.memory_space<vmem>>, vector<1x4x4xbf16>
    %16 = vector.shape_cast %15 : vector<1x4x4xbf16> to vector<4x4xbf16>
    %c0_19 = arith.constant 0 : index
    %c2_20 = arith.constant 2 : index
    %17 = vector.load %arg8[%c0_19, %c2_20] : memref<4x1280xbf16, #tpu.memory_space<vmem>>, vector<4x1024xbf16>
    %cst_21 = arith.constant dense<0.000000e+00> : vector<4x1024xf32>
    %18 = tpu.matmul %16, %17, %cst_21 {dimension_numbers = #tpu.dot_dimension_numbers<[1], [0], [0], [1], [0, 0, 1, 1], [], []>} : vector<4x4xbf16>, vector<4x1024xbf16>, vector<4x1024xf32> -> vector<4x1024xf32>
    %19 = arith.addf %14, %18 : vector<4x1024xf32>
    %c3 = arith.constant 3 : index
    %c0_22 = arith.constant 0 : index
    %c0_23 = arith.constant 0 : index
    %20 = vector.load %arg3[%c3, %c0_22, %c0_23] : memref<27x4x4xbf16, #tpu.memory_space<vmem>>, vector<1x4x4xbf16>
    %21 = vector.shape_cast %20 : vector<1x4x4xbf16> to vector<4x4xbf16>
    %c0_24 = arith.constant 0 : index
    %c10 = arith.constant 10 : index
    %22 = vector.load %arg8[%c0_24, %c10] : memref<4x1280xbf16, #tpu.memory_space<vmem>>, vector<4x1024xbf16>
    %cst_25 = arith.constant dense<0.000000e+00> : vector<4x1024xf32>
    %23 = tpu.matmul %21, %22, %cst_25 {dimension_numbers = #tpu.dot_dimension_numbers<[1], [0], [0], [1], [0, 0, 1, 1], [], []>} : vector<4x4xbf16>, vector<4x1024xbf16>, vector<4x1024xf32> -> vector<4x1024xf32>
    %24 = arith.addf %19, %23 : vector<4x1024xf32>
    %c4 = arith.constant 4 : index
    %c0_26 = arith.constant 0 : index
    %c0_27 = arith.constant 0 : index
    %25 = vector.load %arg3[%c4, %c0_26, %c0_27] : memref<27x4x4xbf16, #tpu.memory_space<vmem>>, vector<1x4x4xbf16>
    %26 = vector.shape_cast %25 : vector<1x4x4xbf16> to vector<4x4xbf16>
    %c0_28 = arith.constant 0 : index
    %c11 = arith.constant 11 : index
    %27 = vector.load %arg8[%c0_28, %c11] : memref<4x1280xbf16, #tpu.memory_space<vmem>>, vector<4x1024xbf16>
    %cst_29 = arith.constant dense<0.000000e+00> : vector<4x1024xf32>
    %28 = tpu.matmul %26, %27, %cst_29 {dimension_numbers = #tpu.dot_dimension_numbers<[1], [0], [0], [1], [0, 0, 1, 1], [], []>} : vector<4x4xbf16>, vector<4x1024xbf16>, vector<4x1024xf32> -> vector<4x1024xf32>
    %29 = arith.addf %24, %28 : vector<4x1024xf32>
    %c5 = arith.constant 5 : index
    %c0_30 = arith.constant 0 : index
    %c0_31 = arith.constant 0 : index
    %30 = vector.load %arg3[%c5, %c0_30, %c0_31] : memref<27x4x4xbf16, #tpu.memory_space<vmem>>, vector<1x4x4xbf16>
    %31 = vector.shape_cast %30 : vector<1x4x4xbf16> to vector<4x4xbf16>
    %c0_32 = arith.constant 0 : index
    %c12 = arith.constant 12 : index
    %32 = vector.load %arg8[%c0_32, %c12] : memref<4x1280xbf16, #tpu.memory_space<vmem>>, vector<4x1024xbf16>
    %cst_33 = arith.constant dense<0.000000e+00> : vector<4x1024xf32>
    %33 = tpu.matmul %31, %32, %cst_33 {dimension_numbers = #tpu.dot_dimension_numbers<[1], [0], [0], [1], [0, 0, 1, 1], [], []>} : vector<4x4xbf16>, vector<4x1024xbf16>, vector<4x1024xf32> -> vector<4x1024xf32>
    %34 = arith.addf %29, %33 : vector<4x1024xf32>
    %c6 = arith.constant 6 : index
    %c0_34 = arith.constant 0 : index
    %c0_35 = arith.constant 0 : index
    %35 = vector.load %arg3[%c6, %c0_34, %c0_35] : memref<27x4x4xbf16, #tpu.memory_space<vmem>>, vector<1x4x4xbf16>
    %36 = vector.shape_cast %35 : vector<1x4x4xbf16> to vector<4x4xbf16>
    %c0_36 = arith.constant 0 : index
    %c20 = arith.constant 20 : index
    %37 = vector.load %arg8[%c0_36, %c20] : memref<4x1280xbf16, #tpu.memory_space<vmem>>, vector<4x1024xbf16>
    %cst_37 = arith.constant dense<0.000000e+00> : vector<4x1024xf32>
    %38 = tpu.matmul %36, %37, %cst_37 {dimension_numbers = #tpu.dot_dimension_numbers<[1], [0], [0], [1], [0, 0, 1, 1], [], []>} : vector<4x4xbf16>, vector<4x1024xbf16>, vector<4x1024xf32> -> vector<4x1024xf32>
    %39 = arith.addf %34, %38 : vector<4x1024xf32>
    %c7 = arith.constant 7 : index
    %c0_38 = arith.constant 0 : index
    %c0_39 = arith.constant 0 : index
    %40 = vector.load %arg3[%c7, %c0_38, %c0_39] : memref<27x4x4xbf16, #tpu.memory_space<vmem>>, vector<1x4x4xbf16>
    %41 = vector.shape_cast %40 : vector<1x4x4xbf16> to vector<4x4xbf16>
    %c0_40 = arith.constant 0 : index
    %c21 = arith.constant 21 : index
    %42 = vector.load %arg8[%c0_40, %c21] : memref<4x1280xbf16, #tpu.memory_space<vmem>>, vector<4x1024xbf16>
    %cst_41 = arith.constant dense<0.000000e+00> : vector<4x1024xf32>
    %43 = tpu.matmul %41, %42, %cst_41 {dimension_numbers = #tpu.dot_dimension_numbers<[1], [0], [0], [1], [0, 0, 1, 1], [], []>} : vector<4x4xbf16>, vector<4x1024xbf16>, vector<4x1024xf32> -> vector<4x1024xf32>
    %44 = arith.addf %39, %43 : vector<4x1024xf32>
    %c8 = arith.constant 8 : index
    %c0_42 = arith.constant 0 : index
    %c0_43 = arith.constant 0 : index
    %45 = vector.load %arg3[%c8, %c0_42, %c0_43] : memref<27x4x4xbf16, #tpu.memory_space<vmem>>, vector<1x4x4xbf16>
    %46 = vector.shape_cast %45 : vector<1x4x4xbf16> to vector<4x4xbf16>
    %c0_44 = arith.constant 0 : index
    %c22 = arith.constant 22 : index
    %47 = vector.load %arg8[%c0_44, %c22] : memref<4x1280xbf16, #tpu.memory_space<vmem>>, vector<4x1024xbf16>
    %cst_45 = arith.constant dense<0.000000e+00> : vector<4x1024xf32>
    %48 = tpu.matmul %46, %47, %cst_45 {dimension_numbers = #tpu.dot_dimension_numbers<[1], [0], [0], [1], [0, 0, 1, 1], [], []>} : vector<4x4xbf16>, vector<4x1024xbf16>, vector<4x1024xf32> -> vector<4x1024xf32>
    %49 = arith.addf %44, %48 : vector<4x1024xf32>
    %c9 = arith.constant 9 : index
    %c0_46 = arith.constant 0 : index
    %c0_47 = arith.constant 0 : index
    %50 = vector.load %arg3[%c9, %c0_46, %c0_47] : memref<27x4x4xbf16, #tpu.memory_space<vmem>>, vector<1x4x4xbf16>
    %51 = vector.shape_cast %50 : vector<1x4x4xbf16> to vector<4x4xbf16>
    %c0_48 = arith.constant 0 : index
    %c100 = arith.constant 100 : index
    %52 = vector.load %arg8[%c0_48, %c100] : memref<4x1280xbf16, #tpu.memory_space<vmem>>, vector<4x1024xbf16>
    %cst_49 = arith.constant dense<0.000000e+00> : vector<4x1024xf32>
    %53 = tpu.matmul %51, %52, %cst_49 {dimension_numbers = #tpu.dot_dimension_numbers<[1], [0], [0], [1], [0, 0, 1, 1], [], []>} : vector<4x4xbf16>, vector<4x1024xbf16>, vector<4x1024xf32> -> vector<4x1024xf32>
    %54 = arith.addf %49, %53 : vector<4x1024xf32>
    %c10_50 = arith.constant 10 : index
    %c0_51 = arith.constant 0 : index
    %c0_52 = arith.constant 0 : index
    %55 = vector.load %arg3[%c10_50, %c0_51, %c0_52] : memref<27x4x4xbf16, #tpu.memory_space<vmem>>, vector<1x4x4xbf16>
    %56 = vector.shape_cast %55 : vector<1x4x4xbf16> to vector<4x4xbf16>
    %c0_53 = arith.constant 0 : index
    %c101 = arith.constant 101 : index
    %57 = vector.load %arg8[%c0_53, %c101] : memref<4x1280xbf16, #tpu.memory_space<vmem>>, vector<4x1024xbf16>
    %cst_54 = arith.constant dense<0.000000e+00> : vector<4x1024xf32>
    %58 = tpu.matmul %56, %57, %cst_54 {dimension_numbers = #tpu.dot_dimension_numbers<[1], [0], [0], [1], [0, 0, 1, 1], [], []>} : vector<4x4xbf16>, vector<4x1024xbf16>, vector<4x1024xf32> -> vector<4x1024xf32>
    %59 = arith.addf %54, %58 : vector<4x1024xf32>
    %c11_55 = arith.constant 11 : index
    %c0_56 = arith.constant 0 : index
    %c0_57 = arith.constant 0 : index
    %60 = vector.load %arg3[%c11_55, %c0_56, %c0_57] : memref<27x4x4xbf16, #tpu.memory_space<vmem>>, vector<1x4x4xbf16>
    %61 = vector.shape_cast %60 : vector<1x4x4xbf16> to vector<4x4xbf16>
    %c0_58 = arith.constant 0 : index
    %c102 = arith.constant 102 : index
    %62 = vector.load %arg8[%c0_58, %c102] : memref<4x1280xbf16, #tpu.memory_space<vmem>>, vector<4x1024xbf16>
    %cst_59 = arith.constant dense<0.000000e+00> : vector<4x1024xf32>
    %63 = tpu.matmul %61, %62, %cst_59 {dimension_numbers = #tpu.dot_dimension_numbers<[1], [0], [0], [1], [0, 0, 1, 1], [], []>} : vector<4x4xbf16>, vector<4x1024xbf16>, vector<4x1024xf32> -> vector<4x1024xf32>
    %64 = arith.addf %59, %63 : vector<4x1024xf32>
    %c12_60 = arith.constant 12 : index
    %c0_61 = arith.constant 0 : index
    %c0_62 = arith.constant 0 : index
    %65 = vector.load %arg3[%c12_60, %c0_61, %c0_62] : memref<27x4x4xbf16, #tpu.memory_space<vmem>>, vector<1x4x4xbf16>
    %66 = vector.shape_cast %65 : vector<1x4x4xbf16> to vector<4x4xbf16>
    %c0_63 = arith.constant 0 : index
    %c110 = arith.constant 110 : index
    %67 = vector.load %arg8[%c0_63, %c110] : memref<4x1280xbf16, #tpu.memory_space<vmem>>, vector<4x1024xbf16>
    %cst_64 = arith.constant dense<0.000000e+00> : vector<4x1024xf32>
    %68 = tpu.matmul %66, %67, %cst_64 {dimension_numbers = #tpu.dot_dimension_numbers<[1], [0], [0], [1], [0, 0, 1, 1], [], []>} : vector<4x4xbf16>, vector<4x1024xbf16>, vector<4x1024xf32> -> vector<4x1024xf32>
    %69 = arith.addf %64, %68 : vector<4x1024xf32>
    %c13 = arith.constant 13 : index
    %c0_65 = arith.constant 0 : index
    %c0_66 = arith.constant 0 : index
    %70 = vector.load %arg3[%c13, %c0_65, %c0_66] : memref<27x4x4xbf16, #tpu.memory_space<vmem>>, vector<1x4x4xbf16>
    %71 = vector.shape_cast %70 : vector<1x4x4xbf16> to vector<4x4xbf16>
    %c0_67 = arith.constant 0 : index
    %c111 = arith.constant 111 : index
    %72 = vector.load %arg8[%c0_67, %c111] : memref<4x1280xbf16, #tpu.memory_space<vmem>>, vector<4x1024xbf16>
    %cst_68 = arith.constant dense<0.000000e+00> : vector<4x1024xf32>
    %73 = tpu.matmul %71, %72, %cst_68 {dimension_numbers = #tpu.dot_dimension_numbers<[1], [0], [0], [1], [0, 0, 1, 1], [], []>} : vector<4x4xbf16>, vector<4x1024xbf16>, vector<4x1024xf32> -> vector<4x1024xf32>
    %74 = arith.addf %69, %73 : vector<4x1024xf32>
    %c14 = arith.constant 14 : index
    %c0_69 = arith.constant 0 : index
    %c0_70 = arith.constant 0 : index
    %75 = vector.load %arg3[%c14, %c0_69, %c0_70] : memref<27x4x4xbf16, #tpu.memory_space<vmem>>, vector<1x4x4xbf16>
    %76 = vector.shape_cast %75 : vector<1x4x4xbf16> to vector<4x4xbf16>
    %c0_71 = arith.constant 0 : index
    %c112 = arith.constant 112 : index
    %77 = vector.load %arg8[%c0_71, %c112] : memref<4x1280xbf16, #tpu.memory_space<vmem>>, vector<4x1024xbf16>
    %cst_72 = arith.constant dense<0.000000e+00> : vector<4x1024xf32>
    %78 = tpu.matmul %76, %77, %cst_72 {dimension_numbers = #tpu.dot_dimension_numbers<[1], [0], [0], [1], [0, 0, 1, 1], [], []>} : vector<4x4xbf16>, vector<4x1024xbf16>, vector<4x1024xf32> -> vector<4x1024xf32>
    %79 = arith.addf %74, %78 : vector<4x1024xf32>
    %c15 = arith.constant 15 : index
    %c0_73 = arith.constant 0 : index
    %c0_74 = arith.constant 0 : index
    %80 = vector.load %arg3[%c15, %c0_73, %c0_74] : memref<27x4x4xbf16, #tpu.memory_space<vmem>>, vector<1x4x4xbf16>
    %81 = vector.shape_cast %80 : vector<1x4x4xbf16> to vector<4x4xbf16>
    %c0_75 = arith.constant 0 : index
    %c120 = arith.constant 120 : index
    %82 = vector.load %arg8[%c0_75, %c120] : memref<4x1280xbf16, #tpu.memory_space<vmem>>, vector<4x1024xbf16>
    %cst_76 = arith.constant dense<0.000000e+00> : vector<4x1024xf32>
    %83 = tpu.matmul %81, %82, %cst_76 {dimension_numbers = #tpu.dot_dimension_numbers<[1], [0], [0], [1], [0, 0, 1, 1], [], []>} : vector<4x4xbf16>, vector<4x1024xbf16>, vector<4x1024xf32> -> vector<4x1024xf32>
    %84 = arith.addf %79, %83 : vector<4x1024xf32>
    %c16 = arith.constant 16 : index
    %c0_77 = arith.constant 0 : index
    %c0_78 = arith.constant 0 : index
    %85 = vector.load %arg3[%c16, %c0_77, %c0_78] : memref<27x4x4xbf16, #tpu.memory_space<vmem>>, vector<1x4x4xbf16>
    %86 = vector.shape_cast %85 : vector<1x4x4xbf16> to vector<4x4xbf16>
    %c0_79 = arith.constant 0 : index
    %c121 = arith.constant 121 : index
    %87 = vector.load %arg8[%c0_79, %c121] : memref<4x1280xbf16, #tpu.memory_space<vmem>>, vector<4x1024xbf16>
    %cst_80 = arith.constant dense<0.000000e+00> : vector<4x1024xf32>
    %88 = tpu.matmul %86, %87, %cst_80 {dimension_numbers = #tpu.dot_dimension_numbers<[1], [0], [0], [1], [0, 0, 1, 1], [], []>} : vector<4x4xbf16>, vector<4x1024xbf16>, vector<4x1024xf32> -> vector<4x1024xf32>
    %89 = arith.addf %84, %88 : vector<4x1024xf32>
    %c17 = arith.constant 17 : index
    %c0_81 = arith.constant 0 : index
    %c0_82 = arith.constant 0 : index
    %90 = vector.load %arg3[%c17, %c0_81, %c0_82] : memref<27x4x4xbf16, #tpu.memory_space<vmem>>, vector<1x4x4xbf16>
    %91 = vector.shape_cast %90 : vector<1x4x4xbf16> to vector<4x4xbf16>
    %c0_83 = arith.constant 0 : index
    %c122 = arith.constant 122 : index
    %92 = vector.load %arg8[%c0_83, %c122] : memref<4x1280xbf16, #tpu.memory_space<vmem>>, vector<4x1024xbf16>
    %cst_84 = arith.constant dense<0.000000e+00> : vector<4x1024xf32>
    %93 = tpu.matmul %91, %92, %cst_84 {dimension_numbers = #tpu.dot_dimension_numbers<[1], [0], [0], [1], [0, 0, 1, 1], [], []>} : vector<4x4xbf16>, vector<4x1024xbf16>, vector<4x1024xf32> -> vector<4x1024xf32>
    %94 = arith.addf %89, %93 : vector<4x1024xf32>
    %c18 = arith.constant 18 : index
    %c0_85 = arith.constant 0 : index
    %c0_86 = arith.constant 0 : index
    %95 = vector.load %arg3[%c18, %c0_85, %c0_86] : memref<27x4x4xbf16, #tpu.memory_space<vmem>>, vector<1x4x4xbf16>
    %96 = vector.shape_cast %95 : vector<1x4x4xbf16> to vector<4x4xbf16>
    %c0_87 = arith.constant 0 : index
    %c200 = arith.constant 200 : index
    %97 = vector.load %arg8[%c0_87, %c200] : memref<4x1280xbf16, #tpu.memory_space<vmem>>, vector<4x1024xbf16>
    %cst_88 = arith.constant dense<0.000000e+00> : vector<4x1024xf32>
    %98 = tpu.matmul %96, %97, %cst_88 {dimension_numbers = #tpu.dot_dimension_numbers<[1], [0], [0], [1], [0, 0, 1, 1], [], []>} : vector<4x4xbf16>, vector<4x1024xbf16>, vector<4x1024xf32> -> vector<4x1024xf32>
    %99 = arith.addf %94, %98 : vector<4x1024xf32>
    %c19 = arith.constant 19 : index
    %c0_89 = arith.constant 0 : index
    %c0_90 = arith.constant 0 : index
    %100 = vector.load %arg3[%c19, %c0_89, %c0_90] : memref<27x4x4xbf16, #tpu.memory_space<vmem>>, vector<1x4x4xbf16>
    %101 = vector.shape_cast %100 : vector<1x4x4xbf16> to vector<4x4xbf16>
    %c0_91 = arith.constant 0 : index
    %c201 = arith.constant 201 : index
    %102 = vector.load %arg8[%c0_91, %c201] : memref<4x1280xbf16, #tpu.memory_space<vmem>>, vector<4x1024xbf16>
    %cst_92 = arith.constant dense<0.000000e+00> : vector<4x1024xf32>
    %103 = tpu.matmul %101, %102, %cst_92 {dimension_numbers = #tpu.dot_dimension_numbers<[1], [0], [0], [1], [0, 0, 1, 1], [], []>} : vector<4x4xbf16>, vector<4x1024xbf16>, vector<4x1024xf32> -> vector<4x1024xf32>
    %104 = arith.addf %99, %103 : vector<4x1024xf32>
    %c20_93 = arith.constant 20 : index
    %c0_94 = arith.constant 0 : index
    %c0_95 = arith.constant 0 : index
    %105 = vector.load %arg3[%c20_93, %c0_94, %c0_95] : memref<27x4x4xbf16, #tpu.memory_space<vmem>>, vector<1x4x4xbf16>
    %106 = vector.shape_cast %105 : vector<1x4x4xbf16> to vector<4x4xbf16>
    %c0_96 = arith.constant 0 : index
    %c202 = arith.constant 202 : index
    %107 = vector.load %arg8[%c0_96, %c202] : memref<4x1280xbf16, #tpu.memory_space<vmem>>, vector<4x1024xbf16>
    %cst_97 = arith.constant dense<0.000000e+00> : vector<4x1024xf32>
    %108 = tpu.matmul %106, %107, %cst_97 {dimension_numbers = #tpu.dot_dimension_numbers<[1], [0], [0], [1], [0, 0, 1, 1], [], []>} : vector<4x4xbf16>, vector<4x1024xbf16>, vector<4x1024xf32> -> vector<4x1024xf32>
    %109 = arith.addf %104, %108 : vector<4x1024xf32>
    %c21_98 = arith.constant 21 : index
    %c0_99 = arith.constant 0 : index
    %c0_100 = arith.constant 0 : index
    %110 = vector.load %arg3[%c21_98, %c0_99, %c0_100] : memref<27x4x4xbf16, #tpu.memory_space<vmem>>, vector<1x4x4xbf16>
    %111 = vector.shape_cast %110 : vector<1x4x4xbf16> to vector<4x4xbf16>
    %c0_101 = arith.constant 0 : index
    %c210 = arith.constant 210 : index
    %112 = vector.load %arg8[%c0_101, %c210] : memref<4x1280xbf16, #tpu.memory_space<vmem>>, vector<4x1024xbf16>
    %cst_102 = arith.constant dense<0.000000e+00> : vector<4x1024xf32>
    %113 = tpu.matmul %111, %112, %cst_102 {dimension_numbers = #tpu.dot_dimension_numbers<[1], [0], [0], [1], [0, 0, 1, 1], [], []>} : vector<4x4xbf16>, vector<4x1024xbf16>, vector<4x1024xf32> -> vector<4x1024xf32>
    %114 = arith.addf %109, %113 : vector<4x1024xf32>
    %c22_103 = arith.constant 22 : index
    %c0_104 = arith.constant 0 : index
    %c0_105 = arith.constant 0 : index
    %115 = vector.load %arg3[%c22_103, %c0_104, %c0_105] : memref<27x4x4xbf16, #tpu.memory_space<vmem>>, vector<1x4x4xbf16>
    %116 = vector.shape_cast %115 : vector<1x4x4xbf16> to vector<4x4xbf16>
    %c0_106 = arith.constant 0 : index
    %c211 = arith.constant 211 : index
    %117 = vector.load %arg8[%c0_106, %c211] : memref<4x1280xbf16, #tpu.memory_space<vmem>>, vector<4x1024xbf16>
    %cst_107 = arith.constant dense<0.000000e+00> : vector<4x1024xf32>
    %118 = tpu.matmul %116, %117, %cst_107 {dimension_numbers = #tpu.dot_dimension_numbers<[1], [0], [0], [1], [0, 0, 1, 1], [], []>} : vector<4x4xbf16>, vector<4x1024xbf16>, vector<4x1024xf32> -> vector<4x1024xf32>
    %119 = arith.addf %114, %118 : vector<4x1024xf32>
    %c23 = arith.constant 23 : index
    %c0_108 = arith.constant 0 : index
    %c0_109 = arith.constant 0 : index
    %120 = vector.load %arg3[%c23, %c0_108, %c0_109] : memref<27x4x4xbf16, #tpu.memory_space<vmem>>, vector<1x4x4xbf16>
    %121 = vector.shape_cast %120 : vector<1x4x4xbf16> to vector<4x4xbf16>
    %c0_110 = arith.constant 0 : index
    %c212 = arith.constant 212 : index
    %122 = vector.load %arg8[%c0_110, %c212] : memref<4x1280xbf16, #tpu.memory_space<vmem>>, vector<4x1024xbf16>
    %cst_111 = arith.constant dense<0.000000e+00> : vector<4x1024xf32>
    %123 = tpu.matmul %121, %122, %cst_111 {dimension_numbers = #tpu.dot_dimension_numbers<[1], [0], [0], [1], [0, 0, 1, 1], [], []>} : vector<4x4xbf16>, vector<4x1024xbf16>, vector<4x1024xf32> -> vector<4x1024xf32>
    %124 = arith.addf %119, %123 : vector<4x1024xf32>
    %c24 = arith.constant 24 : index
    %c0_112 = arith.constant 0 : index
    %c0_113 = arith.constant 0 : index
    %125 = vector.load %arg3[%c24, %c0_112, %c0_113] : memref<27x4x4xbf16, #tpu.memory_space<vmem>>, vector<1x4x4xbf16>
    %126 = vector.shape_cast %125 : vector<1x4x4xbf16> to vector<4x4xbf16>
    %c0_114 = arith.constant 0 : index
    %c220 = arith.constant 220 : index
    %127 = vector.load %arg8[%c0_114, %c220] : memref<4x1280xbf16, #tpu.memory_space<vmem>>, vector<4x1024xbf16>
    %cst_115 = arith.constant dense<0.000000e+00> : vector<4x1024xf32>
    %128 = tpu.matmul %126, %127, %cst_115 {dimension_numbers = #tpu.dot_dimension_numbers<[1], [0], [0], [1], [0, 0, 1, 1], [], []>} : vector<4x4xbf16>, vector<4x1024xbf16>, vector<4x1024xf32> -> vector<4x1024xf32>
    %129 = arith.addf %124, %128 : vector<4x1024xf32>
    %c25 = arith.constant 25 : index
    %c0_116 = arith.constant 0 : index
    %c0_117 = arith.constant 0 : index
    %130 = vector.load %arg3[%c25, %c0_116, %c0_117] : memref<27x4x4xbf16, #tpu.memory_space<vmem>>, vector<1x4x4xbf16>
    %131 = vector.shape_cast %130 : vector<1x4x4xbf16> to vector<4x4xbf16>
    %c0_118 = arith.constant 0 : index
    %c221 = arith.constant 221 : index
    %132 = vector.load %arg8[%c0_118, %c221] : memref<4x1280xbf16, #tpu.memory_space<vmem>>, vector<4x1024xbf16>
    %cst_119 = arith.constant dense<0.000000e+00> : vector<4x1024xf32>
    %133 = tpu.matmul %131, %132, %cst_119 {dimension_numbers = #tpu.dot_dimension_numbers<[1], [0], [0], [1], [0, 0, 1, 1], [], []>} : vector<4x4xbf16>, vector<4x1024xbf16>, vector<4x1024xf32> -> vector<4x1024xf32>
    %134 = arith.addf %129, %133 : vector<4x1024xf32>
    %c26 = arith.constant 26 : index
    %c0_120 = arith.constant 0 : index
    %c0_121 = arith.constant 0 : index
    %135 = vector.load %arg3[%c26, %c0_120, %c0_121] : memref<27x4x4xbf16, #tpu.memory_space<vmem>>, vector<1x4x4xbf16>
    %136 = vector.shape_cast %135 : vector<1x4x4xbf16> to vector<4x4xbf16>
    %c0_122 = arith.constant 0 : index
    %c222 = arith.constant 222 : index
    %137 = vector.load %arg8[%c0_122, %c222] : memref<4x1280xbf16, #tpu.memory_space<vmem>>, vector<4x1024xbf16>
    %cst_123 = arith.constant dense<0.000000e+00> : vector<4x1024xf32>
    %138 = tpu.matmul %136, %137, %cst_123 {dimension_numbers = #tpu.dot_dimension_numbers<[1], [0], [0], [1], [0, 0, 1, 1], [], []>} : vector<4x4xbf16>, vector<4x1024xbf16>, vector<4x1024xf32> -> vector<4x1024xf32>
    %139 = arith.addf %134, %138 : vector<4x1024xf32>
    %c0_124 = arith.constant 0 : index
    %c0_125 = arith.constant 0 : index
    %140 = vector.load %arg5[%c0_124, %c0_125] : memref<4x1024xf32, #tpu.memory_space<vmem>>, vector<4x1024xf32>
    tpu.vector_store %arg5[%c0_124, %c0_125], %139 {strides = array<i32>} : memref<4x1024xf32, #tpu.memory_space<vmem>>, vector<4x1024xf32>,
    %c0_126 = arith.constant 0 : index
    %c0_127 = arith.constant 0 : index
    %141 = vector.load %arg4[%c0_126, %c0_127] : memref<1x1024xbf16, #tpu.memory_space<vmem>>, vector<1x1024xbf16>
    %142 = arith.extf %141 : vector<1x1024xbf16> to vector<1x1024xf32>
    %143 = vector.broadcast %142 : vector<1x1024xf32> to vector<4x1024xf32>
    %144 = arith.mulf %139, %143 : vector<4x1024xf32>
    %cst_128 = arith.constant dense<0.000000e+00> : vector<4xf32>
    %145 = vector.multi_reduction <add>, %144, %cst_128 [1] : vector<4x1024xf32> to vector<4xf32>
    %146 = vector.shape_cast %145 : vector<4xf32> to vector<4x1xf32>
    %c0_129 = arith.constant 0 : index
    %c0_130 = arith.constant 0 : index
    %c0_131 = arith.constant 0 : index
    %147 = vector.load %arg6[%c0_129, %c0_130, %c0_131] : memref<1x4x1xf32, #tpu.memory_space<vmem>>, vector<1x4x1xf32>
    %148 = vector.shape_cast %147 : vector<1x4x1xf32> to vector<4x1xf32>
    %149 = vector.shape_cast %146 : vector<4x1xf32> to vector<1x4x1xf32>
    tpu.vector_store %arg6[%c0_129, %c0_130, %c0_131], %149 {strides = array<i32>} : memref<1x4x1xf32, #tpu.memory_space<vmem>>, vector<1x4x1xf32>,
    %150 = arith.mulf %144, %139 : vector<4x1024xf32>
    %cst_132 = arith.constant dense<0.000000e+00> : vector<4xf32>
    %151 = vector.multi_reduction <add>, %150, %cst_132 [1] : vector<4x1024xf32> to vector<4xf32>
    %152 = vector.shape_cast %151 : vector<4xf32> to vector<4x1xf32>
    %c0_133 = arith.constant 0 : index
    %c0_134 = arith.constant 0 : index
    %c0_135 = arith.constant 0 : index
    %153 = vector.load %arg7[%c0_133, %c0_134, %c0_135] : memref<1x4x1xf32, #tpu.memory_space<vmem>>, vector<1x4x1xf32>
    %154 = vector.shape_cast %153 : vector<1x4x1xf32> to vector<4x1xf32>
    %155 = vector.shape_cast %152 : vector<4x1xf32> to vector<1x4x1xf32>
    tpu.vector_store %arg7[%c0_133, %c0_134, %c0_135], %155 {strides = array<i32>} : memref<1x4x1xf32, #tpu.memory_space<vmem>>, vector<1x4x1xf32>,
    return
  }
  func.func @transform_0(%arg0: i32) -> (i32, i32) {
    %c0_i32 = arith.constant 0 : i32
    %c0_i32_0 = arith.constant 0 : i32
    return %c0_i32, %arg0 : i32, i32
  }
  func.func @transform_1(%arg0: i32) -> (i32, i32) {
    %c1_i32 = arith.constant 1 : i32
    %0 = arith.addi %arg0, %c1_i32 : i32
    %c4_i32 = arith.constant 4 : i32
    %1 = arith.muli %0, %c4_i32 : i32
    %c0_i32 = arith.constant 0 : i32
    %c0_i32_0 = arith.constant 0 : i32
    return %c0_i32, %1 : i32, i32
  }
  func.func @transform_2(%arg0: i32) -> (i32, i32, i32) {
    %c0_i32 = arith.constant 0 : i32
    %c0_i32_0 = arith.constant 0 : i32
    %c0_i32_1 = arith.constant 0 : i32
    %c0_i32_2 = arith.constant 0 : i32
    return %c0_i32, %c0_i32_0, %c0_i32_1 : i32, i32, i32
  }
  func.func @transform_3(%arg0: i32) -> (i32, i32) {
    %c0_i32 = arith.constant 0 : i32
    %c0_i32_0 = arith.constant 0 : i32
    return %c0_i32, %arg0 : i32, i32
  }
  func.func @transform_4(%arg0: i32) -> (i32, i32) {
    %c0_i32 = arith.constant 0 : i32
    %c0_i32_0 = arith.constant 0 : i32
    return %c0_i32, %arg0 : i32, i32
  }
  func.func @transform_5(%arg0: i32) -> (i32, i32, i32) {
    %c0_i32 = arith.constant 0 : i32
    %c0_i32_0 = arith.constant 0 : i32
    %c0_i32_1 = arith.constant 0 : i32
    return %arg0, %c0_i32, %c0_i32_0 : i32, i32, i32
  }
  func.func @transform_6(%arg0: i32) -> (i32, i32, i32) {
    %c0_i32 = arith.constant 0 : i32
    %c0_i32_0 = arith.constant 0 : i32
    %c0_i32_1 = arith.constant 0 : i32
    return %arg0, %c0_i32, %c0_i32_0 : i32, i32, i32
  }
}

module attributes {stable_mosaic.version = 11 : i64} {
  func.func @bn_elu_kernel(%arg0: i32, %arg1: memref<4x1024xf32, #tpu.memory_space<vmem>>, %arg2: memref<4x1xf32, #tpu.memory_space<vmem>>, %arg3: memref<4x1xf32, #tpu.memory_space<vmem>>, %arg4: memref<4x1024xf32, #tpu.memory_space<vmem>>) attributes {dimension_semantics = [#tpu.dimension_semantics<parallel>], iteration_bounds = array<i64: 2>, scalar_prefetch = 0 : i64, scratch_operands = 0 : i64, tpu.core_type = #tpu.core_type<tc>, window_params = [{transform_indices = @transform_0, window_bounds = array<i64: 4, 1024>}, {pipeline_mode = #tpu.pipeline_mode<synchronous>, transform_indices = @transform_1, window_bounds = array<i64: 4, 1>}, {pipeline_mode = #tpu.pipeline_mode<synchronous>, transform_indices = @transform_2, window_bounds = array<i64: 4, 1>}, {transform_indices = @transform_3, window_bounds = array<i64: 4, 1024>}]} {
    %c0 = arith.constant 0 : index
    %c0_0 = arith.constant 0 : index
    %0 = vector.load %arg1[%c0, %c0_0] : memref<4x1024xf32, #tpu.memory_space<vmem>>, vector<4x1024xf32>
    %c0_1 = arith.constant 0 : index
    %c0_2 = arith.constant 0 : index
    %1 = vector.load %arg2[%c0_1, %c0_2] : memref<4x1xf32, #tpu.memory_space<vmem>>, vector<4x1xf32>
    %2 = vector.broadcast %1 : vector<4x1xf32> to vector<4x1024xf32>
    %3 = arith.mulf %0, %2 : vector<4x1024xf32>
    %c0_3 = arith.constant 0 : index
    %c0_4 = arith.constant 0 : index
    %4 = vector.load %arg3[%c0_3, %c0_4] : memref<4x1xf32, #tpu.memory_space<vmem>>, vector<4x1xf32>
    %5 = vector.broadcast %4 : vector<4x1xf32> to vector<4x1024xf32>
    %6 = arith.addf %3, %5 : vector<4x1024xf32>
    %cst = arith.constant 0.000000e+00 : f32
    %7 = vector.broadcast %cst : f32 to vector<4x1024xf32>
    %8 = arith.cmpf ogt, %6, %7 : vector<4x1024xf32>
    %cst_5 = arith.constant 0.000000e+00 : f32
    %9 = vector.broadcast %cst_5 : f32 to vector<4x1024xf32>
    %10 = arith.minimumf %6, %9 : vector<4x1024xf32>
    %11 = math.exp %10 : vector<4x1024xf32>
    %cst_6 = arith.constant 1.000000e+00 : f32
    %12 = vector.broadcast %cst_6 : f32 to vector<4x1024xf32>
    %13 = arith.subf %11, %12 : vector<4x1024xf32>
    %14 = arith.select %8, %6, %13 : vector<4x1024xi1>, vector<4x1024xf32>
    %c0_7 = arith.constant 0 : index
    %c0_8 = arith.constant 0 : index
    %15 = vector.load %arg4[%c0_7, %c0_8] : memref<4x1024xf32, #tpu.memory_space<vmem>>, vector<4x1024xf32>
    tpu.vector_store %arg4[%c0_7, %c0_8], %14 {strides = array<i32>} : memref<4x1024xf32, #tpu.memory_space<vmem>>, vector<4x1024xf32>,
    return
  }
  func.func @transform_0(%arg0: i32) -> (i32, i32) {
    %c0_i32 = arith.constant 0 : i32
    %c0_i32_0 = arith.constant 0 : i32
    return %c0_i32, %arg0 : i32, i32
  }
  func.func @transform_1(%arg0: i32) -> (i32, i32) {
    %c0_i32 = arith.constant 0 : i32
    %c0_i32_0 = arith.constant 0 : i32
    %c0_i32_1 = arith.constant 0 : i32
    return %c0_i32, %c0_i32_0 : i32, i32
  }
  func.func @transform_2(%arg0: i32) -> (i32, i32) {
    %c0_i32 = arith.constant 0 : i32
    %c0_i32_0 = arith.constant 0 : i32
    %c0_i32_1 = arith.constant 0 : i32
    return %c0_i32, %c0_i32_0 : i32, i32
  }
  func.func @transform_3(%arg0: i32) -> (i32, i32) {
    %c0_i32 = arith.constant 0 : i32
    %c0_i32_0 = arith.constant 0 : i32
    return %c0_i32, %arg0 : i32, i32
  }
}

</mosaic_0001>

<llo_original>
// kernel: luconv_forward.3
$region0: #{luconv_forward.3}
  #allocation0 [shape = 'u32[]', space=smem, size = 0x4, offset = 0x4, fixed_abs, tag = 'smem constant byte address 0x4 - core index']
  #allocation1 [shape = 'u32[144,128]{1,0:T(1,128)}', space=vmem, size = 0x12000, scoped, tag = 'internal scratch']
  %s0 = inlined_call_operand.vmem [shape: f32[4,2048], index: 0, kind: input, shape index: {}, may-alias: {0,3}]
  %s1 = inlined_call_operand.vmem [shape: f32[4,1], index: 1, kind: input, shape index: {}]
  %s2 = inlined_call_operand.vmem [shape: f32[4,1], index: 2, kind: input, shape index: {}]
  %s3 = inlined_call_operand.vmem [shape: f32[4,2048], index: 3, kind: output, shape index: {}, may-alias: {0,3}]
  %s4 = sld [smem:[#allocation0]]
  $region45: #{luconv_forward.3} parent=0
    _
  %s6 = ssub.s32 1, %s4
  %s7 = scalar_select 0, %s6, %s4
  loop: start=0, step=1, limit=4
  $region2: #{luconv_forward.3} parent=0 // loop_pre_header
    _
  $region3: #{luconv_forward.3} parent=0 // loop_header
    %s9 = sphi 0, %s13
    %p10 = scmp.ge.s32.totalorder %s9, 4
    %s19 = sphi 0, %s21
    %s22 = sphi 0, %s19
    %s23 = sphi 0, %s22
    %s39 = sphi 0, %s23
    %s43 = sphi 0, %s43
    %s45 = sphi 0, %s43
    %s46 = sphi 0, %s45
    %s60 = sphi 0, %s46
    %s64 = sphi 0, %s64
    %s66 = sphi 0, %s64
    %s67 = sphi 0, %s66
    %s81 = sphi 0, %s67
    %s87 = sphi 0, %s89
    %s90 = sphi 0, %s87
    %s91 = sphi 0, %s90
    %s107 = sphi 0, %s91
  $region4: #{luconv_forward.3} parent=0 // loop_header_branch
    %12 = sbr.rel (%p10) target = $region8
  $region5: #{luconv_forward.3} parent=0 // loop_body
    %s14 = ssub.s32 %s9, 1
    %s15 = ssub.s32 %s9, 2
    %s16 = sadd.s32 %s9, 1
    %s17 = ssub.s32 %s9, %s16
    %p18 = scmp.eq.s32.totalorder %s17, 0
    %s20 = sadd.s32 %s19, 1
    %s21 = scalar_select %p18, %s19, %s20
    %p24 = pneg %p18
    %p25 = scmp.eq.s32.totalorder %s9, 1
    %p26 = por %p24, %p25
    %p27 = scmp.ne.s32.totalorder %s19, %s22
    %p28 = scmp.eq.s32.totalorder %s9, 0
    %p29 = por %p27, %p28
    %p30 = scmp.ne.s32.totalorder %s19, %s22
    %p31 = scmp.eq.s32.totalorder %s14, 1
    %p32 = por %p30, %p31
    %p33 = scmp.ne.s32.totalorder %s22, %s23
    %p34 = scmp.eq.s32.totalorder %s14, 0
    %p35 = por %p33, %p34
    %p36 = scmp.ne.s32.totalorder %s22, %s23
    %p37 = scmp.eq.s32.totalorder %s15, 1
    %p38 = por %p36, %p37
    %p40 = scmp.ne.s32.totalorder %s23, %s39
    %p41 = scmp.eq.s32.totalorder %s15, 0
    %p42 = por %p40, %p41
    %s44 = sadd.s32 %s43, 1
    %p47 = scmp.eq.s32.totalorder %s9, 1
    %p48 = scmp.ne.s32.totalorder %s43, %s45
    %p49 = scmp.eq.s32.totalorder %s9, 0
    %p50 = por %p48, %p49
    %p51 = scmp.ne.s32.totalorder %s43, %s45
    %p52 = scmp.eq.s32.totalorder %s14, 1
    %p53 = por %p51, %p52
    %p54 = scmp.ne.s32.totalorder %s45, %s46
    %p55 = scmp.eq.s32.totalorder %s14, 0
    %p56 = por %p54, %p55
    %p57 = scmp.ne.s32.totalorder %s45, %s46
    %p58 = scmp.eq.s32.totalorder %s15, 1
    %p59 = por %p57, %p58
    %p61 = scmp.ne.s32.totalorder %s46, %s60
    %p62 = scmp.eq.s32.totalorder %s15, 0
    %p63 = por %p61, %p62
    %s65 = sadd.s32 %s64, 1
    %p68 = scmp.eq.s32.totalorder %s9, 1
    %p69 = scmp.ne.s32.totalorder %s64, %s66
    %p70 = scmp.eq.s32.totalorder %s9, 0
    %p71 = por %p69, %p70
    %p72 = scmp.ne.s32.totalorder %s64, %s66
    %p73 = scmp.eq.s32.totalorder %s14, 1
    %p74 = por %p72, %p73
    %p75 = scmp.ne.s32.totalorder %s66, %s67
    %p76 = scmp.eq.s32.totalorder %s14, 0
    %p77 = por %p75, %p76
    %p78 = scmp.ne.s32.totalorder %s66, %s67
    %p79 = scmp.eq.s32.totalorder %s15, 1
    %p80 = por %p78, %p79
    %p82 = scmp.ne.s32.totalorder %s67, %s81
    %p83 = scmp.eq.s32.totalorder %s15, 0
    %p84 = por %p82, %p83
    %s85 = ssub.s32 %s9, %s16
    %p86 = scmp.eq.s32.totalorder %s85, 0
    %s88 = sadd.s32 %s87, 1
    %s89 = scalar_select %p86, %s87, %s88
    %p92 = pneg %p86
    %p93 = scmp.eq.s32.totalorder %s9, 1
    %p94 = por %p92, %p93
    %p95 = scmp.ne.s32.totalorder %s87, %s90
    %p96 = scmp.eq.s32.totalorder %s9, 0
    %p97 = por %p95, %p96
    %p98 = scmp.ne.s32.totalorder %s87, %s90
    %p99 = scmp.eq.s32.totalorder %s14, 1
    %p100 = por %p98, %p99
    %p101 = scmp.ne.s32.totalorder %s90, %s91
    %p102 = scmp.eq.s32.totalorder %s14, 0
    %p103 = por %p101, %p102
    %p104 = scmp.ne.s32.totalorder %s90, %s91
    %p105 = scmp.eq.s32.totalorder %s15, 1
    %p106 = por %p104, %p105
    %p108 = scmp.ne.s32.totalorder %s91, %s107
    %p109 = scmp.eq.s32.totalorder %s15, 0
    %p110 = por %p108, %p109
    %p111 = scmp.le.s32.totalorder 1, %s9
    %p112 = scmp.lt.s32.totalorder %s9, 3
    %p113 = pnand %p111, %p112
    %p114 = pneg %p113
    // Predicated region
    $region9: #{luconv_forward.3} parent=5 // pred_check
      _
    $region10: #{luconv_forward.3} parent=5 // pred_check_branch
      %116 = sbr.rel (%p113) target = $region12
    $region11: #{luconv_forward.3} parent=5 // pred_region
      %s117 = ssub.s32 %s9, 1
      // Predicated region
      $region13: #{luconv_forward.3} parent=11 // pred_check
        %p118 = pneg %p56
      $region14: #{luconv_forward.3} parent=11 // pred_check_branch
        %120 = sbr.rel (%p118) target = $region16
      $region15: #{luconv_forward.3} parent=11 // pred_region
        _
      $region16: #{luconv_forward.3} parent=11 // pred_fallthru
        _
      // Predicated region
      $region17: #{luconv_forward.3} parent=11 // pred_check
        %p121 = pneg %p77
      $region18: #{luconv_forward.3} parent=11 // pred_check_branch
        %123 = sbr.rel (%p121) target = $region20
      $region19: #{luconv_forward.3} parent=11 // pred_region
        _
      $region20: #{luconv_forward.3} parent=11 // pred_fallthru
        _
    $region12: #{luconv_forward.3} parent=5 // pred_fallthru
      _
    %p124 = scmp.lt.s32.totalorder %s9, 2
    // Predicated region
    $region21: #{luconv_forward.3} parent=5 // pred_check
      %p125 = pneg %p124
    $region22: #{luconv_forward.3} parent=5 // pred_check_branch
      %127 = sbr.rel (%p125) target = $region24
    $region23: #{luconv_forward.3} parent=5 // pred_region
      // Predicated region
      $region25: #{luconv_forward.3} parent=23 // pred_check
        %p128 = pneg %p29
      $region26: #{luconv_forward.3} parent=23 // pred_check_branch
        %130 = sbr.rel (%p128) target = $region28
      $region27: #{luconv_forward.3} parent=23 // pred_region
        %s131 = smul.u32 8, %s9
        %p132 = scmp.lt.s32.totalorder %s131, 15
        %s133 = scalar_select %p132, %s131, 15
        %s134 = smul.addr %s133, 4
        %s135 = scalar_lea.vmem %s0, %s134
        %s136 = smul.u32 8, %s9
      $region28: #{luconv_forward.3} parent=23 // pred_fallthru
        _
    $region24: #{luconv_forward.3} parent=5 // pred_fallthru
      _
    %p137 = scmp.le.s32.totalorder 1, %s9
    %p138 = scmp.lt.s32.totalorder %s9, 3
    %p139 = pnand %p137, %p138
    %p140 = pneg %p139
    // Predicated region
    $region29: #{luconv_forward.3} parent=5 // pred_check
      _
    $region30: #{luconv_forward.3} parent=5 // pred_check_branch
      %142 = sbr.rel (%p139) target = $region32
    $region31: #{luconv_forward.3} parent=5 // pred_region
      %s143 = ssub.s32 %s9, 1
      %s144 = smul.u32 8, %s14
      %p145 = scmp.lt.s32.totalorder %s144, 15
      %s146 = scalar_select %p145, %s144, 15
      %s147 = smul.addr %s146, 4
      %s148 = scalar_lea.vmem %s0, %s147
      %p149 = pneg %p35
      %p150 = pneg %p32
      %p151 = pneg %p56
      %p152 = pneg %p53
      %p153 = pneg %p77
      %p154 = pneg %p74
      %p155 = pneg %p103
      %p156 = pneg %p100
      %s157 = smul.u32 8, %s14
      %p158 = scmp.lt.s32.totalorder %s157, 15
      %s159 = scalar_select %p158, %s157, 15
      %s160 = smul.addr %s159, 4
      %s161 = scalar_lea.vmem %s3, %s160
      %s162 = smul.u32 8, %s14
      %p163 = scmp.lt.s32.totalorder %s162, 15
      %s164 = scalar_select %p163, %s162, 15
      %s165 = smul.addr %s164, 4
      %s166 = scalar_lea.vmem %s0, %s165
      %s167 = smul.u32 8, %s14
      %s168 = smul.u32 8, %s14
      %p169 = scmp.lt.s32.totalorder %s168, 15
      %s170 = scalar_select %p169, %s168, 15
      %s171 = smul.addr %s170, 4
      %s172 = scalar_lea.vmem %s3, %s171
      %s173 = smul.u32 8, %s14
      %v174 = vld [vmem:[%s166] sm:$0xff]
      %v175 = vld [vmem:[%s166 + $0x8] sm:$0xff]
      %v176 = vld [vmem:[%s166 + $0x10] sm:$0xff]
      %v177 = vld [vmem:[%s166 + $0x18] sm:$0xff]
      %v178 = vld [vmem:[%s1] sm:$0xf]
      %180 = vset.pattern.permute.xlu0 0
      %181 = vperm.xlu0 %180, %v178
      %v182 = vpop.permute.xlu0 %181
      %v184 = vunpack.c.l.s4 839922192
      %v185 = vunpack.c.0.s8 %v184
      %v186 = vlaneseq
      %v187 = vshrl.u32 %v186, 7
      %v188 = vsub.s32 %v185, %v187
      %v189 = vrot.slane %v182, %v188
      %v191 = vmul.f32 %v174, %v189
      %v192 = vmul.f32 %v175, %v189
      %v193 = vmul.f32 %v176, %v189
      %v194 = vmul.f32 %v177, %v189
      %v195 = vld [vmem:[%s2] sm:$0xf]
      %197 = vset.pattern.permute.xlu0 0
      %198 = vperm.xlu0 %197, %v195
      %v199 = vpop.permute.xlu0 %198
      %v201 = vunpack.c.l.s4 839922192
      %v202 = vunpack.c.0.s8 %v201
      %v203 = vlaneseq
      %v204 = vshrl.u32 %v203, 7
      %v205 = vsub.s32 %v202, %v204
      %v206 = vrot.slane %v199, %v205
      %v208 = vadd.f32 %v191, %v206
      %v209 = vadd.f32 %v192, %v206
      %v210 = vadd.f32 %v193, %v206
      %v211 = vadd.f32 %v194, %v206
      %vm212 = vcmp.gt.f32.partialorder %v208, 0.0
      %vm213 = vcmp.gt.f32.partialorder %v209, 0.0
      %vm214 = vcmp.gt.f32.partialorder %v210, 0.0
      %vm215 = vcmp.gt.f32.partialorder %v211, 0.0
      %v216 = vmin.f32 %v208, 0.0
      %v217 = vmin.f32 %v209, 0.0
      %v218 = vmin.f32 %v210, 0.0
      %v219 = vmin.f32 %v211, 0.0
      %v220 = vmul.f32 %v216, 1.442695
      %v221 = vpow.pop %v220
      %v222 = vmul.f32 %v217, 1.442695
      %v223 = vpow.pop %v222
      %v224 = vmul.f32 %v218, 1.442695
      %v225 = vpow.pop %v224
      %v226 = vmul.f32 %v219, 1.442695
      %v227 = vpow.pop %v226
      %v228 = vsub.f32 %v221, 1.0
      %v229 = vsub.f32 %v223, 1.0
      %v230 = vsub.f32 %v225, 1.0
      %v231 = vsub.f32 %v227, 1.0
      %v232 = vsel %vm212, %v208, %v228
      %v233 = vsel %vm213, %v209, %v229
      %v234 = vsel %vm214, %v210, %v230
      %v235 = vsel %vm215, %v211, %v231
      %236 = vst [vmem:[%s172] sm:$0xff] %v232
      %237 = vst [vmem:[%s172 + $0x8] sm:$0xff] %v233
      %238 = vst [vmem:[%s172 + $0x10] sm:$0xff] %v234
      %239 = vst [vmem:[%s172 + $0x18] sm:$0xff] %v235
      %s240 = smul.u32 8, %s14
      %p241 = scmp.lt.s32.totalorder %s240, 15
      %s242 = scalar_select %p241, %s240, 15
      %s243 = smul.addr %s242, 4
      %s244 = scalar_lea.vmem %s3, %s243
      // Predicated region
      $region33: #{luconv_forward.3} parent=31 // pred_check
        %p245 = pneg %p100
      $region34: #{luconv_forward.3} parent=31 // pred_check_branch
        %247 = sbr.rel (%p245) target = $region36
      $region35: #{luconv_forward.3} parent=31 // pred_region
        %s248 = smul.u32 8, %s14
      $region36: #{luconv_forward.3} parent=31 // pred_fallthru
        _
    $region32: #{luconv_forward.3} parent=5 // pred_fallthru
      _
    %p249 = scmp.le.s32.totalorder 2, %s9
    // Predicated region
    $region37: #{luconv_forward.3} parent=5 // pred_check
      %p250 = pneg %p249
    $region38: #{luconv_forward.3} parent=5 // pred_check_branch
      %252 = sbr.rel (%p250) target = $region40
    $region39: #{luconv_forward.3} parent=5 // pred_region
      %s253 = ssub.s32 %s9, 2
      // Predicated region
      $region41: #{luconv_forward.3} parent=39 // pred_check
        %p254 = pneg %p106
      $region42: #{luconv_forward.3} parent=39 // pred_check_branch
        %256 = sbr.rel (%p254) target = $region44
      $region43: #{luconv_forward.3} parent=39 // pred_region
        %s257 = smul.u32 8, %s15
        %p258 = scmp.lt.s32.totalorder %s257, 15
        %s259 = scalar_select %p258, %s257, 15
        %s260 = smul.addr %s259, 4
        %s261 = scalar_lea.vmem %s3, %s260
      $region44: #{luconv_forward.3} parent=39 // pred_fallthru
        _
    $region40: #{luconv_forward.3} parent=5 // pred_fallthru
      _
  $region6: #{luconv_forward.3} parent=0 // loop_footer
    %s13 = sadd.s32 1, %s9
  $region7: #{luconv_forward.3} parent=0 // loop_footer_branch
    %8 = sbr.rel target = $region3
  $region8: #{luconv_forward.3} parent=0 // loop_exit
    _

// kernel: luconv_forward.2
$region0: #{luconv_forward.2}
  #allocation0 [shape = 'u32[]', space=smem, size = 0x4, offset = 0x4, fixed_abs, tag = 'smem constant byte address 0x4 - core index']
  #allocation1 [shape = 'u32[144,128]{1,0:T(1,128)}', space=vmem, size = 0x12000, scoped, tag = 'internal scratch']
  #allocation2 [shape = 'bf16[4,1280]{1,0:T(4,128)(2,1)}', space=vmem, size = 0x2800, scoped, tag = 'scratch operand']
  %s0 = inlined_call_operand.vmem [shape: bf16[4,3072], index: 0, kind: input, shape index: {}, may-alias: {0,1}]
  %s1 = inlined_call_operand.vmem [shape: bf16[4,3072], index: 1, kind: input, shape index: {}, may-alias: {0,1}]
  %s2 = inlined_call_operand.vmem [shape: bf16[27,4,4], index: 2, kind: input, shape index: {}]
  %s3 = inlined_call_operand.vmem [shape: bf16[1,2048], index: 3, kind: input, shape index: {}]
  %s4 = inlined_call_operand.vmem [shape: f32[4,2048], index: 4, kind: output, shape index: {0}]
  %s5 = inlined_call_operand.vmem [shape: f32[2,4,1], index: 5, kind: output, shape index: {1}]
  %s6 = inlined_call_operand.vmem [shape: f32[2,4,1], index: 6, kind: output, shape index: {2}]
  %7 = xla_tuple %s4, %s5, %s6
  %s8 = sld [smem:[#allocation0]]
  $region65: #{luconv_forward.2} parent=0
    _
  %s10 = ssub.s32 1, %s8
  %s11 = scalar_select 0, %s10, %s8
  loop: start=0, step=1, limit=4
  $region2: #{luconv_forward.2} parent=0 // loop_pre_header
    _
  $region3: #{luconv_forward.2} parent=0 // loop_header
    %s13 = sphi 0, %s17
    %p14 = scmp.ge.s32.totalorder %s13, 4
    %s23 = sphi 0, %s25
    %s26 = sphi 0, %s23
    %s27 = sphi 0, %s26
    %s43 = sphi 0, %s27
    %s53 = sphi 0, %s55
    %s56 = sphi 0, %s53
    %s57 = sphi 0, %s56
    %s73 = sphi 0, %s57
    %s77 = sphi 0, %s77
    %s79 = sphi 0, %s77
    %s80 = sphi 0, %s79
    %s94 = sphi 0, %s80
    %s100 = sphi 0, %s102
    %s103 = sphi 0, %s100
    %s104 = sphi 0, %s103
    %s120 = sphi 0, %s104
    %s126 = sphi 0, %s128
    %s129 = sphi 0, %s126
    %s130 = sphi 0, %s129
    %s146 = sphi 0, %s130
    %s152 = sphi 0, %s154
    %s155 = sphi 0, %s152
    %s156 = sphi 0, %s155
    %s172 = sphi 0, %s156
    %s178 = sphi 0, %s180
    %s181 = sphi 0, %s178
    %s182 = sphi 0, %s181
    %s198 = sphi 0, %s182
  $region4: #{luconv_forward.2} parent=0 // loop_header_branch
    %16 = sbr.rel (%p14) target = $region8
  $region5: #{luconv_forward.2} parent=0 // loop_body
    %s18 = ssub.s32 %s13, 1
    %s19 = ssub.s32 %s13, 2
    %s20 = sadd.s32 %s13, 1
    %s21 = ssub.s32 %s13, %s20
    %p22 = scmp.eq.s32.totalorder %s21, 0
    %s24 = sadd.s32 %s23, 1
    %s25 = scalar_select %p22, %s23, %s24
    %p28 = pneg %p22
    %p29 = scmp.eq.s32.totalorder %s13, 1
    %p30 = por %p28, %p29
    %p31 = scmp.ne.s32.totalorder %s23, %s26
    %p32 = scmp.eq.s32.totalorder %s13, 0
    %p33 = por %p31, %p32
    %p34 = scmp.ne.s32.totalorder %s23, %s26
    %p35 = scmp.eq.s32.totalorder %s18, 1
    %p36 = por %p34, %p35
    %p37 = scmp.ne.s32.totalorder %s26, %s27
    %p38 = scmp.eq.s32.totalorder %s18, 0
    %p39 = por %p37, %p38
    %p40 = scmp.ne.s32.totalorder %s26, %s27
    %p41 = scmp.eq.s32.totalorder %s19, 1
    %p42 = por %p40, %p41
    %p44 = scmp.ne.s32.totalorder %s27, %s43
    %p45 = scmp.eq.s32.totalorder %s19, 0
    %p46 = por %p44, %p45
    %s47 = sadd.s32 %s13, 1
    %s48 = smul.u32 %s47, 4
    %s49 = sadd.s32 %s20, 1
    %s50 = smul.u32 %s49, 4
    %s51 = ssub.s32 %s48, %s50
    %p52 = scmp.eq.s32.totalorder %s51, 0
    %s54 = sadd.s32 %s53, 1
    %s55 = scalar_select %p52, %s53, %s54
    %p58 = pneg %p52
    %p59 = scmp.eq.s32.totalorder %s13, 1
    %p60 = por %p58, %p59
    %p61 = scmp.ne.s32.totalorder %s53, %s56
    %p62 = scmp.eq.s32.totalorder %s13, 0
    %p63 = por %p61, %p62
    %p64 = scmp.ne.s32.totalorder %s53, %s56
    %p65 = scmp.eq.s32.totalorder %s18, 1
    %p66 = por %p64, %p65
    %p67 = scmp.ne.s32.totalorder %s56, %s57
    %p68 = scmp.eq.s32.totalorder %s18, 0
    %p69 = por %p67, %p68
    %p70 = scmp.ne.s32.totalorder %s56, %s57
    %p71 = scmp.eq.s32.totalorder %s19, 1
    %p72 = por %p70, %p71
    %p74 = scmp.ne.s32.totalorder %s57, %s73
    %p75 = scmp.eq.s32.totalorder %s19, 0
    %p76 = por %p74, %p75
    %s78 = sadd.s32 %s77, 1
    %p81 = scmp.eq.s32.totalorder %s13, 1
    %p82 = scmp.ne.s32.totalorder %s77, %s79
    %p83 = scmp.eq.s32.totalorder %s13, 0
    %p84 = por %p82, %p83
    %p85 = scmp.ne.s32.totalorder %s77, %s79
    %p86 = scmp.eq.s32.totalorder %s18, 1
    %p87 = por %p85, %p86
    %p88 = scmp.ne.s32.totalorder %s79, %s80
    %p89 = scmp.eq.s32.totalorder %s18, 0
    %p90 = por %p88, %p89
    %p91 = scmp.ne.s32.totalorder %s79, %s80
    %p92 = scmp.eq.s32.totalorder %s19, 1
    %p93 = por %p91, %p92
    %p95 = scmp.ne.s32.totalorder %s80, %s94
    %p96 = scmp.eq.s32.totalorder %s19, 0
    %p97 = por %p95, %p96
    %s98 = ssub.s32 %s13, %s20
    %p99 = scmp.eq.s32.totalorder %s98, 0
    %s101 = sadd.s32 %s100, 1
    %s102 = scalar_select %p99, %s100, %s101
    %p105 = pneg %p99
    %p106 = scmp.eq.s32.totalorder %s13, 1
    %p107 = por %p105, %p106
    %p108 = scmp.ne.s32.totalorder %s100, %s103
    %p109 = scmp.eq.s32.totalorder %s13, 0
    %p110 = por %p108, %p109
    %p111 = scmp.ne.s32.totalorder %s100, %s103
    %p112 = scmp.eq.s32.totalorder %s18, 1
    %p113 = por %p111, %p112
    %p114 = scmp.ne.s32.totalorder %s103, %s104
    %p115 = scmp.eq.s32.totalorder %s18, 0
    %p116 = por %p114, %p115
    %p117 = scmp.ne.s32.totalorder %s103, %s104
    %p118 = scmp.eq.s32.totalorder %s19, 1
    %p119 = por %p117, %p118
    %p121 = scmp.ne.s32.totalorder %s104, %s120
    %p122 = scmp.eq.s32.totalorder %s19, 0
    %p123 = por %p121, %p122
    %s124 = ssub.s32 %s13, %s20
    %p125 = scmp.eq.s32.totalorder %s124, 0
    %s127 = sadd.s32 %s126, 1
    %s128 = scalar_select %p125, %s126, %s127
    %p131 = pneg %p125
    %p132 = scmp.eq.s32.totalorder %s13, 1
    %p133 = por %p131, %p132
    %p134 = scmp.ne.s32.totalorder %s126, %s129
    %p135 = scmp.eq.s32.totalorder %s13, 0
    %p136 = por %p134, %p135
    %p137 = scmp.ne.s32.totalorder %s126, %s129
    %p138 = scmp.eq.s32.totalorder %s18, 1
    %p139 = por %p137, %p138
    %p140 = scmp.ne.s32.totalorder %s129, %s130
    %p141 = scmp.eq.s32.totalorder %s18, 0
    %p142 = por %p140, %p141
    %p143 = scmp.ne.s32.totalorder %s129, %s130
    %p144 = scmp.eq.s32.totalorder %s19, 1
    %p145 = por %p143, %p144
    %p147 = scmp.ne.s32.totalorder %s130, %s146
    %p148 = scmp.eq.s32.totalorder %s19, 0
    %p149 = por %p147, %p148
    %s150 = ssub.s32 %s13, %s20
    %p151 = scmp.eq.s32.totalorder %s150, 0
    %s153 = sadd.s32 %s152, 1
    %s154 = scalar_select %p151, %s152, %s153
    %p157 = pneg %p151
    %p158 = scmp.eq.s32.totalorder %s13, 1
    %p159 = por %p157, %p158
    %p160 = scmp.ne.s32.totalorder %s152, %s155
    %p161 = scmp.eq.s32.totalorder %s13, 0
    %p162 = por %p160, %p161
    %p163 = scmp.ne.s32.totalorder %s152, %s155
    %p164 = scmp.eq.s32.totalorder %s18, 1
    %p165 = por %p163, %p164
    %p166 = scmp.ne.s32.totalorder %s155, %s156
    %p167 = scmp.eq.s32.totalorder %s18, 0
    %p168 = por %p166, %p167
    %p169 = scmp.ne.s32.totalorder %s155, %s156
    %p170 = scmp.eq.s32.totalorder %s19, 1
    %p171 = por %p169, %p170
    %p173 = scmp.ne.s32.totalorder %s156, %s172
    %p174 = scmp.eq.s32.totalorder %s19, 0
    %p175 = por %p173, %p174
    %s176 = ssub.s32 %s13, %s20
    %p177 = scmp.eq.s32.totalorder %s176, 0
    %s179 = sadd.s32 %s178, 1
    %s180 = scalar_select %p177, %s178, %s179
    %p183 = pneg %p177
    %p184 = scmp.eq.s32.totalorder %s13, 1
    %p185 = por %p183, %p184
    %p186 = scmp.ne.s32.totalorder %s178, %s181
    %p187 = scmp.eq.s32.totalorder %s13, 0
    %p188 = por %p186, %p187
    %p189 = scmp.ne.s32.totalorder %s178, %s181
    %p190 = scmp.eq.s32.totalorder %s18, 1
    %p191 = por %p189, %p190
    %p192 = scmp.ne.s32.totalorder %s181, %s182
    %p193 = scmp.eq.s32.totalorder %s18, 0
    %p194 = por %p192, %p193
    %p195 = scmp.ne.s32.totalorder %s181, %s182
    %p196 = scmp.eq.s32.totalorder %s19, 1
    %p197 = por %p195, %p196
    %p199 = scmp.ne.s32.totalorder %s182, %s198
    %p200 = scmp.eq.s32.totalorder %s19, 0
    %p201 = por %p199, %p200
    %p202 = scmp.le.s32.totalorder 1, %s13
    %p203 = scmp.lt.s32.totalorder %s13, 3
    %p204 = pnand %p202, %p203
    %p205 = pneg %p204
    // Predicated region
    $region9: #{luconv_forward.2} parent=5 // pred_check
      _
    $region10: #{luconv_forward.2} parent=5 // pred_check_branch
      %207 = sbr.rel (%p204) target = $region12
    $region11: #{luconv_forward.2} parent=5 // pred_region
      %s208 = ssub.s32 %s13, 1
      // Predicated region
      $region13: #{luconv_forward.2} parent=11 // pred_check
        %p209 = pneg %p90
      $region14: #{luconv_forward.2} parent=11 // pred_check_branch
        %211 = sbr.rel (%p209) target = $region16
      $region15: #{luconv_forward.2} parent=11 // pred_region
        _
      $region16: #{luconv_forward.2} parent=11 // pred_fallthru
        _
    $region12: #{luconv_forward.2} parent=5 // pred_fallthru
      _
    %p212 = scmp.lt.s32.totalorder %s13, 2
    // Predicated region
    $region17: #{luconv_forward.2} parent=5 // pred_check
      %p213 = pneg %p212
    $region18: #{luconv_forward.2} parent=5 // pred_check_branch
      %215 = sbr.rel (%p213) target = $region20
    $region19: #{luconv_forward.2} parent=5 // pred_region
      // Predicated region
      $region21: #{luconv_forward.2} parent=19 // pred_check
        %p216 = pneg %p33
      $region22: #{luconv_forward.2} parent=19 // pred_check_branch
        %218 = sbr.rel (%p216) target = $region24
      $region23: #{luconv_forward.2} parent=19 // pred_region
        %s219 = smul.u32 8, %s13
        %p220 = scmp.lt.s32.totalorder %s219, 23
        %s221 = scalar_select %p220, %s219, 23
        %s222 = smul.addr %s221, 2
        %s223 = scalar_lea.vmem %s0, %s222
        %s224 = smul.u32 8, %s13
      $region24: #{luconv_forward.2} parent=19 // pred_fallthru
        _
      // Predicated region
      $region25: #{luconv_forward.2} parent=19 // pred_check
        %p225 = pneg %p63
      $region26: #{luconv_forward.2} parent=19 // pred_check_branch
        %227 = sbr.rel (%p225) target = $region28
      $region27: #{luconv_forward.2} parent=19 // pred_region
        %s228 = sadd.s32 %s13, 1
        %s229 = smul.u32 %s228, 4
        %s230 = smul.u32 2, %s229
        %p231 = scmp.lt.s32.totalorder %s230, 23
        %s232 = scalar_select %p231, %s230, 23
        %s233 = smul.addr %s232, 2
        %s234 = scalar_lea.vmem %s1, %s233
        %s235 = sadd.s32 %s13, 1
        %s236 = smul.u32 %s235, 4
        %s237 = smul.u32 2, %s236
      $region28: #{luconv_forward.2} parent=19 // pred_fallthru
        _
      // Predicated region
      $region29: #{luconv_forward.2} parent=19 // pred_check
        %p238 = pneg %p110
      $region30: #{luconv_forward.2} parent=19 // pred_check_branch
        %240 = sbr.rel (%p238) target = $region32
      $region31: #{luconv_forward.2} parent=19 // pred_region
        %s241 = smul.u32 8, %s13
        %p242 = scmp.lt.s32.totalorder %s241, 15
        %s243 = scalar_select %p242, %s241, 15
        %s244 = scalar_lea.vmem %s3, %s243
        %s245 = smul.u32 8, %s13
      $region32: #{luconv_forward.2} parent=19 // pred_fallthru
        _
    $region20: #{luconv_forward.2} parent=5 // pred_fallthru
      _
    %p246 = scmp.le.s32.totalorder 1, %s13
    %p247 = scmp.lt.s32.totalorder %s13, 3
    %p248 = pnand %p246, %p247
    %p249 = pneg %p248
    // Predicated region
    $region33: #{luconv_forward.2} parent=5 // pred_check
      _
    $region34: #{luconv_forward.2} parent=5 // pred_check_branch
      %251 = sbr.rel (%p248) target = $region36
    $region35: #{luconv_forward.2} parent=5 // pred_region
      %s252 = ssub.s32 %s13, 1
      %s253 = smul.u32 8, %s18
      %p254 = scmp.lt.s32.totalorder %s253, 23
      %s255 = scalar_select %p254, %s253, 23
      %s256 = smul.addr %s255, 2
      %s257 = scalar_lea.vmem %s0, %s256
      %p258 = pneg %p39
      %p259 = pneg %p36
      %s260 = sadd.s32 %s18, 1
      %s261 = smul.u32 %s260, 4
      %s262 = smul.u32 2, %s261
      %p263 = scmp.lt.s32.totalorder %s262, 23
      %s264 = scalar_select %p263, %s262, 23
      %s265 = smul.addr %s264, 2
      %s266 = scalar_lea.vmem %s1, %s265
      %p267 = pneg %p69
      %p268 = pneg %p66
      %p269 = pneg %p90
      %p270 = pneg %p87
      %s271 = smul.u32 8, %s18
      %p272 = scmp.lt.s32.totalorder %s271, 15
      %s273 = scalar_select %p272, %s271, 15
      %s274 = scalar_lea.vmem %s3, %s273
      %p275 = pneg %p116
      %p276 = pneg %p113
      %p277 = pneg %p142
      %p278 = pneg %p139
      %s279 = smul.u32 8, %s18
      %p280 = scmp.lt.s32.totalorder %s279, 15
      %s281 = scalar_select %p280, %s279, 15
      %s282 = smul.addr %s281, 4
      %s283 = scalar_lea.vmem %s4, %s282
      %p284 = pneg %p168
      %p285 = pneg %p165
      %p286 = scmp.lt.s32.totalorder %s18, 1
      %s287 = scalar_select %p286, %s18, 1
      %s288 = smul.addr %s287, 4
      %s289 = scalar_lea.vmem %s5, %s288
      %p290 = pneg %p194
      %p291 = pneg %p191
      %p292 = scmp.lt.s32.totalorder %s18, 1
      %s293 = scalar_select %p292, %s18, 1
      %s294 = smul.addr %s293, 4
      %s295 = scalar_lea.vmem %s6, %s294
      %s296 = smul.u32 8, %s18
      %p297 = scmp.lt.s32.totalorder %s296, 23
      %s298 = scalar_select %p297, %s296, 23
      %s299 = smul.addr %s298, 2
      %s300 = scalar_lea.vmem %s0, %s299
      %s301 = smul.u32 8, %s18
      %s302 = sadd.s32 %s18, 1
      %s303 = smul.u32 %s302, 4
      %s304 = smul.u32 2, %s303
      %p305 = scmp.lt.s32.totalorder %s304, 23
      %s306 = scalar_select %p305, %s304, 23
      %s307 = smul.addr %s306, 2
      %s308 = scalar_lea.vmem %s1, %s307
      %s309 = sadd.s32 %s18, 1
      %s310 = smul.u32 %s309, 4
      %s311 = smul.u32 2, %s310
      %s312 = smul.u32 8, %s18
      %p313 = scmp.lt.s32.totalorder %s312, 15
      %s314 = scalar_select %p313, %s312, 15
      %s315 = scalar_lea.vmem %s3, %s314
      %s316 = smul.u32 8, %s18
      %s317 = smul.u32 8, %s18
      %p318 = scmp.lt.s32.totalorder %s317, 15
      %s319 = scalar_select %p318, %s317, 15
      %s320 = smul.addr %s319, 4
      %s321 = scalar_lea.vmem %s4, %s320
      %s322 = smul.u32 8, %s18
      %p323 = scmp.lt.s32.totalorder %s18, 1
      %s324 = scalar_select %p323, %s18, 1
      %s325 = smul.addr %s324, 4
      %s326 = scalar_lea.vmem %s5, %s325
      %p327 = scmp.lt.s32.totalorder %s18, 1
      %s328 = scalar_select %p327, %s18, 1
      %s329 = smul.addr %s328, 4
      %s330 = scalar_lea.vmem %s6, %s329
      %v332 = vld [vmem:[%s300] sm:$0xff]
      %v333 = vld [vmem:[%s300 + $0x8] sm:$0xff]
      %334 = vst [vmem:[#allocation2] sm:$0xff] %v332
      %335 = vst [vmem:[#allocation2 + $0x8] sm:$0xff] %v333
      %v336 = vld [vmem:[%s308] sm:$0xf]
      %337 = vst [vmem:[#allocation2 + $0x10] sm:$0xf] %v336
      %v338 = vld [vmem:[%s2] sm:$0x3]
      %v339 = vld [vmem:[#allocation2] sm:$0xff]
      %v340 = vld [vmem:[#allocation2 + $0x8] sm:$0xff]
      %s341 = scalar_lea.vmem %s2, 2
      %v342 = vld [vmem:[%s341] sm:$0x3]
      %v343 = vld [vmem:[#allocation2 + $0x10] sm:$0x3]
      %v347 = vcombine.high %v339, %v339
      %v349 = vunpack.c.l.s4 1983009808
      %v350 = vunpack.c.0.s8 %v349
      %v351 = vlaneseq
      %v352 = vshrl.u32 %v351, 7
      %v353 = vsub.s32 %v350, %v352
      %v354 = vrot.slane %v339, %v353
      %v356 = vunpack.c.l.s4 1983009808
      %v357 = vunpack.c.0.s8 %v356
      %v358 = vlaneseq
      %v359 = vshrl.u32 %v358, 7
      %v360 = vsub.s32 %v357, %v359
      %v361 = vrot.slane %v347, %v360
      %v362 = vcombine.high %v354, %v354
      %v363 = vcombine.high %v361, %v361
      %v364 = vcombine.high %v340, %v340
      %v366 = vunpack.c.l.s4 1983009808
      %v367 = vunpack.c.0.s8 %v366
      %v368 = vlaneseq
      %v369 = vshrl.u32 %v368, 7
      %v370 = vsub.s32 %v367, %v369
      %v371 = vrot.slane %v340, %v370
      %v373 = vunpack.c.l.s4 1983009808
      %v374 = vunpack.c.0.s8 %v373
      %v375 = vlaneseq
      %v376 = vshrl.u32 %v375, 7
      %v377 = vsub.s32 %v374, %v376
      %v378 = vrot.slane %v364, %v377
      %v379 = vcombine.high %v371, %v371
      %v380 = vcombine.high %v378, %v378
      %v382 = vunpack.c.l.s4 1983009808
      %v383 = vunpack.c.0.s8 %v382
      %v384 = vlaneseq
      %v385 = vshrl.u32 %v384, 7
      %v386 = vsub.s32 %v383, %v385
      %v387 = vrot.slane %v343, %v386
      %388 = vrot.lane.b32.xlu0 %v354, 127
      %v389 = vpop.permute.xlu0 %388
      %390 = vrot.lane.b32.xlu0 %v362, 127
      %v391 = vpop.permute.xlu0 %390
      %392 = vrot.lane.b32.xlu0 %v361, 127
      %v393 = vpop.permute.xlu0 %392
      %394 = vrot.lane.b32.xlu0 %v363, 127
      %v395 = vpop.permute.xlu0 %394
      %396 = vrot.lane.b32.xlu0 %v371, 127
      %v397 = vpop.permute.xlu0 %396
      %398 = vrot.lane.b32.xlu0 %v379, 127
      %v399 = vpop.permute.xlu0 %398
      %400 = vrot.lane.b32.xlu0 %v378, 127
      %v401 = vpop.permute.xlu0 %400
      %402 = vrot.lane.b32.xlu0 %v380, 127
      %v403 = vpop.permute.xlu0 %402
      %404 = vrot.lane.b32.xlu0 %v387, 127
      %v405 = vpop.permute.xlu0 %404
      %vm406 = vcmask 1039360
      %v407 = vsel %vm406, %v389, %v391
      %v408 = vsel %vm406, %v391, %v393
      %v409 = vsel %vm406, %v393, %v395
      %v410 = vsel %vm406, %v395, %v397
      %v411 = vsel %vm406, %v397, %v399
      %v412 = vsel %vm406, %v399, %v401
      %v413 = vsel %vm406, %v401, %v403
      %v414 = vsel %vm406, %v403, %v405
      %vm415 = vcmask 31744
      %v417 = vsel %vm415, %v342, 0
      %vm419 = vcmask 1041408
      %v421 = vsel %vm419, %v407, 0
      %v424 = vsel %vm419, %v408, 0
      %v427 = vsel %vm419, %v409, 0
      %v430 = vsel %vm419, %v410, 0
      %v433 = vsel %vm419, %v411, 0
      %v436 = vsel %vm419, %v412, 0
      %v439 = vsel %vm419, %v413, 0
      %v442 = vsel %vm419, %v414, 0
      %444 = vmatprep.subr.bf16.mxu0 0
      %445 = vmatpush1.bf16.msra.mxu0 0
      %446 = vmatprep.subr.bf16.mxu0 0
      %447 = vmatpush1.bf16.msra.mxu0 0
      %448 = vmatprep.subr.bf16.mxu0 0
      %449 = vmatpush1.bf16.msra.mxu0 0
      %450 = vmatprep.subr.bf16.mxu0 0
      %451 = vmatpush1.bf16.msra.mxu0 0
      %452 = vmatprep.subr.bf16.mxu0 0
      %453 = vmatpush1.bf16.msra.mxu0 0
      %454 = vmatprep.subr.bf16.mxu0 0
      %455 = vmatpush1.bf16.msra.mxu0 0
      %456 = vmatprep.subr.bf16.mxu0 0
      %457 = vmatpush1.bf16.msra.mxu0 0
      %458 = vmatprep.subr.bf16.mxu0 %v424
      %459 = vmatpush1.bf16.msra.mxu0 %v421
      %460 = vmatprep.subr.bf16.mxu0 0
      %461 = vmatpush2.bf16.msra.mxu0 0
      %462 = vmatprep.subr.bf16.mxu0 0
      %463 = vmatpush2.bf16.msra.mxu0 0
      %464 = vmatprep.subr.bf16.mxu0 0
      %465 = vmatpush2.bf16.msra.mxu0 0
      %466 = vmatprep.subr.bf16.mxu0 0
      %467 = vmatpush2.bf16.msra.mxu0 0
      %468 = vmatprep.subr.bf16.mxu0 0
      %469 = vmatpush2.bf16.msra.mxu0 0
      %470 = vmatprep.subr.bf16.mxu0 0
      %471 = vmatpush2.bf16.msra.mxu0 0
      %472 = vmatprep.subr.bf16.mxu0 0
      %473 = vmatpush2.bf16.msra.mxu0 0
      %474 = vmatprep.subr.bf16.mxu0 0
      %475 = vmatpush2.bf16.msra.mxu0 0
      %476 = vmatprep.mubr.bf16.mxu0 0
      %477 = vmatmul.mubr.bf16.gmra.mxu0 %v417
      %v478 = vpop.f32.mrf.mxu0
      %v479 = vadd.f32 0.0, %v478
      %v480 = vpop.f32.mrf.mxu0
      %v481 = vadd.f32 0.0, %v480
      %v482 = vpop.f32.mrf.mxu0
      %v483 = vpop.f32.mrf.mxu0
      %484 = vdwg.mxu0
      %485 = vmatprep.subr.bf16.mxu0 0
      %486 = vmatpush1.bf16.msra.mxu0 0
      %487 = vmatprep.subr.bf16.mxu0 0
      %488 = vmatpush1.bf16.msra.mxu0 0
      %489 = vmatprep.subr.bf16.mxu0 0
      %490 = vmatpush1.bf16.msra.mxu0 0
      %491 = vmatprep.subr.bf16.mxu0 0
      %492 = vmatpush1.bf16.msra.mxu0 0
      %493 = vmatprep.subr.bf16.mxu0 0
      %494 = vmatpush1.bf16.msra.mxu0 0
      %495 = vmatprep.subr.bf16.mxu0 0
      %496 = vmatpush1.bf16.msra.mxu0 0
      %497 = vmatprep.subr.bf16.mxu0 0
      %498 = vmatpush1.bf16.msra.mxu0 0
      %499 = vmatprep.subr.bf16.mxu0 %v430
      %500 = vmatpush1.bf16.msra.mxu0 %v427
      %501 = vmatprep.subr.bf16.mxu0 0
      %502 = vmatpush2.bf16.msra.mxu0 0
      %503 = vmatprep.subr.bf16.mxu0 0
      %504 = vmatpush2.bf16.msra.mxu0 0
      %505 = vmatprep.subr.bf16.mxu0 0
      %506 = vmatpush2.bf16.msra.mxu0 0
      %507 = vmatprep.subr.bf16.mxu0 0
      %508 = vmatpush2.bf16.msra.mxu0 0
      %509 = vmatprep.subr.bf16.mxu0 0
      %510 = vmatpush2.bf16.msra.mxu0 0
      %511 = vmatprep.subr.bf16.mxu0 0
      %512 = vmatpush2.bf16.msra.mxu0 0
      %513 = vmatprep.subr.bf16.mxu0 0
      %514 = vmatpush2.bf16.msra.mxu0 0
      %515 = vmatprep.subr.bf16.mxu0 0
      %516 = vmatpush2.bf16.msra.mxu0 0
      %517 = vmatprep.mubr.bf16.mxu0 0
      %518 = vmatmul.mubr.bf16.gmra.mxu0 %v417
      %v519 = vpop.f32.mrf.mxu0
      %v520 = vadd.f32 0.0, %v519
      %v521 = vpop.f32.mrf.mxu0
      %v522 = vadd.f32 0.0, %v521
      %v523 = vpop.f32.mrf.mxu0
      %v524 = vpop.f32.mrf.mxu0
      %525 = vdwg.mxu0
      %526 = vmatprep.subr.bf16.mxu0 0
      %527 = vmatpush1.bf16.msra.mxu0 0
      %528 = vmatprep.subr.bf16.mxu0 0
      %529 = vmatpush1.bf16.msra.mxu0 0
      %530 = vmatprep.subr.bf16.mxu0 0
      %531 = vmatpush1.bf16.msra.mxu0 0
      %532 = vmatprep.subr.bf16.mxu0 0
      %533 = vmatpush1.bf16.msra.mxu0 0
      %534 = vmatprep.subr.bf16.mxu0 0
      %535 = vmatpush1.bf16.msra.mxu0 0
      %536 = vmatprep.subr.bf16.mxu0 0
      %537 = vmatpush1.bf16.msra.mxu0 0
      %538 = vmatprep.subr.bf16.mxu0 0
      %539 = vmatpush1.bf16.msra.mxu0 0
      %540 = vmatprep.subr.bf16.mxu0 %v436
      %541 = vmatpush1.bf16.msra.mxu0 %v433
      %542 = vmatprep.subr.bf16.mxu0 0
      %543 = vmatpush2.bf16.msra.mxu0 0
      %544 = vmatprep.subr.bf16.mxu0 0
      %545 = vmatpush2.bf16.msra.mxu0 0
      %546 = vmatprep.subr.bf16.mxu0 0
      %547 = vmatpush2.bf16.msra.mxu0 0
      %548 = vmatprep.subr.bf16.mxu0 0
      %549 = vmatpush2.bf16.msra.mxu0 0
      %550 = vmatprep.subr.bf16.mxu0 0
      %551 = vmatpush2.bf16.msra.mxu0 0
      %552 = vmatprep.subr.bf16.mxu0 0
      %553 = vmatpush2.bf16.msra.mxu0 0
      %554 = vmatprep.subr.bf16.mxu0 0
      %555 = vmatpush2.bf16.msra.mxu0 0
      %556 = vmatprep.subr.bf16.mxu0 0
      %557 = vmatpush2.bf16.msra.mxu0 0
      %558 = vmatprep.mubr.bf16.mxu0 0
      %559 = vmatmul.mubr.bf16.gmra.mxu0 %v417
      %v560 = vpop.f32.mrf.mxu0
      %v561 = vadd.f32 0.0, %v560
      %v562 = vpop.f32.mrf.mxu0
      %v563 = vadd.f32 0.0, %v562
      %v564 = vpop.f32.mrf.mxu0
      %v565 = vpop.f32.mrf.mxu0
      %566 = vdwg.mxu0
      %567 = vmatprep.subr.bf16.mxu0 0
      %568 = vmatpush1.bf16.msra.mxu0 0
      %569 = vmatprep.subr.bf16.mxu0 0
      %570 = vmatpush1.bf16.msra.mxu0 0
      %571 = vmatprep.subr.bf16.mxu0 0
      %572 = vmatpush1.bf16.msra.mxu0 0
      %573 = vmatprep.subr.bf16.mxu0 0
      %574 = vmatpush1.bf16.msra.mxu0 0
      %575 = vmatprep.subr.bf16.mxu0 0
      %576 = vmatpush1.bf16.msra.mxu0 0
      %577 = vmatprep.subr.bf16.mxu0 0
      %578 = vmatpush1.bf16.msra.mxu0 0
      %579 = vmatprep.subr.bf16.mxu0 0
      %580 = vmatpush1.bf16.msra.mxu0 0
      %581 = vmatprep.subr.bf16.mxu0 %v442
      %582 = vmatpush1.bf16.msra.mxu0 %v439
      %583 = vmatprep.subr.bf16.mxu0 0
      %584 = vmatpush2.bf16.msra.mxu0 0
      %585 = vmatprep.subr.bf16.mxu0 0
      %586 = vmatpush2.bf16.msra.mxu0 0
      %587 = vmatprep.subr.bf16.mxu0 0
      %588 = vmatpush2.bf16.msra.mxu0 0
      %589 = vmatprep.subr.bf16.mxu0 0
      %590 = vmatpush2.bf16.msra.mxu0 0
      %591 = vmatprep.subr.bf16.mxu0 0
      %592 = vmatpush2.bf16.msra.mxu0 0
      %593 = vmatprep.subr.bf16.mxu0 0
      %594 = vmatpush2.bf16.msra.mxu0 0
      %595 = vmatprep.subr.bf16.mxu0 0
      %596 = vmatpush2.bf16.msra.mxu0 0
      %597 = vmatprep.subr.bf16.mxu0 0
      %598 = vmatpush2.bf16.msra.mxu0 0
      %599 = vmatprep.mubr.bf16.mxu0 0
      %600 = vmatmul.mubr.bf16.gmra.mxu0 %v417
      %v601 = vpop.f32.mrf.mxu0
      %v602 = vadd.f32 0.0, %v601
      %v603 = vpop.f32.mrf.mxu0
      %v604 = vadd.f32 0.0, %v603
      %v605 = vpop.f32.mrf.mxu0
      %v606 = vpop.f32.mrf.mxu0
      %607 = vdwg.mxu0
      %v609 = vsel %vm415, %v338, 0
      %v612 = vsel %vm419, %v354, 0
      %v615 = vsel %vm419, %v362, 0
      %v618 = vsel %vm419, %v361, 0
      %v621 = vsel %vm419, %v363, 0
      %v624 = vsel %vm419, %v371, 0
      %v627 = vsel %vm419, %v379, 0
      %v630 = vsel %vm419, %v378, 0
      %v633 = vsel %vm419, %v380, 0
      %635 = vmatprep.subr.bf16.mxu0 0
      %636 = vmatpush1.bf16.msra.mxu0 0
      %637 = vmatprep.subr.bf16.mxu0 0
      %638 = vmatpush1.bf16.msra.mxu0 0
      %639 = vmatprep.subr.bf16.mxu0 0
      %640 = vmatpush1.bf16.msra.mxu0 0
      %641 = vmatprep.subr.bf16.mxu0 0
      %642 = vmatpush1.bf16.msra.mxu0 0
      %643 = vmatprep.subr.bf16.mxu0 0
      %644 = vmatpush1.bf16.msra.mxu0 0
      %645 = vmatprep.subr.bf16.mxu0 0
      %646 = vmatpush1.bf16.msra.mxu0 0
      %647 = vmatprep.subr.bf16.mxu0 0
      %648 = vmatpush1.bf16.msra.mxu0 0
      %649 = vmatprep.subr.bf16.mxu0 %v615
      %650 = vmatpush1.bf16.msra.mxu0 %v612
      %651 = vmatprep.subr.bf16.mxu0 0
      %652 = vmatpush2.bf16.msra.mxu0 0
      %653 = vmatprep.subr.bf16.mxu0 0
      %654 = vmatpush2.bf16.msra.mxu0 0
      %655 = vmatprep.subr.bf16.mxu0 0
      %656 = vmatpush2.bf16.msra.mxu0 0
      %657 = vmatprep.subr.bf16.mxu0 0
      %658 = vmatpush2.bf16.msra.mxu0 0
      %659 = vmatprep.subr.bf16.mxu0 0
      %660 = vmatpush2.bf16.msra.mxu0 0
      %661 = vmatprep.subr.bf16.mxu0 0
      %662 = vmatpush2.bf16.msra.mxu0 0
      %663 = vmatprep.subr.bf16.mxu0 0
      %664 = vmatpush2.bf16.msra.mxu0 0
      %665 = vmatprep.subr.bf16.mxu0 0
      %666 = vmatpush2.bf16.msra.mxu0 0
      %667 = vmatprep.mubr.bf16.mxu0 0
      %668 = vmatmul.mubr.bf16.gmra.mxu0 %v609
      %v669 = vpop.f32.mrf.mxu0
      %v670 = vadd.f32 %v479, %v669
      %v671 = vpop.f32.mrf.mxu0
      %v672 = vadd.f32 %v481, %v671
      %v673 = vpop.f32.mrf.mxu0
      %v674 = vpop.f32.mrf.mxu0
      %675 = vdwg.mxu0
      %676 = vmatprep.subr.bf16.mxu0 0
      %677 = vmatpush1.bf16.msra.mxu0 0
      %678 = vmatprep.subr.bf16.mxu0 0
      %679 = vmatpush1.bf16.msra.mxu0 0
      %680 = vmatprep.subr.bf16.mxu0 0
      %681 = vmatpush1.bf16.msra.mxu0 0
      %682 = vmatprep.subr.bf16.mxu0 0
      %683 = vmatpush1.bf16.msra.mxu0 0
      %684 = vmatprep.subr.bf16.mxu0 0
      %685 = vmatpush1.bf16.msra.mxu0 0
      %686 = vmatprep.subr.bf16.mxu0 0
      %687 = vmatpush1.bf16.msra.mxu0 0
      %688 = vmatprep.subr.bf16.mxu0 0
      %689 = vmatpush1.bf16.msra.mxu0 0
      %690 = vmatprep.subr.bf16.mxu0 %v621
      %691 = vmatpush1.bf16.msra.mxu0 %v618
      %692 = vmatprep.subr.bf16.mxu0 0
      %693 = vmatpush2.bf16.msra.mxu0 0
      %694 = vmatprep.subr.bf16.mxu0 0
      %695 = vmatpush2.bf16.msra.mxu0 0
      %696 = vmatprep.subr.bf16.mxu0 0
      %697 = vmatpush2.bf16.msra.mxu0 0
      %698 = vmatprep.subr.bf16.mxu0 0
      %699 = vmatpush2.bf16.msra.mxu0 0
      %700 = vmatprep.subr.bf16.mxu0 0
      %701 = vmatpush2.bf16.msra.mxu0 0
      %702 = vmatprep.subr.bf16.mxu0 0
      %703 = vmatpush2.bf16.msra.mxu0 0
      %704 = vmatprep.subr.bf16.mxu0 0
      %705 = vmatpush2.bf16.msra.mxu0 0
      %706 = vmatprep.subr.bf16.mxu0 0
      %707 = vmatpush2.bf16.msra.mxu0 0
      %708 = vmatprep.mubr.bf16.mxu0 0
      %709 = vmatmul.mubr.bf16.gmra.mxu0 %v609
      %v710 = vpop.f32.mrf.mxu0
      %v711 = vadd.f32 %v520, %v710
      %v712 = vpop.f32.mrf.mxu0
      %v713 = vadd.f32 %v522, %v712
      %v714 = vpop.f32.mrf.mxu0
      %v715 = vpop.f32.mrf.mxu0
      %716 = vdwg.mxu0
      %717 = vmatprep.subr.bf16.mxu0 0
      %718 = vmatpush1.bf16.msra.mxu0 0
      %719 = vmatprep.subr.bf16.mxu0 0
      %720 = vmatpush1.bf16.msra.mxu0 0
      %721 = vmatprep.subr.bf16.mxu0 0
      %722 = vmatpush1.bf16.msra.mxu0 0
      %723 = vmatprep.subr.bf16.mxu0 0
      %724 = vmatpush1.bf16.msra.mxu0 0
      %725 = vmatprep.subr.bf16.mxu0 0
      %726 = vmatpush1.bf16.msra.mxu0 0
      %727 = vmatprep.subr.bf16.mxu0 0
      %728 = vmatpush1.bf16.msra.mxu0 0
      %729 = vmatprep.subr.bf16.mxu0 0
      %730 = vmatpush1.bf16.msra.mxu0 0
      %731 = vmatprep.subr.bf16.mxu0 %v627
      %732 = vmatpush1.bf16.msra.mxu0 %v624
      %733 = vmatprep.subr.bf16.mxu0 0
      %734 = vmatpush2.bf16.msra.mxu0 0
      %735 = vmatprep.subr.bf16.mxu0 0
      %736 = vmatpush2.bf16.msra.mxu0 0
      %737 = vmatprep.subr.bf16.mxu0 0
      %738 = vmatpush2.bf16.msra.mxu0 0
      %739 = vmatprep.subr.bf16.mxu0 0
      %740 = vmatpush2.bf16.msra.mxu0 0
      %741 = vmatprep.subr.bf16.mxu0 0
      %742 = vmatpush2.bf16.msra.mxu0 0
      %743 = vmatprep.subr.bf16.mxu0 0
      %744 = vmatpush2.bf16.msra.mxu0 0
      %745 = vmatprep.subr.bf16.mxu0 0
      %746 = vmatpush2.bf16.msra.mxu0 0
      %747 = vmatprep.subr.bf16.mxu0 0
      %748 = vmatpush2.bf16.msra.mxu0 0
      %749 = vmatprep.mubr.bf16.mxu0 0
      %750 = vmatmul.mubr.bf16.gmra.mxu0 %v609
      %v751 = vpop.f32.mrf.mxu0
      %v752 = vadd.f32 %v561, %v751
      %v753 = vpop.f32.mrf.mxu0
      %v754 = vadd.f32 %v563, %v753
      %v755 = vpop.f32.mrf.mxu0
      %v756 = vpop.f32.mrf.mxu0
      %757 = vdwg.mxu0
      %758 = vmatprep.subr.bf16.mxu0 0
      %759 = vmatpush1.bf16.msra.mxu0 0
      %760 = vmatprep.subr.bf16.mxu0 0
      %761 = vmatpush1.bf16.msra.mxu0 0
      %762 = vmatprep.subr.bf16.mxu0 0
      %763 = vmatpush1.bf16.msra.mxu0 0
      %764 = vmatprep.subr.bf16.mxu0 0
      %765 = vmatpush1.bf16.msra.mxu0 0
      %766 = vmatprep.subr.bf16.mxu0 0
      %767 = vmatpush1.bf16.msra.mxu0 0
      %768 = vmatprep.subr.bf16.mxu0 0
      %769 = vmatpush1.bf16.msra.mxu0 0
      %770 = vmatprep.subr.bf16.mxu0 0
      %771 = vmatpush1.bf16.msra.mxu0 0
      %772 = vmatprep.subr.bf16.mxu0 %v633
      %773 = vmatpush1.bf16.msra.mxu0 %v630
      %774 = vmatprep.subr.bf16.mxu0 0
      %775 = vmatpush2.bf16.msra.mxu0 0
      %776 = vmatprep.subr.bf16.mxu0 0
      %777 = vmatpush2.bf16.msra.mxu0 0
      %778 = vmatprep.subr.bf16.mxu0 0
      %779 = vmatpush2.bf16.msra.mxu0 0
      %780 = vmatprep.subr.bf16.mxu0 0
      %781 = vmatpush2.bf16.msra.mxu0 0
      %782 = vmatprep.subr.bf16.mxu0 0
      %783 = vmatpush2.bf16.msra.mxu0 0
      %784 = vmatprep.subr.bf16.mxu0 0
      %785 = vmatpush2.bf16.msra.mxu0 0
      %786 = vmatprep.subr.bf16.mxu0 0
      %787 = vmatpush2.bf16.msra.mxu0 0
      %788 = vmatprep.subr.bf16.mxu0 0
      %789 = vmatpush2.bf16.msra.mxu0 0
      %790 = vmatprep.mubr.bf16.mxu0 0
      %791 = vmatmul.mubr.bf16.gmra.mxu0 %v609
      %v792 = vpop.f32.mrf.mxu0
      %v793 = vadd.f32 %v602, %v792
      %v794 = vpop.f32.mrf.mxu0
      %v795 = vadd.f32 %v604, %v794
      %v796 = vpop.f32.mrf.mxu0
      %v797 = vpop.f32.mrf.mxu0
      %798 = vdwg.mxu0
      %s799 = scalar_lea.vmem %s2, 4
      %v800 = vld [vmem:[%s799] sm:$0x3]
      %v801 = vld [vmem:[#allocation2] sm:$0xff]
      %v802 = vld [vmem:[#allocation2 + $0x8] sm:$0xff]
      %v803 = vld [vmem:[#allocation2 + $0x10] sm:$0x3]
      %v807 = vcombine.high %v801, %v801
      %v809 = vunpack.c.l.s4 1983009808
      %v810 = vunpack.c.0.s8 %v809
      %v811 = vlaneseq
      %v812 = vshrl.u32 %v811, 7
      %v813 = vsub.s32 %v810, %v812
      %v814 = vrot.slane %v801, %v813
      %v816 = vunpack.c.l.s4 1983009808
      %v817 = vunpack.c.0.s8 %v816
      %v818 = vlaneseq
      %v819 = vshrl.u32 %v818, 7
      %v820 = vsub.s32 %v817, %v819
      %v821 = vrot.slane %v807, %v820
      %v822 = vcombine.high %v814, %v814
      %v823 = vcombine.high %v821, %v821
      %v824 = vcombine.high %v802, %v802
      %v826 = vunpack.c.l.s4 1983009808
      %v827 = vunpack.c.0.s8 %v826
      %v828 = vlaneseq
      %v829 = vshrl.u32 %v828, 7
      %v830 = vsub.s32 %v827, %v829
      %v831 = vrot.slane %v802, %v830
      %v833 = vunpack.c.l.s4 1983009808
      %v834 = vunpack.c.0.s8 %v833
      %v835 = vlaneseq
      %v836 = vshrl.u32 %v835, 7
      %v837 = vsub.s32 %v834, %v836
      %v838 = vrot.slane %v824, %v837
      %v839 = vcombine.high %v831, %v831
      %v840 = vcombine.high %v838, %v838
      %v842 = vunpack.c.l.s4 1983009808
      %v843 = vunpack.c.0.s8 %v842
      %v844 = vlaneseq
      %v845 = vshrl.u32 %v844, 7
      %v846 = vsub.s32 %v843, %v845
      %v847 = vrot.slane %v803, %v846
      %848 = vrot.lane.b32.xlu0 %v814, 126
      %v849 = vpop.permute.xlu0 %848
      %850 = vrot.lane.b32.xlu0 %v822, 126
      %v851 = vpop.permute.xlu0 %850
      %852 = vrot.lane.b32.xlu0 %v821, 126
      %v853 = vpop.permute.xlu0 %852
      %854 = vrot.lane.b32.xlu0 %v823, 126
      %v855 = vpop.permute.xlu0 %854
      %856 = vrot.lane.b32.xlu0 %v831, 126
      %v857 = vpop.permute.xlu0 %856
      %858 = vrot.lane.b32.xlu0 %v839, 126
      %v859 = vpop.permute.xlu0 %858
      %860 = vrot.lane.b32.xlu0 %v838, 126
      %v861 = vpop.permute.xlu0 %860
      %862 = vrot.lane.b32.xlu0 %v840, 126
      %v863 = vpop.permute.xlu0 %862
      %864 = vrot.lane.b32.xlu0 %v847, 126
      %v865 = vpop.permute.xlu0 %864
      %vm866 = vcmask 1031168
      %v867 = vsel %vm866, %v849, %v851
      %v868 = vsel %vm866, %v851, %v853
      %v869 = vsel %vm866, %v853, %v855
      %v870 = vsel %vm866, %v855, %v857
      %v871 = vsel %vm866, %v857, %v859
      %v872 = vsel %vm866, %v859, %v861
      %v873 = vsel %vm866, %v861, %v863
      %v874 = vsel %vm866, %v863, %v865
      %v876 = vsel %vm415, %v800, 0
      %v879 = vsel %vm419, %v867, 0
      %v882 = vsel %vm419, %v868, 0
      %v885 = vsel %vm419, %v869, 0
      %v888 = vsel %vm419, %v870, 0
      %v891 = vsel %vm419, %v871, 0
      %v894 = vsel %vm419, %v872, 0
      %v897 = vsel %vm419, %v873, 0
      %v900 = vsel %vm419, %v874, 0
      %902 = vmatprep.subr.bf16.mxu0 0
      %903 = vmatpush1.bf16.msra.mxu0 0
      %904 = vmatprep.subr.bf16.mxu0 0
      %905 = vmatpush1.bf16.msra.mxu0 0
      %906 = vmatprep.subr.bf16.mxu0 0
      %907 = vmatpush1.bf16.msra.mxu0 0
      %908 = vmatprep.subr.bf16.mxu0 0
      %909 = vmatpush1.bf16.msra.mxu0 0
      %910 = vmatprep.subr.bf16.mxu0 0
      %911 = vmatpush1.bf16.msra.mxu0 0
      %912 = vmatprep.subr.bf16.mxu0 0
      %913 = vmatpush1.bf16.msra.mxu0 0
      %914 = vmatprep.subr.bf16.mxu0 0
      %915 = vmatpush1.bf16.msra.mxu0 0
      %916 = vmatprep.subr.bf16.mxu0 %v882
      %917 = vmatpush1.bf16.msra.mxu0 %v879
      %918 = vmatprep.subr.bf16.mxu0 0
      %919 = vmatpush2.bf16.msra.mxu0 0
      %920 = vmatprep.subr.bf16.mxu0 0
      %921 = vmatpush2.bf16.msra.mxu0 0
      %922 = vmatprep.subr.bf16.mxu0 0
      %923 = vmatpush2.bf16.msra.mxu0 0
      %924 = vmatprep.subr.bf16.mxu0 0
      %925 = vmatpush2.bf16.msra.mxu0 0
      %926 = vmatprep.subr.bf16.mxu0 0
      %927 = vmatpush2.bf16.msra.mxu0 0
      %928 = vmatprep.subr.bf16.mxu0 0
      %929 = vmatpush2.bf16.msra.mxu0 0
      %930 = vmatprep.subr.bf16.mxu0 0
      %931 = vmatpush2.bf16.msra.mxu0 0
      %932 = vmatprep.subr.bf16.mxu0 0
      %933 = vmatpush2.bf16.msra.mxu0 0
      %934 = vmatprep.mubr.bf16.mxu0 0
      %935 = vmatmul.mubr.bf16.gmra.mxu0 %v876
      %v936 = vpop.f32.mrf.mxu0
      %v937 = vadd.f32 0.0, %v936
      %v938 = vpop.f32.mrf.mxu0
      %v939 = vadd.f32 0.0, %v938
      %v940 = vpop.f32.mrf.mxu0
      %v941 = vpop.f32.mrf.mxu0
      %942 = vdwg.mxu0
      %943 = vmatprep.subr.bf16.mxu0 0
      %944 = vmatpush1.bf16.msra.mxu0 0
      %945 = vmatprep.subr.bf16.mxu0 0
      %946 = vmatpush1.bf16.msra.mxu0 0
      %947 = vmatprep.subr.bf16.mxu0 0
      %948 = vmatpush1.bf16.msra.mxu0 0
      %949 = vmatprep.subr.bf16.mxu0 0
      %950 = vmatpush1.bf16.msra.mxu0 0
      %951 = vmatprep.subr.bf16.mxu0 0
      %952 = vmatpush1.bf16.msra.mxu0 0
      %953 = vmatprep.subr.bf16.mxu0 0
      %954 = vmatpush1.bf16.msra.mxu0 0
      %955 = vmatprep.subr.bf16.mxu0 0
      %956 = vmatpush1.bf16.msra.mxu0 0
      %957 = vmatprep.subr.bf16.mxu0 %v888
      %958 = vmatpush1.bf16.msra.mxu0 %v885
      %959 = vmatprep.subr.bf16.mxu0 0
      %960 = vmatpush2.bf16.msra.mxu0 0
      %961 = vmatprep.subr.bf16.mxu0 0
      %962 = vmatpush2.bf16.msra.mxu0 0
      %963 = vmatprep.subr.bf16.mxu0 0
      %964 = vmatpush2.bf16.msra.mxu0 0
      %965 = vmatprep.subr.bf16.mxu0 0
      %966 = vmatpush2.bf16.msra.mxu0 0
      %967 = vmatprep.subr.bf16.mxu0 0
      %968 = vmatpush2.bf16.msra.mxu0 0
      %969 = vmatprep.subr.bf16.mxu0 0
      %970 = vmatpush2.bf16.msra.mxu0 0
      %971 = vmatprep.subr.bf16.mxu0 0
      %972 = vmatpush2.bf16.msra.mxu0 0
      %973 = vmatprep.subr.bf16.mxu0 0
      %974 = vmatpush2.bf16.msra.mxu0 0
      %975 = vmatprep.mubr.bf16.mxu0 0
      %976 = vmatmul.mubr.bf16.gmra.mxu0 %v876
      %v977 = vpop.f32.mrf.mxu0
      %v978 = vadd.f32 0.0, %v977
      %v979 = vpop.f32.mrf.mxu0
      %v980 = vadd.f32 0.0, %v979
      %v981 = vpop.f32.mrf.mxu0
      %v982 = vpop.f32.mrf.mxu0
      %983 = vdwg.mxu0
      %984 = vmatprep.subr.bf16.mxu0 0
      %985 = vmatpush1.bf16.msra.mxu0 0
      %986 = vmatprep.subr.bf16.mxu0 0
      %987 = vmatpush1.bf16.msra.mxu0 0
      %988 = vmatprep.subr.bf16.mxu0 0
      %989 = vmatpush1.bf16.msra.mxu0 0
      %990 = vmatprep.subr.bf16.mxu0 0
      %991 = vmatpush1.bf16.msra.mxu0 0
      %992 = vmatprep.subr.bf16.mxu0 0
      %993 = vmatpush1.bf16.msra.mxu0 0
      %994 = vmatprep.subr.bf16.mxu0 0
      %995 = vmatpush1.bf16.msra.mxu0 0
      %996 = vmatprep.subr.bf16.mxu0 0
      %997 = vmatpush1.bf16.msra.mxu0 0
      %998 = vmatprep.subr.bf16.mxu0 %v894
      %999 = vmatpush1.bf16.msra.mxu0 %v891
      %1000 = vmatprep.subr.bf16.mxu0 0
      %1001 = vmatpush2.bf16.msra.mxu0 0
      %1002 = vmatprep.subr.bf16.mxu0 0
      %1003 = vmatpush2.bf16.msra.mxu0 0
      %1004 = vmatprep.subr.bf16.mxu0 0
      %1005 = vmatpush2.bf16.msra.mxu0 0
      %1006 = vmatprep.subr.bf16.mxu0 0
      %1007 = vmatpush2.bf16.msra.mxu0 0
      %1008 = vmatprep.subr.bf16.mxu0 0
      %1009 = vmatpush2.bf16.msra.mxu0 0
      %1010 = vmatprep.subr.bf16.mxu0 0
      %1011 = vmatpush2.bf16.msra.mxu0 0
      %1012 = vmatprep.subr.bf16.mxu0 0
      %1013 = vmatpush2.bf16.msra.mxu0 0
      %1014 = vmatprep.subr.bf16.mxu0 0
      %1015 = vmatpush2.bf16.msra.mxu0 0
      %1016 = vmatprep.mubr.bf16.mxu0 0
      %1017 = vmatmul.mubr.bf16.gmra.mxu0 %v876
      %v1018 = vpop.f32.mrf.mxu0
      %v1019 = vadd.f32 0.0, %v1018
      %v1020 = vpop.f32.mrf.mxu0
      %v1021 = vadd.f32 0.0, %v1020
      %v1022 = vpop.f32.mrf.mxu0
      %v1023 = vpop.f32.mrf.mxu0
      %1024 = vdwg.mxu0
      %1025 = vmatprep.subr.bf16.mxu0 0
      %1026 = vmatpush1.bf16.msra.mxu0 0
      %1027 = vmatprep.subr.bf16.mxu0 0
      %1028 = vmatpush1.bf16.msra.mxu0 0
      %1029 = vmatprep.subr.bf16.mxu0 0
      %1030 = vmatpush1.bf16.msra.mxu0 0
      %1031 = vmatprep.subr.bf16.mxu0 0
      %1032 = vmatpush1.bf16.msra.mxu0 0
      %1033 = vmatprep.subr.bf16.mxu0 0
      %1034 = vmatpush1.bf16.msra.mxu0 0
      %1035 = vmatprep.subr.bf16.mxu0 0
      %1036 = vmatpush1.bf16.msra.mxu0 0
      %1037 = vmatprep.subr.bf16.mxu0 0
      %1038 = vmatpush1.bf16.msra.mxu0 0
      %1039 = vmatprep.subr.bf16.mxu0 %v900
      %1040 = vmatpush1.bf16.msra.mxu0 %v897
      %1041 = vmatprep.subr.bf16.mxu0 0
      %1042 = vmatpush2.bf16.msra.mxu0 0
      %1043 = vmatprep.subr.bf16.mxu0 0
      %1044 = vmatpush2.bf16.msra.mxu0 0
      %1045 = vmatprep.subr.bf16.mxu0 0
      %1046 = vmatpush2.bf16.msra.mxu0 0
      %1047 = vmatprep.subr.bf16.mxu0 0
      %1048 = vmatpush2.bf16.msra.mxu0 0
      %1049 = vmatprep.subr.bf16.mxu0 0
      %1050 = vmatpush2.bf16.msra.mxu0 0
      %1051 = vmatprep.subr.bf16.mxu0 0
      %1052 = vmatpush2.bf16.msra.mxu0 0
      %1053 = vmatprep.subr.bf16.mxu0 0
      %1054 = vmatpush2.bf16.msra.mxu0 0
      %1055 = vmatprep.subr.bf16.mxu0 0
      %1056 = vmatpush2.bf16.msra.mxu0 0
      %1057 = vmatprep.mubr.bf16.mxu0 0
      %1058 = vmatmul.mubr.bf16.gmra.mxu0 %v876
      %v1059 = vpop.f32.mrf.mxu0
      %v1060 = vadd.f32 0.0, %v1059
      %v1061 = vpop.f32.mrf.mxu0
      %v1062 = vadd.f32 0.0, %v1061
      %v1063 = vpop.f32.mrf.mxu0
      %v1064 = vpop.f32.mrf.mxu0
      %1065 = vdwg.mxu0
      %v1066 = vadd.f32 %v670, %v937
      %v1067 = vadd.f32 %v672, %v939
      %v1068 = vadd.f32 %v711, %v978
      %v1069 = vadd.f32 %v713, %v980
      %v1070 = vadd.f32 %v752, %v1019
      %v1071 = vadd.f32 %v754, %v1021
      %v1072 = vadd.f32 %v793, %v1060
      %v1073 = vadd.f32 %v795, %v1062
      %s1074 = scalar_lea.vmem %s2, 6
      %v1075 = vld [vmem:[%s1074] sm:$0x3]
      %v1076 = vld [vmem:[#allocation2] sm:$0xff]
      %v1077 = vld [vmem:[#allocation2 + $0x8] sm:$0xff]
      %v1078 = vld [vmem:[#allocation2 + $0x10] sm:$0x3]
      %v1082 = vcombine.high %v1076, %v1076
      %v1084 = vunpack.c.l.s4 1983009808
      %v1085 = vunpack.c.0.s8 %v1084
      %v1086 = vlaneseq
      %v1087 = vshrl.u32 %v1086, 7
      %v1088 = vsub.s32 %v1085, %v1087
      %v1089 = vrot.slane %v1076, %v1088
      %v1091 = vunpack.c.l.s4 1983009808
      %v1092 = vunpack.c.0.s8 %v1091
      %v1093 = vlaneseq
      %v1094 = vshrl.u32 %v1093, 7
      %v1095 = vsub.s32 %v1092, %v1094
      %v1096 = vrot.slane %v1082, %v1095
      %v1097 = vcombine.high %v1089, %v1089
      %v1098 = vcombine.high %v1096, %v1096
      %v1099 = vcombine.high %v1077, %v1077
      %v1101 = vunpack.c.l.s4 1983009808
      %v1102 = vunpack.c.0.s8 %v1101
      %v1103 = vlaneseq
      %v1104 = vshrl.u32 %v1103, 7
      %v1105 = vsub.s32 %v1102, %v1104
      %v1106 = vrot.slane %v1077, %v1105
      %v1108 = vunpack.c.l.s4 1983009808
      %v1109 = vunpack.c.0.s8 %v1108
      %v1110 = vlaneseq
      %v1111 = vshrl.u32 %v1110, 7
      %v1112 = vsub.s32 %v1109, %v1111
      %v1113 = vrot.slane %v1099, %v1112
      %v1114 = vcombine.high %v1106, %v1106
      %v1115 = vcombine.high %v1113, %v1113
      %v1117 = vunpack.c.l.s4 1983009808
      %v1118 = vunpack.c.0.s8 %v1117
      %v1119 = vlaneseq
      %v1120 = vshrl.u32 %v1119, 7
      %v1121 = vsub.s32 %v1118, %v1120
      %v1122 = vrot.slane %v1078, %v1121
      %1123 = vrot.lane.b32.xlu0 %v1089, 118
      %v1124 = vpop.permute.xlu0 %1123
      %1125 = vrot.lane.b32.xlu0 %v1097, 118
      %v1126 = vpop.permute.xlu0 %1125
      %1127 = vrot.lane.b32.xlu0 %v1096, 118
      %v1128 = vpop.permute.xlu0 %1127
      %1129 = vrot.lane.b32.xlu0 %v1098, 118
      %v1130 = vpop.permute.xlu0 %1129
      %1131 = vrot.lane.b32.xlu0 %v1106, 118
      %v1132 = vpop.permute.xlu0 %1131
      %1133 = vrot.lane.b32.xlu0 %v1114, 118
      %v1134 = vpop.permute.xlu0 %1133
      %1135 = vrot.lane.b32.xlu0 %v1113, 118
      %v1136 = vpop.permute.xlu0 %1135
      %1137 = vrot.lane.b32.xlu0 %v1115, 118
      %v1138 = vpop.permute.xlu0 %1137
      %1139 = vrot.lane.b32.xlu0 %v1122, 118
      %v1140 = vpop.permute.xlu0 %1139
      %vm1141 = vcmask 965632
      %v1142 = vsel %vm1141, %v1124, %v1126
      %v1143 = vsel %vm1141, %v1126, %v1128
      %v1144 = vsel %vm1141, %v1128, %v1130
      %v1145 = vsel %vm1141, %v1130, %v1132
      %v1146 = vsel %vm1141, %v1132, %v1134
      %v1147 = vsel %vm1141, %v1134, %v1136
      %v1148 = vsel %vm1141, %v1136, %v1138
      %v1149 = vsel %vm1141, %v1138, %v1140
      %v1151 = vsel %vm415, %v1075, 0
      %v1154 = vsel %vm419, %v1142, 0
      %v1157 = vsel %vm419, %v1143, 0
      %v1160 = vsel %vm419, %v1144, 0
      %v1163 = vsel %vm419, %v1145, 0
      %v1166 = vsel %vm419, %v1146, 0
      %v1169 = vsel %vm419, %v1147, 0
      %v1172 = vsel %vm419, %v1148, 0
      %v1175 = vsel %vm419, %v1149, 0
      %1177 = vmatprep.subr.bf16.mxu0 0
      %1178 = vmatpush1.bf16.msra.mxu0 0
      %1179 = vmatprep.subr.bf16.mxu0 0
      %1180 = vmatpush1.bf16.msra.mxu0 0
      %1181 = vmatprep.subr.bf16.mxu0 0
      %1182 = vmatpush1.bf16.msra.mxu0 0
      %1183 = vmatprep.subr.bf16.mxu0 0
      %1184 = vmatpush1.bf16.msra.mxu0 0
      %1185 = vmatprep.subr.bf16.mxu0 0
      %1186 = vmatpush1.bf16.msra.mxu0 0
      %1187 = vmatprep.subr.bf16.mxu0 0
      %1188 = vmatpush1.bf16.msra.mxu0 0
      %1189 = vmatprep.subr.bf16.mxu0 0
      %1190 = vmatpush1.bf16.msra.mxu0 0
      %1191 = vmatprep.subr.bf16.mxu0 %v1157
      %1192 = vmatpush1.bf16.msra.mxu0 %v1154
      %1193 = vmatprep.subr.bf16.mxu0 0
      %1194 = vmatpush2.bf16.msra.mxu0 0
      %1195 = vmatprep.subr.bf16.mxu0 0
      %1196 = vmatpush2.bf16.msra.mxu0 0
      %1197 = vmatprep.subr.bf16.mxu0 0
      %1198 = vmatpush2.bf16.msra.mxu0 0
      %1199 = vmatprep.subr.bf16.mxu0 0
      %1200 = vmatpush2.bf16.msra.mxu0 0
      %1201 = vmatprep.subr.bf16.mxu0 0
      %1202 = vmatpush2.bf16.msra.mxu0 0
      %1203 = vmatprep.subr.bf16.mxu0 0
      %1204 = vmatpush2.bf16.msra.mxu0 0
      %1205 = vmatprep.subr.bf16.mxu0 0
      %1206 = vmatpush2.bf16.msra.mxu0 0
      %1207 = vmatprep.subr.bf16.mxu0 0
      %1208 = vmatpush2.bf16.msra.mxu0 0
      %1209 = vmatprep.mubr.bf16.mxu0 0
      %1210 = vmatmul.mubr.bf16.gmra.mxu0 %v1151
      %v1211 = vpop.f32.mrf.mxu0
      %v1212 = vadd.f32 0.0, %v1211
      %v1213 = vpop.f32.mrf.mxu0
      %v1214 = vadd.f32 0.0, %v1213
      %v1215 = vpop.f32.mrf.mxu0
      %v1216 = vpop.f32.mrf.mxu0
      %1217 = vdwg.mxu0
      %1218 = vmatprep.subr.bf16.mxu0 0
      %1219 = vmatpush1.bf16.msra.mxu0 0
      %1220 = vmatprep.subr.bf16.mxu0 0
      %1221 = vmatpush1.bf16.msra.mxu0 0
      %1222 = vmatprep.subr.bf16.mxu0 0
      %1223 = vmatpush1.bf16.msra.mxu0 0
      %1224 = vmatprep.subr.bf16.mxu0 0
      %1225 = vmatpush1.bf16.msra.mxu0 0
      %1226 = vmatprep.subr.bf16.mxu0 0
      %1227 = vmatpush1.bf16.msra.mxu0 0
      %1228 = vmatprep.subr.bf16.mxu0 0
      %1229 = vmatpush1.bf16.msra.mxu0 0
      %1230 = vmatprep.subr.bf16.mxu0 0
      %1231 = vmatpush1.bf16.msra.mxu0 0
      %1232 = vmatprep.subr.bf16.mxu0 %v1163
      %1233 = vmatpush1.bf16.msra.mxu0 %v1160
      %1234 = vmatprep.subr.bf16.mxu0 0
      %1235 = vmatpush2.bf16.msra.mxu0 0
      %1236 = vmatprep.subr.bf16.mxu0 0
      %1237 = vmatpush2.bf16.msra.mxu0 0
      %1238 = vmatprep.subr.bf16.mxu0 0
      %1239 = vmatpush2.bf16.msra.mxu0 0
      %1240 = vmatprep.subr.bf16.mxu0 0
      %1241 = vmatpush2.bf16.msra.mxu0 0
      %1242 = vmatprep.subr.bf16.mxu0 0
      %1243 = vmatpush2.bf16.msra.mxu0 0
      %1244 = vmatprep.subr.bf16.mxu0 0
      %1245 = vmatpush2.bf16.msra.mxu0 0
      %1246 = vmatprep.subr.bf16.mxu0 0
      %1247 = vmatpush2.bf16.msra.mxu0 0
      %1248 = vmatprep.subr.bf16.mxu0 0
      %1249 = vmatpush2.bf16.msra.mxu0 0
      %1250 = vmatprep.mubr.bf16.mxu0 0
      %1251 = vmatmul.mubr.bf16.gmra.mxu0 %v1151
      %v1252 = vpop.f32.mrf.mxu0
      %v1253 = vadd.f32 0.0, %v1252
      %v1254 = vpop.f32.mrf.mxu0
      %v1255 = vadd.f32 0.0, %v1254
      %v1256 = vpop.f32.mrf.mxu0
      %v1257 = vpop.f32.mrf.mxu0
      %1258 = vdwg.mxu0
      %1259 = vmatprep.subr.bf16.mxu0 0
      %1260 = vmatpush1.bf16.msra.mxu0 0
      %1261 = vmatprep.subr.bf16.mxu0 0
      %1262 = vmatpush1.bf16.msra.mxu0 0
      %1263 = vmatprep.subr.bf16.mxu0 0
      %1264 = vmatpush1.bf16.msra.mxu0 0
      %1265 = vmatprep.subr.bf16.mxu0 0
      %1266 = vmatpush1.bf16.msra.mxu0 0
      %1267 = vmatprep.subr.bf16.mxu0 0
      %1268 = vmatpush1.bf16.msra.mxu0 0
      %1269 = vmatprep.subr.bf16.mxu0 0
      %1270 = vmatpush1.bf16.msra.mxu0 0
      %1271 = vmatprep.subr.bf16.mxu0 0
      %1272 = vmatpush1.bf16.msra.mxu0 0
      %1273 = vmatprep.subr.bf16.mxu0 %v1169
      %1274 = vmatpush1.bf16.msra.mxu0 %v1166
      %1275 = vmatprep.subr.bf16.mxu0 0
      %1276 = vmatpush2.bf16.msra.mxu0 0
      %1277 = vmatprep.subr.bf16.mxu0 0
      %1278 = vmatpush2.bf16.msra.mxu0 0
      %1279 = vmatprep.subr.bf16.mxu0 0
      %1280 = vmatpush2.bf16.msra.mxu0 0
      %1281 = vmatprep.subr.bf16.mxu0 0
      %1282 = vmatpush2.bf16.msra.mxu0 0
      %1283 = vmatprep.subr.bf16.mxu0 0
      %1284 = vmatpush2.bf16.msra.mxu0 0
      %1285 = vmatprep.subr.bf16.mxu0 0
      %1286 = vmatpush2.bf16.msra.mxu0 0
      %1287 = vmatprep.subr.bf16.mxu0 0
      %1288 = vmatpush2.bf16.msra.mxu0 0
      %1289 = vmatprep.subr.bf16.mxu0 0
      %1290 = vmatpush2.bf16.msra.mxu0 0
      %1291 = vmatprep.mubr.bf16.mxu0 0
      %1292 = vmatmul.mubr.bf16.gmra.mxu0 %v1151
      %v1293 = vpop.f32.mrf.mxu0
      %v1294 = vadd.f32 0.0, %v1293
      %v1295 = vpop.f32.mrf.mxu0
      %v1296 = vadd.f32 0.0, %v1295
      %v1297 = vpop.f32.mrf.mxu0
      %v1298 = vpop.f32.mrf.mxu0
      %1299 = vdwg.mxu0
      %1300 = vmatprep.subr.bf16.mxu0 0
      %1301 = vmatpush1.bf16.msra.mxu0 0
      %1302 = vmatprep.subr.bf16.mxu0 0
      %1303 = vmatpush1.bf16.msra.mxu0 0
      %1304 = vmatprep.subr.bf16.mxu0 0
      %1305 = vmatpush1.bf16.msra.mxu0 0
      %1306 = vmatprep.subr.bf16.mxu0 0
      %1307 = vmatpush1.bf16.msra.mxu0 0
      %1308 = vmatprep.subr.bf16.mxu0 0
      %1309 = vmatpush1.bf16.msra.mxu0 0
      %1310 = vmatprep.subr.bf16.mxu0 0
      %1311 = vmatpush1.bf16.msra.mxu0 0
      %1312 = vmatprep.subr.bf16.mxu0 0
      %1313 = vmatpush1.bf16.msra.mxu0 0
      %1314 = vmatprep.subr.bf16.mxu0 %v1175
      %1315 = vmatpush1.bf16.msra.mxu0 %v1172
      %1316 = vmatprep.subr.bf16.mxu0 0
      %1317 = vmatpush2.bf16.msra.mxu0 0
      %1318 = vmatprep.subr.bf16.mxu0 0
      %1319 = vmatpush2.bf16.msra.mxu0 0
      %1320 = vmatprep.subr.bf16.mxu0 0
      %1321 = vmatpush2.bf16.msra.mxu0 0
      %1322 = vmatprep.subr.bf16.mxu0 0
      %1323 = vmatpush2.bf16.msra.mxu0 0
      %1324 = vmatprep.subr.bf16.mxu0 0
      %1325 = vmatpush2.bf16.msra.mxu0 0
      %1326 = vmatprep.subr.bf16.mxu0 0
      %1327 = vmatpush2.bf16.msra.mxu0 0
      %1328 = vmatprep.subr.bf16.mxu0 0
      %1329 = vmatpush2.bf16.msra.mxu0 0
      %1330 = vmatprep.subr.bf16.mxu0 0
      %1331 = vmatpush2.bf16.msra.mxu0 0
      %1332 = vmatprep.mubr.bf16.mxu0 0
      %1333 = vmatmul.mubr.bf16.gmra.mxu0 %v1151
      %v1334 = vpop.f32.mrf.mxu0
      %v1335 = vadd.f32 0.0, %v1334
      %v1336 = vpop.f32.mrf.mxu0
      %v1337 = vadd.f32 0.0, %v1336
      %v1338 = vpop.f32.mrf.mxu0
      %v1339 = vpop.f32.mrf.mxu0
      %1340 = vdwg.mxu0
      %v1341 = vadd.f32 %v1066, %v1212
      %v1342 = vadd.f32 %v1067, %v1214
      %v1343 = vadd.f32 %v1068, %v1253
      %v1344 = vadd.f32 %v1069, %v1255
      %v1345 = vadd.f32 %v1070, %v1294
      %v1346 = vadd.f32 %v1071, %v1296
      %v1347 = vadd.f32 %v1072, %v1335
      %v1348 = vadd.f32 %v1073, %v1337
      %s1349 = scalar_lea.vmem %s2, 8
      %v1350 = vld [vmem:[%s1349] sm:$0x3]
      %v1351 = vld [vmem:[#allocation2] sm:$0xff]
      %v1352 = vld [vmem:[#allocation2 + $0x8] sm:$0xff]
      %v1353 = vld [vmem:[#allocation2 + $0x10] sm:$0x3]
      %v1357 = vcombine.high %v1351, %v1351
      %v1359 = vunpack.c.l.s4 1983009808
      %v1360 = vunpack.c.0.s8 %v1359
      %v1361 = vlaneseq
      %v1362 = vshrl.u32 %v1361, 7
      %v1363 = vsub.s32 %v1360, %v1362
      %v1364 = vrot.slane %v1351, %v1363
      %v1366 = vunpack.c.l.s4 1983009808
      %v1367 = vunpack.c.0.s8 %v1366
      %v1368 = vlaneseq
      %v1369 = vshrl.u32 %v1368, 7
      %v1370 = vsub.s32 %v1367, %v1369
      %v1371 = vrot.slane %v1357, %v1370
      %v1372 = vcombine.high %v1364, %v1364
      %v1373 = vcombine.high %v1371, %v1371
      %v1374 = vcombine.high %v1352, %v1352
      %v1376 = vunpack.c.l.s4 1983009808
      %v1377 = vunpack.c.0.s8 %v1376
      %v1378 = vlaneseq
      %v1379 = vshrl.u32 %v1378, 7
      %v1380 = vsub.s32 %v1377, %v1379
      %v1381 = vrot.slane %v1352, %v1380
      %v1383 = vunpack.c.l.s4 1983009808
      %v1384 = vunpack.c.0.s8 %v1383
      %v1385 = vlaneseq
      %v1386 = vshrl.u32 %v1385, 7
      %v1387 = vsub.s32 %v1384, %v1386
      %v1388 = vrot.slane %v1374, %v1387
      %v1389 = vcombine.high %v1381, %v1381
      %v1390 = vcombine.high %v1388, %v1388
      %v1392 = vunpack.c.l.s4 1983009808
      %v1393 = vunpack.c.0.s8 %v1392
      %v1394 = vlaneseq
      %v1395 = vshrl.u32 %v1394, 7
      %v1396 = vsub.s32 %v1393, %v1395
      %v1397 = vrot.slane %v1353, %v1396
      %1398 = vrot.lane.b32.xlu0 %v1364, 117
      %v1399 = vpop.permute.xlu0 %1398
      %1400 = vrot.lane.b32.xlu0 %v1372, 117
      %v1401 = vpop.permute.xlu0 %1400
      %1402 = vrot.lane.b32.xlu0 %v1371, 117
      %v1403 = vpop.permute.xlu0 %1402
      %1404 = vrot.lane.b32.xlu0 %v1373, 117
      %v1405 = vpop.permute.xlu0 %1404
      %1406 = vrot.lane.b32.xlu0 %v1381, 117
      %v1407 = vpop.permute.xlu0 %1406
      %1408 = vrot.lane.b32.xlu0 %v1389, 117
      %v1409 = vpop.permute.xlu0 %1408
      %1410 = vrot.lane.b32.xlu0 %v1388, 117
      %v1411 = vpop.permute.xlu0 %1410
      %1412 = vrot.lane.b32.xlu0 %v1390, 117
      %v1413 = vpop.permute.xlu0 %1412
      %1414 = vrot.lane.b32.xlu0 %v1397, 117
      %v1415 = vpop.permute.xlu0 %1414
      %vm1416 = vcmask 957440
      %v1417 = vsel %vm1416, %v1399, %v1401
      %v1418 = vsel %vm1416, %v1401, %v1403
      %v1419 = vsel %vm1416, %v1403, %v1405
      %v1420 = vsel %vm1416, %v1405, %v1407
      %v1421 = vsel %vm1416, %v1407, %v1409
      %v1422 = vsel %vm1416, %v1409, %v1411
      %v1423 = vsel %vm1416, %v1411, %v1413
      %v1424 = vsel %vm1416, %v1413, %v1415
      %v1426 = vsel %vm415, %v1350, 0
      %v1429 = vsel %vm419, %v1417, 0
      %v1432 = vsel %vm419, %v1418, 0
      %v1435 = vsel %vm419, %v1419, 0
      %v1438 = vsel %vm419, %v1420, 0
      %v1441 = vsel %vm419, %v1421, 0
      %v1444 = vsel %vm419, %v1422, 0
      %v1447 = vsel %vm419, %v1423, 0
      %v1450 = vsel %vm419, %v1424, 0
      %1452 = vmatprep.subr.bf16.mxu0 0
      %1453 = vmatpush1.bf16.msra.mxu0 0
      %1454 = vmatprep.subr.bf16.mxu0 0
      %1455 = vmatpush1.bf16.msra.mxu0 0
      %1456 = vmatprep.subr.bf16.mxu0 0
      %1457 = vmatpush1.bf16.msra.mxu0 0
      %1458 = vmatprep.subr.bf16.mxu0 0
      %1459 = vmatpush1.bf16.msra.mxu0 0
      %1460 = vmatprep.subr.bf16.mxu0 0
      %1461 = vmatpush1.bf16.msra.mxu0 0
      %1462 = vmatprep.subr.bf16.mxu0 0
      %1463 = vmatpush1.bf16.msra.mxu0 0
      %1464 = vmatprep.subr.bf16.mxu0 0
      %1465 = vmatpush1.bf16.msra.mxu0 0
      %1466 = vmatprep.subr.bf16.mxu0 %v1432
      %1467 = vmatpush1.bf16.msra.mxu0 %v1429
      %1468 = vmatprep.subr.bf16.mxu0 0
      %1469 = vmatpush2.bf16.msra.mxu0 0
      %1470 = vmatprep.subr.bf16.mxu0 0
      %1471 = vmatpush2.bf16.msra.mxu0 0
      %1472 = vmatprep.subr.bf16.mxu0 0
      %1473 = vmatpush2.bf16.msra.mxu0 0
      %1474 = vmatprep.subr.bf16.mxu0 0
      %1475 = vmatpush2.bf16.msra.mxu0 0
      %1476 = vmatprep.subr.bf16.mxu0 0
      %1477 = vmatpush2.bf16.msra.mxu0 0
      %1478 = vmatprep.subr.bf16.mxu0 0
      %1479 = vmatpush2.bf16.msra.mxu0 0
      %1480 = vmatprep.subr.bf16.mxu0 0
      %1481 = vmatpush2.bf16.msra.mxu0 0
      %1482 = vmatprep.subr.bf16.mxu0 0
      %1483 = vmatpush2.bf16.msra.mxu0 0
      %1484 = vmatprep.mubr.bf16.mxu0 0
      %1485 = vmatmul.mubr.bf16.gmra.mxu0 %v1426
      %v1486 = vpop.f32.mrf.mxu0
      %v1487 = vadd.f32 0.0, %v1486
      %v1488 = vpop.f32.mrf.mxu0
      %v1489 = vadd.f32 0.0, %v1488
      %v1490 = vpop.f32.mrf.mxu0
      %v1491 = vpop.f32.mrf.mxu0
      %1492 = vdwg.mxu0
      %1493 = vmatprep.subr.bf16.mxu0 0
      %1494 = vmatpush1.bf16.msra.mxu0 0
      %1495 = vmatprep.subr.bf16.mxu0 0
      %1496 = vmatpush1.bf16.msra.mxu0 0
      %1497 = vmatprep.subr.bf16.mxu0 0
      %1498 = vmatpush1.bf16.msra.mxu0 0
      %1499 = vmatprep.subr.bf16.mxu0 0
      %1500 = vmatpush1.bf16.msra.mxu0 0
      %1501 = vmatprep.subr.bf16.mxu0 0
      %1502 = vmatpush1.bf16.msra.mxu0 0
      %1503 = vmatprep.subr.bf16.mxu0 0
      %1504 = vmatpush1.bf16.msra.mxu0 0
      %1505 = vmatprep.subr.bf16.mxu0 0
      %1506 = vmatpush1.bf16.msra.mxu0 0
      %1507 = vmatprep.subr.bf16.mxu0 %v1438
      %1508 = vmatpush1.bf16.msra.mxu0 %v1435
      %1509 = vmatprep.subr.bf16.mxu0 0
      %1510 = vmatpush2.bf16.msra.mxu0 0
      %1511 = vmatprep.subr.bf16.mxu0 0
      %1512 = vmatpush2.bf16.msra.mxu0 0
      %1513 = vmatprep.subr.bf16.mxu0 0
      %1514 = vmatpush2.bf16.msra.mxu0 0
      %1515 = vmatprep.subr.bf16.mxu0 0
      %1516 = vmatpush2.bf16.msra.mxu0 0
      %1517 = vmatprep.subr.bf16.mxu0 0
      %1518 = vmatpush2.bf16.msra.mxu0 0
      %1519 = vmatprep.subr.bf16.mxu0 0
      %1520 = vmatpush2.bf16.msra.mxu0 0
      %1521 = vmatprep.subr.bf16.mxu0 0
      %1522 = vmatpush2.bf16.msra.mxu0 0
      %1523 = vmatprep.subr.bf16.mxu0 0
      %1524 = vmatpush2.bf16.msra.mxu0 0
      %1525 = vmatprep.mubr.bf16.mxu0 0
      %1526 = vmatmul.mubr.bf16.gmra.mxu0 %v1426
      %v1527 = vpop.f32.mrf.mxu0
      %v1528 = vadd.f32 0.0, %v1527
      %v1529 = vpop.f32.mrf.mxu0
      %v1530 = vadd.f32 0.0, %v1529
      %v1531 = vpop.f32.mrf.mxu0
      %v1532 = vpop.f32.mrf.mxu0
      %1533 = vdwg.mxu0
      %1534 = vmatprep.subr.bf16.mxu0 0
      %1535 = vmatpush1.bf16.msra.mxu0 0
      %1536 = vmatprep.subr.bf16.mxu0 0
      %1537 = vmatpush1.bf16.msra.mxu0 0
      %1538 = vmatprep.subr.bf16.mxu0 0
      %1539 = vmatpush1.bf16.msra.mxu0 0
      %1540 = vmatprep.subr.bf16.mxu0 0
      %1541 = vmatpush1.bf16.msra.mxu0 0
      %1542 = vmatprep.subr.bf16.mxu0 0
      %1543 = vmatpush1.bf16.msra.mxu0 0
      %1544 = vmatprep.subr.bf16.mxu0 0
      %1545 = vmatpush1.bf16.msra.mxu0 0
      %1546 = vmatprep.subr.bf16.mxu0 0
      %1547 = vmatpush1.bf16.msra.mxu0 0
      %1548 = vmatprep.subr.bf16.mxu0 %v1444
      %1549 = vmatpush1.bf16.msra.mxu0 %v1441
      %1550 = vmatprep.subr.bf16.mxu0 0
      %1551 = vmatpush2.bf16.msra.mxu0 0
      %1552 = vmatprep.subr.bf16.mxu0 0
      %1553 = vmatpush2.bf16.msra.mxu0 0
      %1554 = vmatprep.subr.bf16.mxu0 0
      %1555 = vmatpush2.bf16.msra.mxu0 0
      %1556 = vmatprep.subr.bf16.mxu0 0
      %1557 = vmatpush2.bf16.msra.mxu0 0
      %1558 = vmatprep.subr.bf16.mxu0 0
      %1559 = vmatpush2.bf16.msra.mxu0 0
      %1560 = vmatprep.subr.bf16.mxu0 0
      %1561 = vmatpush2.bf16.msra.mxu0 0
      %1562 = vmatprep.subr.bf16.mxu0 0
      %1563 = vmatpush2.bf16.msra.mxu0 0
      %1564 = vmatprep.subr.bf16.mxu0 0
      %1565 = vmatpush2.bf16.msra.mxu0 0
      %1566 = vmatprep.mubr.bf16.mxu0 0
      %1567 = vmatmul.mubr.bf16.gmra.mxu0 %v1426
      %v1568 = vpop.f32.mrf.mxu0
      %v1569 = vadd.f32 0.0, %v1568
      %v1570 = vpop.f32.mrf.mxu0
      %v1571 = vadd.f32 0.0, %v1570
      %v1572 = vpop.f32.mrf.mxu0
      %v1573 = vpop.f32.mrf.mxu0
      %1574 = vdwg.mxu0
      %1575 = vmatprep.subr.bf16.mxu0 0
      %1576 = vmatpush1.bf16.msra.mxu0 0
      %1577 = vmatprep.subr.bf16.mxu0 0
      %1578 = vmatpush1.bf16.msra.mxu0 0
      %1579 = vmatprep.subr.bf16.mxu0 0
      %1580 = vmatpush1.bf16.msra.mxu0 0
      %1581 = vmatprep.subr.bf16.mxu0 0
      %1582 = vmatpush1.bf16.msra.mxu0 0
      %1583 = vmatprep.subr.bf16.mxu0 0
      %1584 = vmatpush1.bf16.msra.mxu0 0
      %1585 = vmatprep.subr.bf16.mxu0 0
      %1586 = vmatpush1.bf16.msra.mxu0 0
      %1587 = vmatprep.subr.bf16.mxu0 0
      %1588 = vmatpush1.bf16.msra.mxu0 0
      %1589 = vmatprep.subr.bf16.mxu0 %v1450
      %1590 = vmatpush1.bf16.msra.mxu0 %v1447
      %1591 = vmatprep.subr.bf16.mxu0 0
      %1592 = vmatpush2.bf16.msra.mxu0 0
      %1593 = vmatprep.subr.bf16.mxu0 0
      %1594 = vmatpush2.bf16.msra.mxu0 0
      %1595 = vmatprep.subr.bf16.mxu0 0
      %1596 = vmatpush2.bf16.msra.mxu0 0
      %1597 = vmatprep.subr.bf16.mxu0 0
      %1598 = vmatpush2.bf16.msra.mxu0 0
      %1599 = vmatprep.subr.bf16.mxu0 0
      %1600 = vmatpush2.bf16.msra.mxu0 0
      %1601 = vmatprep.subr.bf16.mxu0 0
      %1602 = vmatpush2.bf16.msra.mxu0 0
      %1603 = vmatprep.subr.bf16.mxu0 0
      %1604 = vmatpush2.bf16.msra.mxu0 0
      %1605 = vmatprep.subr.bf16.mxu0 0
      %1606 = vmatpush2.bf16.msra.mxu0 0
      %1607 = vmatprep.mubr.bf16.mxu0 0
      %1608 = vmatmul.mubr.bf16.gmra.mxu0 %v1426
      %v1609 = vpop.f32.mrf.mxu0
      %v1610 = vadd.f32 0.0, %v1609
      %v1611 = vpop.f32.mrf.mxu0
      %v1612 = vadd.f32 0.0, %v1611
      %v1613 = vpop.f32.mrf.mxu0
      %v1614 = vpop.f32.mrf.mxu0
      %1615 = vdwg.mxu0
      %v1616 = vadd.f32 %v1341, %v1487
      %v1617 = vadd.f32 %v1342, %v1489
      %v1618 = vadd.f32 %v1343, %v1528
      %v1619 = vadd.f32 %v1344, %v1530
      %v1620 = vadd.f32 %v1345, %v1569
      %v1621 = vadd.f32 %v1346, %v1571
      %v1622 = vadd.f32 %v1347, %v1610
      %v1623 = vadd.f32 %v1348, %v1612
      %s1624 = scalar_lea.vmem %s2, 10
      %v1625 = vld [vmem:[%s1624] sm:$0x3]
      %v1626 = vld [vmem:[#allocation2] sm:$0xff]
      %v1627 = vld [vmem:[#allocation2 + $0x8] sm:$0xff]
      %v1628 = vld [vmem:[#allocation2 + $0x10] sm:$0x3]
      %v1632 = vcombine.high %v1626, %v1626
      %v1634 = vunpack.c.l.s4 1983009808
      %v1635 = vunpack.c.0.s8 %v1634
      %v1636 = vlaneseq
      %v1637 = vshrl.u32 %v1636, 7
      %v1638 = vsub.s32 %v1635, %v1637
      %v1639 = vrot.slane %v1626, %v1638
      %v1641 = vunpack.c.l.s4 1983009808
      %v1642 = vunpack.c.0.s8 %v1641
      %v1643 = vlaneseq
      %v1644 = vshrl.u32 %v1643, 7
      %v1645 = vsub.s32 %v1642, %v1644
      %v1646 = vrot.slane %v1632, %v1645
      %v1647 = vcombine.high %v1639, %v1639
      %v1648 = vcombine.high %v1646, %v1646
      %v1649 = vcombine.high %v1627, %v1627
      %v1651 = vunpack.c.l.s4 1983009808
      %v1652 = vunpack.c.0.s8 %v1651
      %v1653 = vlaneseq
      %v1654 = vshrl.u32 %v1653, 7
      %v1655 = vsub.s32 %v1652, %v1654
      %v1656 = vrot.slane %v1627, %v1655
      %v1658 = vunpack.c.l.s4 1983009808
      %v1659 = vunpack.c.0.s8 %v1658
      %v1660 = vlaneseq
      %v1661 = vshrl.u32 %v1660, 7
      %v1662 = vsub.s32 %v1659, %v1661
      %v1663 = vrot.slane %v1649, %v1662
      %v1664 = vcombine.high %v1656, %v1656
      %v1665 = vcombine.high %v1663, %v1663
      %v1667 = vunpack.c.l.s4 1983009808
      %v1668 = vunpack.c.0.s8 %v1667
      %v1669 = vlaneseq
      %v1670 = vshrl.u32 %v1669, 7
      %v1671 = vsub.s32 %v1668, %v1670
      %v1672 = vrot.slane %v1628, %v1671
      %1673 = vrot.lane.b32.xlu0 %v1639, 116
      %v1674 = vpop.permute.xlu0 %1673
      %1675 = vrot.lane.b32.xlu0 %v1647, 116
      %v1676 = vpop.permute.xlu0 %1675
      %1677 = vrot.lane.b32.xlu0 %v1646, 116
      %v1678 = vpop.permute.xlu0 %1677
      %1679 = vrot.lane.b32.xlu0 %v1648, 116
      %v1680 = vpop.permute.xlu0 %1679
      %1681 = vrot.lane.b32.xlu0 %v1656, 116
      %v1682 = vpop.permute.xlu0 %1681
      %1683 = vrot.lane.b32.xlu0 %v1664, 116
      %v1684 = vpop.permute.xlu0 %1683
      %1685 = vrot.lane.b32.xlu0 %v1663, 116
      %v1686 = vpop.permute.xlu0 %1685
      %1687 = vrot.lane.b32.xlu0 %v1665, 116
      %v1688 = vpop.permute.xlu0 %1687
      %1689 = vrot.lane.b32.xlu0 %v1672, 116
      %v1690 = vpop.permute.xlu0 %1689
      %vm1691 = vcmask 949248
      %v1692 = vsel %vm1691, %v1674, %v1676
      %v1693 = vsel %vm1691, %v1676, %v1678
      %v1694 = vsel %vm1691, %v1678, %v1680
      %v1695 = vsel %vm1691, %v1680, %v1682
      %v1696 = vsel %vm1691, %v1682, %v1684
      %v1697 = vsel %vm1691, %v1684, %v1686
      %v1698 = vsel %vm1691, %v1686, %v1688
      %v1699 = vsel %vm1691, %v1688, %v1690
      %v1701 = vsel %vm415, %v1625, 0
      %v1704 = vsel %vm419, %v1692, 0
      %v1707 = vsel %vm419, %v1693, 0
      %v1710 = vsel %vm419, %v1694, 0
      %v1713 = vsel %vm419, %v1695, 0
      %v1716 = vsel %vm419, %v1696, 0
      %v1719 = vsel %vm419, %v1697, 0
      %v1722 = vsel %vm419, %v1698, 0
      %v1725 = vsel %vm419, %v1699, 0
      %1727 = vmatprep.subr.bf16.mxu0 0
      %1728 = vmatpush1.bf16.msra.mxu0 0
      %1729 = vmatprep.subr.bf16.mxu0 0
      %1730 = vmatpush1.bf16.msra.mxu0 0
      %1731 = vmatprep.subr.bf16.mxu0 0
      %1732 = vmatpush1.bf16.msra.mxu0 0
      %1733 = vmatprep.subr.bf16.mxu0 0
      %1734 = vmatpush1.bf16.msra.mxu0 0
      %1735 = vmatprep.subr.bf16.mxu0 0
      %1736 = vmatpush1.bf16.msra.mxu0 0
      %1737 = vmatprep.subr.bf16.mxu0 0
      %1738 = vmatpush1.bf16.msra.mxu0 0
      %1739 = vmatprep.subr.bf16.mxu0 0
      %1740 = vmatpush1.bf16.msra.mxu0 0
      %1741 = vmatprep.subr.bf16.mxu0 %v1707
      %1742 = vmatpush1.bf16.msra.mxu0 %v1704
      %1743 = vmatprep.subr.bf16.mxu0 0
      %1744 = vmatpush2.bf16.msra.mxu0 0
      %1745 = vmatprep.subr.bf16.mxu0 0
      %1746 = vmatpush2.bf16.msra.mxu0 0
      %1747 = vmatprep.subr.bf16.mxu0 0
      %1748 = vmatpush2.bf16.msra.mxu0 0
      %1749 = vmatprep.subr.bf16.mxu0 0
      %1750 = vmatpush2.bf16.msra.mxu0 0
      %1751 = vmatprep.subr.bf16.mxu0 0
      %1752 = vmatpush2.bf16.msra.mxu0 0
      %1753 = vmatprep.subr.bf16.mxu0 0
      %1754 = vmatpush2.bf16.msra.mxu0 0
      %1755 = vmatprep.subr.bf16.mxu0 0
      %1756 = vmatpush2.bf16.msra.mxu0 0
      %1757 = vmatprep.subr.bf16.mxu0 0
      %1758 = vmatpush2.bf16.msra.mxu0 0
      %1759 = vmatprep.mubr.bf16.mxu0 0
      %1760 = vmatmul.mubr.bf16.gmra.mxu0 %v1701
      %v1761 = vpop.f32.mrf.mxu0
      %v1762 = vadd.f32 0.0, %v1761
      %v1763 = vpop.f32.mrf.mxu0
      %v1764 = vadd.f32 0.0, %v1763
      %v1765 = vpop.f32.mrf.mxu0
      %v1766 = vpop.f32.mrf.mxu0
      %1767 = vdwg.mxu0
      %1768 = vmatprep.subr.bf16.mxu0 0
      %1769 = vmatpush1.bf16.msra.mxu0 0
      %1770 = vmatprep.subr.bf16.mxu0 0
      %1771 = vmatpush1.bf16.msra.mxu0 0
      %1772 = vmatprep.subr.bf16.mxu0 0
      %1773 = vmatpush1.bf16.msra.mxu0 0
      %1774 = vmatprep.subr.bf16.mxu0 0
      %1775 = vmatpush1.bf16.msra.mxu0 0
      %1776 = vmatprep.subr.bf16.mxu0 0
      %1777 = vmatpush1.bf16.msra.mxu0 0
      %1778 = vmatprep.subr.bf16.mxu0 0
      %1779 = vmatpush1.bf16.msra.mxu0 0
      %1780 = vmatprep.subr.bf16.mxu0 0
      %1781 = vmatpush1.bf16.msra.mxu0 0
      %1782 = vmatprep.subr.bf16.mxu0 %v1713
      %1783 = vmatpush1.bf16.msra.mxu0 %v1710
      %1784 = vmatprep.subr.bf16.mxu0 0
      %1785 = vmatpush2.bf16.msra.mxu0 0
      %1786 = vmatprep.subr.bf16.mxu0 0
      %1787 = vmatpush2.bf16.msra.mxu0 0
      %1788 = vmatprep.subr.bf16.mxu0 0
      %1789 = vmatpush2.bf16.msra.mxu0 0
      %1790 = vmatprep.subr.bf16.mxu0 0
      %1791 = vmatpush2.bf16.msra.mxu0 0
      %1792 = vmatprep.subr.bf16.mxu0 0
      %1793 = vmatpush2.bf16.msra.mxu0 0
      %1794 = vmatprep.subr.bf16.mxu0 0
      %1795 = vmatpush2.bf16.msra.mxu0 0
      %1796 = vmatprep.subr.bf16.mxu0 0
      %1797 = vmatpush2.bf16.msra.mxu0 0
      %1798 = vmatprep.subr.bf16.mxu0 0
      %1799 = vmatpush2.bf16.msra.mxu0 0
      %1800 = vmatprep.mubr.bf16.mxu0 0
      %1801 = vmatmul.mubr.bf16.gmra.mxu0 %v1701
      %v1802 = vpop.f32.mrf.mxu0
      %v1803 = vadd.f32 0.0, %v1802
      %v1804 = vpop.f32.mrf.mxu0
      %v1805 = vadd.f32 0.0, %v1804
      %v1806 = vpop.f32.mrf.mxu0
      %v1807 = vpop.f32.mrf.mxu0
      %1808 = vdwg.mxu0
      %1809 = vmatprep.subr.bf16.mxu0 0
      %1810 = vmatpush1.bf16.msra.mxu0 0
      %1811 = vmatprep.subr.bf16.mxu0 0
      %1812 = vmatpush1.bf16.msra.mxu0 0
      %1813 = vmatprep.subr.bf16.mxu0 0
      %1814 = vmatpush1.bf16.msra.mxu0 0
      %1815 = vmatprep.subr.bf16.mxu0 0
      %1816 = vmatpush1.bf16.msra.mxu0 0
      %1817 = vmatprep.subr.bf16.mxu0 0
      %1818 = vmatpush1.bf16.msra.mxu0 0
      %1819 = vmatprep.subr.bf16.mxu0 0
      %1820 = vmatpush1.bf16.msra.mxu0 0
      %1821 = vmatprep.subr.bf16.mxu0 0
      %1822 = vmatpush1.bf16.msra.mxu0 0
      %1823 = vmatprep.subr.bf16.mxu0 %v1719
      %1824 = vmatpush1.bf16.msra.mxu0 %v1716
      %1825 = vmatprep.subr.bf16.mxu0 0
      %1826 = vmatpush2.bf16.msra.mxu0 0
      %1827 = vmatprep.subr.bf16.mxu0 0
      %1828 = vmatpush2.bf16.msra.mxu0 0
      %1829 = vmatprep.subr.bf16.mxu0 0
      %1830 = vmatpush2.bf16.msra.mxu0 0
      %1831 = vmatprep.subr.bf16.mxu0 0
      %1832 = vmatpush2.bf16.msra.mxu0 0
      %1833 = vmatprep.subr.bf16.mxu0 0
      %1834 = vmatpush2.bf16.msra.mxu0 0
      %1835 = vmatprep.subr.bf16.mxu0 0
      %1836 = vmatpush2.bf16.msra.mxu0 0
      %1837 = vmatprep.subr.bf16.mxu0 0
      %1838 = vmatpush2.bf16.msra.mxu0 0
      %1839 = vmatprep.subr.bf16.mxu0 0
      %1840 = vmatpush2.bf16.msra.mxu0 0
      %1841 = vmatprep.mubr.bf16.mxu0 0
      %1842 = vmatmul.mubr.bf16.gmra.mxu0 %v1701
      %v1843 = vpop.f32.mrf.mxu0
      %v1844 = vadd.f32 0.0, %v1843
      %v1845 = vpop.f32.mrf.mxu0
      %v1846 = vadd.f32 0.0, %v1845
      %v1847 = vpop.f32.mrf.mxu0
      %v1848 = vpop.f32.mrf.mxu0
      %1849 = vdwg.mxu0
      %1850 = vmatprep.subr.bf16.mxu0 0
      %1851 = vmatpush1.bf16.msra.mxu0 0
      %1852 = vmatprep.subr.bf16.mxu0 0
      %1853 = vmatpush1.bf16.msra.mxu0 0
      %1854 = vmatprep.subr.bf16.mxu0 0
      %1855 = vmatpush1.bf16.msra.mxu0 0
      %1856 = vmatprep.subr.bf16.mxu0 0
      %1857 = vmatpush1.bf16.msra.mxu0 0
      %1858 = vmatprep.subr.bf16.mxu0 0
      %1859 = vmatpush1.bf16.msra.mxu0 0
      %1860 = vmatprep.subr.bf16.mxu0 0
      %1861 = vmatpush1.bf16.msra.mxu0 0
      %1862 = vmatprep.subr.bf16.mxu0 0
      %1863 = vmatpush1.bf16.msra.mxu0 0
      %1864 = vmatprep.subr.bf16.mxu0 %v1725
      %1865 = vmatpush1.bf16.msra.mxu0 %v1722
      %1866 = vmatprep.subr.bf16.mxu0 0
      %1867 = vmatpush2.bf16.msra.mxu0 0
      %1868 = vmatprep.subr.bf16.mxu0 0
      %1869 = vmatpush2.bf16.msra.mxu0 0
      %1870 = vmatprep.subr.bf16.mxu0 0
      %1871 = vmatpush2.bf16.msra.mxu0 0
      %1872 = vmatprep.subr.bf16.mxu0 0
      %1873 = vmatpush2.bf16.msra.mxu0 0
      %1874 = vmatprep.subr.bf16.mxu0 0
      %1875 = vmatpush2.bf16.msra.mxu0 0
      %1876 = vmatprep.subr.bf16.mxu0 0
      %1877 = vmatpush2.bf16.msra.mxu0 0
      %1878 = vmatprep.subr.bf16.mxu0 0
      %1879 = vmatpush2.bf16.msra.mxu0 0
      %1880 = vmatprep.subr.bf16.mxu0 0
      %1881 = vmatpush2.bf16.msra.mxu0 0
      %1882 = vmatprep.mubr.bf16.mxu0 0
      %1883 = vmatmul.mubr.bf16.gmra.mxu0 %v1701
      %v1884 = vpop.f32.mrf.mxu0
      %v1885 = vadd.f32 0.0, %v1884
      %v1886 = vpop.f32.mrf.mxu0
      %v1887 = vadd.f32 0.0, %v1886
      %v1888 = vpop.f32.mrf.mxu0
      %v1889 = vpop.f32.mrf.mxu0
      %1890 = vdwg.mxu0
      %v1891 = vadd.f32 %v1616, %v1762
      %v1892 = vadd.f32 %v1617, %v1764
      %v1893 = vadd.f32 %v1618, %v1803
      %v1894 = vadd.f32 %v1619, %v1805
      %v1895 = vadd.f32 %v1620, %v1844
      %v1896 = vadd.f32 %v1621, %v1846
      %v1897 = vadd.f32 %v1622, %v1885
      %v1898 = vadd.f32 %v1623, %v1887
      %s1899 = scalar_lea.vmem %s2, 12
      %v1900 = vld [vmem:[%s1899] sm:$0x3]
      %v1901 = vld [vmem:[#allocation2] sm:$0xff]
      %v1902 = vld [vmem:[#allocation2 + $0x8] sm:$0xff]
      %v1903 = vld [vmem:[#allocation2 + $0x10] sm:$0x3]
      %v1907 = vcombine.high %v1901, %v1901
      %v1909 = vunpack.c.l.s4 1983009808
      %v1910 = vunpack.c.0.s8 %v1909
      %v1911 = vlaneseq
      %v1912 = vshrl.u32 %v1911, 7
      %v1913 = vsub.s32 %v1910, %v1912
      %v1914 = vrot.slane %v1901, %v1913
      %v1916 = vunpack.c.l.s4 1983009808
      %v1917 = vunpack.c.0.s8 %v1916
      %v1918 = vlaneseq
      %v1919 = vshrl.u32 %v1918, 7
      %v1920 = vsub.s32 %v1917, %v1919
      %v1921 = vrot.slane %v1907, %v1920
      %v1922 = vcombine.high %v1914, %v1914
      %v1923 = vcombine.high %v1921, %v1921
      %v1924 = vcombine.high %v1902, %v1902
      %v1926 = vunpack.c.l.s4 1983009808
      %v1927 = vunpack.c.0.s8 %v1926
      %v1928 = vlaneseq
      %v1929 = vshrl.u32 %v1928, 7
      %v1930 = vsub.s32 %v1927, %v1929
      %v1931 = vrot.slane %v1902, %v1930
      %v1933 = vunpack.c.l.s4 1983009808
      %v1934 = vunpack.c.0.s8 %v1933
      %v1935 = vlaneseq
      %v1936 = vshrl.u32 %v1935, 7
      %v1937 = vsub.s32 %v1934, %v1936
      %v1938 = vrot.slane %v1924, %v1937
      %v1939 = vcombine.high %v1931, %v1931
      %v1940 = vcombine.high %v1938, %v1938
      %v1942 = vunpack.c.l.s4 1983009808
      %v1943 = vunpack.c.0.s8 %v1942
      %v1944 = vlaneseq
      %v1945 = vshrl.u32 %v1944, 7
      %v1946 = vsub.s32 %v1943, %v1945
      %v1947 = vrot.slane %v1903, %v1946
      %1948 = vrot.lane.b32.xlu0 %v1914, 108
      %v1949 = vpop.permute.xlu0 %1948
      %1950 = vrot.lane.b32.xlu0 %v1922, 108
      %v1951 = vpop.permute.xlu0 %1950
      %1952 = vrot.lane.b32.xlu0 %v1921, 108
      %v1953 = vpop.permute.xlu0 %1952
      %1954 = vrot.lane.b32.xlu0 %v1923, 108
      %v1955 = vpop.permute.xlu0 %1954
      %1956 = vrot.lane.b32.xlu0 %v1931, 108
      %v1957 = vpop.permute.xlu0 %1956
      %1958 = vrot.lane.b32.xlu0 %v1939, 108
      %v1959 = vpop.permute.xlu0 %1958
      %1960 = vrot.lane.b32.xlu0 %v1938, 108
      %v1961 = vpop.permute.xlu0 %1960
      %1962 = vrot.lane.b32.xlu0 %v1940, 108
      %v1963 = vpop.permute.xlu0 %1962
      %1964 = vrot.lane.b32.xlu0 %v1947, 108
      %v1965 = vpop.permute.xlu0 %1964
      %vm1966 = vcmask 883712
      %v1967 = vsel %vm1966, %v1949, %v1951
      %v1968 = vsel %vm1966, %v1951, %v1953
      %v1969 = vsel %vm1966, %v1953, %v1955
      %v1970 = vsel %vm1966, %v1955, %v1957
      %v1971 = vsel %vm1966, %v1957, %v1959
      %v1972 = vsel %vm1966, %v1959, %v1961
      %v1973 = vsel %vm1966, %v1961, %v1963
      %v1974 = vsel %vm1966, %v1963, %v1965
      %v1976 = vsel %vm415, %v1900, 0
      %v1979 = vsel %vm419, %v1967, 0
      %v1982 = vsel %vm419, %v1968, 0
      %v1985 = vsel %vm419, %v1969, 0
      %v1988 = vsel %vm419, %v1970, 0
      %v1991 = vsel %vm419, %v1971, 0
      %v1994 = vsel %vm419, %v1972, 0
      %v1997 = vsel %vm419, %v1973, 0
      %v2000 = vsel %vm419, %v1974, 0
      %2002 = vmatprep.subr.bf16.mxu0 0
      %2003 = vmatpush1.bf16.msra.mxu0 0
      %2004 = vmatprep.subr.bf16.mxu0 0
      %2005 = vmatpush1.bf16.msra.mxu0 0
      %2006 = vmatprep.subr.bf16.mxu0 0
      %2007 = vmatpush1.bf16.msra.mxu0 0
      %2008 = vmatprep.subr.bf16.mxu0 0
      %2009 = vmatpush1.bf16.msra.mxu0 0
      %2010 = vmatprep.subr.bf16.mxu0 0
      %2011 = vmatpush1.bf16.msra.mxu0 0
      %2012 = vmatprep.subr.bf16.mxu0 0
      %2013 = vmatpush1.bf16.msra.mxu0 0
      %2014 = vmatprep.subr.bf16.mxu0 0
      %2015 = vmatpush1.bf16.msra.mxu0 0
      %2016 = vmatprep.subr.bf16.mxu0 %v1982
      %2017 = vmatpush1.bf16.msra.mxu0 %v1979
      %2018 = vmatprep.subr.bf16.mxu0 0
      %2019 = vmatpush2.bf16.msra.mxu0 0
      %2020 = vmatprep.subr.bf16.mxu0 0
      %2021 = vmatpush2.bf16.msra.mxu0 0
      %2022 = vmatprep.subr.bf16.mxu0 0
      %2023 = vmatpush2.bf16.msra.mxu0 0
      %2024 = vmatprep.subr.bf16.mxu0 0
      %2025 = vmatpush2.bf16.msra.mxu0 0
      %2026 = vmatprep.subr.bf16.mxu0 0
      %2027 = vmatpush2.bf16.msra.mxu0 0
      %2028 = vmatprep.subr.bf16.mxu0 0
      %2029 = vmatpush2.bf16.msra.mxu0 0
      %2030 = vmatprep.subr.bf16.mxu0 0
      %2031 = vmatpush2.bf16.msra.mxu0 0
      %2032 = vmatprep.subr.bf16.mxu0 0
      %2033 = vmatpush2.bf16.msra.mxu0 0
      %2034 = vmatprep.mubr.bf16.mxu0 0
      %2035 = vmatmul.mubr.bf16.gmra.mxu0 %v1976
      %v2036 = vpop.f32.mrf.mxu0
      %v2037 = vadd.f32 0.0, %v2036
      %v2038 = vpop.f32.mrf.mxu0
      %v2039 = vadd.f32 0.0, %v2038
      %v2040 = vpop.f32.mrf.mxu0
      %v2041 = vpop.f32.mrf.mxu0
      %2042 = vdwg.mxu0
      %2043 = vmatprep.subr.bf16.mxu0 0
      %2044 = vmatpush1.bf16.msra.mxu0 0
      %2045 = vmatprep.subr.bf16.mxu0 0
      %2046 = vmatpush1.bf16.msra.mxu0 0
      %2047 = vmatprep.subr.bf16.mxu0 0
      %2048 = vmatpush1.bf16.msra.mxu0 0
      %2049 = vmatprep.subr.bf16.mxu0 0
      %2050 = vmatpush1.bf16.msra.mxu0 0
      %2051 = vmatprep.subr.bf16.mxu0 0
      %2052 = vmatpush1.bf16.msra.mxu0 0
      %2053 = vmatprep.subr.bf16.mxu0 0
      %2054 = vmatpush1.bf16.msra.mxu0 0
      %2055 = vmatprep.subr.bf16.mxu0 0
      %2056 = vmatpush1.bf16.msra.mxu0 0
      %2057 = vmatprep.subr.bf16.mxu0 %v1988
      %2058 = vmatpush1.bf16.msra.mxu0 %v1985
      %2059 = vmatprep.subr.bf16.mxu0 0
      %2060 = vmatpush2.bf16.msra.mxu0 0
      %2061 = vmatprep.subr.bf16.mxu0 0
      %2062 = vmatpush2.bf16.msra.mxu0 0
      %2063 = vmatprep.subr.bf16.mxu0 0
      %2064 = vmatpush2.bf16.msra.mxu0 0
      %2065 = vmatprep.subr.bf16.mxu0 0
      %2066 = vmatpush2.bf16.msra.mxu0 0
      %2067 = vmatprep.subr.bf16.mxu0 0
      %2068 = vmatpush2.bf16.msra.mxu0 0
      %2069 = vmatprep.subr.bf16.mxu0 0
      %2070 = vmatpush2.bf16.msra.mxu0 0
      %2071 = vmatprep.subr.bf16.mxu0 0
      %2072 = vmatpush2.bf16.msra.mxu0 0
      %2073 = vmatprep.subr.bf16.mxu0 0
      %2074 = vmatpush2.bf16.msra.mxu0 0
      %2075 = vmatprep.mubr.bf16.mxu0 0
      %2076 = vmatmul.mubr.bf16.gmra.mxu0 %v1976
      %v2077 = vpop.f32.mrf.mxu0
      %v2078 = vadd.f32 0.0, %v2077
      %v2079 = vpop.f32.mrf.mxu0
      %v2080 = vadd.f32 0.0, %v2079
      %v2081 = vpop.f32.mrf.mxu0
      %v2082 = vpop.f32.mrf.mxu0
      %2083 = vdwg.mxu0
      %2084 = vmatprep.subr.bf16.mxu0 0
      %2085 = vmatpush1.bf16.msra.mxu0 0
      %2086 = vmatprep.subr.bf16.mxu0 0
      %2087 = vmatpush1.bf16.msra.mxu0 0
      %2088 = vmatprep.subr.bf16.mxu0 0
      %2089 = vmatpush1.bf16.msra.mxu0 0
      %2090 = vmatprep.subr.bf16.mxu0 0
      %2091 = vmatpush1.bf16.msra.mxu0 0
      %2092 = vmatprep.subr.bf16.mxu0 0
      %2093 = vmatpush1.bf16.msra.mxu0 0
      %2094 = vmatprep.subr.bf16.mxu0 0
      %2095 = vmatpush1.bf16.msra.mxu0 0
      %2096 = vmatprep.subr.bf16.mxu0 0
      %2097 = vmatpush1.bf16.msra.mxu0 0
      %2098 = vmatprep.subr.bf16.mxu0 %v1994
      %2099 = vmatpush1.bf16.msra.mxu0 %v1991
      %2100 = vmatprep.subr.bf16.mxu0 0
      %2101 = vmatpush2.bf16.msra.mxu0 0
      %2102 = vmatprep.subr.bf16.mxu0 0
      %2103 = vmatpush2.bf16.msra.mxu0 0
      %2104 = vmatprep.subr.bf16.mxu0 0
      %2105 = vmatpush2.bf16.msra.mxu0 0
      %2106 = vmatprep.subr.bf16.mxu0 0
      %2107 = vmatpush2.bf16.msra.mxu0 0
      %2108 = vmatprep.subr.bf16.mxu0 0
      %2109 = vmatpush2.bf16.msra.mxu0 0
      %2110 = vmatprep.subr.bf16.mxu0 0
      %2111 = vmatpush2.bf16.msra.mxu0 0
      %2112 = vmatprep.subr.bf16.mxu0 0
      %2113 = vmatpush2.bf16.msra.mxu0 0
      %2114 = vmatprep.subr.bf16.mxu0 0
      %2115 = vmatpush2.bf16.msra.mxu0 0
      %2116 = vmatprep.mubr.bf16.mxu0 0
      %2117 = vmatmul.mubr.bf16.gmra.mxu0 %v1976
      %v2118 = vpop.f32.mrf.mxu0
      %v2119 = vadd.f32 0.0, %v2118
      %v2120 = vpop.f32.mrf.mxu0
      %v2121 = vadd.f32 0.0, %v2120
      %v2122 = vpop.f32.mrf.mxu0
      %v2123 = vpop.f32.mrf.mxu0
      %2124 = vdwg.mxu0
      %2125 = vmatprep.subr.bf16.mxu0 0
      %2126 = vmatpush1.bf16.msra.mxu0 0
      %2127 = vmatprep.subr.bf16.mxu0 0
      %2128 = vmatpush1.bf16.msra.mxu0 0
      %2129 = vmatprep.subr.bf16.mxu0 0
      %2130 = vmatpush1.bf16.msra.mxu0 0
      %2131 = vmatprep.subr.bf16.mxu0 0
      %2132 = vmatpush1.bf16.msra.mxu0 0
      %2133 = vmatprep.subr.bf16.mxu0 0
      %2134 = vmatpush1.bf16.msra.mxu0 0
      %2135 = vmatprep.subr.bf16.mxu0 0
      %2136 = vmatpush1.bf16.msra.mxu0 0
      %2137 = vmatprep.subr.bf16.mxu0 0
      %2138 = vmatpush1.bf16.msra.mxu0 0
      %2139 = vmatprep.subr.bf16.mxu0 %v2000
      %2140 = vmatpush1.bf16.msra.mxu0 %v1997
      %2141 = vmatprep.subr.bf16.mxu0 0
      %2142 = vmatpush2.bf16.msra.mxu0 0
      %2143 = vmatprep.subr.bf16.mxu0 0
      %2144 = vmatpush2.bf16.msra.mxu0 0
      %2145 = vmatprep.subr.bf16.mxu0 0
      %2146 = vmatpush2.bf16.msra.mxu0 0
      %2147 = vmatprep.subr.bf16.mxu0 0
      %2148 = vmatpush2.bf16.msra.mxu0 0
      %2149 = vmatprep.subr.bf16.mxu0 0
      %2150 = vmatpush2.bf16.msra.mxu0 0
      %2151 = vmatprep.subr.bf16.mxu0 0
      %2152 = vmatpush2.bf16.msra.mxu0 0
      %2153 = vmatprep.subr.bf16.mxu0 0
      %2154 = vmatpush2.bf16.msra.mxu0 0
      %2155 = vmatprep.subr.bf16.mxu0 0
      %2156 = vmatpush2.bf16.msra.mxu0 0
      %2157 = vmatprep.mubr.bf16.mxu0 0
      %2158 = vmatmul.mubr.bf16.gmra.mxu0 %v1976
      %v2159 = vpop.f32.mrf.mxu0
      %v2160 = vadd.f32 0.0, %v2159
      %v2161 = vpop.f32.mrf.mxu0
      %v2162 = vadd.f32 0.0, %v2161
      %v2163 = vpop.f32.mrf.mxu0
      %v2164 = vpop.f32.mrf.mxu0
      %2165 = vdwg.mxu0
      %v2166 = vadd.f32 %v1891, %v2037
      %v2167 = vadd.f32 %v1892, %v2039
      %v2168 = vadd.f32 %v1893, %v2078
      %v2169 = vadd.f32 %v1894, %v2080
      %v2170 = vadd.f32 %v1895, %v2119
      %v2171 = vadd.f32 %v1896, %v2121
      %v2172 = vadd.f32 %v1897, %v2160
      %v2173 = vadd.f32 %v1898, %v2162
      %s2174 = scalar_lea.vmem %s2, 14
      %v2175 = vld [vmem:[%s2174] sm:$0x3]
      %v2176 = vld [vmem:[#allocation2] sm:$0xff]
      %v2177 = vld [vmem:[#allocation2 + $0x8] sm:$0xff]
      %v2178 = vld [vmem:[#allocation2 + $0x10] sm:$0x3]
      %v2182 = vcombine.high %v2176, %v2176
      %v2184 = vunpack.c.l.s4 1983009808
      %v2185 = vunpack.c.0.s8 %v2184
      %v2186 = vlaneseq
      %v2187 = vshrl.u32 %v2186, 7
      %v2188 = vsub.s32 %v2185, %v2187
      %v2189 = vrot.slane %v2176, %v2188
      %v2191 = vunpack.c.l.s4 1983009808
      %v2192 = vunpack.c.0.s8 %v2191
      %v2193 = vlaneseq
      %v2194 = vshrl.u32 %v2193, 7
      %v2195 = vsub.s32 %v2192, %v2194
      %v2196 = vrot.slane %v2182, %v2195
      %v2197 = vcombine.high %v2189, %v2189
      %v2198 = vcombine.high %v2196, %v2196
      %v2199 = vcombine.high %v2177, %v2177
      %v2201 = vunpack.c.l.s4 1983009808
      %v2202 = vunpack.c.0.s8 %v2201
      %v2203 = vlaneseq
      %v2204 = vshrl.u32 %v2203, 7
      %v2205 = vsub.s32 %v2202, %v2204
      %v2206 = vrot.slane %v2177, %v2205
      %v2208 = vunpack.c.l.s4 1983009808
      %v2209 = vunpack.c.0.s8 %v2208
      %v2210 = vlaneseq
      %v2211 = vshrl.u32 %v2210, 7
      %v2212 = vsub.s32 %v2209, %v2211
      %v2213 = vrot.slane %v2199, %v2212
      %v2214 = vcombine.high %v2206, %v2206
      %v2215 = vcombine.high %v2213, %v2213
      %v2217 = vunpack.c.l.s4 1983009808
      %v2218 = vunpack.c.0.s8 %v2217
      %v2219 = vlaneseq
      %v2220 = vshrl.u32 %v2219, 7
      %v2221 = vsub.s32 %v2218, %v2220
      %v2222 = vrot.slane %v2178, %v2221
      %2223 = vrot.lane.b32.xlu0 %v2189, 107
      %v2224 = vpop.permute.xlu0 %2223
      %2225 = vrot.lane.b32.xlu0 %v2197, 107
      %v2226 = vpop.permute.xlu0 %2225
      %2227 = vrot.lane.b32.xlu0 %v2196, 107
      %v2228 = vpop.permute.xlu0 %2227
      %2229 = vrot.lane.b32.xlu0 %v2198, 107
      %v2230 = vpop.permute.xlu0 %2229
      %2231 = vrot.lane.b32.xlu0 %v2206, 107
      %v2232 = vpop.permute.xlu0 %2231
      %2233 = vrot.lane.b32.xlu0 %v2214, 107
      %v2234 = vpop.permute.xlu0 %2233
      %2235 = vrot.lane.b32.xlu0 %v2213, 107
      %v2236 = vpop.permute.xlu0 %2235
      %2237 = vrot.lane.b32.xlu0 %v2215, 107
      %v2238 = vpop.permute.xlu0 %2237
      %2239 = vrot.lane.b32.xlu0 %v2222, 107
      %v2240 = vpop.permute.xlu0 %2239
      %vm2241 = vcmask 875520
      %v2242 = vsel %vm2241, %v2224, %v2226
      %v2243 = vsel %vm2241, %v2226, %v2228
      %v2244 = vsel %vm2241, %v2228, %v2230
      %v2245 = vsel %vm2241, %v2230, %v2232
      %v2246 = vsel %vm2241, %v2232, %v2234
      %v2247 = vsel %vm2241, %v2234, %v2236
      %v2248 = vsel %vm2241, %v2236, %v2238
      %v2249 = vsel %vm2241, %v2238, %v2240
      %v2251 = vsel %vm415, %v2175, 0
      %v2254 = vsel %vm419, %v2242, 0
      %v2257 = vsel %vm419, %v2243, 0
      %v2260 = vsel %vm419, %v2244, 0
      %v2263 = vsel %vm419, %v2245, 0
      %v2266 = vsel %vm419, %v2246, 0
      %v2269 = vsel %vm419, %v2247, 0
      %v2272 = vsel %vm419, %v2248, 0
      %v2275 = vsel %vm419, %v2249, 0
      %2277 = vmatprep.subr.bf16.mxu0 0
      %2278 = vmatpush1.bf16.msra.mxu0 0
      %2279 = vmatprep.subr.bf16.mxu0 0
      %2280 = vmatpush1.bf16.msra.mxu0 0
      %2281 = vmatprep.subr.bf16.mxu0 0
      %2282 = vmatpush1.bf16.msra.mxu0 0
      %2283 = vmatprep.subr.bf16.mxu0 0
      %2284 = vmatpush1.bf16.msra.mxu0 0
      %2285 = vmatprep.subr.bf16.mxu0 0
      %2286 = vmatpush1.bf16.msra.mxu0 0
      %2287 = vmatprep.subr.bf16.mxu0 0
      %2288 = vmatpush1.bf16.msra.mxu0 0
      %2289 = vmatprep.subr.bf16.mxu0 0
      %2290 = vmatpush1.bf16.msra.mxu0 0
      %2291 = vmatprep.subr.bf16.mxu0 %v2257
      %2292 = vmatpush1.bf16.msra.mxu0 %v2254
      %2293 = vmatprep.subr.bf16.mxu0 0
      %2294 = vmatpush2.bf16.msra.mxu0 0
      %2295 = vmatprep.subr.bf16.mxu0 0
      %2296 = vmatpush2.bf16.msra.mxu0 0
      %2297 = vmatprep.subr.bf16.mxu0 0
      %2298 = vmatpush2.bf16.msra.mxu0 0
      %2299 = vmatprep.subr.bf16.mxu0 0
      %2300 = vmatpush2.bf16.msra.mxu0 0
      %2301 = vmatprep.subr.bf16.mxu0 0
      %2302 = vmatpush2.bf16.msra.mxu0 0
      %2303 = vmatprep.subr.bf16.mxu0 0
      %2304 = vmatpush2.bf16.msra.mxu0 0
      %2305 = vmatprep.subr.bf16.mxu0 0
      %2306 = vmatpush2.bf16.msra.mxu0 0
      %2307 = vmatprep.subr.bf16.mxu0 0
      %2308 = vmatpush2.bf16.msra.mxu0 0
      %2309 = vmatprep.mubr.bf16.mxu0 0
      %2310 = vmatmul.mubr.bf16.gmra.mxu0 %v2251
      %v2311 = vpop.f32.mrf.mxu0
      %v2312 = vadd.f32 0.0, %v2311
      %v2313 = vpop.f32.mrf.mxu0
      %v2314 = vadd.f32 0.0, %v2313
      %v2315 = vpop.f32.mrf.mxu0
      %v2316 = vpop.f32.mrf.mxu0
      %2317 = vdwg.mxu0
      %2318 = vmatprep.subr.bf16.mxu0 0
      %2319 = vmatpush1.bf16.msra.mxu0 0
      %2320 = vmatprep.subr.bf16.mxu0 0
      %2321 = vmatpush1.bf16.msra.mxu0 0
      %2322 = vmatprep.subr.bf16.mxu0 0
      %2323 = vmatpush1.bf16.msra.mxu0 0
      %2324 = vmatprep.subr.bf16.mxu0 0
      %2325 = vmatpush1.bf16.msra.mxu0 0
      %2326 = vmatprep.subr.bf16.mxu0 0
      %2327 = vmatpush1.bf16.msra.mxu0 0
      %2328 = vmatprep.subr.bf16.mxu0 0
      %2329 = vmatpush1.bf16.msra.mxu0 0
      %2330 = vmatprep.subr.bf16.mxu0 0
      %2331 = vmatpush1.bf16.msra.mxu0 0
      %2332 = vmatprep.subr.bf16.mxu0 %v2263
      %2333 = vmatpush1.bf16.msra.mxu0 %v2260
      %2334 = vmatprep.subr.bf16.mxu0 0
      %2335 = vmatpush2.bf16.msra.mxu0 0
      %2336 = vmatprep.subr.bf16.mxu0 0
      %2337 = vmatpush2.bf16.msra.mxu0 0
      %2338 = vmatprep.subr.bf16.mxu0 0
      %2339 = vmatpush2.bf16.msra.mxu0 0
      %2340 = vmatprep.subr.bf16.mxu0 0
      %2341 = vmatpush2.bf16.msra.mxu0 0
      %2342 = vmatprep.subr.bf16.mxu0 0
      %2343 = vmatpush2.bf16.msra.mxu0 0
      %2344 = vmatprep.subr.bf16.mxu0 0
      %2345 = vmatpush2.bf16.msra.mxu0 0
      %2346 = vmatprep.subr.bf16.mxu0 0
      %2347 = vmatpush2.bf16.msra.mxu0 0
      %2348 = vmatprep.subr.bf16.mxu0 0
      %2349 = vmatpush2.bf16.msra.mxu0 0
      %2350 = vmatprep.mubr.bf16.mxu0 0
      %2351 = vmatmul.mubr.bf16.gmra.mxu0 %v2251
      %v2352 = vpop.f32.mrf.mxu0
      %v2353 = vadd.f32 0.0, %v2352
      %v2354 = vpop.f32.mrf.mxu0
      %v2355 = vadd.f32 0.0, %v2354
      %v2356 = vpop.f32.mrf.mxu0
      %v2357 = vpop.f32.mrf.mxu0
      %2358 = vdwg.mxu0
      %2359 = vmatprep.subr.bf16.mxu0 0
      %2360 = vmatpush1.bf16.msra.mxu0 0
      %2361 = vmatprep.subr.bf16.mxu0 0
      %2362 = vmatpush1.bf16.msra.mxu0 0
      %2363 = vmatprep.subr.bf16.mxu0 0
      %2364 = vmatpush1.bf16.msra.mxu0 0
      %2365 = vmatprep.subr.bf16.mxu0 0
      %2366 = vmatpush1.bf16.msra.mxu0 0
      %2367 = vmatprep.subr.bf16.mxu0 0
      %2368 = vmatpush1.bf16.msra.mxu0 0
      %2369 = vmatprep.subr.bf16.mxu0 0
      %2370 = vmatpush1.bf16.msra.mxu0 0
      %2371 = vmatprep.subr.bf16.mxu0 0
      %2372 = vmatpush1.bf16.msra.mxu0 0
      %2373 = vmatprep.subr.bf16.mxu0 %v2269
      %2374 = vmatpush1.bf16.msra.mxu0 %v2266
      %2375 = vmatprep.subr.bf16.mxu0 0
      %2376 = vmatpush2.bf16.msra.mxu0 0
      %2377 = vmatprep.subr.bf16.mxu0 0
      %2378 = vmatpush2.bf16.msra.mxu0 0
      %2379 = vmatprep.subr.bf16.mxu0 0
      %2380 = vmatpush2.bf16.msra.mxu0 0
      %2381 = vmatprep.subr.bf16.mxu0 0
      %2382 = vmatpush2.bf16.msra.mxu0 0
      %2383 = vmatprep.subr.bf16.mxu0 0
      %2384 = vmatpush2.bf16.msra.mxu0 0
      %2385 = vmatprep.subr.bf16.mxu0 0
      %2386 = vmatpush2.bf16.msra.mxu0 0
      %2387 = vmatprep.subr.bf16.mxu0 0
      %2388 = vmatpush2.bf16.msra.mxu0 0
      %2389 = vmatprep.subr.bf16.mxu0 0
      %2390 = vmatpush2.bf16.msra.mxu0 0
      %2391 = vmatprep.mubr.bf16.mxu0 0
      %2392 = vmatmul.mubr.bf16.gmra.mxu0 %v2251
      %v2393 = vpop.f32.mrf.mxu0
      %v2394 = vadd.f32 0.0, %v2393
      %v2395 = vpop.f32.mrf.mxu0
      %v2396 = vadd.f32 0.0, %v2395
      %v2397 = vpop.f32.mrf.mxu0
      %v2398 = vpop.f32.mrf.mxu0
      %2399 = vdwg.mxu0
      %2400 = vmatprep.subr.bf16.mxu0 0
      %2401 = vmatpush1.bf16.msra.mxu0 0
      %2402 = vmatprep.subr.bf16.mxu0 0
      %2403 = vmatpush1.bf16.msra.mxu0 0
      %2404 = vmatprep.subr.bf16.mxu0 0
      %2405 = vmatpush1.bf16.msra.mxu0 0
      %2406 = vmatprep.subr.bf16.mxu0 0
      %2407 = vmatpush1.bf16.msra.mxu0 0
      %2408 = vmatprep.subr.bf16.mxu0 0
      %2409 = vmatpush1.bf16.msra.mxu0 0
      %2410 = vmatprep.subr.bf16.mxu0 0
      %2411 = vmatpush1.bf16.msra.mxu0 0
      %2412 = vmatprep.subr.bf16.mxu0 0
      %2413 = vmatpush1.bf16.msra.mxu0 0
      %2414 = vmatprep.subr.bf16.mxu0 %v2275
      %2415 = vmatpush1.bf16.msra.mxu0 %v2272
      %2416 = vmatprep.subr.bf16.mxu0 0
      %2417 = vmatpush2.bf16.msra.mxu0 0
      %2418 = vmatprep.subr.bf16.mxu0 0
      %2419 = vmatpush2.bf16.msra.mxu0 0
      %2420 = vmatprep.subr.bf16.mxu0 0
      %2421 = vmatpush2.bf16.msra.mxu0 0
      %2422 = vmatprep.subr.bf16.mxu0 0
      %2423 = vmatpush2.bf16.msra.mxu0 0
      %2424 = vmatprep.subr.bf16.mxu0 0
      %2425 = vmatpush2.bf16.msra.mxu0 0
      %2426 = vmatprep.subr.bf16.mxu0 0
      %2427 = vmatpush2.bf16.msra.mxu0 0
      %2428 = vmatprep.subr.bf16.mxu0 0
      %2429 = vmatpush2.bf16.msra.mxu0 0
      %2430 = vmatprep.subr.bf16.mxu0 0
      %2431 = vmatpush2.bf16.msra.mxu0 0
      %2432 = vmatprep.mubr.bf16.mxu0 0
      %2433 = vmatmul.mubr.bf16.gmra.mxu0 %v2251
      %v2434 = vpop.f32.mrf.mxu0
      %v2435 = vadd.f32 0.0, %v2434
      %v2436 = vpop.f32.mrf.mxu0
      %v2437 = vadd.f32 0.0, %v2436
      %v2438 = vpop.f32.mrf.mxu0
      %v2439 = vpop.f32.mrf.mxu0
      %2440 = vdwg.mxu0
      %v2441 = vadd.f32 %v2166, %v2312
      %v2442 = vadd.f32 %v2167, %v2314
      %v2443 = vadd.f32 %v2168, %v2353
      %v2444 = vadd.f32 %v2169, %v2355
      %v2445 = vadd.f32 %v2170, %v2394
      %v2446 = vadd.f32 %v2171, %v2396
      %v2447 = vadd.f32 %v2172, %v2435
      %v2448 = vadd.f32 %v2173, %v2437
      %s2449 = scalar_lea.vmem %s2, 16
      %v2450 = vld [vmem:[%s2449] sm:$0x3]
      %v2451 = vld [vmem:[#allocation2] sm:$0xff]
      %v2452 = vld [vmem:[#allocation2 + $0x8] sm:$0xff]
      %v2453 = vld [vmem:[#allocation2 + $0x10] sm:$0x3]
      %v2457 = vcombine.high %v2451, %v2451
      %v2459 = vunpack.c.l.s4 1983009808
      %v2460 = vunpack.c.0.s8 %v2459
      %v2461 = vlaneseq
      %v2462 = vshrl.u32 %v2461, 7
      %v2463 = vsub.s32 %v2460, %v2462
      %v2464 = vrot.slane %v2451, %v2463
      %v2466 = vunpack.c.l.s4 1983009808
      %v2467 = vunpack.c.0.s8 %v2466
      %v2468 = vlaneseq
      %v2469 = vshrl.u32 %v2468, 7
      %v2470 = vsub.s32 %v2467, %v2469
      %v2471 = vrot.slane %v2457, %v2470
      %v2472 = vcombine.high %v2464, %v2464
      %v2473 = vcombine.high %v2471, %v2471
      %v2474 = vcombine.high %v2452, %v2452
      %v2476 = vunpack.c.l.s4 1983009808
      %v2477 = vunpack.c.0.s8 %v2476
      %v2478 = vlaneseq
      %v2479 = vshrl.u32 %v2478, 7
      %v2480 = vsub.s32 %v2477, %v2479
      %v2481 = vrot.slane %v2452, %v2480
      %v2483 = vunpack.c.l.s4 1983009808
      %v2484 = vunpack.c.0.s8 %v2483
      %v2485 = vlaneseq
      %v2486 = vshrl.u32 %v2485, 7
      %v2487 = vsub.s32 %v2484, %v2486
      %v2488 = vrot.slane %v2474, %v2487
      %v2489 = vcombine.high %v2481, %v2481
      %v2490 = vcombine.high %v2488, %v2488
      %v2492 = vunpack.c.l.s4 1983009808
      %v2493 = vunpack.c.0.s8 %v2492
      %v2494 = vlaneseq
      %v2495 = vshrl.u32 %v2494, 7
      %v2496 = vsub.s32 %v2493, %v2495
      %v2497 = vrot.slane %v2453, %v2496
      %2498 = vrot.lane.b32.xlu0 %v2464, 106
      %v2499 = vpop.permute.xlu0 %2498
      %2500 = vrot.lane.b32.xlu0 %v2472, 106
      %v2501 = vpop.permute.xlu0 %2500
      %2502 = vrot.lane.b32.xlu0 %v2471, 106
      %v2503 = vpop.permute.xlu0 %2502
      %2504 = vrot.lane.b32.xlu0 %v2473, 106
      %v2505 = vpop.permute.xlu0 %2504
      %2506 = vrot.lane.b32.xlu0 %v2481, 106
      %v2507 = vpop.permute.xlu0 %2506
      %2508 = vrot.lane.b32.xlu0 %v2489, 106
      %v2509 = vpop.permute.xlu0 %2508
      %2510 = vrot.lane.b32.xlu0 %v2488, 106
      %v2511 = vpop.permute.xlu0 %2510
      %2512 = vrot.lane.b32.xlu0 %v2490, 106
      %v2513 = vpop.permute.xlu0 %2512
      %2514 = vrot.lane.b32.xlu0 %v2497, 106
      %v2515 = vpop.permute.xlu0 %2514
      %vm2516 = vcmask 867328
      %v2517 = vsel %vm2516, %v2499, %v2501
      %v2518 = vsel %vm2516, %v2501, %v2503
      %v2519 = vsel %vm2516, %v2503, %v2505
      %v2520 = vsel %vm2516, %v2505, %v2507
      %v2521 = vsel %vm2516, %v2507, %v2509
      %v2522 = vsel %vm2516, %v2509, %v2511
      %v2523 = vsel %vm2516, %v2511, %v2513
      %v2524 = vsel %vm2516, %v2513, %v2515
      %v2526 = vsel %vm415, %v2450, 0
      %v2529 = vsel %vm419, %v2517, 0
      %v2532 = vsel %vm419, %v2518, 0
      %v2535 = vsel %vm419, %v2519, 0
      %v2538 = vsel %vm419, %v2520, 0
      %v2541 = vsel %vm419, %v2521, 0
      %v2544 = vsel %vm419, %v2522, 0
      %v2547 = vsel %vm419, %v2523, 0
      %v2550 = vsel %vm419, %v2524, 0
      %2552 = vmatprep.subr.bf16.mxu0 0
      %2553 = vmatpush1.bf16.msra.mxu0 0
      %2554 = vmatprep.subr.bf16.mxu0 0
      %2555 = vmatpush1.bf16.msra.mxu0 0
      %2556 = vmatprep.subr.bf16.mxu0 0
      %2557 = vmatpush1.bf16.msra.mxu0 0
      %2558 = vmatprep.subr.bf16.mxu0 0
      %2559 = vmatpush1.bf16.msra.mxu0 0
      %2560 = vmatprep.subr.bf16.mxu0 0
      %2561 = vmatpush1.bf16.msra.mxu0 0
      %2562 = vmatprep.subr.bf16.mxu0 0
      %2563 = vmatpush1.bf16.msra.mxu0 0
      %2564 = vmatprep.subr.bf16.mxu0 0
      %2565 = vmatpush1.bf16.msra.mxu0 0
      %2566 = vmatprep.subr.bf16.mxu0 %v2532
      %2567 = vmatpush1.bf16.msra.mxu0 %v2529
      %2568 = vmatprep.subr.bf16.mxu0 0
      %2569 = vmatpush2.bf16.msra.mxu0 0
      %2570 = vmatprep.subr.bf16.mxu0 0
      %2571 = vmatpush2.bf16.msra.mxu0 0
      %2572 = vmatprep.subr.bf16.mxu0 0
      %2573 = vmatpush2.bf16.msra.mxu0 0
      %2574 = vmatprep.subr.bf16.mxu0 0
      %2575 = vmatpush2.bf16.msra.mxu0 0
      %2576 = vmatprep.subr.bf16.mxu0 0
      %2577 = vmatpush2.bf16.msra.mxu0 0
      %2578 = vmatprep.subr.bf16.mxu0 0
      %2579 = vmatpush2.bf16.msra.mxu0 0
      %2580 = vmatprep.subr.bf16.mxu0 0
      %2581 = vmatpush2.bf16.msra.mxu0 0
      %2582 = vmatprep.subr.bf16.mxu0 0
      %2583 = vmatpush2.bf16.msra.mxu0 0
      %2584 = vmatprep.mubr.bf16.mxu0 0
      %2585 = vmatmul.mubr.bf16.gmra.mxu0 %v2526
      %v2586 = vpop.f32.mrf.mxu0
      %v2587 = vadd.f32 0.0, %v2586
      %v2588 = vpop.f32.mrf.mxu0
      %v2589 = vadd.f32 0.0, %v2588
      %v2590 = vpop.f32.mrf.mxu0
      %v2591 = vpop.f32.mrf.mxu0
      %2592 = vdwg.mxu0
      %2593 = vmatprep.subr.bf16.mxu0 0
      %2594 = vmatpush1.bf16.msra.mxu0 0
      %2595 = vmatprep.subr.bf16.mxu0 0
      %2596 = vmatpush1.bf16.msra.mxu0 0
      %2597 = vmatprep.subr.bf16.mxu0 0
      %2598 = vmatpush1.bf16.msra.mxu0 0
      %2599 = vmatprep.subr.bf16.mxu0 0
      %2600 = vmatpush1.bf16.msra.mxu0 0
      %2601 = vmatprep.subr.bf16.mxu0 0
      %2602 = vmatpush1.bf16.msra.mxu0 0
      %2603 = vmatprep.subr.bf16.mxu0 0
      %2604 = vmatpush1.bf16.msra.mxu0 0
      %2605 = vmatprep.subr.bf16.mxu0 0
      %2606 = vmatpush1.bf16.msra.mxu0 0
      %2607 = vmatprep.subr.bf16.mxu0 %v2538
      %2608 = vmatpush1.bf16.msra.mxu0 %v2535
      %2609 = vmatprep.subr.bf16.mxu0 0
      %2610 = vmatpush2.bf16.msra.mxu0 0
      %2611 = vmatprep.subr.bf16.mxu0 0
      %2612 = vmatpush2.bf16.msra.mxu0 0
      %2613 = vmatprep.subr.bf16.mxu0 0
      %2614 = vmatpush2.bf16.msra.mxu0 0
      %2615 = vmatprep.subr.bf16.mxu0 0
      %2616 = vmatpush2.bf16.msra.mxu0 0
      %2617 = vmatprep.subr.bf16.mxu0 0
      %2618 = vmatpush2.bf16.msra.mxu0 0
      %2619 = vmatprep.subr.bf16.mxu0 0
      %2620 = vmatpush2.bf16.msra.mxu0 0
      %2621 = vmatprep.subr.bf16.mxu0 0
      %2622 = vmatpush2.bf16.msra.mxu0 0
      %2623 = vmatprep.subr.bf16.mxu0 0
      %2624 = vmatpush2.bf16.msra.mxu0 0
      %2625 = vmatprep.mubr.bf16.mxu0 0
      %2626 = vmatmul.mubr.bf16.gmra.mxu0 %v2526
      %v2627 = vpop.f32.mrf.mxu0
      %v2628 = vadd.f32 0.0, %v2627
      %v2629 = vpop.f32.mrf.mxu0
      %v2630 = vadd.f32 0.0, %v2629
      %v2631 = vpop.f32.mrf.mxu0
      %v2632 = vpop.f32.mrf.mxu0
      %2633 = vdwg.mxu0
      %2634 = vmatprep.subr.bf16.mxu0 0
      %2635 = vmatpush1.bf16.msra.mxu0 0
      %2636 = vmatprep.subr.bf16.mxu0 0
      %2637 = vmatpush1.bf16.msra.mxu0 0
      %2638 = vmatprep.subr.bf16.mxu0 0
      %2639 = vmatpush1.bf16.msra.mxu0 0
      %2640 = vmatprep.subr.bf16.mxu0 0
      %2641 = vmatpush1.bf16.msra.mxu0 0
      %2642 = vmatprep.subr.bf16.mxu0 0
      %2643 = vmatpush1.bf16.msra.mxu0 0
      %2644 = vmatprep.subr.bf16.mxu0 0
      %2645 = vmatpush1.bf16.msra.mxu0 0
      %2646 = vmatprep.subr.bf16.mxu0 0
      %2647 = vmatpush1.bf16.msra.mxu0 0
      %2648 = vmatprep.subr.bf16.mxu0 %v2544
      %2649 = vmatpush1.bf16.msra.mxu0 %v2541
      %2650 = vmatprep.subr.bf16.mxu0 0
      %2651 = vmatpush2.bf16.msra.mxu0 0
      %2652 = vmatprep.subr.bf16.mxu0 0
      %2653 = vmatpush2.bf16.msra.mxu0 0
      %2654 = vmatprep.subr.bf16.mxu0 0
      %2655 = vmatpush2.bf16.msra.mxu0 0
      %2656 = vmatprep.subr.bf16.mxu0 0
      %2657 = vmatpush2.bf16.msra.mxu0 0
      %2658 = vmatprep.subr.bf16.mxu0 0
      %2659 = vmatpush2.bf16.msra.mxu0 0
      %2660 = vmatprep.subr.bf16.mxu0 0
      %2661 = vmatpush2.bf16.msra.mxu0 0
      %2662 = vmatprep.subr.bf16.mxu0 0
      %2663 = vmatpush2.bf16.msra.mxu0 0
      %2664 = vmatprep.subr.bf16.mxu0 0
      %2665 = vmatpush2.bf16.msra.mxu0 0
      %2666 = vmatprep.mubr.bf16.mxu0 0
      %2667 = vmatmul.mubr.bf16.gmra.mxu0 %v2526
      %v2668 = vpop.f32.mrf.mxu0
      %v2669 = vadd.f32 0.0, %v2668
      %v2670 = vpop.f32.mrf.mxu0
      %v2671 = vadd.f32 0.0, %v2670
      %v2672 = vpop.f32.mrf.mxu0
      %v2673 = vpop.f32.mrf.mxu0
      %2674 = vdwg.mxu0
      %2675 = vmatprep.subr.bf16.mxu0 0
      %2676 = vmatpush1.bf16.msra.mxu0 0
      %2677 = vmatprep.subr.bf16.mxu0 0
      %2678 = vmatpush1.bf16.msra.mxu0 0
      %2679 = vmatprep.subr.bf16.mxu0 0
      %2680 = vmatpush1.bf16.msra.mxu0 0
      %2681 = vmatprep.subr.bf16.mxu0 0
      %2682 = vmatpush1.bf16.msra.mxu0 0
      %2683 = vmatprep.subr.bf16.mxu0 0
      %2684 = vmatpush1.bf16.msra.mxu0 0
      %2685 = vmatprep.subr.bf16.mxu0 0
      %2686 = vmatpush1.bf16.msra.mxu0 0
      %2687 = vmatprep.subr.bf16.mxu0 0
      %2688 = vmatpush1.bf16.msra.mxu0 0
      %2689 = vmatprep.subr.bf16.mxu0 %v2550
      %2690 = vmatpush1.bf16.msra.mxu0 %v2547
      %2691 = vmatprep.subr.bf16.mxu0 0
      %2692 = vmatpush2.bf16.msra.mxu0 0
      %2693 = vmatprep.subr.bf16.mxu0 0
      %2694 = vmatpush2.bf16.msra.mxu0 0
      %2695 = vmatprep.subr.bf16.mxu0 0
      %2696 = vmatpush2.bf16.msra.mxu0 0
      %2697 = vmatprep.subr.bf16.mxu0 0
      %2698 = vmatpush2.bf16.msra.mxu0 0
      %2699 = vmatprep.subr.bf16.mxu0 0
      %2700 = vmatpush2.bf16.msra.mxu0 0
      %2701 = vmatprep.subr.bf16.mxu0 0
      %2702 = vmatpush2.bf16.msra.mxu0 0
      %2703 = vmatprep.subr.bf16.mxu0 0
      %2704 = vmatpush2.bf16.msra.mxu0 0
      %2705 = vmatprep.subr.bf16.mxu0 0
      %2706 = vmatpush2.bf16.msra.mxu0 0
      %2707 = vmatprep.mubr.bf16.mxu0 0
      %2708 = vmatmul.mubr.bf16.gmra.mxu0 %v2526
      %v2709 = vpop.f32.mrf.mxu0
      %v2710 = vadd.f32 0.0, %v2709
      %v2711 = vpop.f32.mrf.mxu0
      %v2712 = vadd.f32 0.0, %v2711
      %v2713 = vpop.f32.mrf.mxu0
      %v2714 = vpop.f32.mrf.mxu0
      %2715 = vdwg.mxu0
      %v2716 = vadd.f32 %v2441, %v2587
      %v2717 = vadd.f32 %v2442, %v2589
      %v2718 = vadd.f32 %v2443, %v2628
      %v2719 = vadd.f32 %v2444, %v2630
      %v2720 = vadd.f32 %v2445, %v2669
      %v2721 = vadd.f32 %v2446, %v2671
      %v2722 = vadd.f32 %v2447, %v2710
      %v2723 = vadd.f32 %v2448, %v2712
      %s2724 = scalar_lea.vmem %s2, 18
      %v2725 = vld [vmem:[%s2724] sm:$0x3]
      %v2726 = vld [vmem:[#allocation2] sm:$0xff]
      %v2727 = vld [vmem:[#allocation2 + $0x8] sm:$0xff]
      %v2728 = vld [vmem:[#allocation2 + $0x10] sm:$0x3]
      %v2732 = vcombine.high %v2726, %v2726
      %v2734 = vunpack.c.l.s4 1983009808
      %v2735 = vunpack.c.0.s8 %v2734
      %v2736 = vlaneseq
      %v2737 = vshrl.u32 %v2736, 7
      %v2738 = vsub.s32 %v2735, %v2737
      %v2739 = vrot.slane %v2726, %v2738
      %v2741 = vunpack.c.l.s4 1983009808
      %v2742 = vunpack.c.0.s8 %v2741
      %v2743 = vlaneseq
      %v2744 = vshrl.u32 %v2743, 7
      %v2745 = vsub.s32 %v2742, %v2744
      %v2746 = vrot.slane %v2732, %v2745
      %v2747 = vcombine.high %v2739, %v2739
      %v2748 = vcombine.high %v2746, %v2746
      %v2749 = vcombine.high %v2727, %v2727
      %v2751 = vunpack.c.l.s4 1983009808
      %v2752 = vunpack.c.0.s8 %v2751
      %v2753 = vlaneseq
      %v2754 = vshrl.u32 %v2753, 7
      %v2755 = vsub.s32 %v2752, %v2754
      %v2756 = vrot.slane %v2727, %v2755
      %v2758 = vunpack.c.l.s4 1983009808
      %v2759 = vunpack.c.0.s8 %v2758
      %v2760 = vlaneseq
      %v2761 = vshrl.u32 %v2760, 7
      %v2762 = vsub.s32 %v2759, %v2761
      %v2763 = vrot.slane %v2749, %v2762
      %v2764 = vcombine.high %v2756, %v2756
      %v2765 = vcombine.high %v2763, %v2763
      %v2767 = vunpack.c.l.s4 1983009808
      %v2768 = vunpack.c.0.s8 %v2767
      %v2769 = vlaneseq
      %v2770 = vshrl.u32 %v2769, 7
      %v2771 = vsub.s32 %v2768, %v2770
      %v2772 = vrot.slane %v2728, %v2771
      %2773 = vrot.lane.b32.xlu0 %v2739, 28
      %v2774 = vpop.permute.xlu0 %2773
      %2775 = vrot.lane.b32.xlu0 %v2747, 28
      %v2776 = vpop.permute.xlu0 %2775
      %2777 = vrot.lane.b32.xlu0 %v2746, 28
      %v2778 = vpop.permute.xlu0 %2777
      %2779 = vrot.lane.b32.xlu0 %v2748, 28
      %v2780 = vpop.permute.xlu0 %2779
      %2781 = vrot.lane.b32.xlu0 %v2756, 28
      %v2782 = vpop.permute.xlu0 %2781
      %2783 = vrot.lane.b32.xlu0 %v2764, 28
      %v2784 = vpop.permute.xlu0 %2783
      %2785 = vrot.lane.b32.xlu0 %v2763, 28
      %v2786 = vpop.permute.xlu0 %2785
      %2787 = vrot.lane.b32.xlu0 %v2765, 28
      %v2788 = vpop.permute.xlu0 %2787
      %2789 = vrot.lane.b32.xlu0 %v2772, 28
      %v2790 = vpop.permute.xlu0 %2789
      %vm2791 = vcmask 228352
      %v2792 = vsel %vm2791, %v2774, %v2776
      %v2793 = vsel %vm2791, %v2776, %v2778
      %v2794 = vsel %vm2791, %v2778, %v2780
      %v2795 = vsel %vm2791, %v2780, %v2782
      %v2796 = vsel %vm2791, %v2782, %v2784
      %v2797 = vsel %vm2791, %v2784, %v2786
      %v2798 = vsel %vm2791, %v2786, %v2788
      %v2799 = vsel %vm2791, %v2788, %v2790
      %v2801 = vsel %vm415, %v2725, 0
      %v2804 = vsel %vm419, %v2792, 0
      %v2807 = vsel %vm419, %v2793, 0
      %v2810 = vsel %vm419, %v2794, 0
      %v2813 = vsel %vm419, %v2795, 0
      %v2816 = vsel %vm419, %v2796, 0
      %v2819 = vsel %vm419, %v2797, 0
      %v2822 = vsel %vm419, %v2798, 0
      %v2825 = vsel %vm419, %v2799, 0
      %2827 = vmatprep.subr.bf16.mxu0 0
      %2828 = vmatpush1.bf16.msra.mxu0 0
      %2829 = vmatprep.subr.bf16.mxu0 0
      %2830 = vmatpush1.bf16.msra.mxu0 0
      %2831 = vmatprep.subr.bf16.mxu0 0
      %2832 = vmatpush1.bf16.msra.mxu0 0
      %2833 = vmatprep.subr.bf16.mxu0 0
      %2834 = vmatpush1.bf16.msra.mxu0 0
      %2835 = vmatprep.subr.bf16.mxu0 0
      %2836 = vmatpush1.bf16.msra.mxu0 0
      %2837 = vmatprep.subr.bf16.mxu0 0
      %2838 = vmatpush1.bf16.msra.mxu0 0
      %2839 = vmatprep.subr.bf16.mxu0 0
      %2840 = vmatpush1.bf16.msra.mxu0 0
      %2841 = vmatprep.subr.bf16.mxu0 %v2807
      %2842 = vmatpush1.bf16.msra.mxu0 %v2804
      %2843 = vmatprep.subr.bf16.mxu0 0
      %2844 = vmatpush2.bf16.msra.mxu0 0
      %2845 = vmatprep.subr.bf16.mxu0 0
      %2846 = vmatpush2.bf16.msra.mxu0 0
      %2847 = vmatprep.subr.bf16.mxu0 0
      %2848 = vmatpush2.bf16.msra.mxu0 0
      %2849 = vmatprep.subr.bf16.mxu0 0
      %2850 = vmatpush2.bf16.msra.mxu0 0
      %2851 = vmatprep.subr.bf16.mxu0 0
      %2852 = vmatpush2.bf16.msra.mxu0 0
      %2853 = vmatprep.subr.bf16.mxu0 0
      %2854 = vmatpush2.bf16.msra.mxu0 0
      %2855 = vmatprep.subr.bf16.mxu0 0
      %2856 = vmatpush2.bf16.msra.mxu0 0
      %2857 = vmatprep.subr.bf16.mxu0 0
      %2858 = vmatpush2.bf16.msra.mxu0 0
      %2859 = vmatprep.mubr.bf16.mxu0 0
      %2860 = vmatmul.mubr.bf16.gmra.mxu0 %v2801
      %v2861 = vpop.f32.mrf.mxu0
      %v2862 = vadd.f32 0.0, %v2861
      %v2863 = vpop.f32.mrf.mxu0
      %v2864 = vadd.f32 0.0, %v2863
      %v2865 = vpop.f32.mrf.mxu0
      %v2866 = vpop.f32.mrf.mxu0
      %2867 = vdwg.mxu0
      %2868 = vmatprep.subr.bf16.mxu0 0
      %2869 = vmatpush1.bf16.msra.mxu0 0
      %2870 = vmatprep.subr.bf16.mxu0 0
      %2871 = vmatpush1.bf16.msra.mxu0 0
      %2872 = vmatprep.subr.bf16.mxu0 0
      %2873 = vmatpush1.bf16.msra.mxu0 0
      %2874 = vmatprep.subr.bf16.mxu0 0
      %2875 = vmatpush1.bf16.msra.mxu0 0
      %2876 = vmatprep.subr.bf16.mxu0 0
      %2877 = vmatpush1.bf16.msra.mxu0 0
      %2878 = vmatprep.subr.bf16.mxu0 0
      %2879 = vmatpush1.bf16.msra.mxu0 0
      %2880 = vmatprep.subr.bf16.mxu0 0
      %2881 = vmatpush1.bf16.msra.mxu0 0
      %2882 = vmatprep.subr.bf16.mxu0 %v2813
      %2883 = vmatpush1.bf16.msra.mxu0 %v2810
      %2884 = vmatprep.subr.bf16.mxu0 0
      %2885 = vmatpush2.bf16.msra.mxu0 0
      %2886 = vmatprep.subr.bf16.mxu0 0
      %2887 = vmatpush2.bf16.msra.mxu0 0
      %2888 = vmatprep.subr.bf16.mxu0 0
      %2889 = vmatpush2.bf16.msra.mxu0 0
      %2890 = vmatprep.subr.bf16.mxu0 0
      %2891 = vmatpush2.bf16.msra.mxu0 0
      %2892 = vmatprep.subr.bf16.mxu0 0
      %2893 = vmatpush2.bf16.msra.mxu0 0
      %2894 = vmatprep.subr.bf16.mxu0 0
      %2895 = vmatpush2.bf16.msra.mxu0 0
      %2896 = vmatprep.subr.bf16.mxu0 0
      %2897 = vmatpush2.bf16.msra.mxu0 0
      %2898 = vmatprep.subr.bf16.mxu0 0
      %2899 = vmatpush2.bf16.msra.mxu0 0
      %2900 = vmatprep.mubr.bf16.mxu0 0
      %2901 = vmatmul.mubr.bf16.gmra.mxu0 %v2801
      %v2902 = vpop.f32.mrf.mxu0
      %v2903 = vadd.f32 0.0, %v2902
      %v2904 = vpop.f32.mrf.mxu0
      %v2905 = vadd.f32 0.0, %v2904
      %v2906 = vpop.f32.mrf.mxu0
      %v2907 = vpop.f32.mrf.mxu0
      %2908 = vdwg.mxu0
      %2909 = vmatprep.subr.bf16.mxu0 0
      %2910 = vmatpush1.bf16.msra.mxu0 0
      %2911 = vmatprep.subr.bf16.mxu0 0
      %2912 = vmatpush1.bf16.msra.mxu0 0
      %2913 = vmatprep.subr.bf16.mxu0 0
      %2914 = vmatpush1.bf16.msra.mxu0 0
      %2915 = vmatprep.subr.bf16.mxu0 0
      %2916 = vmatpush1.bf16.msra.mxu0 0
      %2917 = vmatprep.subr.bf16.mxu0 0
      %2918 = vmatpush1.bf16.msra.mxu0 0
      %2919 = vmatprep.subr.bf16.mxu0 0
      %2920 = vmatpush1.bf16.msra.mxu0 0
      %2921 = vmatprep.subr.bf16.mxu0 0
      %2922 = vmatpush1.bf16.msra.mxu0 0
      %2923 = vmatprep.subr.bf16.mxu0 %v2819
      %2924 = vmatpush1.bf16.msra.mxu0 %v2816
      %2925 = vmatprep.subr.bf16.mxu0 0
      %2926 = vmatpush2.bf16.msra.mxu0 0
      %2927 = vmatprep.subr.bf16.mxu0 0
      %2928 = vmatpush2.bf16.msra.mxu0 0
      %2929 = vmatprep.subr.bf16.mxu0 0
      %2930 = vmatpush2.bf16.msra.mxu0 0
      %2931 = vmatprep.subr.bf16.mxu0 0
      %2932 = vmatpush2.bf16.msra.mxu0 0
      %2933 = vmatprep.subr.bf16.mxu0 0
      %2934 = vmatpush2.bf16.msra.mxu0 0
      %2935 = vmatprep.subr.bf16.mxu0 0
      %2936 = vmatpush2.bf16.msra.mxu0 0
      %2937 = vmatprep.subr.bf16.mxu0 0
      %2938 = vmatpush2.bf16.msra.mxu0 0
      %2939 = vmatprep.subr.bf16.mxu0 0
      %2940 = vmatpush2.bf16.msra.mxu0 0
      %2941 = vmatprep.mubr.bf16.mxu0 0
      %2942 = vmatmul.mubr.bf16.gmra.mxu0 %v2801
      %v2943 = vpop.f32.mrf.mxu0
      %v2944 = vadd.f32 0.0, %v2943
      %v2945 = vpop.f32.mrf.mxu0
      %v2946 = vadd.f32 0.0, %v2945
      %v2947 = vpop.f32.mrf.mxu0
      %v2948 = vpop.f32.mrf.mxu0
      %2949 = vdwg.mxu0
      %2950 = vmatprep.subr.bf16.mxu0 0
      %2951 = vmatpush1.bf16.msra.mxu0 0
      %2952 = vmatprep.subr.bf16.mxu0 0
      %2953 = vmatpush1.bf16.msra.mxu0 0
      %2954 = vmatprep.subr.bf16.mxu0 0
      %2955 = vmatpush1.bf16.msra.mxu0 0
      %2956 = vmatprep.subr.bf16.mxu0 0
      %2957 = vmatpush1.bf16.msra.mxu0 0
      %2958 = vmatprep.subr.bf16.mxu0 0
      %2959 = vmatpush1.bf16.msra.mxu0 0
      %2960 = vmatprep.subr.bf16.mxu0 0
      %2961 = vmatpush1.bf16.msra.mxu0 0
      %2962 = vmatprep.subr.bf16.mxu0 0
      %2963 = vmatpush1.bf16.msra.mxu0 0
      %2964 = vmatprep.subr.bf16.mxu0 %v2825
      %2965 = vmatpush1.bf16.msra.mxu0 %v2822
      %2966 = vmatprep.subr.bf16.mxu0 0
      %2967 = vmatpush2.bf16.msra.mxu0 0
      %2968 = vmatprep.subr.bf16.mxu0 0
      %2969 = vmatpush2.bf16.msra.mxu0 0
      %2970 = vmatprep.subr.bf16.mxu0 0
      %2971 = vmatpush2.bf16.msra.mxu0 0
      %2972 = vmatprep.subr.bf16.mxu0 0
      %2973 = vmatpush2.bf16.msra.mxu0 0
      %2974 = vmatprep.subr.bf16.mxu0 0
      %2975 = vmatpush2.bf16.msra.mxu0 0
      %2976 = vmatprep.subr.bf16.mxu0 0
      %2977 = vmatpush2.bf16.msra.mxu0 0
      %2978 = vmatprep.subr.bf16.mxu0 0
      %2979 = vmatpush2.bf16.msra.mxu0 0
      %2980 = vmatprep.subr.bf16.mxu0 0
      %2981 = vmatpush2.bf16.msra.mxu0 0
      %2982 = vmatprep.mubr.bf16.mxu0 0
      %2983 = vmatmul.mubr.bf16.gmra.mxu0 %v2801
      %v2984 = vpop.f32.mrf.mxu0
      %v2985 = vadd.f32 0.0, %v2984
      %v2986 = vpop.f32.mrf.mxu0
      %v2987 = vadd.f32 0.0, %v2986
      %v2988 = vpop.f32.mrf.mxu0
      %v2989 = vpop.f32.mrf.mxu0
      %2990 = vdwg.mxu0
      %v2991 = vadd.f32 %v2716, %v2862
      %v2992 = vadd.f32 %v2717, %v2864
      %v2993 = vadd.f32 %v2718, %v2903
      %v2994 = vadd.f32 %v2719, %v2905
      %v2995 = vadd.f32 %v2720, %v2944
      %v2996 = vadd.f32 %v2721, %v2946
      %v2997 = vadd.f32 %v2722, %v2985
      %v2998 = vadd.f32 %v2723, %v2987
      %s2999 = scalar_lea.vmem %s2, 20
      %v3000 = vld [vmem:[%s2999] sm:$0x3]
      %v3001 = vld [vmem:[#allocation2] sm:$0xff]
      %v3002 = vld [vmem:[#allocation2 + $0x8] sm:$0xff]
      %v3003 = vld [vmem:[#allocation2 + $0x10] sm:$0x3]
      %v3007 = vcombine.high %v3001, %v3001
      %v3009 = vunpack.c.l.s4 1983009808
      %v3010 = vunpack.c.0.s8 %v3009
      %v3011 = vlaneseq
      %v3012 = vshrl.u32 %v3011, 7
      %v3013 = vsub.s32 %v3010, %v3012
      %v3014 = vrot.slane %v3001, %v3013
      %v3016 = vunpack.c.l.s4 1983009808
      %v3017 = vunpack.c.0.s8 %v3016
      %v3018 = vlaneseq
      %v3019 = vshrl.u32 %v3018, 7
      %v3020 = vsub.s32 %v3017, %v3019
      %v3021 = vrot.slane %v3007, %v3020
      %v3022 = vcombine.high %v3014, %v3014
      %v3023 = vcombine.high %v3021, %v3021
      %v3024 = vcombine.high %v3002, %v3002
      %v3026 = vunpack.c.l.s4 1983009808
      %v3027 = vunpack.c.0.s8 %v3026
      %v3028 = vlaneseq
      %v3029 = vshrl.u32 %v3028, 7
      %v3030 = vsub.s32 %v3027, %v3029
      %v3031 = vrot.slane %v3002, %v3030
      %v3033 = vunpack.c.l.s4 1983009808
      %v3034 = vunpack.c.0.s8 %v3033
      %v3035 = vlaneseq
      %v3036 = vshrl.u32 %v3035, 7
      %v3037 = vsub.s32 %v3034, %v3036
      %v3038 = vrot.slane %v3024, %v3037
      %v3039 = vcombine.high %v3031, %v3031
      %v3040 = vcombine.high %v3038, %v3038
      %v3042 = vunpack.c.l.s4 1983009808
      %v3043 = vunpack.c.0.s8 %v3042
      %v3044 = vlaneseq
      %v3045 = vshrl.u32 %v3044, 7
      %v3046 = vsub.s32 %v3043, %v3045
      %v3047 = vrot.slane %v3003, %v3046
      %3048 = vrot.lane.b32.xlu0 %v3014, 27
      %v3049 = vpop.permute.xlu0 %3048
      %3050 = vrot.lane.b32.xlu0 %v3022, 27
      %v3051 = vpop.permute.xlu0 %3050
      %3052 = vrot.lane.b32.xlu0 %v3021, 27
      %v3053 = vpop.permute.xlu0 %3052
      %3054 = vrot.lane.b32.xlu0 %v3023, 27
      %v3055 = vpop.permute.xlu0 %3054
      %3056 = vrot.lane.b32.xlu0 %v3031, 27
      %v3057 = vpop.permute.xlu0 %3056
      %3058 = vrot.lane.b32.xlu0 %v3039, 27
      %v3059 = vpop.permute.xlu0 %3058
      %3060 = vrot.lane.b32.xlu0 %v3038, 27
      %v3061 = vpop.permute.xlu0 %3060
      %3062 = vrot.lane.b32.xlu0 %v3040, 27
      %v3063 = vpop.permute.xlu0 %3062
      %3064 = vrot.lane.b32.xlu0 %v3047, 27
      %v3065 = vpop.permute.xlu0 %3064
      %vm3066 = vcmask 220160
      %v3067 = vsel %vm3066, %v3049, %v3051
      %v3068 = vsel %vm3066, %v3051, %v3053
      %v3069 = vsel %vm3066, %v3053, %v3055
      %v3070 = vsel %vm3066, %v3055, %v3057
      %v3071 = vsel %vm3066, %v3057, %v3059
      %v3072 = vsel %vm3066, %v3059, %v3061
      %v3073 = vsel %vm3066, %v3061, %v3063
      %v3074 = vsel %vm3066, %v3063, %v3065
      %v3076 = vsel %vm415, %v3000, 0
      %v3079 = vsel %vm419, %v3067, 0
      %v3082 = vsel %vm419, %v3068, 0
      %v3085 = vsel %vm419, %v3069, 0
      %v3088 = vsel %vm419, %v3070, 0
      %v3091 = vsel %vm419, %v3071, 0
      %v3094 = vsel %vm419, %v3072, 0
      %v3097 = vsel %vm419, %v3073, 0
      %v3100 = vsel %vm419, %v3074, 0
      %3102 = vmatprep.subr.bf16.mxu0 0
      %3103 = vmatpush1.bf16.msra.mxu0 0
      %3104 = vmatprep.subr.bf16.mxu0 0
      %3105 = vmatpush1.bf16.msra.mxu0 0
      %3106 = vmatprep.subr.bf16.mxu0 0
      %3107 = vmatpush1.bf16.msra.mxu0 0
      %3108 = vmatprep.subr.bf16.mxu0 0
      %3109 = vmatpush1.bf16.msra.mxu0 0
      %3110 = vmatprep.subr.bf16.mxu0 0
      %3111 = vmatpush1.bf16.msra.mxu0 0
      %3112 = vmatprep.subr.bf16.mxu0 0
      %3113 = vmatpush1.bf16.msra.mxu0 0
      %3114 = vmatprep.subr.bf16.mxu0 0
      %3115 = vmatpush1.bf16.msra.mxu0 0
      %3116 = vmatprep.subr.bf16.mxu0 %v3082
      %3117 = vmatpush1.bf16.msra.mxu0 %v3079
      %3118 = vmatprep.subr.bf16.mxu0 0
      %3119 = vmatpush2.bf16.msra.mxu0 0
      %3120 = vmatprep.subr.bf16.mxu0 0
      %3121 = vmatpush2.bf16.msra.mxu0 0
      %3122 = vmatprep.subr.bf16.mxu0 0
      %3123 = vmatpush2.bf16.msra.mxu0 0
      %3124 = vmatprep.subr.bf16.mxu0 0
      %3125 = vmatpush2.bf16.msra.mxu0 0
      %3126 = vmatprep.subr.bf16.mxu0 0
      %3127 = vmatpush2.bf16.msra.mxu0 0
      %3128 = vmatprep.subr.bf16.mxu0 0
      %3129 = vmatpush2.bf16.msra.mxu0 0
      %3130 = vmatprep.subr.bf16.mxu0 0
      %3131 = vmatpush2.bf16.msra.mxu0 0
      %3132 = vmatprep.subr.bf16.mxu0 0
      %3133 = vmatpush2.bf16.msra.mxu0 0
      %3134 = vmatprep.mubr.bf16.mxu0 0
      %3135 = vmatmul.mubr.bf16.gmra.mxu0 %v3076
      %v3136 = vpop.f32.mrf.mxu0
      %v3137 = vadd.f32 0.0, %v3136
      %v3138 = vpop.f32.mrf.mxu0
      %v3139 = vadd.f32 0.0, %v3138
      %v3140 = vpop.f32.mrf.mxu0
      %v3141 = vpop.f32.mrf.mxu0
      %3142 = vdwg.mxu0
      %3143 = vmatprep.subr.bf16.mxu0 0
      %3144 = vmatpush1.bf16.msra.mxu0 0
      %3145 = vmatprep.subr.bf16.mxu0 0
      %3146 = vmatpush1.bf16.msra.mxu0 0
      %3147 = vmatprep.subr.bf16.mxu0 0
      %3148 = vmatpush1.bf16.msra.mxu0 0
      %3149 = vmatprep.subr.bf16.mxu0 0
      %3150 = vmatpush1.bf16.msra.mxu0 0
      %3151 = vmatprep.subr.bf16.mxu0 0
      %3152 = vmatpush1.bf16.msra.mxu0 0
      %3153 = vmatprep.subr.bf16.mxu0 0
      %3154 = vmatpush1.bf16.msra.mxu0 0
      %3155 = vmatprep.subr.bf16.mxu0 0
      %3156 = vmatpush1.bf16.msra.mxu0 0
      %3157 = vmatprep.subr.bf16.mxu0 %v3088
      %3158 = vmatpush1.bf16.msra.mxu0 %v3085
      %3159 = vmatprep.subr.bf16.mxu0 0
      %3160 = vmatpush2.bf16.msra.mxu0 0
      %3161 = vmatprep.subr.bf16.mxu0 0
      %3162 = vmatpush2.bf16.msra.mxu0 0
      %3163 = vmatprep.subr.bf16.mxu0 0
      %3164 = vmatpush2.bf16.msra.mxu0 0
      %3165 = vmatprep.subr.bf16.mxu0 0
      %3166 = vmatpush2.bf16.msra.mxu0 0
      %3167 = vmatprep.subr.bf16.mxu0 0
      %3168 = vmatpush2.bf16.msra.mxu0 0
      %3169 = vmatprep.subr.bf16.mxu0 0
      %3170 = vmatpush2.bf16.msra.mxu0 0
      %3171 = vmatprep.subr.bf16.mxu0 0
      %3172 = vmatpush2.bf16.msra.mxu0 0
      %3173 = vmatprep.subr.bf16.mxu0 0
      %3174 = vmatpush2.bf16.msra.mxu0 0
      %3175 = vmatprep.mubr.bf16.mxu0 0
      %3176 = vmatmul.mubr.bf16.gmra.mxu0 %v3076
      %v3177 = vpop.f32.mrf.mxu0
      %v3178 = vadd.f32 0.0, %v3177
      %v3179 = vpop.f32.mrf.mxu0
      %v3180 = vadd.f32 0.0, %v3179
      %v3181 = vpop.f32.mrf.mxu0
      %v3182 = vpop.f32.mrf.mxu0
      %3183 = vdwg.mxu0
      %3184 = vmatprep.subr.bf16.mxu0 0
      %3185 = vmatpush1.bf16.msra.mxu0 0
      %3186 = vmatprep.subr.bf16.mxu0 0
      %3187 = vmatpush1.bf16.msra.mxu0 0
      %3188 = vmatprep.subr.bf16.mxu0 0
      %3189 = vmatpush1.bf16.msra.mxu0 0
      %3190 = vmatprep.subr.bf16.mxu0 0
      %3191 = vmatpush1.bf16.msra.mxu0 0
      %3192 = vmatprep.subr.bf16.mxu0 0
      %3193 = vmatpush1.bf16.msra.mxu0 0
      %3194 = vmatprep.subr.bf16.mxu0 0
      %3195 = vmatpush1.bf16.msra.mxu0 0
      %3196 = vmatprep.subr.bf16.mxu0 0
      %3197 = vmatpush1.bf16.msra.mxu0 0
      %3198 = vmatprep.subr.bf16.mxu0 %v3094
      %3199 = vmatpush1.bf16.msra.mxu0 %v3091
      %3200 = vmatprep.subr.bf16.mxu0 0
      %3201 = vmatpush2.bf16.msra.mxu0 0
      %3202 = vmatprep.subr.bf16.mxu0 0
      %3203 = vmatpush2.bf16.msra.mxu0 0
      %3204 = vmatprep.subr.bf16.mxu0 0
      %3205 = vmatpush2.bf16.msra.mxu0 0
      %3206 = vmatprep.subr.bf16.mxu0 0
      %3207 = vmatpush2.bf16.msra.mxu0 0
      %3208 = vmatprep.subr.bf16.mxu0 0
      %3209 = vmatpush2.bf16.msra.mxu0 0
      %3210 = vmatprep.subr.bf16.mxu0 0
      %3211 = vmatpush2.bf16.msra.mxu0 0
      %3212 = vmatprep.subr.bf16.mxu0 0
      %3213 = vmatpush2.bf16.msra.mxu0 0
      %3214 = vmatprep.subr.bf16.mxu0 0
      %3215 = vmatpush2.bf16.msra.mxu0 0
      %3216 = vmatprep.mubr.bf16.mxu0 0
      %3217 = vmatmul.mubr.bf16.gmra.mxu0 %v3076
      %v3218 = vpop.f32.mrf.mxu0
      %v3219 = vadd.f32 0.0, %v3218
      %v3220 = vpop.f32.mrf.mxu0
      %v3221 = vadd.f32 0.0, %v3220
      %v3222 = vpop.f32.mrf.mxu0
      %v3223 = vpop.f32.mrf.mxu0
      %3224 = vdwg.mxu0
      %3225 = vmatprep.subr.bf16.mxu0 0
      %3226 = vmatpush1.bf16.msra.mxu0 0
      %3227 = vmatprep.subr.bf16.mxu0 0
      %3228 = vmatpush1.bf16.msra.mxu0 0
      %3229 = vmatprep.subr.bf16.mxu0 0
      %3230 = vmatpush1.bf16.msra.mxu0 0
      %3231 = vmatprep.subr.bf16.mxu0 0
      %3232 = vmatpush1.bf16.msra.mxu0 0
      %3233 = vmatprep.subr.bf16.mxu0 0
      %3234 = vmatpush1.bf16.msra.mxu0 0
      %3235 = vmatprep.subr.bf16.mxu0 0
      %3236 = vmatpush1.bf16.msra.mxu0 0
      %3237 = vmatprep.subr.bf16.mxu0 0
      %3238 = vmatpush1.bf16.msra.mxu0 0
      %3239 = vmatprep.subr.bf16.mxu0 %v3100
      %3240 = vmatpush1.bf16.msra.mxu0 %v3097
      %3241 = vmatprep.subr.bf16.mxu0 0
      %3242 = vmatpush2.bf16.msra.mxu0 0
      %3243 = vmatprep.subr.bf16.mxu0 0
      %3244 = vmatpush2.bf16.msra.mxu0 0
      %3245 = vmatprep.subr.bf16.mxu0 0
      %3246 = vmatpush2.bf16.msra.mxu0 0
      %3247 = vmatprep.subr.bf16.mxu0 0
      %3248 = vmatpush2.bf16.msra.mxu0 0
      %3249 = vmatprep.subr.bf16.mxu0 0
      %3250 = vmatpush2.bf16.msra.mxu0 0
      %3251 = vmatprep.subr.bf16.mxu0 0
      %3252 = vmatpush2.bf16.msra.mxu0 0
      %3253 = vmatprep.subr.bf16.mxu0 0
      %3254 = vmatpush2.bf16.msra.mxu0 0
      %3255 = vmatprep.subr.bf16.mxu0 0
      %3256 = vmatpush2.bf16.msra.mxu0 0
      %3257 = vmatprep.mubr.bf16.mxu0 0
      %3258 = vmatmul.mubr.bf16.gmra.mxu0 %v3076
      %v3259 = vpop.f32.mrf.mxu0
      %v3260 = vadd.f32 0.0, %v3259
      %v3261 = vpop.f32.mrf.mxu0
      %v3262 = vadd.f32 0.0, %v3261
      %v3263 = vpop.f32.mrf.mxu0
      %v3264 = vpop.f32.mrf.mxu0
      %3265 = vdwg.mxu0
      %v3266 = vadd.f32 %v2991, %v3137
      %v3267 = vadd.f32 %v2992, %v3139
      %v3268 = vadd.f32 %v2993, %v3178
      %v3269 = vadd.f32 %v2994, %v3180
      %v3270 = vadd.f32 %v2995, %v3219
      %v3271 = vadd.f32 %v2996, %v3221
      %v3272 = vadd.f32 %v2997, %v3260
      %v3273 = vadd.f32 %v2998, %v3262
      %s3274 = scalar_lea.vmem %s2, 22
      %v3275 = vld [vmem:[%s3274] sm:$0x3]
      %v3276 = vld [vmem:[#allocation2] sm:$0xff]
      %v3277 = vld [vmem:[#allocation2 + $0x8] sm:$0xff]
      %v3278 = vld [vmem:[#allocation2 + $0x10] sm:$0x3]
      %v3282 = vcombine.high %v3276, %v3276
      %v3284 = vunpack.c.l.s4 1983009808
      %v3285 = vunpack.c.0.s8 %v3284
      %v3286 = vlaneseq
      %v3287 = vshrl.u32 %v3286, 7
      %v3288 = vsub.s32 %v3285, %v3287
      %v3289 = vrot.slane %v3276, %v3288
      %v3291 = vunpack.c.l.s4 1983009808
      %v3292 = vunpack.c.0.s8 %v3291
      %v3293 = vlaneseq
      %v3294 = vshrl.u32 %v3293, 7
      %v3295 = vsub.s32 %v3292, %v3294
      %v3296 = vrot.slane %v3282, %v3295
      %v3297 = vcombine.high %v3289, %v3289
      %v3298 = vcombine.high %v3296, %v3296
      %v3299 = vcombine.high %v3277, %v3277
      %v3301 = vunpack.c.l.s4 1983009808
      %v3302 = vunpack.c.0.s8 %v3301
      %v3303 = vlaneseq
      %v3304 = vshrl.u32 %v3303, 7
      %v3305 = vsub.s32 %v3302, %v3304
      %v3306 = vrot.slane %v3277, %v3305
      %v3308 = vunpack.c.l.s4 1983009808
      %v3309 = vunpack.c.0.s8 %v3308
      %v3310 = vlaneseq
      %v3311 = vshrl.u32 %v3310, 7
      %v3312 = vsub.s32 %v3309, %v3311
      %v3313 = vrot.slane %v3299, %v3312
      %v3314 = vcombine.high %v3306, %v3306
      %v3315 = vcombine.high %v3313, %v3313
      %v3317 = vunpack.c.l.s4 1983009808
      %v3318 = vunpack.c.0.s8 %v3317
      %v3319 = vlaneseq
      %v3320 = vshrl.u32 %v3319, 7
      %v3321 = vsub.s32 %v3318, %v3320
      %v3322 = vrot.slane %v3278, %v3321
      %3323 = vrot.lane.b32.xlu0 %v3289, 26
      %v3324 = vpop.permute.xlu0 %3323
      %3325 = vrot.lane.b32.xlu0 %v3297, 26
      %v3326 = vpop.permute.xlu0 %3325
      %3327 = vrot.lane.b32.xlu0 %v3296, 26
      %v3328 = vpop.permute.xlu0 %3327
      %3329 = vrot.lane.b32.xlu0 %v3298, 26
      %v3330 = vpop.permute.xlu0 %3329
      %3331 = vrot.lane.b32.xlu0 %v3306, 26
      %v3332 = vpop.permute.xlu0 %3331
      %3333 = vrot.lane.b32.xlu0 %v3314, 26
      %v3334 = vpop.permute.xlu0 %3333
      %3335 = vrot.lane.b32.xlu0 %v3313, 26
      %v3336 = vpop.permute.xlu0 %3335
      %3337 = vrot.lane.b32.xlu0 %v3315, 26
      %v3338 = vpop.permute.xlu0 %3337
      %3339 = vrot.lane.b32.xlu0 %v3322, 26
      %v3340 = vpop.permute.xlu0 %3339
      %vm3341 = vcmask 211968
      %v3342 = vsel %vm3341, %v3324, %v3326
      %v3343 = vsel %vm3341, %v3326, %v3328
      %v3344 = vsel %vm3341, %v3328, %v3330
      %v3345 = vsel %vm3341, %v3330, %v3332
      %v3346 = vsel %vm3341, %v3332, %v3334
      %v3347 = vsel %vm3341, %v3334, %v3336
      %v3348 = vsel %vm3341, %v3336, %v3338
      %v3349 = vsel %vm3341, %v3338, %v3340
      %v3351 = vsel %vm415, %v3275, 0
      %v3354 = vsel %vm419, %v3342, 0
      %v3357 = vsel %vm419, %v3343, 0
      %v3360 = vsel %vm419, %v3344, 0
      %v3363 = vsel %vm419, %v3345, 0
      %v3366 = vsel %vm419, %v3346, 0
      %v3369 = vsel %vm419, %v3347, 0
      %v3372 = vsel %vm419, %v3348, 0
      %v3375 = vsel %vm419, %v3349, 0
      %3377 = vmatprep.subr.bf16.mxu0 0
      %3378 = vmatpush1.bf16.msra.mxu0 0
      %3379 = vmatprep.subr.bf16.mxu0 0
      %3380 = vmatpush1.bf16.msra.mxu0 0
      %3381 = vmatprep.subr.bf16.mxu0 0
      %3382 = vmatpush1.bf16.msra.mxu0 0
      %3383 = vmatprep.subr.bf16.mxu0 0
      %3384 = vmatpush1.bf16.msra.mxu0 0
      %3385 = vmatprep.subr.bf16.mxu0 0
      %3386 = vmatpush1.bf16.msra.mxu0 0
      %3387 = vmatprep.subr.bf16.mxu0 0
      %3388 = vmatpush1.bf16.msra.mxu0 0
      %3389 = vmatprep.subr.bf16.mxu0 0
      %3390 = vmatpush1.bf16.msra.mxu0 0
      %3391 = vmatprep.subr.bf16.mxu0 %v3357
      %3392 = vmatpush1.bf16.msra.mxu0 %v3354
      %3393 = vmatprep.subr.bf16.mxu0 0
      %3394 = vmatpush2.bf16.msra.mxu0 0
      %3395 = vmatprep.subr.bf16.mxu0 0
      %3396 = vmatpush2.bf16.msra.mxu0 0
      %3397 = vmatprep.subr.bf16.mxu0 0
      %3398 = vmatpush2.bf16.msra.mxu0 0
      %3399 = vmatprep.subr.bf16.mxu0 0
      %3400 = vmatpush2.bf16.msra.mxu0 0
      %3401 = vmatprep.subr.bf16.mxu0 0
      %3402 = vmatpush2.bf16.msra.mxu0 0
      %3403 = vmatprep.subr.bf16.mxu0 0
      %3404 = vmatpush2.bf16.msra.mxu0 0
      %3405 = vmatprep.subr.bf16.mxu0 0
      %3406 = vmatpush2.bf16.msra.mxu0 0
      %3407 = vmatprep.subr.bf16.mxu0 0
      %3408 = vmatpush2.bf16.msra.mxu0 0
      %3409 = vmatprep.mubr.bf16.mxu0 0
      %3410 = vmatmul.mubr.bf16.gmra.mxu0 %v3351
      %v3411 = vpop.f32.mrf.mxu0
      %v3412 = vadd.f32 0.0, %v3411
      %v3413 = vpop.f32.mrf.mxu0
      %v3414 = vadd.f32 0.0, %v3413
      %v3415 = vpop.f32.mrf.mxu0
      %v3416 = vpop.f32.mrf.mxu0
      %3417 = vdwg.mxu0
      %3418 = vmatprep.subr.bf16.mxu0 0
      %3419 = vmatpush1.bf16.msra.mxu0 0
      %3420 = vmatprep.subr.bf16.mxu0 0
      %3421 = vmatpush1.bf16.msra.mxu0 0
      %3422 = vmatprep.subr.bf16.mxu0 0
      %3423 = vmatpush1.bf16.msra.mxu0 0
      %3424 = vmatprep.subr.bf16.mxu0 0
      %3425 = vmatpush1.bf16.msra.mxu0 0
      %3426 = vmatprep.subr.bf16.mxu0 0
      %3427 = vmatpush1.bf16.msra.mxu0 0
      %3428 = vmatprep.subr.bf16.mxu0 0
      %3429 = vmatpush1.bf16.msra.mxu0 0
      %3430 = vmatprep.subr.bf16.mxu0 0
      %3431 = vmatpush1.bf16.msra.mxu0 0
      %3432 = vmatprep.subr.bf16.mxu0 %v3363
      %3433 = vmatpush1.bf16.msra.mxu0 %v3360
      %3434 = vmatprep.subr.bf16.mxu0 0
      %3435 = vmatpush2.bf16.msra.mxu0 0
      %3436 = vmatprep.subr.bf16.mxu0 0
      %3437 = vmatpush2.bf16.msra.mxu0 0
      %3438 = vmatprep.subr.bf16.mxu0 0
      %3439 = vmatpush2.bf16.msra.mxu0 0
      %3440 = vmatprep.subr.bf16.mxu0 0
      %3441 = vmatpush2.bf16.msra.mxu0 0
      %3442 = vmatprep.subr.bf16.mxu0 0
      %3443 = vmatpush2.bf16.msra.mxu0 0
      %3444 = vmatprep.subr.bf16.mxu0 0
      %3445 = vmatpush2.bf16.msra.mxu0 0
      %3446 = vmatprep.subr.bf16.mxu0 0
      %3447 = vmatpush2.bf16.msra.mxu0 0
      %3448 = vmatprep.subr.bf16.mxu0 0
      %3449 = vmatpush2.bf16.msra.mxu0 0
      %3450 = vmatprep.mubr.bf16.mxu0 0
      %3451 = vmatmul.mubr.bf16.gmra.mxu0 %v3351
      %v3452 = vpop.f32.mrf.mxu0
      %v3453 = vadd.f32 0.0, %v3452
      %v3454 = vpop.f32.mrf.mxu0
      %v3455 = vadd.f32 0.0, %v3454
      %v3456 = vpop.f32.mrf.mxu0
      %v3457 = vpop.f32.mrf.mxu0
      %3458 = vdwg.mxu0
      %3459 = vmatprep.subr.bf16.mxu0 0
      %3460 = vmatpush1.bf16.msra.mxu0 0
      %3461 = vmatprep.subr.bf16.mxu0 0
      %3462 = vmatpush1.bf16.msra.mxu0 0
      %3463 = vmatprep.subr.bf16.mxu0 0
      %3464 = vmatpush1.bf16.msra.mxu0 0
      %3465 = vmatprep.subr.bf16.mxu0 0
      %3466 = vmatpush1.bf16.msra.mxu0 0
      %3467 = vmatprep.subr.bf16.mxu0 0
      %3468 = vmatpush1.bf16.msra.mxu0 0
      %3469 = vmatprep.subr.bf16.mxu0 0
      %3470 = vmatpush1.bf16.msra.mxu0 0
      %3471 = vmatprep.subr.bf16.mxu0 0
      %3472 = vmatpush1.bf16.msra.mxu0 0
      %3473 = vmatprep.subr.bf16.mxu0 %v3369
      %3474 = vmatpush1.bf16.msra.mxu0 %v3366
      %3475 = vmatprep.subr.bf16.mxu0 0
      %3476 = vmatpush2.bf16.msra.mxu0 0
      %3477 = vmatprep.subr.bf16.mxu0 0
      %3478 = vmatpush2.bf16.msra.mxu0 0
      %3479 = vmatprep.subr.bf16.mxu0 0
      %3480 = vmatpush2.bf16.msra.mxu0 0
      %3481 = vmatprep.subr.bf16.mxu0 0
      %3482 = vmatpush2.bf16.msra.mxu0 0
      %3483 = vmatprep.subr.bf16.mxu0 0
      %3484 = vmatpush2.bf16.msra.mxu0 0
      %3485 = vmatprep.subr.bf16.mxu0 0
      %3486 = vmatpush2.bf16.msra.mxu0 0
      %3487 = vmatprep.subr.bf16.mxu0 0
      %3488 = vmatpush2.bf16.msra.mxu0 0
      %3489 = vmatprep.subr.bf16.mxu0 0
      %3490 = vmatpush2.bf16.msra.mxu0 0
      %3491 = vmatprep.mubr.bf16.mxu0 0
      %3492 = vmatmul.mubr.bf16.gmra.mxu0 %v3351
      %v3493 = vpop.f32.mrf.mxu0
      %v3494 = vadd.f32 0.0, %v3493
      %v3495 = vpop.f32.mrf.mxu0
      %v3496 = vadd.f32 0.0, %v3495
      %v3497 = vpop.f32.mrf.mxu0
      %v3498 = vpop.f32.mrf.mxu0
      %3499 = vdwg.mxu0
      %3500 = vmatprep.subr.bf16.mxu0 0
      %3501 = vmatpush1.bf16.msra.mxu0 0
      %3502 = vmatprep.subr.bf16.mxu0 0
      %3503 = vmatpush1.bf16.msra.mxu0 0
      %3504 = vmatprep.subr.bf16.mxu0 0
      %3505 = vmatpush1.bf16.msra.mxu0 0
      %3506 = vmatprep.subr.bf16.mxu0 0
      %3507 = vmatpush1.bf16.msra.mxu0 0
      %3508 = vmatprep.subr.bf16.mxu0 0
      %3509 = vmatpush1.bf16.msra.mxu0 0
      %3510 = vmatprep.subr.bf16.mxu0 0
      %3511 = vmatpush1.bf16.msra.mxu0 0
      %3512 = vmatprep.subr.bf16.mxu0 0
      %3513 = vmatpush1.bf16.msra.mxu0 0
      %3514 = vmatprep.subr.bf16.mxu0 %v3375
      %3515 = vmatpush1.bf16.msra.mxu0 %v3372
      %3516 = vmatprep.subr.bf16.mxu0 0
      %3517 = vmatpush2.bf16.msra.mxu0 0
      %3518 = vmatprep.subr.bf16.mxu0 0
      %3519 = vmatpush2.bf16.msra.mxu0 0
      %3520 = vmatprep.subr.bf16.mxu0 0
      %3521 = vmatpush2.bf16.msra.mxu0 0
      %3522 = vmatprep.subr.bf16.mxu0 0
      %3523 = vmatpush2.bf16.msra.mxu0 0
      %3524 = vmatprep.subr.bf16.mxu0 0
      %3525 = vmatpush2.bf16.msra.mxu0 0
      %3526 = vmatprep.subr.bf16.mxu0 0
      %3527 = vmatpush2.bf16.msra.mxu0 0
      %3528 = vmatprep.subr.bf16.mxu0 0
      %3529 = vmatpush2.bf16.msra.mxu0 0
      %3530 = vmatprep.subr.bf16.mxu0 0
      %3531 = vmatpush2.bf16.msra.mxu0 0
      %3532 = vmatprep.mubr.bf16.mxu0 0
      %3533 = vmatmul.mubr.bf16.gmra.mxu0 %v3351
      %v3534 = vpop.f32.mrf.mxu0
      %v3535 = vadd.f32 0.0, %v3534
      %v3536 = vpop.f32.mrf.mxu0
      %v3537 = vadd.f32 0.0, %v3536
      %v3538 = vpop.f32.mrf.mxu0
      %v3539 = vpop.f32.mrf.mxu0
      %3540 = vdwg.mxu0
      %v3541 = vadd.f32 %v3266, %v3412
      %v3542 = vadd.f32 %v3267, %v3414
      %v3543 = vadd.f32 %v3268, %v3453
      %v3544 = vadd.f32 %v3269, %v3455
      %v3545 = vadd.f32 %v3270, %v3494
      %v3546 = vadd.f32 %v3271, %v3496
      %v3547 = vadd.f32 %v3272, %v3535
      %v3548 = vadd.f32 %v3273, %v3537
      %s3549 = scalar_lea.vmem %s2, 24
      %v3550 = vld [vmem:[%s3549] sm:$0x3]
      %v3551 = vld [vmem:[#allocation2] sm:$0xff]
      %v3552 = vld [vmem:[#allocation2 + $0x8] sm:$0xff]
      %v3553 = vld [vmem:[#allocation2 + $0x10] sm:$0x3]
      %v3557 = vcombine.high %v3551, %v3551
      %v3559 = vunpack.c.l.s4 1983009808
      %v3560 = vunpack.c.0.s8 %v3559
      %v3561 = vlaneseq
      %v3562 = vshrl.u32 %v3561, 7
      %v3563 = vsub.s32 %v3560, %v3562
      %v3564 = vrot.slane %v3551, %v3563
      %v3566 = vunpack.c.l.s4 1983009808
      %v3567 = vunpack.c.0.s8 %v3566
      %v3568 = vlaneseq
      %v3569 = vshrl.u32 %v3568, 7
      %v3570 = vsub.s32 %v3567, %v3569
      %v3571 = vrot.slane %v3557, %v3570
      %v3572 = vcombine.high %v3564, %v3564
      %v3573 = vcombine.high %v3571, %v3571
      %v3574 = vcombine.high %v3552, %v3552
      %v3576 = vunpack.c.l.s4 1983009808
      %v3577 = vunpack.c.0.s8 %v3576
      %v3578 = vlaneseq
      %v3579 = vshrl.u32 %v3578, 7
      %v3580 = vsub.s32 %v3577, %v3579
      %v3581 = vrot.slane %v3552, %v3580
      %v3583 = vunpack.c.l.s4 1983009808
      %v3584 = vunpack.c.0.s8 %v3583
      %v3585 = vlaneseq
      %v3586 = vshrl.u32 %v3585, 7
      %v3587 = vsub.s32 %v3584, %v3586
      %v3588 = vrot.slane %v3574, %v3587
      %v3589 = vcombine.high %v3581, %v3581
      %v3590 = vcombine.high %v3588, %v3588
      %v3592 = vunpack.c.l.s4 1983009808
      %v3593 = vunpack.c.0.s8 %v3592
      %v3594 = vlaneseq
      %v3595 = vshrl.u32 %v3594, 7
      %v3596 = vsub.s32 %v3593, %v3595
      %v3597 = vrot.slane %v3553, %v3596
      %3598 = vrot.lane.b32.xlu0 %v3564, 18
      %v3599 = vpop.permute.xlu0 %3598
      %3600 = vrot.lane.b32.xlu0 %v3572, 18
      %v3601 = vpop.permute.xlu0 %3600
      %3602 = vrot.lane.b32.xlu0 %v3571, 18
      %v3603 = vpop.permute.xlu0 %3602
      %3604 = vrot.lane.b32.xlu0 %v3573, 18
      %v3605 = vpop.permute.xlu0 %3604
      %3606 = vrot.lane.b32.xlu0 %v3581, 18
      %v3607 = vpop.permute.xlu0 %3606
      %3608 = vrot.lane.b32.xlu0 %v3589, 18
      %v3609 = vpop.permute.xlu0 %3608
      %3610 = vrot.lane.b32.xlu0 %v3588, 18
      %v3611 = vpop.permute.xlu0 %3610
      %3612 = vrot.lane.b32.xlu0 %v3590, 18
      %v3613 = vpop.permute.xlu0 %3612
      %3614 = vrot.lane.b32.xlu0 %v3597, 18
      %v3615 = vpop.permute.xlu0 %3614
      %vm3616 = vcmask 146432
      %v3617 = vsel %vm3616, %v3599, %v3601
      %v3618 = vsel %vm3616, %v3601, %v3603
      %v3619 = vsel %vm3616, %v3603, %v3605
      %v3620 = vsel %vm3616, %v3605, %v3607
      %v3621 = vsel %vm3616, %v3607, %v3609
      %v3622 = vsel %vm3616, %v3609, %v3611
      %v3623 = vsel %vm3616, %v3611, %v3613
      %v3624 = vsel %vm3616, %v3613, %v3615
      %v3626 = vsel %vm415, %v3550, 0
      %v3629 = vsel %vm419, %v3617, 0
      %v3632 = vsel %vm419, %v3618, 0
      %v3635 = vsel %vm419, %v3619, 0
      %v3638 = vsel %vm419, %v3620, 0
      %v3641 = vsel %vm419, %v3621, 0
      %v3644 = vsel %vm419, %v3622, 0
      %v3647 = vsel %vm419, %v3623, 0
      %v3650 = vsel %vm419, %v3624, 0
      %3652 = vmatprep.subr.bf16.mxu0 0
      %3653 = vmatpush1.bf16.msra.mxu0 0
      %3654 = vmatprep.subr.bf16.mxu0 0
      %3655 = vmatpush1.bf16.msra.mxu0 0
      %3656 = vmatprep.subr.bf16.mxu0 0
      %3657 = vmatpush1.bf16.msra.mxu0 0
      %3658 = vmatprep.subr.bf16.mxu0 0
      %3659 = vmatpush1.bf16.msra.mxu0 0
      %3660 = vmatprep.subr.bf16.mxu0 0
      %3661 = vmatpush1.bf16.msra.mxu0 0
      %3662 = vmatprep.subr.bf16.mxu0 0
      %3663 = vmatpush1.bf16.msra.mxu0 0
      %3664 = vmatprep.subr.bf16.mxu0 0
      %3665 = vmatpush1.bf16.msra.mxu0 0
      %3666 = vmatprep.subr.bf16.mxu0 %v3632
      %3667 = vmatpush1.bf16.msra.mxu0 %v3629
      %3668 = vmatprep.subr.bf16.mxu0 0
      %3669 = vmatpush2.bf16.msra.mxu0 0
      %3670 = vmatprep.subr.bf16.mxu0 0
      %3671 = vmatpush2.bf16.msra.mxu0 0
      %3672 = vmatprep.subr.bf16.mxu0 0
      %3673 = vmatpush2.bf16.msra.mxu0 0
      %3674 = vmatprep.subr.bf16.mxu0 0
      %3675 = vmatpush2.bf16.msra.mxu0 0
      %3676 = vmatprep.subr.bf16.mxu0 0
      %3677 = vmatpush2.bf16.msra.mxu0 0
      %3678 = vmatprep.subr.bf16.mxu0 0
      %3679 = vmatpush2.bf16.msra.mxu0 0
      %3680 = vmatprep.subr.bf16.mxu0 0
      %3681 = vmatpush2.bf16.msra.mxu0 0
      %3682 = vmatprep.subr.bf16.mxu0 0
      %3683 = vmatpush2.bf16.msra.mxu0 0
      %3684 = vmatprep.mubr.bf16.mxu0 0
      %3685 = vmatmul.mubr.bf16.gmra.mxu0 %v3626
      %v3686 = vpop.f32.mrf.mxu0
      %v3687 = vadd.f32 0.0, %v3686
      %v3688 = vpop.f32.mrf.mxu0
      %v3689 = vadd.f32 0.0, %v3688
      %v3690 = vpop.f32.mrf.mxu0
      %v3691 = vpop.f32.mrf.mxu0
      %3692 = vdwg.mxu0
      %3693 = vmatprep.subr.bf16.mxu0 0
      %3694 = vmatpush1.bf16.msra.mxu0 0
      %3695 = vmatprep.subr.bf16.mxu0 0
      %3696 = vmatpush1.bf16.msra.mxu0 0
      %3697 = vmatprep.subr.bf16.mxu0 0
      %3698 = vmatpush1.bf16.msra.mxu0 0
      %3699 = vmatprep.subr.bf16.mxu0 0
      %3700 = vmatpush1.bf16.msra.mxu0 0
      %3701 = vmatprep.subr.bf16.mxu0 0
      %3702 = vmatpush1.bf16.msra.mxu0 0
      %3703 = vmatprep.subr.bf16.mxu0 0
      %3704 = vmatpush1.bf16.msra.mxu0 0
      %3705 = vmatprep.subr.bf16.mxu0 0
      %3706 = vmatpush1.bf16.msra.mxu0 0
      %3707 = vmatprep.subr.bf16.mxu0 %v3638
      %3708 = vmatpush1.bf16.msra.mxu0 %v3635
      %3709 = vmatprep.subr.bf16.mxu0 0
      %3710 = vmatpush2.bf16.msra.mxu0 0
      %3711 = vmatprep.subr.bf16.mxu0 0
      %3712 = vmatpush2.bf16.msra.mxu0 0
      %3713 = vmatprep.subr.bf16.mxu0 0
      %3714 = vmatpush2.bf16.msra.mxu0 0
      %3715 = vmatprep.subr.bf16.mxu0 0
      %3716 = vmatpush2.bf16.msra.mxu0 0
      %3717 = vmatprep.subr.bf16.mxu0 0
      %3718 = vmatpush2.bf16.msra.mxu0 0
      %3719 = vmatprep.subr.bf16.mxu0 0
      %3720 = vmatpush2.bf16.msra.mxu0 0
      %3721 = vmatprep.subr.bf16.mxu0 0
      %3722 = vmatpush2.bf16.msra.mxu0 0
      %3723 = vmatprep.subr.bf16.mxu0 0
      %3724 = vmatpush2.bf16.msra.mxu0 0
      %3725 = vmatprep.mubr.bf16.mxu0 0
      %3726 = vmatmul.mubr.bf16.gmra.mxu0 %v3626
      %v3727 = vpop.f32.mrf.mxu0
      %v3728 = vadd.f32 0.0, %v3727
      %v3729 = vpop.f32.mrf.mxu0
      %v3730 = vadd.f32 0.0, %v3729
      %v3731 = vpop.f32.mrf.mxu0
      %v3732 = vpop.f32.mrf.mxu0
      %3733 = vdwg.mxu0
      %3734 = vmatprep.subr.bf16.mxu0 0
      %3735 = vmatpush1.bf16.msra.mxu0 0
      %3736 = vmatprep.subr.bf16.mxu0 0
      %3737 = vmatpush1.bf16.msra.mxu0 0
      %3738 = vmatprep.subr.bf16.mxu0 0
      %3739 = vmatpush1.bf16.msra.mxu0 0
      %3740 = vmatprep.subr.bf16.mxu0 0
      %3741 = vmatpush1.bf16.msra.mxu0 0
      %3742 = vmatprep.subr.bf16.mxu0 0
      %3743 = vmatpush1.bf16.msra.mxu0 0
      %3744 = vmatprep.subr.bf16.mxu0 0
      %3745 = vmatpush1.bf16.msra.mxu0 0
      %3746 = vmatprep.subr.bf16.mxu0 0
      %3747 = vmatpush1.bf16.msra.mxu0 0
      %3748 = vmatprep.subr.bf16.mxu0 %v3644
      %3749 = vmatpush1.bf16.msra.mxu0 %v3641
      %3750 = vmatprep.subr.bf16.mxu0 0
      %3751 = vmatpush2.bf16.msra.mxu0 0
      %3752 = vmatprep.subr.bf16.mxu0 0
      %3753 = vmatpush2.bf16.msra.mxu0 0
      %3754 = vmatprep.subr.bf16.mxu0 0
      %3755 = vmatpush2.bf16.msra.mxu0 0
      %3756 = vmatprep.subr.bf16.mxu0 0
      %3757 = vmatpush2.bf16.msra.mxu0 0
      %3758 = vmatprep.subr.bf16.mxu0 0
      %3759 = vmatpush2.bf16.msra.mxu0 0
      %3760 = vmatprep.subr.bf16.mxu0 0
      %3761 = vmatpush2.bf16.msra.mxu0 0
      %3762 = vmatprep.subr.bf16.mxu0 0
      %3763 = vmatpush2.bf16.msra.mxu0 0
      %3764 = vmatprep.subr.bf16.mxu0 0
      %3765 = vmatpush2.bf16.msra.mxu0 0
      %3766 = vmatprep.mubr.bf16.mxu0 0
      %3767 = vmatmul.mubr.bf16.gmra.mxu0 %v3626
      %v3768 = vpop.f32.mrf.mxu0
      %v3769 = vadd.f32 0.0, %v3768
      %v3770 = vpop.f32.mrf.mxu0
      %v3771 = vadd.f32 0.0, %v3770
      %v3772 = vpop.f32.mrf.mxu0
      %v3773 = vpop.f32.mrf.mxu0
      %3774 = vdwg.mxu0
      %3775 = vmatprep.subr.bf16.mxu0 0
      %3776 = vmatpush1.bf16.msra.mxu0 0
      %3777 = vmatprep.subr.bf16.mxu0 0
      %3778 = vmatpush1.bf16.msra.mxu0 0
      %3779 = vmatprep.subr.bf16.mxu0 0
      %3780 = vmatpush1.bf16.msra.mxu0 0
      %3781 = vmatprep.subr.bf16.mxu0 0
      %3782 = vmatpush1.bf16.msra.mxu0 0
      %3783 = vmatprep.subr.bf16.mxu0 0
      %3784 = vmatpush1.bf16.msra.mxu0 0
      %3785 = vmatprep.subr.bf16.mxu0 0
      %3786 = vmatpush1.bf16.msra.mxu0 0
      %3787 = vmatprep.subr.bf16.mxu0 0
      %3788 = vmatpush1.bf16.msra.mxu0 0
      %3789 = vmatprep.subr.bf16.mxu0 %v3650
      %3790 = vmatpush1.bf16.msra.mxu0 %v3647
      %3791 = vmatprep.subr.bf16.mxu0 0
      %3792 = vmatpush2.bf16.msra.mxu0 0
      %3793 = vmatprep.subr.bf16.mxu0 0
      %3794 = vmatpush2.bf16.msra.mxu0 0
      %3795 = vmatprep.subr.bf16.mxu0 0
      %3796 = vmatpush2.bf16.msra.mxu0 0
      %3797 = vmatprep.subr.bf16.mxu0 0
      %3798 = vmatpush2.bf16.msra.mxu0 0
      %3799 = vmatprep.subr.bf16.mxu0 0
      %3800 = vmatpush2.bf16.msra.mxu0 0
      %3801 = vmatprep.subr.bf16.mxu0 0
      %3802 = vmatpush2.bf16.msra.mxu0 0
      %3803 = vmatprep.subr.bf16.mxu0 0
      %3804 = vmatpush2.bf16.msra.mxu0 0
      %3805 = vmatprep.subr.bf16.mxu0 0
      %3806 = vmatpush2.bf16.msra.mxu0 0
      %3807 = vmatprep.mubr.bf16.mxu0 0
      %3808 = vmatmul.mubr.bf16.gmra.mxu0 %v3626
      %v3809 = vpop.f32.mrf.mxu0
      %v3810 = vadd.f32 0.0, %v3809
      %v3811 = vpop.f32.mrf.mxu0
      %v3812 = vadd.f32 0.0, %v3811
      %v3813 = vpop.f32.mrf.mxu0
      %v3814 = vpop.f32.mrf.mxu0
      %3815 = vdwg.mxu0
      %v3816 = vadd.f32 %v3541, %v3687
      %v3817 = vadd.f32 %v3542, %v3689
      %v3818 = vadd.f32 %v3543, %v3728
      %v3819 = vadd.f32 %v3544, %v3730
      %v3820 = vadd.f32 %v3545, %v3769
      %v3821 = vadd.f32 %v3546, %v3771
      %v3822 = vadd.f32 %v3547, %v3810
      %v3823 = vadd.f32 %v3548, %v3812
      %s3824 = scalar_lea.vmem %s2, 26
      %v3825 = vld [vmem:[%s3824] sm:$0x3]
      %v3826 = vld [vmem:[#allocation2] sm:$0xff]
      %v3827 = vld [vmem:[#allocation2 + $0x8] sm:$0xff]
      %v3828 = vld [vmem:[#allocation2 + $0x10] sm:$0x3]
      %v3832 = vcombine.high %v3826, %v3826
      %v3834 = vunpack.c.l.s4 1983009808
      %v3835 = vunpack.c.0.s8 %v3834
      %v3836 = vlaneseq
      %v3837 = vshrl.u32 %v3836, 7
      %v3838 = vsub.s32 %v3835, %v3837
      %v3839 = vrot.slane %v3826, %v3838
      %v3841 = vunpack.c.l.s4 1983009808
      %v3842 = vunpack.c.0.s8 %v3841
      %v3843 = vlaneseq
      %v3844 = vshrl.u32 %v3843, 7
      %v3845 = vsub.s32 %v3842, %v3844
      %v3846 = vrot.slane %v3832, %v3845
      %v3847 = vcombine.high %v3839, %v3839
      %v3848 = vcombine.high %v3846, %v3846
      %v3849 = vcombine.high %v3827, %v3827
      %v3851 = vunpack.c.l.s4 1983009808
      %v3852 = vunpack.c.0.s8 %v3851
      %v3853 = vlaneseq
      %v3854 = vshrl.u32 %v3853, 7
      %v3855 = vsub.s32 %v3852, %v3854
      %v3856 = vrot.slane %v3827, %v3855
      %v3858 = vunpack.c.l.s4 1983009808
      %v3859 = vunpack.c.0.s8 %v3858
      %v3860 = vlaneseq
      %v3861 = vshrl.u32 %v3860, 7
      %v3862 = vsub.s32 %v3859, %v3861
      %v3863 = vrot.slane %v3849, %v3862
      %v3864 = vcombine.high %v3856, %v3856
      %v3865 = vcombine.high %v3863, %v3863
      %v3867 = vunpack.c.l.s4 1983009808
      %v3868 = vunpack.c.0.s8 %v3867
      %v3869 = vlaneseq
      %v3870 = vshrl.u32 %v3869, 7
      %v3871 = vsub.s32 %v3868, %v3870
      %v3872 = vrot.slane %v3828, %v3871
      %3873 = vrot.lane.b32.xlu0 %v3839, 17
      %v3874 = vpop.permute.xlu0 %3873
      %3875 = vrot.lane.b32.xlu0 %v3847, 17
      %v3876 = vpop.permute.xlu0 %3875
      %3877 = vrot.lane.b32.xlu0 %v3846, 17
      %v3878 = vpop.permute.xlu0 %3877
      %3879 = vrot.lane.b32.xlu0 %v3848, 17
      %v3880 = vpop.permute.xlu0 %3879
      %3881 = vrot.lane.b32.xlu0 %v3856, 17
      %v3882 = vpop.permute.xlu0 %3881
      %3883 = vrot.lane.b32.xlu0 %v3864, 17
      %v3884 = vpop.permute.xlu0 %3883
      %3885 = vrot.lane.b32.xlu0 %v3863, 17
      %v3886 = vpop.permute.xlu0 %3885
      %3887 = vrot.lane.b32.xlu0 %v3865, 17
      %v3888 = vpop.permute.xlu0 %3887
      %3889 = vrot.lane.b32.xlu0 %v3872, 17
      %v3890 = vpop.permute.xlu0 %3889
      %vm3891 = vcmask 138240
      %v3892 = vsel %vm3891, %v3874, %v3876
      %v3893 = vsel %vm3891, %v3876, %v3878
      %v3894 = vsel %vm3891, %v3878, %v3880
      %v3895 = vsel %vm3891, %v3880, %v3882
      %v3896 = vsel %vm3891, %v3882, %v3884
      %v3897 = vsel %vm3891, %v3884, %v3886
      %v3898 = vsel %vm3891, %v3886, %v3888
      %v3899 = vsel %vm3891, %v3888, %v3890
      %v3901 = vsel %vm415, %v3825, 0
      %v3904 = vsel %vm419, %v3892, 0
      %v3907 = vsel %vm419, %v3893, 0
      %v3910 = vsel %vm419, %v3894, 0
      %v3913 = vsel %vm419, %v3895, 0
      %v3916 = vsel %vm419, %v3896, 0
      %v3919 = vsel %vm419, %v3897, 0
      %v3922 = vsel %vm419, %v3898, 0
      %v3925 = vsel %vm419, %v3899, 0
      %3927 = vmatprep.subr.bf16.mxu0 0
      %3928 = vmatpush1.bf16.msra.mxu0 0
      %3929 = vmatprep.subr.bf16.mxu0 0
      %3930 = vmatpush1.bf16.msra.mxu0 0
      %3931 = vmatprep.subr.bf16.mxu0 0
      %3932 = vmatpush1.bf16.msra.mxu0 0
      %3933 = vmatprep.subr.bf16.mxu0 0
      %3934 = vmatpush1.bf16.msra.mxu0 0
      %3935 = vmatprep.subr.bf16.mxu0 0
      %3936 = vmatpush1.bf16.msra.mxu0 0
      %3937 = vmatprep.subr.bf16.mxu0 0
      %3938 = vmatpush1.bf16.msra.mxu0 0
      %3939 = vmatprep.subr.bf16.mxu0 0
      %3940 = vmatpush1.bf16.msra.mxu0 0
      %3941 = vmatprep.subr.bf16.mxu0 %v3907
      %3942 = vmatpush1.bf16.msra.mxu0 %v3904
      %3943 = vmatprep.subr.bf16.mxu0 0
      %3944 = vmatpush2.bf16.msra.mxu0 0
      %3945 = vmatprep.subr.bf16.mxu0 0
      %3946 = vmatpush2.bf16.msra.mxu0 0
      %3947 = vmatprep.subr.bf16.mxu0 0
      %3948 = vmatpush2.bf16.msra.mxu0 0
      %3949 = vmatprep.subr.bf16.mxu0 0
      %3950 = vmatpush2.bf16.msra.mxu0 0
      %3951 = vmatprep.subr.bf16.mxu0 0
      %3952 = vmatpush2.bf16.msra.mxu0 0
      %3953 = vmatprep.subr.bf16.mxu0 0
      %3954 = vmatpush2.bf16.msra.mxu0 0
      %3955 = vmatprep.subr.bf16.mxu0 0
      %3956 = vmatpush2.bf16.msra.mxu0 0
      %3957 = vmatprep.subr.bf16.mxu0 0
      %3958 = vmatpush2.bf16.msra.mxu0 0
      %3959 = vmatprep.mubr.bf16.mxu0 0
      %3960 = vmatmul.mubr.bf16.gmra.mxu0 %v3901
      %v3961 = vpop.f32.mrf.mxu0
      %v3962 = vadd.f32 0.0, %v3961
      %v3963 = vpop.f32.mrf.mxu0
      %v3964 = vadd.f32 0.0, %v3963
      %v3965 = vpop.f32.mrf.mxu0
      %v3966 = vpop.f32.mrf.mxu0
      %3967 = vdwg.mxu0
      %3968 = vmatprep.subr.bf16.mxu0 0
      %3969 = vmatpush1.bf16.msra.mxu0 0
      %3970 = vmatprep.subr.bf16.mxu0 0
      %3971 = vmatpush1.bf16.msra.mxu0 0
      %3972 = vmatprep.subr.bf16.mxu0 0
      %3973 = vmatpush1.bf16.msra.mxu0 0
      %3974 = vmatprep.subr.bf16.mxu0 0
      %3975 = vmatpush1.bf16.msra.mxu0 0
      %3976 = vmatprep.subr.bf16.mxu0 0
      %3977 = vmatpush1.bf16.msra.mxu0 0
      %3978 = vmatprep.subr.bf16.mxu0 0
      %3979 = vmatpush1.bf16.msra.mxu0 0
      %3980 = vmatprep.subr.bf16.mxu0 0
      %3981 = vmatpush1.bf16.msra.mxu0 0
      %3982 = vmatprep.subr.bf16.mxu0 %v3913
      %3983 = vmatpush1.bf16.msra.mxu0 %v3910
      %3984 = vmatprep.subr.bf16.mxu0 0
      %3985 = vmatpush2.bf16.msra.mxu0 0
      %3986 = vmatprep.subr.bf16.mxu0 0
      %3987 = vmatpush2.bf16.msra.mxu0 0
      %3988 = vmatprep.subr.bf16.mxu0 0
      %3989 = vmatpush2.bf16.msra.mxu0 0
      %3990 = vmatprep.subr.bf16.mxu0 0
      %3991 = vmatpush2.bf16.msra.mxu0 0
      %3992 = vmatprep.subr.bf16.mxu0 0
      %3993 = vmatpush2.bf16.msra.mxu0 0
      %3994 = vmatprep.subr.bf16.mxu0 0
      %3995 = vmatpush2.bf16.msra.mxu0 0
      %3996 = vmatprep.subr.bf16.mxu0 0
      %3997 = vmatpush2.bf16.msra.mxu0 0
      %3998 = vmatprep.subr.bf16.mxu0 0
      %3999 = vmatpush2.bf16.msra.mxu0 0
      %4000 = vmatprep.mubr.bf16.mxu0 0
      %4001 = vmatmul.mubr.bf16.gmra.mxu0 %v3901
      %v4002 = vpop.f32.mrf.mxu0
      %v4003 = vadd.f32 0.0, %v4002
      %v4004 = vpop.f32.mrf.mxu0
      %v4005 = vadd.f32 0.0, %v4004
      %v4006 = vpop.f32.mrf.mxu0
      %v4007 = vpop.f32.mrf.mxu0
      %4008 = vdwg.mxu0
      %4009 = vmatprep.subr.bf16.mxu0 0
      %4010 = vmatpush1.bf16.msra.mxu0 0
      %4011 = vmatprep.subr.bf16.mxu0 0
      %4012 = vmatpush1.bf16.msra.mxu0 0
      %4013 = vmatprep.subr.bf16.mxu0 0
      %4014 = vmatpush1.bf16.msra.mxu0 0
      %4015 = vmatprep.subr.bf16.mxu0 0
      %4016 = vmatpush1.bf16.msra.mxu0 0
      %4017 = vmatprep.subr.bf16.mxu0 0
      %4018 = vmatpush1.bf16.msra.mxu0 0
      %4019 = vmatprep.subr.bf16.mxu0 0
      %4020 = vmatpush1.bf16.msra.mxu0 0
      %4021 = vmatprep.subr.bf16.mxu0 0
      %4022 = vmatpush1.bf16.msra.mxu0 0
      %4023 = vmatprep.subr.bf16.mxu0 %v3919
      %4024 = vmatpush1.bf16.msra.mxu0 %v3916
      %4025 = vmatprep.subr.bf16.mxu0 0
      %4026 = vmatpush2.bf16.msra.mxu0 0
      %4027 = vmatprep.subr.bf16.mxu0 0
      %4028 = vmatpush2.bf16.msra.mxu0 0
      %4029 = vmatprep.subr.bf16.mxu0 0
      %4030 = vmatpush2.bf16.msra.mxu0 0
      %4031 = vmatprep.subr.bf16.mxu0 0
      %4032 = vmatpush2.bf16.msra.mxu0 0
      %4033 = vmatprep.subr.bf16.mxu0 0
      %4034 = vmatpush2.bf16.msra.mxu0 0
      %4035 = vmatprep.subr.bf16.mxu0 0
      %4036 = vmatpush2.bf16.msra.mxu0 0
      %4037 = vmatprep.subr.bf16.mxu0 0
      %4038 = vmatpush2.bf16.msra.mxu0 0
      %4039 = vmatprep.subr.bf16.mxu0 0
      %4040 = vmatpush2.bf16.msra.mxu0 0
      %4041 = vmatprep.mubr.bf16.mxu0 0
      %4042 = vmatmul.mubr.bf16.gmra.mxu0 %v3901
      %v4043 = vpop.f32.mrf.mxu0
      %v4044 = vadd.f32 0.0, %v4043
      %v4045 = vpop.f32.mrf.mxu0
      %v4046 = vadd.f32 0.0, %v4045
      %v4047 = vpop.f32.mrf.mxu0
      %v4048 = vpop.f32.mrf.mxu0
      %4049 = vdwg.mxu0
      %4050 = vmatprep.subr.bf16.mxu0 0
      %4051 = vmatpush1.bf16.msra.mxu0 0
      %4052 = vmatprep.subr.bf16.mxu0 0
      %4053 = vmatpush1.bf16.msra.mxu0 0
      %4054 = vmatprep.subr.bf16.mxu0 0
      %4055 = vmatpush1.bf16.msra.mxu0 0
      %4056 = vmatprep.subr.bf16.mxu0 0
      %4057 = vmatpush1.bf16.msra.mxu0 0
      %4058 = vmatprep.subr.bf16.mxu0 0
      %4059 = vmatpush1.bf16.msra.mxu0 0
      %4060 = vmatprep.subr.bf16.mxu0 0
      %4061 = vmatpush1.bf16.msra.mxu0 0
      %4062 = vmatprep.subr.bf16.mxu0 0
      %4063 = vmatpush1.bf16.msra.mxu0 0
      %4064 = vmatprep.subr.bf16.mxu0 %v3925
      %4065 = vmatpush1.bf16.msra.mxu0 %v3922
      %4066 = vmatprep.subr.bf16.mxu0 0
      %4067 = vmatpush2.bf16.msra.mxu0 0
      %4068 = vmatprep.subr.bf16.mxu0 0
      %4069 = vmatpush2.bf16.msra.mxu0 0
      %4070 = vmatprep.subr.bf16.mxu0 0
      %4071 = vmatpush2.bf16.msra.mxu0 0
      %4072 = vmatprep.subr.bf16.mxu0 0
      %4073 = vmatpush2.bf16.msra.mxu0 0
      %4074 = vmatprep.subr.bf16.mxu0 0
      %4075 = vmatpush2.bf16.msra.mxu0 0
      %4076 = vmatprep.subr.bf16.mxu0 0
      %4077 = vmatpush2.bf16.msra.mxu0 0
      %4078 = vmatprep.subr.bf16.mxu0 0
      %4079 = vmatpush2.bf16.msra.mxu0 0
      %4080 = vmatprep.subr.bf16.mxu0 0
      %4081 = vmatpush2.bf16.msra.mxu0 0
      %4082 = vmatprep.mubr.bf16.mxu0 0
      %4083 = vmatmul.mubr.bf16.gmra.mxu0 %v3901
      %v4084 = vpop.f32.mrf.mxu0
      %v4085 = vadd.f32 0.0, %v4084
      %v4086 = vpop.f32.mrf.mxu0
      %v4087 = vadd.f32 0.0, %v4086
      %v4088 = vpop.f32.mrf.mxu0
      %v4089 = vpop.f32.mrf.mxu0
      %4090 = vdwg.mxu0
      %v4091 = vadd.f32 %v3816, %v3962
      %v4092 = vadd.f32 %v3817, %v3964
      %v4093 = vadd.f32 %v3818, %v4003
      %v4094 = vadd.f32 %v3819, %v4005
      %v4095 = vadd.f32 %v3820, %v4044
      %v4096 = vadd.f32 %v3821, %v4046
      %v4097 = vadd.f32 %v3822, %v4085
      %v4098 = vadd.f32 %v3823, %v4087
      %s4099 = scalar_lea.vmem %s2, 28
      %v4100 = vld [vmem:[%s4099] sm:$0x3]
      %v4101 = vld [vmem:[#allocation2] sm:$0xff]
      %v4102 = vld [vmem:[#allocation2 + $0x8] sm:$0xff]
      %v4103 = vld [vmem:[#allocation2 + $0x10] sm:$0x3]
      %v4107 = vcombine.high %v4101, %v4101
      %v4109 = vunpack.c.l.s4 1983009808
      %v4110 = vunpack.c.0.s8 %v4109
      %v4111 = vlaneseq
      %v4112 = vshrl.u32 %v4111, 7
      %v4113 = vsub.s32 %v4110, %v4112
      %v4114 = vrot.slane %v4101, %v4113
      %v4116 = vunpack.c.l.s4 1983009808
      %v4117 = vunpack.c.0.s8 %v4116
      %v4118 = vlaneseq
      %v4119 = vshrl.u32 %v4118, 7
      %v4120 = vsub.s32 %v4117, %v4119
      %v4121 = vrot.slane %v4107, %v4120
      %v4122 = vcombine.high %v4114, %v4114
      %v4123 = vcombine.high %v4121, %v4121
      %v4124 = vcombine.high %v4102, %v4102
      %v4126 = vunpack.c.l.s4 1983009808
      %v4127 = vunpack.c.0.s8 %v4126
      %v4128 = vlaneseq
      %v4129 = vshrl.u32 %v4128, 7
      %v4130 = vsub.s32 %v4127, %v4129
      %v4131 = vrot.slane %v4102, %v4130
      %v4133 = vunpack.c.l.s4 1983009808
      %v4134 = vunpack.c.0.s8 %v4133
      %v4135 = vlaneseq
      %v4136 = vshrl.u32 %v4135, 7
      %v4137 = vsub.s32 %v4134, %v4136
      %v4138 = vrot.slane %v4124, %v4137
      %v4139 = vcombine.high %v4131, %v4131
      %v4140 = vcombine.high %v4138, %v4138
      %v4142 = vunpack.c.l.s4 1983009808
      %v4143 = vunpack.c.0.s8 %v4142
      %v4144 = vlaneseq
      %v4145 = vshrl.u32 %v4144, 7
      %v4146 = vsub.s32 %v4143, %v4145
      %v4147 = vrot.slane %v4103, %v4146
      %4148 = vrot.lane.b32.xlu0 %v4114, 16
      %v4149 = vpop.permute.xlu0 %4148
      %4150 = vrot.lane.b32.xlu0 %v4122, 16
      %v4151 = vpop.permute.xlu0 %4150
      %4152 = vrot.lane.b32.xlu0 %v4121, 16
      %v4153 = vpop.permute.xlu0 %4152
      %4154 = vrot.lane.b32.xlu0 %v4123, 16
      %v4155 = vpop.permute.xlu0 %4154
      %4156 = vrot.lane.b32.xlu0 %v4131, 16
      %v4157 = vpop.permute.xlu0 %4156
      %4158 = vrot.lane.b32.xlu0 %v4139, 16
      %v4159 = vpop.permute.xlu0 %4158
      %4160 = vrot.lane.b32.xlu0 %v4138, 16
      %v4161 = vpop.permute.xlu0 %4160
      %4162 = vrot.lane.b32.xlu0 %v4140, 16
      %v4163 = vpop.permute.xlu0 %4162
      %4164 = vrot.lane.b32.xlu0 %v4147, 16
      %v4165 = vpop.permute.xlu0 %4164
      %vm4166 = vcmask 130048
      %v4167 = vsel %vm4166, %v4149, %v4151
      %v4168 = vsel %vm4166, %v4151, %v4153
      %v4169 = vsel %vm4166, %v4153, %v4155
      %v4170 = vsel %vm4166, %v4155, %v4157
      %v4171 = vsel %vm4166, %v4157, %v4159
      %v4172 = vsel %vm4166, %v4159, %v4161
      %v4173 = vsel %vm4166, %v4161, %v4163
      %v4174 = vsel %vm4166, %v4163, %v4165
      %v4176 = vsel %vm415, %v4100, 0
      %v4179 = vsel %vm419, %v4167, 0
      %v4182 = vsel %vm419, %v4168, 0
      %v4185 = vsel %vm419, %v4169, 0
      %v4188 = vsel %vm419, %v4170, 0
      %v4191 = vsel %vm419, %v4171, 0
      %v4194 = vsel %vm419, %v4172, 0
      %v4197 = vsel %vm419, %v4173, 0
      %v4200 = vsel %vm419, %v4174, 0
      %4202 = vmatprep.subr.bf16.mxu0 0
      %4203 = vmatpush1.bf16.msra.mxu0 0
      %4204 = vmatprep.subr.bf16.mxu0 0
      %4205 = vmatpush1.bf16.msra.mxu0 0
      %4206 = vmatprep.subr.bf16.mxu0 0
      %4207 = vmatpush1.bf16.msra.mxu0 0
      %4208 = vmatprep.subr.bf16.mxu0 0
      %4209 = vmatpush1.bf16.msra.mxu0 0
      %4210 = vmatprep.subr.bf16.mxu0 0
      %4211 = vmatpush1.bf16.msra.mxu0 0
      %4212 = vmatprep.subr.bf16.mxu0 0
      %4213 = vmatpush1.bf16.msra.mxu0 0
      %4214 = vmatprep.subr.bf16.mxu0 0
      %4215 = vmatpush1.bf16.msra.mxu0 0
      %4216 = vmatprep.subr.bf16.mxu0 %v4182
      %4217 = vmatpush1.bf16.msra.mxu0 %v4179
      %4218 = vmatprep.subr.bf16.mxu0 0
      %4219 = vmatpush2.bf16.msra.mxu0 0
      %4220 = vmatprep.subr.bf16.mxu0 0
      %4221 = vmatpush2.bf16.msra.mxu0 0
      %4222 = vmatprep.subr.bf16.mxu0 0
      %4223 = vmatpush2.bf16.msra.mxu0 0
      %4224 = vmatprep.subr.bf16.mxu0 0
      %4225 = vmatpush2.bf16.msra.mxu0 0
      %4226 = vmatprep.subr.bf16.mxu0 0
      %4227 = vmatpush2.bf16.msra.mxu0 0
      %4228 = vmatprep.subr.bf16.mxu0 0
      %4229 = vmatpush2.bf16.msra.mxu0 0
      %4230 = vmatprep.subr.bf16.mxu0 0
      %4231 = vmatpush2.bf16.msra.mxu0 0
      %4232 = vmatprep.subr.bf16.mxu0 0
      %4233 = vmatpush2.bf16.msra.mxu0 0
      %4234 = vmatprep.mubr.bf16.mxu0 0
      %4235 = vmatmul.mubr.bf16.gmra.mxu0 %v4176
      %v4236 = vpop.f32.mrf.mxu0
      %v4237 = vadd.f32 0.0, %v4236
      %v4238 = vpop.f32.mrf.mxu0
      %v4239 = vadd.f32 0.0, %v4238
      %v4240 = vpop.f32.mrf.mxu0
      %v4241 = vpop.f32.mrf.mxu0
      %4242 = vdwg.mxu0
      %4243 = vmatprep.subr.bf16.mxu0 0
      %4244 = vmatpush1.bf16.msra.mxu0 0
      %4245 = vmatprep.subr.bf16.mxu0 0
      %4246 = vmatpush1.bf16.msra.mxu0 0
      %4247 = vmatprep.subr.bf16.mxu0 0
      %4248 = vmatpush1.bf16.msra.mxu0 0
      %4249 = vmatprep.subr.bf16.mxu0 0
      %4250 = vmatpush1.bf16.msra.mxu0 0
      %4251 = vmatprep.subr.bf16.mxu0 0
      %4252 = vmatpush1.bf16.msra.mxu0 0
      %4253 = vmatprep.subr.bf16.mxu0 0
      %4254 = vmatpush1.bf16.msra.mxu0 0
      %4255 = vmatprep.subr.bf16.mxu0 0
      %4256 = vmatpush1.bf16.msra.mxu0 0
      %4257 = vmatprep.subr.bf16.mxu0 %v4188
      %4258 = vmatpush1.bf16.msra.mxu0 %v4185
      %4259 = vmatprep.subr.bf16.mxu0 0
      %4260 = vmatpush2.bf16.msra.mxu0 0
      %4261 = vmatprep.subr.bf16.mxu0 0
      %4262 = vmatpush2.bf16.msra.mxu0 0
      %4263 = vmatprep.subr.bf16.mxu0 0
      %4264 = vmatpush2.bf16.msra.mxu0 0
      %4265 = vmatprep.subr.bf16.mxu0 0
      %4266 = vmatpush2.bf16.msra.mxu0 0
      %4267 = vmatprep.subr.bf16.mxu0 0
      %4268 = vmatpush2.bf16.msra.mxu0 0
      %4269 = vmatprep.subr.bf16.mxu0 0
      %4270 = vmatpush2.bf16.msra.mxu0 0
      %4271 = vmatprep.subr.bf16.mxu0 0
      %4272 = vmatpush2.bf16.msra.mxu0 0
      %4273 = vmatprep.subr.bf16.mxu0 0
      %4274 = vmatpush2.bf16.msra.mxu0 0
      %4275 = vmatprep.mubr.bf16.mxu0 0
      %4276 = vmatmul.mubr.bf16.gmra.mxu0 %v4176
      %v4277 = vpop.f32.mrf.mxu0
      %v4278 = vadd.f32 0.0, %v4277
      %v4279 = vpop.f32.mrf.mxu0
      %v4280 = vadd.f32 0.0, %v4279
      %v4281 = vpop.f32.mrf.mxu0
      %v4282 = vpop.f32.mrf.mxu0
      %4283 = vdwg.mxu0
      %4284 = vmatprep.subr.bf16.mxu0 0
      %4285 = vmatpush1.bf16.msra.mxu0 0
      %4286 = vmatprep.subr.bf16.mxu0 0
      %4287 = vmatpush1.bf16.msra.mxu0 0
      %4288 = vmatprep.subr.bf16.mxu0 0
      %4289 = vmatpush1.bf16.msra.mxu0 0
      %4290 = vmatprep.subr.bf16.mxu0 0
      %4291 = vmatpush1.bf16.msra.mxu0 0
      %4292 = vmatprep.subr.bf16.mxu0 0
      %4293 = vmatpush1.bf16.msra.mxu0 0
      %4294 = vmatprep.subr.bf16.mxu0 0
      %4295 = vmatpush1.bf16.msra.mxu0 0
      %4296 = vmatprep.subr.bf16.mxu0 0
      %4297 = vmatpush1.bf16.msra.mxu0 0
      %4298 = vmatprep.subr.bf16.mxu0 %v4194
      %4299 = vmatpush1.bf16.msra.mxu0 %v4191
      %4300 = vmatprep.subr.bf16.mxu0 0
      %4301 = vmatpush2.bf16.msra.mxu0 0
      %4302 = vmatprep.subr.bf16.mxu0 0
      %4303 = vmatpush2.bf16.msra.mxu0 0
      %4304 = vmatprep.subr.bf16.mxu0 0
      %4305 = vmatpush2.bf16.msra.mxu0 0
      %4306 = vmatprep.subr.bf16.mxu0 0
      %4307 = vmatpush2.bf16.msra.mxu0 0
      %4308 = vmatprep.subr.bf16.mxu0 0
      %4309 = vmatpush2.bf16.msra.mxu0 0
      %4310 = vmatprep.subr.bf16.mxu0 0
      %4311 = vmatpush2.bf16.msra.mxu0 0
      %4312 = vmatprep.subr.bf16.mxu0 0
      %4313 = vmatpush2.bf16.msra.mxu0 0
      %4314 = vmatprep.subr.bf16.mxu0 0
      %4315 = vmatpush2.bf16.msra.mxu0 0
      %4316 = vmatprep.mubr.bf16.mxu0 0
      %4317 = vmatmul.mubr.bf16.gmra.mxu0 %v4176
      %v4318 = vpop.f32.mrf.mxu0
      %v4319 = vadd.f32 0.0, %v4318
      %v4320 = vpop.f32.mrf.mxu0
      %v4321 = vadd.f32 0.0, %v4320
      %v4322 = vpop.f32.mrf.mxu0
      %v4323 = vpop.f32.mrf.mxu0
      %4324 = vdwg.mxu0
      %4325 = vmatprep.subr.bf16.mxu0 0
      %4326 = vmatpush1.bf16.msra.mxu0 0
      %4327 = vmatprep.subr.bf16.mxu0 0
      %4328 = vmatpush1.bf16.msra.mxu0 0
      %4329 = vmatprep.subr.bf16.mxu0 0
      %4330 = vmatpush1.bf16.msra.mxu0 0
      %4331 = vmatprep.subr.bf16.mxu0 0
      %4332 = vmatpush1.bf16.msra.mxu0 0
      %4333 = vmatprep.subr.bf16.mxu0 0
      %4334 = vmatpush1.bf16.msra.mxu0 0
      %4335 = vmatprep.subr.bf16.mxu0 0
      %4336 = vmatpush1.bf16.msra.mxu0 0
      %4337 = vmatprep.subr.bf16.mxu0 0
      %4338 = vmatpush1.bf16.msra.mxu0 0
      %4339 = vmatprep.subr.bf16.mxu0 %v4200
      %4340 = vmatpush1.bf16.msra.mxu0 %v4197
      %4341 = vmatprep.subr.bf16.mxu0 0
      %4342 = vmatpush2.bf16.msra.mxu0 0
      %4343 = vmatprep.subr.bf16.mxu0 0
      %4344 = vmatpush2.bf16.msra.mxu0 0
      %4345 = vmatprep.subr.bf16.mxu0 0
      %4346 = vmatpush2.bf16.msra.mxu0 0
      %4347 = vmatprep.subr.bf16.mxu0 0
      %4348 = vmatpush2.bf16.msra.mxu0 0
      %4349 = vmatprep.subr.bf16.mxu0 0
      %4350 = vmatpush2.bf16.msra.mxu0 0
      %4351 = vmatprep.subr.bf16.mxu0 0
      %4352 = vmatpush2.bf16.msra.mxu0 0
      %4353 = vmatprep.subr.bf16.mxu0 0
      %4354 = vmatpush2.bf16.msra.mxu0 0
      %4355 = vmatprep.subr.bf16.mxu0 0
      %4356 = vmatpush2.bf16.msra.mxu0 0
      %4357 = vmatprep.mubr.bf16.mxu0 0
      %4358 = vmatmul.mubr.bf16.gmra.mxu0 %v4176
      %v4359 = vpop.f32.mrf.mxu0
      %v4360 = vadd.f32 0.0, %v4359
      %v4361 = vpop.f32.mrf.mxu0
      %v4362 = vadd.f32 0.0, %v4361
      %v4363 = vpop.f32.mrf.mxu0
      %v4364 = vpop.f32.mrf.mxu0
      %4365 = vdwg.mxu0
      %v4366 = vadd.f32 %v4091, %v4237
      %v4367 = vadd.f32 %v4092, %v4239
      %v4368 = vadd.f32 %v4093, %v4278
      %v4369 = vadd.f32 %v4094, %v4280
      %v4370 = vadd.f32 %v4095, %v4319
      %v4371 = vadd.f32 %v4096, %v4321
      %v4372 = vadd.f32 %v4097, %v4360
      %v4373 = vadd.f32 %v4098, %v4362
      %s4374 = scalar_lea.vmem %s2, 30
      %v4375 = vld [vmem:[%s4374] sm:$0x3]
      %v4376 = vld [vmem:[#allocation2] sm:$0xff]
      %v4377 = vld [vmem:[#allocation2 + $0x8] sm:$0xff]
      %v4378 = vld [vmem:[#allocation2 + $0x10] sm:$0x3]
      %v4382 = vcombine.high %v4376, %v4376
      %v4384 = vunpack.c.l.s4 1983009808
      %v4385 = vunpack.c.0.s8 %v4384
      %v4386 = vlaneseq
      %v4387 = vshrl.u32 %v4386, 7
      %v4388 = vsub.s32 %v4385, %v4387
      %v4389 = vrot.slane %v4376, %v4388
      %v4391 = vunpack.c.l.s4 1983009808
      %v4392 = vunpack.c.0.s8 %v4391
      %v4393 = vlaneseq
      %v4394 = vshrl.u32 %v4393, 7
      %v4395 = vsub.s32 %v4392, %v4394
      %v4396 = vrot.slane %v4382, %v4395
      %v4397 = vcombine.high %v4389, %v4389
      %v4398 = vcombine.high %v4396, %v4396
      %v4399 = vcombine.high %v4377, %v4377
      %v4401 = vunpack.c.l.s4 1983009808
      %v4402 = vunpack.c.0.s8 %v4401
      %v4403 = vlaneseq
      %v4404 = vshrl.u32 %v4403, 7
      %v4405 = vsub.s32 %v4402, %v4404
      %v4406 = vrot.slane %v4377, %v4405
      %v4408 = vunpack.c.l.s4 1983009808
      %v4409 = vunpack.c.0.s8 %v4408
      %v4410 = vlaneseq
      %v4411 = vshrl.u32 %v4410, 7
      %v4412 = vsub.s32 %v4409, %v4411
      %v4413 = vrot.slane %v4399, %v4412
      %v4414 = vcombine.high %v4406, %v4406
      %v4415 = vcombine.high %v4413, %v4413
      %v4417 = vunpack.c.l.s4 1983009808
      %v4418 = vunpack.c.0.s8 %v4417
      %v4419 = vlaneseq
      %v4420 = vshrl.u32 %v4419, 7
      %v4421 = vsub.s32 %v4418, %v4420
      %v4422 = vrot.slane %v4378, %v4421
      %4423 = vrot.lane.b32.xlu0 %v4389, 8
      %v4424 = vpop.permute.xlu0 %4423
      %4425 = vrot.lane.b32.xlu0 %v4397, 8
      %v4426 = vpop.permute.xlu0 %4425
      %4427 = vrot.lane.b32.xlu0 %v4396, 8
      %v4428 = vpop.permute.xlu0 %4427
      %4429 = vrot.lane.b32.xlu0 %v4398, 8
      %v4430 = vpop.permute.xlu0 %4429
      %4431 = vrot.lane.b32.xlu0 %v4406, 8
      %v4432 = vpop.permute.xlu0 %4431
      %4433 = vrot.lane.b32.xlu0 %v4414, 8
      %v4434 = vpop.permute.xlu0 %4433
      %4435 = vrot.lane.b32.xlu0 %v4413, 8
      %v4436 = vpop.permute.xlu0 %4435
      %4437 = vrot.lane.b32.xlu0 %v4415, 8
      %v4438 = vpop.permute.xlu0 %4437
      %4439 = vrot.lane.b32.xlu0 %v4422, 8
      %v4440 = vpop.permute.xlu0 %4439
      %vm4441 = vcmask 64512
      %v4442 = vsel %vm4441, %v4424, %v4426
      %v4443 = vsel %vm4441, %v4426, %v4428
      %v4444 = vsel %vm4441, %v4428, %v4430
      %v4445 = vsel %vm4441, %v4430, %v4432
      %v4446 = vsel %vm4441, %v4432, %v4434
      %v4447 = vsel %vm4441, %v4434, %v4436
      %v4448 = vsel %vm4441, %v4436, %v4438
      %v4449 = vsel %vm4441, %v4438, %v4440
      %v4451 = vsel %vm415, %v4375, 0
      %v4454 = vsel %vm419, %v4442, 0
      %v4457 = vsel %vm419, %v4443, 0
      %v4460 = vsel %vm419, %v4444, 0
      %v4463 = vsel %vm419, %v4445, 0
      %v4466 = vsel %vm419, %v4446, 0
      %v4469 = vsel %vm419, %v4447, 0
      %v4472 = vsel %vm419, %v4448, 0
      %v4475 = vsel %vm419, %v4449, 0
      %4477 = vmatprep.subr.bf16.mxu0 0
      %4478 = vmatpush1.bf16.msra.mxu0 0
      %4479 = vmatprep.subr.bf16.mxu0 0
      %4480 = vmatpush1.bf16.msra.mxu0 0
      %4481 = vmatprep.subr.bf16.mxu0 0
      %4482 = vmatpush1.bf16.msra.mxu0 0
      %4483 = vmatprep.subr.bf16.mxu0 0
      %4484 = vmatpush1.bf16.msra.mxu0 0
      %4485 = vmatprep.subr.bf16.mxu0 0
      %4486 = vmatpush1.bf16.msra.mxu0 0
      %4487 = vmatprep.subr.bf16.mxu0 0
      %4488 = vmatpush1.bf16.msra.mxu0 0
      %4489 = vmatprep.subr.bf16.mxu0 0
      %4490 = vmatpush1.bf16.msra.mxu0 0
      %4491 = vmatprep.subr.bf16.mxu0 %v4457
      %4492 = vmatpush1.bf16.msra.mxu0 %v4454
      %4493 = vmatprep.subr.bf16.mxu0 0
      %4494 = vmatpush2.bf16.msra.mxu0 0
      %4495 = vmatprep.subr.bf16.mxu0 0
      %4496 = vmatpush2.bf16.msra.mxu0 0
      %4497 = vmatprep.subr.bf16.mxu0 0
      %4498 = vmatpush2.bf16.msra.mxu0 0
      %4499 = vmatprep.subr.bf16.mxu0 0
      %4500 = vmatpush2.bf16.msra.mxu0 0
      %4501 = vmatprep.subr.bf16.mxu0 0
      %4502 = vmatpush2.bf16.msra.mxu0 0
      %4503 = vmatprep.subr.bf16.mxu0 0
      %4504 = vmatpush2.bf16.msra.mxu0 0
      %4505 = vmatprep.subr.bf16.mxu0 0
      %4506 = vmatpush2.bf16.msra.mxu0 0
      %4507 = vmatprep.subr.bf16.mxu0 0
      %4508 = vmatpush2.bf16.msra.mxu0 0
      %4509 = vmatprep.mubr.bf16.mxu0 0
      %4510 = vmatmul.mubr.bf16.gmra.mxu0 %v4451
      %v4511 = vpop.f32.mrf.mxu0
      %v4512 = vadd.f32 0.0, %v4511
      %v4513 = vpop.f32.mrf.mxu0
      %v4514 = vadd.f32 0.0, %v4513
      %v4515 = vpop.f32.mrf.mxu0
      %v4516 = vpop.f32.mrf.mxu0
      %4517 = vdwg.mxu0
      %4518 = vmatprep.subr.bf16.mxu0 0
      %4519 = vmatpush1.bf16.msra.mxu0 0
      %4520 = vmatprep.subr.bf16.mxu0 0
      %4521 = vmatpush1.bf16.msra.mxu0 0
      %4522 = vmatprep.subr.bf16.mxu0 0
      %4523 = vmatpush1.bf16.msra.mxu0 0
      %4524 = vmatprep.subr.bf16.mxu0 0
      %4525 = vmatpush1.bf16.msra.mxu0 0
      %4526 = vmatprep.subr.bf16.mxu0 0
      %4527 = vmatpush1.bf16.msra.mxu0 0
      %4528 = vmatprep.subr.bf16.mxu0 0
      %4529 = vmatpush1.bf16.msra.mxu0 0
      %4530 = vmatprep.subr.bf16.mxu0 0
      %4531 = vmatpush1.bf16.msra.mxu0 0
      %4532 = vmatprep.subr.bf16.mxu0 %v4463
      %4533 = vmatpush1.bf16.msra.mxu0 %v4460
      %4534 = vmatprep.subr.bf16.mxu0 0
      %4535 = vmatpush2.bf16.msra.mxu0 0
      %4536 = vmatprep.subr.bf16.mxu0 0
      %4537 = vmatpush2.bf16.msra.mxu0 0
      %4538 = vmatprep.subr.bf16.mxu0 0
      %4539 = vmatpush2.bf16.msra.mxu0 0
      %4540 = vmatprep.subr.bf16.mxu0 0
      %4541 = vmatpush2.bf16.msra.mxu0 0
      %4542 = vmatprep.subr.bf16.mxu0 0
      %4543 = vmatpush2.bf16.msra.mxu0 0
      %4544 = vmatprep.subr.bf16.mxu0 0
      %4545 = vmatpush2.bf16.msra.mxu0 0
      %4546 = vmatprep.subr.bf16.mxu0 0
      %4547 = vmatpush2.bf16.msra.mxu0 0
      %4548 = vmatprep.subr.bf16.mxu0 0
      %4549 = vmatpush2.bf16.msra.mxu0 0
      %4550 = vmatprep.mubr.bf16.mxu0 0
      %4551 = vmatmul.mubr.bf16.gmra.mxu0 %v4451
      %v4552 = vpop.f32.mrf.mxu0
      %v4553 = vadd.f32 0.0, %v4552
      %v4554 = vpop.f32.mrf.mxu0
      %v4555 = vadd.f32 0.0, %v4554
      %v4556 = vpop.f32.mrf.mxu0
      %v4557 = vpop.f32.mrf.mxu0
      %4558 = vdwg.mxu0
      %4559 = vmatprep.subr.bf16.mxu0 0
      %4560 = vmatpush1.bf16.msra.mxu0 0
      %4561 = vmatprep.subr.bf16.mxu0 0
      %4562 = vmatpush1.bf16.msra.mxu0 0
      %4563 = vmatprep.subr.bf16.mxu0 0
      %4564 = vmatpush1.bf16.msra.mxu0 0
      %4565 = vmatprep.subr.bf16.mxu0 0
      %4566 = vmatpush1.bf16.msra.mxu0 0
      %4567 = vmatprep.subr.bf16.mxu0 0
      %4568 = vmatpush1.bf16.msra.mxu0 0
      %4569 = vmatprep.subr.bf16.mxu0 0
      %4570 = vmatpush1.bf16.msra.mxu0 0
      %4571 = vmatprep.subr.bf16.mxu0 0
      %4572 = vmatpush1.bf16.msra.mxu0 0
      %4573 = vmatprep.subr.bf16.mxu0 %v4469
      %4574 = vmatpush1.bf16.msra.mxu0 %v4466
      %4575 = vmatprep.subr.bf16.mxu0 0
      %4576 = vmatpush2.bf16.msra.mxu0 0
      %4577 = vmatprep.subr.bf16.mxu0 0
      %4578 = vmatpush2.bf16.msra.mxu0 0
      %4579 = vmatprep.subr.bf16.mxu0 0
      %4580 = vmatpush2.bf16.msra.mxu0 0
      %4581 = vmatprep.subr.bf16.mxu0 0
      %4582 = vmatpush2.bf16.msra.mxu0 0
      %4583 = vmatprep.subr.bf16.mxu0 0
      %4584 = vmatpush2.bf16.msra.mxu0 0
      %4585 = vmatprep.subr.bf16.mxu0 0
      %4586 = vmatpush2.bf16.msra.mxu0 0
      %4587 = vmatprep.subr.bf16.mxu0 0
      %4588 = vmatpush2.bf16.msra.mxu0 0
      %4589 = vmatprep.subr.bf16.mxu0 0
      %4590 = vmatpush2.bf16.msra.mxu0 0
      %4591 = vmatprep.mubr.bf16.mxu0 0
      %4592 = vmatmul.mubr.bf16.gmra.mxu0 %v4451
      %v4593 = vpop.f32.mrf.mxu0
      %v4594 = vadd.f32 0.0, %v4593
      %v4595 = vpop.f32.mrf.mxu0
      %v4596 = vadd.f32 0.0, %v4595
      %v4597 = vpop.f32.mrf.mxu0
      %v4598 = vpop.f32.mrf.mxu0
      %4599 = vdwg.mxu0
      %4600 = vmatprep.subr.bf16.mxu0 0
      %4601 = vmatpush1.bf16.msra.mxu0 0
      %4602 = vmatprep.subr.bf16.mxu0 0
      %4603 = vmatpush1.bf16.msra.mxu0 0
      %4604 = vmatprep.subr.bf16.mxu0 0
      %4605 = vmatpush1.bf16.msra.mxu0 0
      %4606 = vmatprep.subr.bf16.mxu0 0
      %4607 = vmatpush1.bf16.msra.mxu0 0
      %4608 = vmatprep.subr.bf16.mxu0 0
      %4609 = vmatpush1.bf16.msra.mxu0 0
      %4610 = vmatprep.subr.bf16.mxu0 0
      %4611 = vmatpush1.bf16.msra.mxu0 0
      %4612 = vmatprep.subr.bf16.mxu0 0
      %4613 = vmatpush1.bf16.msra.mxu0 0
      %4614 = vmatprep.subr.bf16.mxu0 %v4475
      %4615 = vmatpush1.bf16.msra.mxu0 %v4472
      %4616 = vmatprep.subr.bf16.mxu0 0
      %4617 = vmatpush2.bf16.msra.mxu0 0
      %4618 = vmatprep.subr.bf16.mxu0 0
      %4619 = vmatpush2.bf16.msra.mxu0 0
      %4620 = vmatprep.subr.bf16.mxu0 0
      %4621 = vmatpush2.bf16.msra.mxu0 0
      %4622 = vmatprep.subr.bf16.mxu0 0
      %4623 = vmatpush2.bf16.msra.mxu0 0
      %4624 = vmatprep.subr.bf16.mxu0 0
      %4625 = vmatpush2.bf16.msra.mxu0 0
      %4626 = vmatprep.subr.bf16.mxu0 0
      %4627 = vmatpush2.bf16.msra.mxu0 0
      %4628 = vmatprep.subr.bf16.mxu0 0
      %4629 = vmatpush2.bf16.msra.mxu0 0
      %4630 = vmatprep.subr.bf16.mxu0 0
      %4631 = vmatpush2.bf16.msra.mxu0 0
      %4632 = vmatprep.mubr.bf16.mxu0 0
      %4633 = vmatmul.mubr.bf16.gmra.mxu0 %v4451
      %v4634 = vpop.f32.mrf.mxu0
      %v4635 = vadd.f32 0.0, %v4634
      %v4636 = vpop.f32.mrf.mxu0
      %v4637 = vadd.f32 0.0, %v4636
      %v4638 = vpop.f32.mrf.mxu0
      %v4639 = vpop.f32.mrf.mxu0
      %4640 = vdwg.mxu0
      %v4641 = vadd.f32 %v4366, %v4512
      %v4642 = vadd.f32 %v4367, %v4514
      %v4643 = vadd.f32 %v4368, %v4553
      %v4644 = vadd.f32 %v4369, %v4555
      %v4645 = vadd.f32 %v4370, %v4594
      %v4646 = vadd.f32 %v4371, %v4596
      %v4647 = vadd.f32 %v4372, %v4635
      %v4648 = vadd.f32 %v4373, %v4637
      %s4649 = scalar_lea.vmem %s2, 32
      %v4650 = vld [vmem:[%s4649] sm:$0x3]
      %v4651 = vld [vmem:[#allocation2] sm:$0xff]
      %v4652 = vld [vmem:[#allocation2 + $0x8] sm:$0xff]
      %v4653 = vld [vmem:[#allocation2 + $0x10] sm:$0x3]
      %v4657 = vcombine.high %v4651, %v4651
      %v4659 = vunpack.c.l.s4 1983009808
      %v4660 = vunpack.c.0.s8 %v4659
      %v4661 = vlaneseq
      %v4662 = vshrl.u32 %v4661, 7
      %v4663 = vsub.s32 %v4660, %v4662
      %v4664 = vrot.slane %v4651, %v4663
      %v4666 = vunpack.c.l.s4 1983009808
      %v4667 = vunpack.c.0.s8 %v4666
      %v4668 = vlaneseq
      %v4669 = vshrl.u32 %v4668, 7
      %v4670 = vsub.s32 %v4667, %v4669
      %v4671 = vrot.slane %v4657, %v4670
      %v4672 = vcombine.high %v4664, %v4664
      %v4673 = vcombine.high %v4671, %v4671
      %v4674 = vcombine.high %v4652, %v4652
      %v4676 = vunpack.c.l.s4 1983009808
      %v4677 = vunpack.c.0.s8 %v4676
      %v4678 = vlaneseq
      %v4679 = vshrl.u32 %v4678, 7
      %v4680 = vsub.s32 %v4677, %v4679
      %v4681 = vrot.slane %v4652, %v4680
      %v4683 = vunpack.c.l.s4 1983009808
      %v4684 = vunpack.c.0.s8 %v4683
      %v4685 = vlaneseq
      %v4686 = vshrl.u32 %v4685, 7
      %v4687 = vsub.s32 %v4684, %v4686
      %v4688 = vrot.slane %v4674, %v4687
      %v4689 = vcombine.high %v4681, %v4681
      %v4690 = vcombine.high %v4688, %v4688
      %v4692 = vunpack.c.l.s4 1983009808
      %v4693 = vunpack.c.0.s8 %v4692
      %v4694 = vlaneseq
      %v4695 = vshrl.u32 %v4694, 7
      %v4696 = vsub.s32 %v4693, %v4695
      %v4697 = vrot.slane %v4653, %v4696
      %4698 = vrot.lane.b32.xlu0 %v4664, 7
      %v4699 = vpop.permute.xlu0 %4698
      %4700 = vrot.lane.b32.xlu0 %v4672, 7
      %v4701 = vpop.permute.xlu0 %4700
      %4702 = vrot.lane.b32.xlu0 %v4671, 7
      %v4703 = vpop.permute.xlu0 %4702
      %4704 = vrot.lane.b32.xlu0 %v4673, 7
      %v4705 = vpop.permute.xlu0 %4704
      %4706 = vrot.lane.b32.xlu0 %v4681, 7
      %v4707 = vpop.permute.xlu0 %4706
      %4708 = vrot.lane.b32.xlu0 %v4689, 7
      %v4709 = vpop.permute.xlu0 %4708
      %4710 = vrot.lane.b32.xlu0 %v4688, 7
      %v4711 = vpop.permute.xlu0 %4710
      %4712 = vrot.lane.b32.xlu0 %v4690, 7
      %v4713 = vpop.permute.xlu0 %4712
      %4714 = vrot.lane.b32.xlu0 %v4697, 7
      %v4715 = vpop.permute.xlu0 %4714
      %vm4716 = vcmask 56320
      %v4717 = vsel %vm4716, %v4699, %v4701
      %v4718 = vsel %vm4716, %v4701, %v4703
      %v4719 = vsel %vm4716, %v4703, %v4705
      %v4720 = vsel %vm4716, %v4705, %v4707
      %v4721 = vsel %vm4716, %v4707, %v4709
      %v4722 = vsel %vm4716, %v4709, %v4711
      %v4723 = vsel %vm4716, %v4711, %v4713
      %v4724 = vsel %vm4716, %v4713, %v4715
      %v4726 = vsel %vm415, %v4650, 0
      %v4729 = vsel %vm419, %v4717, 0
      %v4732 = vsel %vm419, %v4718, 0
      %v4735 = vsel %vm419, %v4719, 0
      %v4738 = vsel %vm419, %v4720, 0
      %v4741 = vsel %vm419, %v4721, 0
      %v4744 = vsel %vm419, %v4722, 0
      %v4747 = vsel %vm419, %v4723, 0
      %v4750 = vsel %vm419, %v4724, 0
      %4752 = vmatprep.subr.bf16.mxu0 0
      %4753 = vmatpush1.bf16.msra.mxu0 0
      %4754 = vmatprep.subr.bf16.mxu0 0
      %4755 = vmatpush1.bf16.msra.mxu0 0
      %4756 = vmatprep.subr.bf16.mxu0 0
      %4757 = vmatpush1.bf16.msra.mxu0 0
      %4758 = vmatprep.subr.bf16.mxu0 0
      %4759 = vmatpush1.bf16.msra.mxu0 0
      %4760 = vmatprep.subr.bf16.mxu0 0
      %4761 = vmatpush1.bf16.msra.mxu0 0
      %4762 = vmatprep.subr.bf16.mxu0 0
      %4763 = vmatpush1.bf16.msra.mxu0 0
      %4764 = vmatprep.subr.bf16.mxu0 0
      %4765 = vmatpush1.bf16.msra.mxu0 0
      %4766 = vmatprep.subr.bf16.mxu0 %v4732
      %4767 = vmatpush1.bf16.msra.mxu0 %v4729
      %4768 = vmatprep.subr.bf16.mxu0 0
      %4769 = vmatpush2.bf16.msra.mxu0 0
      %4770 = vmatprep.subr.bf16.mxu0 0
      %4771 = vmatpush2.bf16.msra.mxu0 0
      %4772 = vmatprep.subr.bf16.mxu0 0
      %4773 = vmatpush2.bf16.msra.mxu0 0
      %4774 = vmatprep.subr.bf16.mxu0 0
      %4775 = vmatpush2.bf16.msra.mxu0 0
      %4776 = vmatprep.subr.bf16.mxu0 0
      %4777 = vmatpush2.bf16.msra.mxu0 0
      %4778 = vmatprep.subr.bf16.mxu0 0
      %4779 = vmatpush2.bf16.msra.mxu0 0
      %4780 = vmatprep.subr.bf16.mxu0 0
      %4781 = vmatpush2.bf16.msra.mxu0 0
      %4782 = vmatprep.subr.bf16.mxu0 0
      %4783 = vmatpush2.bf16.msra.mxu0 0
      %4784 = vmatprep.mubr.bf16.mxu0 0
      %4785 = vmatmul.mubr.bf16.gmra.mxu0 %v4726
      %v4786 = vpop.f32.mrf.mxu0
      %v4787 = vadd.f32 0.0, %v4786
      %v4788 = vpop.f32.mrf.mxu0
      %v4789 = vadd.f32 0.0, %v4788
      %v4790 = vpop.f32.mrf.mxu0
      %v4791 = vpop.f32.mrf.mxu0
      %4792 = vdwg.mxu0
      %4793 = vmatprep.subr.bf16.mxu0 0
      %4794 = vmatpush1.bf16.msra.mxu0 0
      %4795 = vmatprep.subr.bf16.mxu0 0
      %4796 = vmatpush1.bf16.msra.mxu0 0
      %4797 = vmatprep.subr.bf16.mxu0 0
      %4798 = vmatpush1.bf16.msra.mxu0 0
      %4799 = vmatprep.subr.bf16.mxu0 0
      %4800 = vmatpush1.bf16.msra.mxu0 0
      %4801 = vmatprep.subr.bf16.mxu0 0
      %4802 = vmatpush1.bf16.msra.mxu0 0
      %4803 = vmatprep.subr.bf16.mxu0 0
      %4804 = vmatpush1.bf16.msra.mxu0 0
      %4805 = vmatprep.subr.bf16.mxu0 0
      %4806 = vmatpush1.bf16.msra.mxu0 0
      %4807 = vmatprep.subr.bf16.mxu0 %v4738
      %4808 = vmatpush1.bf16.msra.mxu0 %v4735
      %4809 = vmatprep.subr.bf16.mxu0 0
      %4810 = vmatpush2.bf16.msra.mxu0 0
      %4811 = vmatprep.subr.bf16.mxu0 0
      %4812 = vmatpush2.bf16.msra.mxu0 0
      %4813 = vmatprep.subr.bf16.mxu0 0
      %4814 = vmatpush2.bf16.msra.mxu0 0
      %4815 = vmatprep.subr.bf16.mxu0 0
      %4816 = vmatpush2.bf16.msra.mxu0 0
      %4817 = vmatprep.subr.bf16.mxu0 0
      %4818 = vmatpush2.bf16.msra.mxu0 0
      %4819 = vmatprep.subr.bf16.mxu0 0
      %4820 = vmatpush2.bf16.msra.mxu0 0
      %4821 = vmatprep.subr.bf16.mxu0 0
      %4822 = vmatpush2.bf16.msra.mxu0 0
      %4823 = vmatprep.subr.bf16.mxu0 0
      %4824 = vmatpush2.bf16.msra.mxu0 0
      %4825 = vmatprep.mubr.bf16.mxu0 0
      %4826 = vmatmul.mubr.bf16.gmra.mxu0 %v4726
      %v4827 = vpop.f32.mrf.mxu0
      %v4828 = vadd.f32 0.0, %v4827
      %v4829 = vpop.f32.mrf.mxu0
      %v4830 = vadd.f32 0.0, %v4829
      %v4831 = vpop.f32.mrf.mxu0
      %v4832 = vpop.f32.mrf.mxu0
      %4833 = vdwg.mxu0
      %4834 = vmatprep.subr.bf16.mxu0 0
      %4835 = vmatpush1.bf16.msra.mxu0 0
      %4836 = vmatprep.subr.bf16.mxu0 0
      %4837 = vmatpush1.bf16.msra.mxu0 0
      %4838 = vmatprep.subr.bf16.mxu0 0
      %4839 = vmatpush1.bf16.msra.mxu0 0
      %4840 = vmatprep.subr.bf16.mxu0 0
      %4841 = vmatpush1.bf16.msra.mxu0 0
      %4842 = vmatprep.subr.bf16.mxu0 0
      %4843 = vmatpush1.bf16.msra.mxu0 0
      %4844 = vmatprep.subr.bf16.mxu0 0
      %4845 = vmatpush1.bf16.msra.mxu0 0
      %4846 = vmatprep.subr.bf16.mxu0 0
      %4847 = vmatpush1.bf16.msra.mxu0 0
      %4848 = vmatprep.subr.bf16.mxu0 %v4744
      %4849 = vmatpush1.bf16.msra.mxu0 %v4741
      %4850 = vmatprep.subr.bf16.mxu0 0
      %4851 = vmatpush2.bf16.msra.mxu0 0
      %4852 = vmatprep.subr.bf16.mxu0 0
      %4853 = vmatpush2.bf16.msra.mxu0 0
      %4854 = vmatprep.subr.bf16.mxu0 0
      %4855 = vmatpush2.bf16.msra.mxu0 0
      %4856 = vmatprep.subr.bf16.mxu0 0
      %4857 = vmatpush2.bf16.msra.mxu0 0
      %4858 = vmatprep.subr.bf16.mxu0 0
      %4859 = vmatpush2.bf16.msra.mxu0 0
      %4860 = vmatprep.subr.bf16.mxu0 0
      %4861 = vmatpush2.bf16.msra.mxu0 0
      %4862 = vmatprep.subr.bf16.mxu0 0
      %4863 = vmatpush2.bf16.msra.mxu0 0
      %4864 = vmatprep.subr.bf16.mxu0 0
      %4865 = vmatpush2.bf16.msra.mxu0 0
      %4866 = vmatprep.mubr.bf16.mxu0 0
      %4867 = vmatmul.mubr.bf16.gmra.mxu0 %v4726
      %v4868 = vpop.f32.mrf.mxu0
      %v4869 = vadd.f32 0.0, %v4868
      %v4870 = vpop.f32.mrf.mxu0
      %v4871 = vadd.f32 0.0, %v4870
      %v4872 = vpop.f32.mrf.mxu0
      %v4873 = vpop.f32.mrf.mxu0
      %4874 = vdwg.mxu0
      %4875 = vmatprep.subr.bf16.mxu0 0
      %4876 = vmatpush1.bf16.msra.mxu0 0
      %4877 = vmatprep.subr.bf16.mxu0 0
      %4878 = vmatpush1.bf16.msra.mxu0 0
      %4879 = vmatprep.subr.bf16.mxu0 0
      %4880 = vmatpush1.bf16.msra.mxu0 0
      %4881 = vmatprep.subr.bf16.mxu0 0
      %4882 = vmatpush1.bf16.msra.mxu0 0
      %4883 = vmatprep.subr.bf16.mxu0 0
      %4884 = vmatpush1.bf16.msra.mxu0 0
      %4885 = vmatprep.subr.bf16.mxu0 0
      %4886 = vmatpush1.bf16.msra.mxu0 0
      %4887 = vmatprep.subr.bf16.mxu0 0
      %4888 = vmatpush1.bf16.msra.mxu0 0
      %4889 = vmatprep.subr.bf16.mxu0 %v4750
      %4890 = vmatpush1.bf16.msra.mxu0 %v4747
      %4891 = vmatprep.subr.bf16.mxu0 0
      %4892 = vmatpush2.bf16.msra.mxu0 0
      %4893 = vmatprep.subr.bf16.mxu0 0
      %4894 = vmatpush2.bf16.msra.mxu0 0
      %4895 = vmatprep.subr.bf16.mxu0 0
      %4896 = vmatpush2.bf16.msra.mxu0 0
      %4897 = vmatprep.subr.bf16.mxu0 0
      %4898 = vmatpush2.bf16.msra.mxu0 0
      %4899 = vmatprep.subr.bf16.mxu0 0
      %4900 = vmatpush2.bf16.msra.mxu0 0
      %4901 = vmatprep.subr.bf16.mxu0 0
      %4902 = vmatpush2.bf16.msra.mxu0 0
      %4903 = vmatprep.subr.bf16.mxu0 0
      %4904 = vmatpush2.bf16.msra.mxu0 0
      %4905 = vmatprep.subr.bf16.mxu0 0
      %4906 = vmatpush2.bf16.msra.mxu0 0
      %4907 = vmatprep.mubr.bf16.mxu0 0
      %4908 = vmatmul.mubr.bf16.gmra.mxu0 %v4726
      %v4909 = vpop.f32.mrf.mxu0
      %v4910 = vadd.f32 0.0, %v4909
      %v4911 = vpop.f32.mrf.mxu0
      %v4912 = vadd.f32 0.0, %v4911
      %v4913 = vpop.f32.mrf.mxu0
      %v4914 = vpop.f32.mrf.mxu0
      %4915 = vdwg.mxu0
      %v4916 = vadd.f32 %v4641, %v4787
      %v4917 = vadd.f32 %v4642, %v4789
      %v4918 = vadd.f32 %v4643, %v4828
      %v4919 = vadd.f32 %v4644, %v4830
      %v4920 = vadd.f32 %v4645, %v4869
      %v4921 = vadd.f32 %v4646, %v4871
      %v4922 = vadd.f32 %v4647, %v4910
      %v4923 = vadd.f32 %v4648, %v4912
      %s4924 = scalar_lea.vmem %s2, 34
      %v4925 = vld [vmem:[%s4924] sm:$0x3]
      %v4926 = vld [vmem:[#allocation2] sm:$0xff]
      %v4927 = vld [vmem:[#allocation2 + $0x8] sm:$0xff]
      %v4928 = vld [vmem:[#allocation2 + $0x10] sm:$0x3]
      %v4932 = vcombine.high %v4926, %v4926
      %v4934 = vunpack.c.l.s4 1983009808
      %v4935 = vunpack.c.0.s8 %v4934
      %v4936 = vlaneseq
      %v4937 = vshrl.u32 %v4936, 7
      %v4938 = vsub.s32 %v4935, %v4937
      %v4939 = vrot.slane %v4926, %v4938
      %v4941 = vunpack.c.l.s4 1983009808
      %v4942 = vunpack.c.0.s8 %v4941
      %v4943 = vlaneseq
      %v4944 = vshrl.u32 %v4943, 7
      %v4945 = vsub.s32 %v4942, %v4944
      %v4946 = vrot.slane %v4932, %v4945
      %v4947 = vcombine.high %v4939, %v4939
      %v4948 = vcombine.high %v4946, %v4946
      %v4949 = vcombine.high %v4927, %v4927
      %v4951 = vunpack.c.l.s4 1983009808
      %v4952 = vunpack.c.0.s8 %v4951
      %v4953 = vlaneseq
      %v4954 = vshrl.u32 %v4953, 7
      %v4955 = vsub.s32 %v4952, %v4954
      %v4956 = vrot.slane %v4927, %v4955
      %v4958 = vunpack.c.l.s4 1983009808
      %v4959 = vunpack.c.0.s8 %v4958
      %v4960 = vlaneseq
      %v4961 = vshrl.u32 %v4960, 7
      %v4962 = vsub.s32 %v4959, %v4961
      %v4963 = vrot.slane %v4949, %v4962
      %v4964 = vcombine.high %v4956, %v4956
      %v4965 = vcombine.high %v4963, %v4963
      %v4967 = vunpack.c.l.s4 1983009808
      %v4968 = vunpack.c.0.s8 %v4967
      %v4969 = vlaneseq
      %v4970 = vshrl.u32 %v4969, 7
      %v4971 = vsub.s32 %v4968, %v4970
      %v4972 = vrot.slane %v4928, %v4971
      %4973 = vrot.lane.b32.xlu0 %v4939, 6
      %v4974 = vpop.permute.xlu0 %4973
      %4975 = vrot.lane.b32.xlu0 %v4947, 6
      %v4976 = vpop.permute.xlu0 %4975
      %4977 = vrot.lane.b32.xlu0 %v4946, 6
      %v4978 = vpop.permute.xlu0 %4977
      %4979 = vrot.lane.b32.xlu0 %v4948, 6
      %v4980 = vpop.permute.xlu0 %4979
      %4981 = vrot.lane.b32.xlu0 %v4956, 6
      %v4982 = vpop.permute.xlu0 %4981
      %4983 = vrot.lane.b32.xlu0 %v4964, 6
      %v4984 = vpop.permute.xlu0 %4983
      %4985 = vrot.lane.b32.xlu0 %v4963, 6
      %v4986 = vpop.permute.xlu0 %4985
      %4987 = vrot.lane.b32.xlu0 %v4965, 6
      %v4988 = vpop.permute.xlu0 %4987
      %4989 = vrot.lane.b32.xlu0 %v4972, 6
      %v4990 = vpop.permute.xlu0 %4989
      %vm4991 = vcmask 48128
      %v4992 = vsel %vm4991, %v4974, %v4976
      %v4993 = vsel %vm4991, %v4976, %v4978
      %v4994 = vsel %vm4991, %v4978, %v4980
      %v4995 = vsel %vm4991, %v4980, %v4982
      %v4996 = vsel %vm4991, %v4982, %v4984
      %v4997 = vsel %vm4991, %v4984, %v4986
      %v4998 = vsel %vm4991, %v4986, %v4988
      %v4999 = vsel %vm4991, %v4988, %v4990
      %v5001 = vsel %vm415, %v4925, 0
      %v5004 = vsel %vm419, %v4992, 0
      %v5007 = vsel %vm419, %v4993, 0
      %v5010 = vsel %vm419, %v4994, 0
      %v5013 = vsel %vm419, %v4995, 0
      %v5016 = vsel %vm419, %v4996, 0
      %v5019 = vsel %vm419, %v4997, 0
      %v5022 = vsel %vm419, %v4998, 0
      %v5025 = vsel %vm419, %v4999, 0
      %5027 = vmatprep.subr.bf16.mxu0 0
      %5028 = vmatpush1.bf16.msra.mxu0 0
      %5029 = vmatprep.subr.bf16.mxu0 0
      %5030 = vmatpush1.bf16.msra.mxu0 0
      %5031 = vmatprep.subr.bf16.mxu0 0
      %5032 = vmatpush1.bf16.msra.mxu0 0
      %5033 = vmatprep.subr.bf16.mxu0 0
      %5034 = vmatpush1.bf16.msra.mxu0 0
      %5035 = vmatprep.subr.bf16.mxu0 0
      %5036 = vmatpush1.bf16.msra.mxu0 0
      %5037 = vmatprep.subr.bf16.mxu0 0
      %5038 = vmatpush1.bf16.msra.mxu0 0
      %5039 = vmatprep.subr.bf16.mxu0 0
      %5040 = vmatpush1.bf16.msra.mxu0 0
      %5041 = vmatprep.subr.bf16.mxu0 %v5007
      %5042 = vmatpush1.bf16.msra.mxu0 %v5004
      %5043 = vmatprep.subr.bf16.mxu0 0
      %5044 = vmatpush2.bf16.msra.mxu0 0
      %5045 = vmatprep.subr.bf16.mxu0 0
      %5046 = vmatpush2.bf16.msra.mxu0 0
      %5047 = vmatprep.subr.bf16.mxu0 0
      %5048 = vmatpush2.bf16.msra.mxu0 0
      %5049 = vmatprep.subr.bf16.mxu0 0
      %5050 = vmatpush2.bf16.msra.mxu0 0
      %5051 = vmatprep.subr.bf16.mxu0 0
      %5052 = vmatpush2.bf16.msra.mxu0 0
      %5053 = vmatprep.subr.bf16.mxu0 0
      %5054 = vmatpush2.bf16.msra.mxu0 0
      %5055 = vmatprep.subr.bf16.mxu0 0
      %5056 = vmatpush2.bf16.msra.mxu0 0
      %5057 = vmatprep.subr.bf16.mxu0 0
      %5058 = vmatpush2.bf16.msra.mxu0 0
      %5059 = vmatprep.mubr.bf16.mxu0 0
      %5060 = vmatmul.mubr.bf16.gmra.mxu0 %v5001
      %v5061 = vpop.f32.mrf.mxu0
      %v5062 = vadd.f32 0.0, %v5061
      %v5063 = vpop.f32.mrf.mxu0
      %v5064 = vadd.f32 0.0, %v5063
      %v5065 = vpop.f32.mrf.mxu0
      %v5066 = vpop.f32.mrf.mxu0
      %5067 = vdwg.mxu0
      %5068 = vmatprep.subr.bf16.mxu0 0
      %5069 = vmatpush1.bf16.msra.mxu0 0
      %5070 = vmatprep.subr.bf16.mxu0 0
      %5071 = vmatpush1.bf16.msra.mxu0 0
      %5072 = vmatprep.subr.bf16.mxu0 0
      %5073 = vmatpush1.bf16.msra.mxu0 0
      %5074 = vmatprep.subr.bf16.mxu0 0
      %5075 = vmatpush1.bf16.msra.mxu0 0
      %5076 = vmatprep.subr.bf16.mxu0 0
      %5077 = vmatpush1.bf16.msra.mxu0 0
      %5078 = vmatprep.subr.bf16.mxu0 0
      %5079 = vmatpush1.bf16.msra.mxu0 0
      %5080 = vmatprep.subr.bf16.mxu0 0
      %5081 = vmatpush1.bf16.msra.mxu0 0
      %5082 = vmatprep.subr.bf16.mxu0 %v5013
      %5083 = vmatpush1.bf16.msra.mxu0 %v5010
      %5084 = vmatprep.subr.bf16.mxu0 0
      %5085 = vmatpush2.bf16.msra.mxu0 0
      %5086 = vmatprep.subr.bf16.mxu0 0
      %5087 = vmatpush2.bf16.msra.mxu0 0
      %5088 = vmatprep.subr.bf16.mxu0 0
      %5089 = vmatpush2.bf16.msra.mxu0 0
      %5090 = vmatprep.subr.bf16.mxu0 0
      %5091 = vmatpush2.bf16.msra.mxu0 0
      %5092 = vmatprep.subr.bf16.mxu0 0
      %5093 = vmatpush2.bf16.msra.mxu0 0
      %5094 = vmatprep.subr.bf16.mxu0 0
      %5095 = vmatpush2.bf16.msra.mxu0 0
      %5096 = vmatprep.subr.bf16.mxu0 0
      %5097 = vmatpush2.bf16.msra.mxu0 0
      %5098 = vmatprep.subr.bf16.mxu0 0
      %5099 = vmatpush2.bf16.msra.mxu0 0
      %5100 = vmatprep.mubr.bf16.mxu0 0
      %5101 = vmatmul.mubr.bf16.gmra.mxu0 %v5001
      %v5102 = vpop.f32.mrf.mxu0
      %v5103 = vadd.f32 0.0, %v5102
      %v5104 = vpop.f32.mrf.mxu0
      %v5105 = vadd.f32 0.0, %v5104
      %v5106 = vpop.f32.mrf.mxu0
      %v5107 = vpop.f32.mrf.mxu0
      %5108 = vdwg.mxu0
      %5109 = vmatprep.subr.bf16.mxu0 0
      %5110 = vmatpush1.bf16.msra.mxu0 0
      %5111 = vmatprep.subr.bf16.mxu0 0
      %5112 = vmatpush1.bf16.msra.mxu0 0
      %5113 = vmatprep.subr.bf16.mxu0 0
      %5114 = vmatpush1.bf16.msra.mxu0 0
      %5115 = vmatprep.subr.bf16.mxu0 0
      %5116 = vmatpush1.bf16.msra.mxu0 0
      %5117 = vmatprep.subr.bf16.mxu0 0
      %5118 = vmatpush1.bf16.msra.mxu0 0
      %5119 = vmatprep.subr.bf16.mxu0 0
      %5120 = vmatpush1.bf16.msra.mxu0 0
      %5121 = vmatprep.subr.bf16.mxu0 0
      %5122 = vmatpush1.bf16.msra.mxu0 0
      %5123 = vmatprep.subr.bf16.mxu0 %v5019
      %5124 = vmatpush1.bf16.msra.mxu0 %v5016
      %5125 = vmatprep.subr.bf16.mxu0 0
      %5126 = vmatpush2.bf16.msra.mxu0 0
      %5127 = vmatprep.subr.bf16.mxu0 0
      %5128 = vmatpush2.bf16.msra.mxu0 0
      %5129 = vmatprep.subr.bf16.mxu0 0
      %5130 = vmatpush2.bf16.msra.mxu0 0
      %5131 = vmatprep.subr.bf16.mxu0 0
      %5132 = vmatpush2.bf16.msra.mxu0 0
      %5133 = vmatprep.subr.bf16.mxu0 0
      %5134 = vmatpush2.bf16.msra.mxu0 0
      %5135 = vmatprep.subr.bf16.mxu0 0
      %5136 = vmatpush2.bf16.msra.mxu0 0
      %5137 = vmatprep.subr.bf16.mxu0 0
      %5138 = vmatpush2.bf16.msra.mxu0 0
      %5139 = vmatprep.subr.bf16.mxu0 0
      %5140 = vmatpush2.bf16.msra.mxu0 0
      %5141 = vmatprep.mubr.bf16.mxu0 0
      %5142 = vmatmul.mubr.bf16.gmra.mxu0 %v5001
      %v5143 = vpop.f32.mrf.mxu0
      %v5144 = vadd.f32 0.0, %v5143
      %v5145 = vpop.f32.mrf.mxu0
      %v5146 = vadd.f32 0.0, %v5145
      %v5147 = vpop.f32.mrf.mxu0
      %v5148 = vpop.f32.mrf.mxu0
      %5149 = vdwg.mxu0
      %5150 = vmatprep.subr.bf16.mxu0 0
      %5151 = vmatpush1.bf16.msra.mxu0 0
      %5152 = vmatprep.subr.bf16.mxu0 0
      %5153 = vmatpush1.bf16.msra.mxu0 0
      %5154 = vmatprep.subr.bf16.mxu0 0
      %5155 = vmatpush1.bf16.msra.mxu0 0
      %5156 = vmatprep.subr.bf16.mxu0 0
      %5157 = vmatpush1.bf16.msra.mxu0 0
      %5158 = vmatprep.subr.bf16.mxu0 0
      %5159 = vmatpush1.bf16.msra.mxu0 0
      %5160 = vmatprep.subr.bf16.mxu0 0
      %5161 = vmatpush1.bf16.msra.mxu0 0
      %5162 = vmatprep.subr.bf16.mxu0 0
      %5163 = vmatpush1.bf16.msra.mxu0 0
      %5164 = vmatprep.subr.bf16.mxu0 %v5025
      %5165 = vmatpush1.bf16.msra.mxu0 %v5022
      %5166 = vmatprep.subr.bf16.mxu0 0
      %5167 = vmatpush2.bf16.msra.mxu0 0
      %5168 = vmatprep.subr.bf16.mxu0 0
      %5169 = vmatpush2.bf16.msra.mxu0 0
      %5170 = vmatprep.subr.bf16.mxu0 0
      %5171 = vmatpush2.bf16.msra.mxu0 0
      %5172 = vmatprep.subr.bf16.mxu0 0
      %5173 = vmatpush2.bf16.msra.mxu0 0
      %5174 = vmatprep.subr.bf16.mxu0 0
      %5175 = vmatpush2.bf16.msra.mxu0 0
      %5176 = vmatprep.subr.bf16.mxu0 0
      %5177 = vmatpush2.bf16.msra.mxu0 0
      %5178 = vmatprep.subr.bf16.mxu0 0
      %5179 = vmatpush2.bf16.msra.mxu0 0
      %5180 = vmatprep.subr.bf16.mxu0 0
      %5181 = vmatpush2.bf16.msra.mxu0 0
      %5182 = vmatprep.mubr.bf16.mxu0 0
      %5183 = vmatmul.mubr.bf16.gmra.mxu0 %v5001
      %v5184 = vpop.f32.mrf.mxu0
      %v5185 = vadd.f32 0.0, %v5184
      %v5186 = vpop.f32.mrf.mxu0
      %v5187 = vadd.f32 0.0, %v5186
      %v5188 = vpop.f32.mrf.mxu0
      %v5189 = vpop.f32.mrf.mxu0
      %5190 = vdwg.mxu0
      %v5191 = vadd.f32 %v4916, %v5062
      %v5192 = vadd.f32 %v4917, %v5064
      %v5193 = vadd.f32 %v4918, %v5103
      %v5194 = vadd.f32 %v4919, %v5105
      %v5195 = vadd.f32 %v4920, %v5144
      %v5196 = vadd.f32 %v4921, %v5146
      %v5197 = vadd.f32 %v4922, %v5185
      %v5198 = vadd.f32 %v4923, %v5187
      %s5199 = scalar_lea.vmem %s2, 36
      %v5200 = vld [vmem:[%s5199] sm:$0x3]
      %v5201 = vld [vmem:[#allocation2 + $0x2] sm:$0xff]
      %v5202 = vld [vmem:[#allocation2 + $0xa] sm:$0xff]
      %v5203 = vld [vmem:[#allocation2 + $0x12] sm:$0x3]
      %v5207 = vcombine.high %v5201, %v5201
      %v5209 = vunpack.c.l.s4 1983009808
      %v5210 = vunpack.c.0.s8 %v5209
      %v5211 = vlaneseq
      %v5212 = vshrl.u32 %v5211, 7
      %v5213 = vsub.s32 %v5210, %v5212
      %v5214 = vrot.slane %v5201, %v5213
      %v5216 = vunpack.c.l.s4 1983009808
      %v5217 = vunpack.c.0.s8 %v5216
      %v5218 = vlaneseq
      %v5219 = vshrl.u32 %v5218, 7
      %v5220 = vsub.s32 %v5217, %v5219
      %v5221 = vrot.slane %v5207, %v5220
      %v5222 = vcombine.high %v5214, %v5214
      %v5223 = vcombine.high %v5221, %v5221
      %v5224 = vcombine.high %v5202, %v5202
      %v5226 = vunpack.c.l.s4 1983009808
      %v5227 = vunpack.c.0.s8 %v5226
      %v5228 = vlaneseq
      %v5229 = vshrl.u32 %v5228, 7
      %v5230 = vsub.s32 %v5227, %v5229
      %v5231 = vrot.slane %v5202, %v5230
      %v5233 = vunpack.c.l.s4 1983009808
      %v5234 = vunpack.c.0.s8 %v5233
      %v5235 = vlaneseq
      %v5236 = vshrl.u32 %v5235, 7
      %v5237 = vsub.s32 %v5234, %v5236
      %v5238 = vrot.slane %v5224, %v5237
      %v5239 = vcombine.high %v5231, %v5231
      %v5240 = vcombine.high %v5238, %v5238
      %v5242 = vunpack.c.l.s4 1983009808
      %v5243 = vunpack.c.0.s8 %v5242
      %v5244 = vlaneseq
      %v5245 = vshrl.u32 %v5244, 7
      %v5246 = vsub.s32 %v5243, %v5245
      %v5247 = vrot.slane %v5203, %v5246
      %5248 = vrot.lane.b32.xlu0 %v5214, 56
      %v5249 = vpop.permute.xlu0 %5248
      %5250 = vrot.lane.b32.xlu0 %v5222, 56
      %v5251 = vpop.permute.xlu0 %5250
      %5252 = vrot.lane.b32.xlu0 %v5221, 56
      %v5253 = vpop.permute.xlu0 %5252
      %5254 = vrot.lane.b32.xlu0 %v5223, 56
      %v5255 = vpop.permute.xlu0 %5254
      %5256 = vrot.lane.b32.xlu0 %v5231, 56
      %v5257 = vpop.permute.xlu0 %5256
      %5258 = vrot.lane.b32.xlu0 %v5239, 56
      %v5259 = vpop.permute.xlu0 %5258
      %5260 = vrot.lane.b32.xlu0 %v5238, 56
      %v5261 = vpop.permute.xlu0 %5260
      %5262 = vrot.lane.b32.xlu0 %v5240, 56
      %v5263 = vpop.permute.xlu0 %5262
      %5264 = vrot.lane.b32.xlu0 %v5247, 56
      %v5265 = vpop.permute.xlu0 %5264
      %vm5266 = vcmask 457728
      %v5267 = vsel %vm5266, %v5249, %v5251
      %v5268 = vsel %vm5266, %v5251, %v5253
      %v5269 = vsel %vm5266, %v5253, %v5255
      %v5270 = vsel %vm5266, %v5255, %v5257
      %v5271 = vsel %vm5266, %v5257, %v5259
      %v5272 = vsel %vm5266, %v5259, %v5261
      %v5273 = vsel %vm5266, %v5261, %v5263
      %v5274 = vsel %vm5266, %v5263, %v5265
      %v5276 = vsel %vm415, %v5200, 0
      %v5279 = vsel %vm419, %v5267, 0
      %v5282 = vsel %vm419, %v5268, 0
      %v5285 = vsel %vm419, %v5269, 0
      %v5288 = vsel %vm419, %v5270, 0
      %v5291 = vsel %vm419, %v5271, 0
      %v5294 = vsel %vm419, %v5272, 0
      %v5297 = vsel %vm419, %v5273, 0
      %v5300 = vsel %vm419, %v5274, 0
      %5302 = vmatprep.subr.bf16.mxu0 0
      %5303 = vmatpush1.bf16.msra.mxu0 0
      %5304 = vmatprep.subr.bf16.mxu0 0
      %5305 = vmatpush1.bf16.msra.mxu0 0
      %5306 = vmatprep.subr.bf16.mxu0 0
      %5307 = vmatpush1.bf16.msra.mxu0 0
      %5308 = vmatprep.subr.bf16.mxu0 0
      %5309 = vmatpush1.bf16.msra.mxu0 0
      %5310 = vmatprep.subr.bf16.mxu0 0
      %5311 = vmatpush1.bf16.msra.mxu0 0
      %5312 = vmatprep.subr.bf16.mxu0 0
      %5313 = vmatpush1.bf16.msra.mxu0 0
      %5314 = vmatprep.subr.bf16.mxu0 0
      %5315 = vmatpush1.bf16.msra.mxu0 0
      %5316 = vmatprep.subr.bf16.mxu0 %v5282
      %5317 = vmatpush1.bf16.msra.mxu0 %v5279
      %5318 = vmatprep.subr.bf16.mxu0 0
      %5319 = vmatpush2.bf16.msra.mxu0 0
      %5320 = vmatprep.subr.bf16.mxu0 0
      %5321 = vmatpush2.bf16.msra.mxu0 0
      %5322 = vmatprep.subr.bf16.mxu0 0
      %5323 = vmatpush2.bf16.msra.mxu0 0
      %5324 = vmatprep.subr.bf16.mxu0 0
      %5325 = vmatpush2.bf16.msra.mxu0 0
      %5326 = vmatprep.subr.bf16.mxu0 0
      %5327 = vmatpush2.bf16.msra.mxu0 0
      %5328 = vmatprep.subr.bf16.mxu0 0
      %5329 = vmatpush2.bf16.msra.mxu0 0
      %5330 = vmatprep.subr.bf16.mxu0 0
      %5331 = vmatpush2.bf16.msra.mxu0 0
      %5332 = vmatprep.subr.bf16.mxu0 0
      %5333 = vmatpush2.bf16.msra.mxu0 0
      %5334 = vmatprep.mubr.bf16.mxu0 0
      %5335 = vmatmul.mubr.bf16.gmra.mxu0 %v5276
      %v5336 = vpop.f32.mrf.mxu0
      %v5337 = vadd.f32 0.0, %v5336
      %v5338 = vpop.f32.mrf.mxu0
      %v5339 = vadd.f32 0.0, %v5338
      %v5340 = vpop.f32.mrf.mxu0
      %v5341 = vpop.f32.mrf.mxu0
      %5342 = vdwg.mxu0
      %5343 = vmatprep.subr.bf16.mxu0 0
      %5344 = vmatpush1.bf16.msra.mxu0 0
      %5345 = vmatprep.subr.bf16.mxu0 0
      %5346 = vmatpush1.bf16.msra.mxu0 0
      %5347 = vmatprep.subr.bf16.mxu0 0
      %5348 = vmatpush1.bf16.msra.mxu0 0
      %5349 = vmatprep.subr.bf16.mxu0 0
      %5350 = vmatpush1.bf16.msra.mxu0 0
      %5351 = vmatprep.subr.bf16.mxu0 0
      %5352 = vmatpush1.bf16.msra.mxu0 0
      %5353 = vmatprep.subr.bf16.mxu0 0
      %5354 = vmatpush1.bf16.msra.mxu0 0
      %5355 = vmatprep.subr.bf16.mxu0 0
      %5356 = vmatpush1.bf16.msra.mxu0 0
      %5357 = vmatprep.subr.bf16.mxu0 %v5288
      %5358 = vmatpush1.bf16.msra.mxu0 %v5285
      %5359 = vmatprep.subr.bf16.mxu0 0
      %5360 = vmatpush2.bf16.msra.mxu0 0
      %5361 = vmatprep.subr.bf16.mxu0 0
      %5362 = vmatpush2.bf16.msra.mxu0 0
      %5363 = vmatprep.subr.bf16.mxu0 0
      %5364 = vmatpush2.bf16.msra.mxu0 0
      %5365 = vmatprep.subr.bf16.mxu0 0
      %5366 = vmatpush2.bf16.msra.mxu0 0
      %5367 = vmatprep.subr.bf16.mxu0 0
      %5368 = vmatpush2.bf16.msra.mxu0 0
      %5369 = vmatprep.subr.bf16.mxu0 0
      %5370 = vmatpush2.bf16.msra.mxu0 0
      %5371 = vmatprep.subr.bf16.mxu0 0
      %5372 = vmatpush2.bf16.msra.mxu0 0
      %5373 = vmatprep.subr.bf16.mxu0 0
      %5374 = vmatpush2.bf16.msra.mxu0 0
      %5375 = vmatprep.mubr.bf16.mxu0 0
      %5376 = vmatmul.mubr.bf16.gmra.mxu0 %v5276
      %v5377 = vpop.f32.mrf.mxu0
      %v5378 = vadd.f32 0.0, %v5377
      %v5379 = vpop.f32.mrf.mxu0
      %v5380 = vadd.f32 0.0, %v5379
      %v5381 = vpop.f32.mrf.mxu0
      %v5382 = vpop.f32.mrf.mxu0
      %5383 = vdwg.mxu0
      %5384 = vmatprep.subr.bf16.mxu0 0
      %5385 = vmatpush1.bf16.msra.mxu0 0
      %5386 = vmatprep.subr.bf16.mxu0 0
      %5387 = vmatpush1.bf16.msra.mxu0 0
      %5388 = vmatprep.subr.bf16.mxu0 0
      %5389 = vmatpush1.bf16.msra.mxu0 0
      %5390 = vmatprep.subr.bf16.mxu0 0
      %5391 = vmatpush1.bf16.msra.mxu0 0
      %5392 = vmatprep.subr.bf16.mxu0 0
      %5393 = vmatpush1.bf16.msra.mxu0 0
      %5394 = vmatprep.subr.bf16.mxu0 0
      %5395 = vmatpush1.bf16.msra.mxu0 0
      %5396 = vmatprep.subr.bf16.mxu0 0
      %5397 = vmatpush1.bf16.msra.mxu0 0
      %5398 = vmatprep.subr.bf16.mxu0 %v5294
      %5399 = vmatpush1.bf16.msra.mxu0 %v5291
      %5400 = vmatprep.subr.bf16.mxu0 0
      %5401 = vmatpush2.bf16.msra.mxu0 0
      %5402 = vmatprep.subr.bf16.mxu0 0
      %5403 = vmatpush2.bf16.msra.mxu0 0
      %5404 = vmatprep.subr.bf16.mxu0 0
      %5405 = vmatpush2.bf16.msra.mxu0 0
      %5406 = vmatprep.subr.bf16.mxu0 0
      %5407 = vmatpush2.bf16.msra.mxu0 0
      %5408 = vmatprep.subr.bf16.mxu0 0
      %5409 = vmatpush2.bf16.msra.mxu0 0
      %5410 = vmatprep.subr.bf16.mxu0 0
      %5411 = vmatpush2.bf16.msra.mxu0 0
      %5412 = vmatprep.subr.bf16.mxu0 0
      %5413 = vmatpush2.bf16.msra.mxu0 0
      %5414 = vmatprep.subr.bf16.mxu0 0
      %5415 = vmatpush2.bf16.msra.mxu0 0
      %5416 = vmatprep.mubr.bf16.mxu0 0
      %5417 = vmatmul.mubr.bf16.gmra.mxu0 %v5276
      %v5418 = vpop.f32.mrf.mxu0
      %v5419 = vadd.f32 0.0, %v5418
      %v5420 = vpop.f32.mrf.mxu0
      %v5421 = vadd.f32 0.0, %v5420
      %v5422 = vpop.f32.mrf.mxu0
      %v5423 = vpop.f32.mrf.mxu0
      %5424 = vdwg.mxu0
      %5425 = vmatprep.subr.bf16.mxu0 0
      %5426 = vmatpush1.bf16.msra.mxu0 0
      %5427 = vmatprep.subr.bf16.mxu0 0
      %5428 = vmatpush1.bf16.msra.mxu0 0
      %5429 = vmatprep.subr.bf16.mxu0 0
      %5430 = vmatpush1.bf16.msra.mxu0 0
      %5431 = vmatprep.subr.bf16.mxu0 0
      %5432 = vmatpush1.bf16.msra.mxu0 0
      %5433 = vmatprep.subr.bf16.mxu0 0
      %5434 = vmatpush1.bf16.msra.mxu0 0
      %5435 = vmatprep.subr.bf16.mxu0 0
      %5436 = vmatpush1.bf16.msra.mxu0 0
      %5437 = vmatprep.subr.bf16.mxu0 0
      %5438 = vmatpush1.bf16.msra.mxu0 0
      %5439 = vmatprep.subr.bf16.mxu0 %v5300
      %5440 = vmatpush1.bf16.msra.mxu0 %v5297
      %5441 = vmatprep.subr.bf16.mxu0 0
      %5442 = vmatpush2.bf16.msra.mxu0 0
      %5443 = vmatprep.subr.bf16.mxu0 0
      %5444 = vmatpush2.bf16.msra.mxu0 0
      %5445 = vmatprep.subr.bf16.mxu0 0
      %5446 = vmatpush2.bf16.msra.mxu0 0
      %5447 = vmatprep.subr.bf16.mxu0 0
      %5448 = vmatpush2.bf16.msra.mxu0 0
      %5449 = vmatprep.subr.bf16.mxu0 0
      %5450 = vmatpush2.bf16.msra.mxu0 0
      %5451 = vmatprep.subr.bf16.mxu0 0
      %5452 = vmatpush2.bf16.msra.mxu0 0
      %5453 = vmatprep.subr.bf16.mxu0 0
      %5454 = vmatpush2.bf16.msra.mxu0 0
      %5455 = vmatprep.subr.bf16.mxu0 0
      %5456 = vmatpush2.bf16.msra.mxu0 0
      %5457 = vmatprep.mubr.bf16.mxu0 0
      %5458 = vmatmul.mubr.bf16.gmra.mxu0 %v5276
      %v5459 = vpop.f32.mrf.mxu0
      %v5460 = vadd.f32 0.0, %v5459
      %v5461 = vpop.f32.mrf.mxu0
      %v5462 = vadd.f32 0.0, %v5461
      %v5463 = vpop.f32.mrf.mxu0
      %v5464 = vpop.f32.mrf.mxu0
      %5465 = vdwg.mxu0
      %v5466 = vadd.f32 %v5191, %v5337
      %v5467 = vadd.f32 %v5192, %v5339
      %v5468 = vadd.f32 %v5193, %v5378
      %v5469 = vadd.f32 %v5194, %v5380
      %v5470 = vadd.f32 %v5195, %v5419
      %v5471 = vadd.f32 %v5196, %v5421
      %v5472 = vadd.f32 %v5197, %v5460
      %v5473 = vadd.f32 %v5198, %v5462
      %s5474 = scalar_lea.vmem %s2, 38
      %v5475 = vld [vmem:[%s5474] sm:$0x3]
      %v5476 = vld [vmem:[#allocation2 + $0x2] sm:$0xff]
      %v5477 = vld [vmem:[#allocation2 + $0xa] sm:$0xff]
      %v5478 = vld [vmem:[#allocation2 + $0x12] sm:$0x3]
      %v5482 = vcombine.high %v5476, %v5476
      %v5484 = vunpack.c.l.s4 1983009808
      %v5485 = vunpack.c.0.s8 %v5484
      %v5486 = vlaneseq
      %v5487 = vshrl.u32 %v5486, 7
      %v5488 = vsub.s32 %v5485, %v5487
      %v5489 = vrot.slane %v5476, %v5488
      %v5491 = vunpack.c.l.s4 1983009808
      %v5492 = vunpack.c.0.s8 %v5491
      %v5493 = vlaneseq
      %v5494 = vshrl.u32 %v5493, 7
      %v5495 = vsub.s32 %v5492, %v5494
      %v5496 = vrot.slane %v5482, %v5495
      %v5497 = vcombine.high %v5489, %v5489
      %v5498 = vcombine.high %v5496, %v5496
      %v5499 = vcombine.high %v5477, %v5477
      %v5501 = vunpack.c.l.s4 1983009808
      %v5502 = vunpack.c.0.s8 %v5501
      %v5503 = vlaneseq
      %v5504 = vshrl.u32 %v5503, 7
      %v5505 = vsub.s32 %v5502, %v5504
      %v5506 = vrot.slane %v5477, %v5505
      %v5508 = vunpack.c.l.s4 1983009808
      %v5509 = vunpack.c.0.s8 %v5508
      %v5510 = vlaneseq
      %v5511 = vshrl.u32 %v5510, 7
      %v5512 = vsub.s32 %v5509, %v5511
      %v5513 = vrot.slane %v5499, %v5512
      %v5514 = vcombine.high %v5506, %v5506
      %v5515 = vcombine.high %v5513, %v5513
      %v5517 = vunpack.c.l.s4 1983009808
      %v5518 = vunpack.c.0.s8 %v5517
      %v5519 = vlaneseq
      %v5520 = vshrl.u32 %v5519, 7
      %v5521 = vsub.s32 %v5518, %v5520
      %v5522 = vrot.slane %v5478, %v5521
      %5523 = vrot.lane.b32.xlu0 %v5489, 55
      %v5524 = vpop.permute.xlu0 %5523
      %5525 = vrot.lane.b32.xlu0 %v5497, 55
      %v5526 = vpop.permute.xlu0 %5525
      %5527 = vrot.lane.b32.xlu0 %v5496, 55
      %v5528 = vpop.permute.xlu0 %5527
      %5529 = vrot.lane.b32.xlu0 %v5498, 55
      %v5530 = vpop.permute.xlu0 %5529
      %5531 = vrot.lane.b32.xlu0 %v5506, 55
      %v5532 = vpop.permute.xlu0 %5531
      %5533 = vrot.lane.b32.xlu0 %v5514, 55
      %v5534 = vpop.permute.xlu0 %5533
      %5535 = vrot.lane.b32.xlu0 %v5513, 55
      %v5536 = vpop.permute.xlu0 %5535
      %5537 = vrot.lane.b32.xlu0 %v5515, 55
      %v5538 = vpop.permute.xlu0 %5537
      %5539 = vrot.lane.b32.xlu0 %v5522, 55
      %v5540 = vpop.permute.xlu0 %5539
      %vm5541 = vcmask 449536
      %v5542 = vsel %vm5541, %v5524, %v5526
      %v5543 = vsel %vm5541, %v5526, %v5528
      %v5544 = vsel %vm5541, %v5528, %v5530
      %v5545 = vsel %vm5541, %v5530, %v5532
      %v5546 = vsel %vm5541, %v5532, %v5534
      %v5547 = vsel %vm5541, %v5534, %v5536
      %v5548 = vsel %vm5541, %v5536, %v5538
      %v5549 = vsel %vm5541, %v5538, %v5540
      %v5551 = vsel %vm415, %v5475, 0
      %v5554 = vsel %vm419, %v5542, 0
      %v5557 = vsel %vm419, %v5543, 0
      %v5560 = vsel %vm419, %v5544, 0
      %v5563 = vsel %vm419, %v5545, 0
      %v5566 = vsel %vm419, %v5546, 0
      %v5569 = vsel %vm419, %v5547, 0
      %v5572 = vsel %vm419, %v5548, 0
      %v5575 = vsel %vm419, %v5549, 0
      %5577 = vmatprep.subr.bf16.mxu0 0
      %5578 = vmatpush1.bf16.msra.mxu0 0
      %5579 = vmatprep.subr.bf16.mxu0 0
      %5580 = vmatpush1.bf16.msra.mxu0 0
      %5581 = vmatprep.subr.bf16.mxu0 0
      %5582 = vmatpush1.bf16.msra.mxu0 0
      %5583 = vmatprep.subr.bf16.mxu0 0
      %5584 = vmatpush1.bf16.msra.mxu0 0
      %5585 = vmatprep.subr.bf16.mxu0 0
      %5586 = vmatpush1.bf16.msra.mxu0 0
      %5587 = vmatprep.subr.bf16.mxu0 0
      %5588 = vmatpush1.bf16.msra.mxu0 0
      %5589 = vmatprep.subr.bf16.mxu0 0
      %5590 = vmatpush1.bf16.msra.mxu0 0
      %5591 = vmatprep.subr.bf16.mxu0 %v5557
      %5592 = vmatpush1.bf16.msra.mxu0 %v5554
      %5593 = vmatprep.subr.bf16.mxu0 0
      %5594 = vmatpush2.bf16.msra.mxu0 0
      %5595 = vmatprep.subr.bf16.mxu0 0
      %5596 = vmatpush2.bf16.msra.mxu0 0
      %5597 = vmatprep.subr.bf16.mxu0 0
      %5598 = vmatpush2.bf16.msra.mxu0 0
      %5599 = vmatprep.subr.bf16.mxu0 0
      %5600 = vmatpush2.bf16.msra.mxu0 0
      %5601 = vmatprep.subr.bf16.mxu0 0
      %5602 = vmatpush2.bf16.msra.mxu0 0
      %5603 = vmatprep.subr.bf16.mxu0 0
      %5604 = vmatpush2.bf16.msra.mxu0 0
      %5605 = vmatprep.subr.bf16.mxu0 0
      %5606 = vmatpush2.bf16.msra.mxu0 0
      %5607 = vmatprep.subr.bf16.mxu0 0
      %5608 = vmatpush2.bf16.msra.mxu0 0
      %5609 = vmatprep.mubr.bf16.mxu0 0
      %5610 = vmatmul.mubr.bf16.gmra.mxu0 %v5551
      %v5611 = vpop.f32.mrf.mxu0
      %v5612 = vadd.f32 0.0, %v5611
      %v5613 = vpop.f32.mrf.mxu0
      %v5614 = vadd.f32 0.0, %v5613
      %v5615 = vpop.f32.mrf.mxu0
      %v5616 = vpop.f32.mrf.mxu0
      %5617 = vdwg.mxu0
      %5618 = vmatprep.subr.bf16.mxu0 0
      %5619 = vmatpush1.bf16.msra.mxu0 0
      %5620 = vmatprep.subr.bf16.mxu0 0
      %5621 = vmatpush1.bf16.msra.mxu0 0
      %5622 = vmatprep.subr.bf16.mxu0 0
      %5623 = vmatpush1.bf16.msra.mxu0 0
      %5624 = vmatprep.subr.bf16.mxu0 0
      %5625 = vmatpush1.bf16.msra.mxu0 0
      %5626 = vmatprep.subr.bf16.mxu0 0
      %5627 = vmatpush1.bf16.msra.mxu0 0
      %5628 = vmatprep.subr.bf16.mxu0 0
      %5629 = vmatpush1.bf16.msra.mxu0 0
      %5630 = vmatprep.subr.bf16.mxu0 0
      %5631 = vmatpush1.bf16.msra.mxu0 0
      %5632 = vmatprep.subr.bf16.mxu0 %v5563
      %5633 = vmatpush1.bf16.msra.mxu0 %v5560
      %5634 = vmatprep.subr.bf16.mxu0 0
      %5635 = vmatpush2.bf16.msra.mxu0 0
      %5636 = vmatprep.subr.bf16.mxu0 0
      %5637 = vmatpush2.bf16.msra.mxu0 0
      %5638 = vmatprep.subr.bf16.mxu0 0
      %5639 = vmatpush2.bf16.msra.mxu0 0
      %5640 = vmatprep.subr.bf16.mxu0 0
      %5641 = vmatpush2.bf16.msra.mxu0 0
      %5642 = vmatprep.subr.bf16.mxu0 0
      %5643 = vmatpush2.bf16.msra.mxu0 0
      %5644 = vmatprep.subr.bf16.mxu0 0
      %5645 = vmatpush2.bf16.msra.mxu0 0
      %5646 = vmatprep.subr.bf16.mxu0 0
      %5647 = vmatpush2.bf16.msra.mxu0 0
      %5648 = vmatprep.subr.bf16.mxu0 0
      %5649 = vmatpush2.bf16.msra.mxu0 0
      %5650 = vmatprep.mubr.bf16.mxu0 0
      %5651 = vmatmul.mubr.bf16.gmra.mxu0 %v5551
      %v5652 = vpop.f32.mrf.mxu0
      %v5653 = vadd.f32 0.0, %v5652
      %v5654 = vpop.f32.mrf.mxu0
      %v5655 = vadd.f32 0.0, %v5654
      %v5656 = vpop.f32.mrf.mxu0
      %v5657 = vpop.f32.mrf.mxu0
      %5658 = vdwg.mxu0
      %5659 = vmatprep.subr.bf16.mxu0 0
      %5660 = vmatpush1.bf16.msra.mxu0 0
      %5661 = vmatprep.subr.bf16.mxu0 0
      %5662 = vmatpush1.bf16.msra.mxu0 0
      %5663 = vmatprep.subr.bf16.mxu0 0
      %5664 = vmatpush1.bf16.msra.mxu0 0
      %5665 = vmatprep.subr.bf16.mxu0 0
      %5666 = vmatpush1.bf16.msra.mxu0 0
      %5667 = vmatprep.subr.bf16.mxu0 0
      %5668 = vmatpush1.bf16.msra.mxu0 0
      %5669 = vmatprep.subr.bf16.mxu0 0
      %5670 = vmatpush1.bf16.msra.mxu0 0
      %5671 = vmatprep.subr.bf16.mxu0 0
      %5672 = vmatpush1.bf16.msra.mxu0 0
      %5673 = vmatprep.subr.bf16.mxu0 %v5569
      %5674 = vmatpush1.bf16.msra.mxu0 %v5566
      %5675 = vmatprep.subr.bf16.mxu0 0
      %5676 = vmatpush2.bf16.msra.mxu0 0
      %5677 = vmatprep.subr.bf16.mxu0 0
      %5678 = vmatpush2.bf16.msra.mxu0 0
      %5679 = vmatprep.subr.bf16.mxu0 0
      %5680 = vmatpush2.bf16.msra.mxu0 0
      %5681 = vmatprep.subr.bf16.mxu0 0
      %5682 = vmatpush2.bf16.msra.mxu0 0
      %5683 = vmatprep.subr.bf16.mxu0 0
      %5684 = vmatpush2.bf16.msra.mxu0 0
      %5685 = vmatprep.subr.bf16.mxu0 0
      %5686 = vmatpush2.bf16.msra.mxu0 0
      %5687 = vmatprep.subr.bf16.mxu0 0
      %5688 = vmatpush2.bf16.msra.mxu0 0
      %5689 = vmatprep.subr.bf16.mxu0 0
      %5690 = vmatpush2.bf16.msra.mxu0 0
      %5691 = vmatprep.mubr.bf16.mxu0 0
      %5692 = vmatmul.mubr.bf16.gmra.mxu0 %v5551
      %v5693 = vpop.f32.mrf.mxu0
      %v5694 = vadd.f32 0.0, %v5693
      %v5695 = vpop.f32.mrf.mxu0
      %v5696 = vadd.f32 0.0, %v5695
      %v5697 = vpop.f32.mrf.mxu0
      %v5698 = vpop.f32.mrf.mxu0
      %5699 = vdwg.mxu0
      %5700 = vmatprep.subr.bf16.mxu0 0
      %5701 = vmatpush1.bf16.msra.mxu0 0
      %5702 = vmatprep.subr.bf16.mxu0 0
      %5703 = vmatpush1.bf16.msra.mxu0 0
      %5704 = vmatprep.subr.bf16.mxu0 0
      %5705 = vmatpush1.bf16.msra.mxu0 0
      %5706 = vmatprep.subr.bf16.mxu0 0
      %5707 = vmatpush1.bf16.msra.mxu0 0
      %5708 = vmatprep.subr.bf16.mxu0 0
      %5709 = vmatpush1.bf16.msra.mxu0 0
      %5710 = vmatprep.subr.bf16.mxu0 0
      %5711 = vmatpush1.bf16.msra.mxu0 0
      %5712 = vmatprep.subr.bf16.mxu0 0
      %5713 = vmatpush1.bf16.msra.mxu0 0
      %5714 = vmatprep.subr.bf16.mxu0 %v5575
      %5715 = vmatpush1.bf16.msra.mxu0 %v5572
      %5716 = vmatprep.subr.bf16.mxu0 0
      %5717 = vmatpush2.bf16.msra.mxu0 0
      %5718 = vmatprep.subr.bf16.mxu0 0
      %5719 = vmatpush2.bf16.msra.mxu0 0
      %5720 = vmatprep.subr.bf16.mxu0 0
      %5721 = vmatpush2.bf16.msra.mxu0 0
      %5722 = vmatprep.subr.bf16.mxu0 0
      %5723 = vmatpush2.bf16.msra.mxu0 0
      %5724 = vmatprep.subr.bf16.mxu0 0
      %5725 = vmatpush2.bf16.msra.mxu0 0
      %5726 = vmatprep.subr.bf16.mxu0 0
      %5727 = vmatpush2.bf16.msra.mxu0 0
      %5728 = vmatprep.subr.bf16.mxu0 0
      %5729 = vmatpush2.bf16.msra.mxu0 0
      %5730 = vmatprep.subr.bf16.mxu0 0
      %5731 = vmatpush2.bf16.msra.mxu0 0
      %5732 = vmatprep.mubr.bf16.mxu0 0
      %5733 = vmatmul.mubr.bf16.gmra.mxu0 %v5551
      %v5734 = vpop.f32.mrf.mxu0
      %v5735 = vadd.f32 0.0, %v5734
      %v5736 = vpop.f32.mrf.mxu0
      %v5737 = vadd.f32 0.0, %v5736
      %v5738 = vpop.f32.mrf.mxu0
      %v5739 = vpop.f32.mrf.mxu0
      %5740 = vdwg.mxu0
      %v5741 = vadd.f32 %v5466, %v5612
      %v5742 = vadd.f32 %v5467, %v5614
      %v5743 = vadd.f32 %v5468, %v5653
      %v5744 = vadd.f32 %v5469, %v5655
      %v5745 = vadd.f32 %v5470, %v5694
      %v5746 = vadd.f32 %v5471, %v5696
      %v5747 = vadd.f32 %v5472, %v5735
      %v5748 = vadd.f32 %v5473, %v5737
      %s5749 = scalar_lea.vmem %s2, 40
      %v5750 = vld [vmem:[%s5749] sm:$0x3]
      %v5751 = vld [vmem:[#allocation2 + $0x2] sm:$0xff]
      %v5752 = vld [vmem:[#allocation2 + $0xa] sm:$0xff]
      %v5753 = vld [vmem:[#allocation2 + $0x12] sm:$0x3]
      %v5757 = vcombine.high %v5751, %v5751
      %v5759 = vunpack.c.l.s4 1983009808
      %v5760 = vunpack.c.0.s8 %v5759
      %v5761 = vlaneseq
      %v5762 = vshrl.u32 %v5761, 7
      %v5763 = vsub.s32 %v5760, %v5762
      %v5764 = vrot.slane %v5751, %v5763
      %v5766 = vunpack.c.l.s4 1983009808
      %v5767 = vunpack.c.0.s8 %v5766
      %v5768 = vlaneseq
      %v5769 = vshrl.u32 %v5768, 7
      %v5770 = vsub.s32 %v5767, %v5769
      %v5771 = vrot.slane %v5757, %v5770
      %v5772 = vcombine.high %v5764, %v5764
      %v5773 = vcombine.high %v5771, %v5771
      %v5774 = vcombine.high %v5752, %v5752
      %v5776 = vunpack.c.l.s4 1983009808
      %v5777 = vunpack.c.0.s8 %v5776
      %v5778 = vlaneseq
      %v5779 = vshrl.u32 %v5778, 7
      %v5780 = vsub.s32 %v5777, %v5779
      %v5781 = vrot.slane %v5752, %v5780
      %v5783 = vunpack.c.l.s4 1983009808
      %v5784 = vunpack.c.0.s8 %v5783
      %v5785 = vlaneseq
      %v5786 = vshrl.u32 %v5785, 7
      %v5787 = vsub.s32 %v5784, %v5786
      %v5788 = vrot.slane %v5774, %v5787
      %v5789 = vcombine.high %v5781, %v5781
      %v5790 = vcombine.high %v5788, %v5788
      %v5792 = vunpack.c.l.s4 1983009808
      %v5793 = vunpack.c.0.s8 %v5792
      %v5794 = vlaneseq
      %v5795 = vshrl.u32 %v5794, 7
      %v5796 = vsub.s32 %v5793, %v5795
      %v5797 = vrot.slane %v5753, %v5796
      %5798 = vrot.lane.b32.xlu0 %v5764, 54
      %v5799 = vpop.permute.xlu0 %5798
      %5800 = vrot.lane.b32.xlu0 %v5772, 54
      %v5801 = vpop.permute.xlu0 %5800
      %5802 = vrot.lane.b32.xlu0 %v5771, 54
      %v5803 = vpop.permute.xlu0 %5802
      %5804 = vrot.lane.b32.xlu0 %v5773, 54
      %v5805 = vpop.permute.xlu0 %5804
      %5806 = vrot.lane.b32.xlu0 %v5781, 54
      %v5807 = vpop.permute.xlu0 %5806
      %5808 = vrot.lane.b32.xlu0 %v5789, 54
      %v5809 = vpop.permute.xlu0 %5808
      %5810 = vrot.lane.b32.xlu0 %v5788, 54
      %v5811 = vpop.permute.xlu0 %5810
      %5812 = vrot.lane.b32.xlu0 %v5790, 54
      %v5813 = vpop.permute.xlu0 %5812
      %5814 = vrot.lane.b32.xlu0 %v5797, 54
      %v5815 = vpop.permute.xlu0 %5814
      %vm5816 = vcmask 441344
      %v5817 = vsel %vm5816, %v5799, %v5801
      %v5818 = vsel %vm5816, %v5801, %v5803
      %v5819 = vsel %vm5816, %v5803, %v5805
      %v5820 = vsel %vm5816, %v5805, %v5807
      %v5821 = vsel %vm5816, %v5807, %v5809
      %v5822 = vsel %vm5816, %v5809, %v5811
      %v5823 = vsel %vm5816, %v5811, %v5813
      %v5824 = vsel %vm5816, %v5813, %v5815
      %v5826 = vsel %vm415, %v5750, 0
      %v5829 = vsel %vm419, %v5817, 0
      %v5832 = vsel %vm419, %v5818, 0
      %v5835 = vsel %vm419, %v5819, 0
      %v5838 = vsel %vm419, %v5820, 0
      %v5841 = vsel %vm419, %v5821, 0
      %v5844 = vsel %vm419, %v5822, 0
      %v5847 = vsel %vm419, %v5823, 0
      %v5850 = vsel %vm419, %v5824, 0
      %5852 = vmatprep.subr.bf16.mxu0 0
      %5853 = vmatpush1.bf16.msra.mxu0 0
      %5854 = vmatprep.subr.bf16.mxu0 0
      %5855 = vmatpush1.bf16.msra.mxu0 0
      %5856 = vmatprep.subr.bf16.mxu0 0
      %5857 = vmatpush1.bf16.msra.mxu0 0
      %5858 = vmatprep.subr.bf16.mxu0 0
      %5859 = vmatpush1.bf16.msra.mxu0 0
      %5860 = vmatprep.subr.bf16.mxu0 0
      %5861 = vmatpush1.bf16.msra.mxu0 0
      %5862 = vmatprep.subr.bf16.mxu0 0
      %5863 = vmatpush1.bf16.msra.mxu0 0
      %5864 = vmatprep.subr.bf16.mxu0 0
      %5865 = vmatpush1.bf16.msra.mxu0 0
      %5866 = vmatprep.subr.bf16.mxu0 %v5832
      %5867 = vmatpush1.bf16.msra.mxu0 %v5829
      %5868 = vmatprep.subr.bf16.mxu0 0
      %5869 = vmatpush2.bf16.msra.mxu0 0
      %5870 = vmatprep.subr.bf16.mxu0 0
      %5871 = vmatpush2.bf16.msra.mxu0 0
      %5872 = vmatprep.subr.bf16.mxu0 0
      %5873 = vmatpush2.bf16.msra.mxu0 0
      %5874 = vmatprep.subr.bf16.mxu0 0
      %5875 = vmatpush2.bf16.msra.mxu0 0
      %5876 = vmatprep.subr.bf16.mxu0 0
      %5877 = vmatpush2.bf16.msra.mxu0 0
      %5878 = vmatprep.subr.bf16.mxu0 0
      %5879 = vmatpush2.bf16.msra.mxu0 0
      %5880 = vmatprep.subr.bf16.mxu0 0
      %5881 = vmatpush2.bf16.msra.mxu0 0
      %5882 = vmatprep.subr.bf16.mxu0 0
      %5883 = vmatpush2.bf16.msra.mxu0 0
      %5884 = vmatprep.mubr.bf16.mxu0 0
      %5885 = vmatmul.mubr.bf16.gmra.mxu0 %v5826
      %v5886 = vpop.f32.mrf.mxu0
      %v5887 = vadd.f32 0.0, %v5886
      %v5888 = vpop.f32.mrf.mxu0
      %v5889 = vadd.f32 0.0, %v5888
      %v5890 = vpop.f32.mrf.mxu0
      %v5891 = vpop.f32.mrf.mxu0
      %5892 = vdwg.mxu0
      %5893 = vmatprep.subr.bf16.mxu0 0
      %5894 = vmatpush1.bf16.msra.mxu0 0
      %5895 = vmatprep.subr.bf16.mxu0 0
      %5896 = vmatpush1.bf16.msra.mxu0 0
      %5897 = vmatprep.subr.bf16.mxu0 0
      %5898 = vmatpush1.bf16.msra.mxu0 0
      %5899 = vmatprep.subr.bf16.mxu0 0
      %5900 = vmatpush1.bf16.msra.mxu0 0
      %5901 = vmatprep.subr.bf16.mxu0 0
      %5902 = vmatpush1.bf16.msra.mxu0 0
      %5903 = vmatprep.subr.bf16.mxu0 0
      %5904 = vmatpush1.bf16.msra.mxu0 0
      %5905 = vmatprep.subr.bf16.mxu0 0
      %5906 = vmatpush1.bf16.msra.mxu0 0
      %5907 = vmatprep.subr.bf16.mxu0 %v5838
      %5908 = vmatpush1.bf16.msra.mxu0 %v5835
      %5909 = vmatprep.subr.bf16.mxu0 0
      %5910 = vmatpush2.bf16.msra.mxu0 0
      %5911 = vmatprep.subr.bf16.mxu0 0
      %5912 = vmatpush2.bf16.msra.mxu0 0
      %5913 = vmatprep.subr.bf16.mxu0 0
      %5914 = vmatpush2.bf16.msra.mxu0 0
      %5915 = vmatprep.subr.bf16.mxu0 0
      %5916 = vmatpush2.bf16.msra.mxu0 0
      %5917 = vmatprep.subr.bf16.mxu0 0
      %5918 = vmatpush2.bf16.msra.mxu0 0
      %5919 = vmatprep.subr.bf16.mxu0 0
      %5920 = vmatpush2.bf16.msra.mxu0 0
      %5921 = vmatprep.subr.bf16.mxu0 0
      %5922 = vmatpush2.bf16.msra.mxu0 0
      %5923 = vmatprep.subr.bf16.mxu0 0
      %5924 = vmatpush2.bf16.msra.mxu0 0
      %5925 = vmatprep.mubr.bf16.mxu0 0
      %5926 = vmatmul.mubr.bf16.gmra.mxu0 %v5826
      %v5927 = vpop.f32.mrf.mxu0
      %v5928 = vadd.f32 0.0, %v5927
      %v5929 = vpop.f32.mrf.mxu0
      %v5930 = vadd.f32 0.0, %v5929
      %v5931 = vpop.f32.mrf.mxu0
      %v5932 = vpop.f32.mrf.mxu0
      %5933 = vdwg.mxu0
      %5934 = vmatprep.subr.bf16.mxu0 0
      %5935 = vmatpush1.bf16.msra.mxu0 0
      %5936 = vmatprep.subr.bf16.mxu0 0
      %5937 = vmatpush1.bf16.msra.mxu0 0
      %5938 = vmatprep.subr.bf16.mxu0 0
      %5939 = vmatpush1.bf16.msra.mxu0 0
      %5940 = vmatprep.subr.bf16.mxu0 0
      %5941 = vmatpush1.bf16.msra.mxu0 0
      %5942 = vmatprep.subr.bf16.mxu0 0
      %5943 = vmatpush1.bf16.msra.mxu0 0
      %5944 = vmatprep.subr.bf16.mxu0 0
      %5945 = vmatpush1.bf16.msra.mxu0 0
      %5946 = vmatprep.subr.bf16.mxu0 0
      %5947 = vmatpush1.bf16.msra.mxu0 0
      %5948 = vmatprep.subr.bf16.mxu0 %v5844
      %5949 = vmatpush1.bf16.msra.mxu0 %v5841
      %5950 = vmatprep.subr.bf16.mxu0 0
      %5951 = vmatpush2.bf16.msra.mxu0 0
      %5952 = vmatprep.subr.bf16.mxu0 0
      %5953 = vmatpush2.bf16.msra.mxu0 0
      %5954 = vmatprep.subr.bf16.mxu0 0
      %5955 = vmatpush2.bf16.msra.mxu0 0
      %5956 = vmatprep.subr.bf16.mxu0 0
      %5957 = vmatpush2.bf16.msra.mxu0 0
      %5958 = vmatprep.subr.bf16.mxu0 0
      %5959 = vmatpush2.bf16.msra.mxu0 0
      %5960 = vmatprep.subr.bf16.mxu0 0
      %5961 = vmatpush2.bf16.msra.mxu0 0
      %5962 = vmatprep.subr.bf16.mxu0 0
      %5963 = vmatpush2.bf16.msra.mxu0 0
      %5964 = vmatprep.subr.bf16.mxu0 0
      %5965 = vmatpush2.bf16.msra.mxu0 0
      %5966 = vmatprep.mubr.bf16.mxu0 0
      %5967 = vmatmul.mubr.bf16.gmra.mxu0 %v5826
      %v5968 = vpop.f32.mrf.mxu0
      %v5969 = vadd.f32 0.0, %v5968
      %v5970 = vpop.f32.mrf.mxu0
      %v5971 = vadd.f32 0.0, %v5970
      %v5972 = vpop.f32.mrf.mxu0
      %v5973 = vpop.f32.mrf.mxu0
      %5974 = vdwg.mxu0
      %5975 = vmatprep.subr.bf16.mxu0 0
      %5976 = vmatpush1.bf16.msra.mxu0 0
      %5977 = vmatprep.subr.bf16.mxu0 0
      %5978 = vmatpush1.bf16.msra.mxu0 0
      %5979 = vmatprep.subr.bf16.mxu0 0
      %5980 = vmatpush1.bf16.msra.mxu0 0
      %5981 = vmatprep.subr.bf16.mxu0 0
      %5982 = vmatpush1.bf16.msra.mxu0 0
      %5983 = vmatprep.subr.bf16.mxu0 0
      %5984 = vmatpush1.bf16.msra.mxu0 0
      %5985 = vmatprep.subr.bf16.mxu0 0
      %5986 = vmatpush1.bf16.msra.mxu0 0
      %5987 = vmatprep.subr.bf16.mxu0 0
      %5988 = vmatpush1.bf16.msra.mxu0 0
      %5989 = vmatprep.subr.bf16.mxu0 %v5850
      %5990 = vmatpush1.bf16.msra.mxu0 %v5847
      %5991 = vmatprep.subr.bf16.mxu0 0
      %5992 = vmatpush2.bf16.msra.mxu0 0
      %5993 = vmatprep.subr.bf16.mxu0 0
      %5994 = vmatpush2.bf16.msra.mxu0 0
      %5995 = vmatprep.subr.bf16.mxu0 0
      %5996 = vmatpush2.bf16.msra.mxu0 0
      %5997 = vmatprep.subr.bf16.mxu0 0
      %5998 = vmatpush2.bf16.msra.mxu0 0
      %5999 = vmatprep.subr.bf16.mxu0 0
      %6000 = vmatpush2.bf16.msra.mxu0 0
      %6001 = vmatprep.subr.bf16.mxu0 0
      %6002 = vmatpush2.bf16.msra.mxu0 0
      %6003 = vmatprep.subr.bf16.mxu0 0
      %6004 = vmatpush2.bf16.msra.mxu0 0
      %6005 = vmatprep.subr.bf16.mxu0 0
      %6006 = vmatpush2.bf16.msra.mxu0 0
      %6007 = vmatprep.mubr.bf16.mxu0 0
      %6008 = vmatmul.mubr.bf16.gmra.mxu0 %v5826
      %v6009 = vpop.f32.mrf.mxu0
      %v6010 = vadd.f32 0.0, %v6009
      %v6011 = vpop.f32.mrf.mxu0
      %v6012 = vadd.f32 0.0, %v6011
      %v6013 = vpop.f32.mrf.mxu0
      %v6014 = vpop.f32.mrf.mxu0
      %6015 = vdwg.mxu0
      %v6016 = vadd.f32 %v5741, %v5887
      %v6017 = vadd.f32 %v5742, %v5889
      %v6018 = vadd.f32 %v5743, %v5928
      %v6019 = vadd.f32 %v5744, %v5930
      %v6020 = vadd.f32 %v5745, %v5969
      %v6021 = vadd.f32 %v5746, %v5971
      %v6022 = vadd.f32 %v5747, %v6010
      %v6023 = vadd.f32 %v5748, %v6012
      %s6024 = scalar_lea.vmem %s2, 42
      %v6025 = vld [vmem:[%s6024] sm:$0x3]
      %v6026 = vld [vmem:[#allocation2 + $0x2] sm:$0xff]
      %v6027 = vld [vmem:[#allocation2 + $0xa] sm:$0xff]
      %v6028 = vld [vmem:[#allocation2 + $0x12] sm:$0x3]
      %v6032 = vcombine.high %v6026, %v6026
      %v6034 = vunpack.c.l.s4 1983009808
      %v6035 = vunpack.c.0.s8 %v6034
      %v6036 = vlaneseq
      %v6037 = vshrl.u32 %v6036, 7
      %v6038 = vsub.s32 %v6035, %v6037
      %v6039 = vrot.slane %v6026, %v6038
      %v6041 = vunpack.c.l.s4 1983009808
      %v6042 = vunpack.c.0.s8 %v6041
      %v6043 = vlaneseq
      %v6044 = vshrl.u32 %v6043, 7
      %v6045 = vsub.s32 %v6042, %v6044
      %v6046 = vrot.slane %v6032, %v6045
      %v6047 = vcombine.high %v6039, %v6039
      %v6048 = vcombine.high %v6046, %v6046
      %v6049 = vcombine.high %v6027, %v6027
      %v6051 = vunpack.c.l.s4 1983009808
      %v6052 = vunpack.c.0.s8 %v6051
      %v6053 = vlaneseq
      %v6054 = vshrl.u32 %v6053, 7
      %v6055 = vsub.s32 %v6052, %v6054
      %v6056 = vrot.slane %v6027, %v6055
      %v6058 = vunpack.c.l.s4 1983009808
      %v6059 = vunpack.c.0.s8 %v6058
      %v6060 = vlaneseq
      %v6061 = vshrl.u32 %v6060, 7
      %v6062 = vsub.s32 %v6059, %v6061
      %v6063 = vrot.slane %v6049, %v6062
      %v6064 = vcombine.high %v6056, %v6056
      %v6065 = vcombine.high %v6063, %v6063
      %v6067 = vunpack.c.l.s4 1983009808
      %v6068 = vunpack.c.0.s8 %v6067
      %v6069 = vlaneseq
      %v6070 = vshrl.u32 %v6069, 7
      %v6071 = vsub.s32 %v6068, %v6070
      %v6072 = vrot.slane %v6028, %v6071
      %6073 = vrot.lane.b32.xlu0 %v6039, 46
      %v6074 = vpop.permute.xlu0 %6073
      %6075 = vrot.lane.b32.xlu0 %v6047, 46
      %v6076 = vpop.permute.xlu0 %6075
      %6077 = vrot.lane.b32.xlu0 %v6046, 46
      %v6078 = vpop.permute.xlu0 %6077
      %6079 = vrot.lane.b32.xlu0 %v6048, 46
      %v6080 = vpop.permute.xlu0 %6079
      %6081 = vrot.lane.b32.xlu0 %v6056, 46
      %v6082 = vpop.permute.xlu0 %6081
      %6083 = vrot.lane.b32.xlu0 %v6064, 46
      %v6084 = vpop.permute.xlu0 %6083
      %6085 = vrot.lane.b32.xlu0 %v6063, 46
      %v6086 = vpop.permute.xlu0 %6085
      %6087 = vrot.lane.b32.xlu0 %v6065, 46
      %v6088 = vpop.permute.xlu0 %6087
      %6089 = vrot.lane.b32.xlu0 %v6072, 46
      %v6090 = vpop.permute.xlu0 %6089
      %vm6091 = vcmask 375808
      %v6092 = vsel %vm6091, %v6074, %v6076
      %v6093 = vsel %vm6091, %v6076, %v6078
      %v6094 = vsel %vm6091, %v6078, %v6080
      %v6095 = vsel %vm6091, %v6080, %v6082
      %v6096 = vsel %vm6091, %v6082, %v6084
      %v6097 = vsel %vm6091, %v6084, %v6086
      %v6098 = vsel %vm6091, %v6086, %v6088
      %v6099 = vsel %vm6091, %v6088, %v6090
      %v6101 = vsel %vm415, %v6025, 0
      %v6104 = vsel %vm419, %v6092, 0
      %v6107 = vsel %vm419, %v6093, 0
      %v6110 = vsel %vm419, %v6094, 0
      %v6113 = vsel %vm419, %v6095, 0
      %v6116 = vsel %vm419, %v6096, 0
      %v6119 = vsel %vm419, %v6097, 0
      %v6122 = vsel %vm419, %v6098, 0
      %v6125 = vsel %vm419, %v6099, 0
      %6127 = vmatprep.subr.bf16.mxu0 0
      %6128 = vmatpush1.bf16.msra.mxu0 0
      %6129 = vmatprep.subr.bf16.mxu0 0
      %6130 = vmatpush1.bf16.msra.mxu0 0
      %6131 = vmatprep.subr.bf16.mxu0 0
      %6132 = vmatpush1.bf16.msra.mxu0 0
      %6133 = vmatprep.subr.bf16.mxu0 0
      %6134 = vmatpush1.bf16.msra.mxu0 0
      %6135 = vmatprep.subr.bf16.mxu0 0
      %6136 = vmatpush1.bf16.msra.mxu0 0
      %6137 = vmatprep.subr.bf16.mxu0 0
      %6138 = vmatpush1.bf16.msra.mxu0 0
      %6139 = vmatprep.subr.bf16.mxu0 0
      %6140 = vmatpush1.bf16.msra.mxu0 0
      %6141 = vmatprep.subr.bf16.mxu0 %v6107
      %6142 = vmatpush1.bf16.msra.mxu0 %v6104
      %6143 = vmatprep.subr.bf16.mxu0 0
      %6144 = vmatpush2.bf16.msra.mxu0 0
      %6145 = vmatprep.subr.bf16.mxu0 0
      %6146 = vmatpush2.bf16.msra.mxu0 0
      %6147 = vmatprep.subr.bf16.mxu0 0
      %6148 = vmatpush2.bf16.msra.mxu0 0
      %6149 = vmatprep.subr.bf16.mxu0 0
      %6150 = vmatpush2.bf16.msra.mxu0 0
      %6151 = vmatprep.subr.bf16.mxu0 0
      %6152 = vmatpush2.bf16.msra.mxu0 0
      %6153 = vmatprep.subr.bf16.mxu0 0
      %6154 = vmatpush2.bf16.msra.mxu0 0
      %6155 = vmatprep.subr.bf16.mxu0 0
      %6156 = vmatpush2.bf16.msra.mxu0 0
      %6157 = vmatprep.subr.bf16.mxu0 0
      %6158 = vmatpush2.bf16.msra.mxu0 0
      %6159 = vmatprep.mubr.bf16.mxu0 0
      %6160 = vmatmul.mubr.bf16.gmra.mxu0 %v6101
      %v6161 = vpop.f32.mrf.mxu0
      %v6162 = vadd.f32 0.0, %v6161
      %v6163 = vpop.f32.mrf.mxu0
      %v6164 = vadd.f32 0.0, %v6163
      %v6165 = vpop.f32.mrf.mxu0
      %v6166 = vpop.f32.mrf.mxu0
      %6167 = vdwg.mxu0
      %6168 = vmatprep.subr.bf16.mxu0 0
      %6169 = vmatpush1.bf16.msra.mxu0 0
      %6170 = vmatprep.subr.bf16.mxu0 0
      %6171 = vmatpush1.bf16.msra.mxu0 0
      %6172 = vmatprep.subr.bf16.mxu0 0
      %6173 = vmatpush1.bf16.msra.mxu0 0
      %6174 = vmatprep.subr.bf16.mxu0 0
      %6175 = vmatpush1.bf16.msra.mxu0 0
      %6176 = vmatprep.subr.bf16.mxu0 0
      %6177 = vmatpush1.bf16.msra.mxu0 0
      %6178 = vmatprep.subr.bf16.mxu0 0
      %6179 = vmatpush1.bf16.msra.mxu0 0
      %6180 = vmatprep.subr.bf16.mxu0 0
      %6181 = vmatpush1.bf16.msra.mxu0 0
      %6182 = vmatprep.subr.bf16.mxu0 %v6113
      %6183 = vmatpush1.bf16.msra.mxu0 %v6110
      %6184 = vmatprep.subr.bf16.mxu0 0
      %6185 = vmatpush2.bf16.msra.mxu0 0
      %6186 = vmatprep.subr.bf16.mxu0 0
      %6187 = vmatpush2.bf16.msra.mxu0 0
      %6188 = vmatprep.subr.bf16.mxu0 0
      %6189 = vmatpush2.bf16.msra.mxu0 0
      %6190 = vmatprep.subr.bf16.mxu0 0
      %6191 = vmatpush2.bf16.msra.mxu0 0
      %6192 = vmatprep.subr.bf16.mxu0 0
      %6193 = vmatpush2.bf16.msra.mxu0 0
      %6194 = vmatprep.subr.bf16.mxu0 0
      %6195 = vmatpush2.bf16.msra.mxu0 0
      %6196 = vmatprep.subr.bf16.mxu0 0
      %6197 = vmatpush2.bf16.msra.mxu0 0
      %6198 = vmatprep.subr.bf16.mxu0 0
      %6199 = vmatpush2.bf16.msra.mxu0 0
      %6200 = vmatprep.mubr.bf16.mxu0 0
      %6201 = vmatmul.mubr.bf16.gmra.mxu0 %v6101
      %v6202 = vpop.f32.mrf.mxu0
      %v6203 = vadd.f32 0.0, %v6202
      %v6204 = vpop.f32.mrf.mxu0
      %v6205 = vadd.f32 0.0, %v6204
      %v6206 = vpop.f32.mrf.mxu0
      %v6207 = vpop.f32.mrf.mxu0
      %6208 = vdwg.mxu0
      %6209 = vmatprep.subr.bf16.mxu0 0
      %6210 = vmatpush1.bf16.msra.mxu0 0
      %6211 = vmatprep.subr.bf16.mxu0 0
      %6212 = vmatpush1.bf16.msra.mxu0 0
      %6213 = vmatprep.subr.bf16.mxu0 0
      %6214 = vmatpush1.bf16.msra.mxu0 0
      %6215 = vmatprep.subr.bf16.mxu0 0
      %6216 = vmatpush1.bf16.msra.mxu0 0
      %6217 = vmatprep.subr.bf16.mxu0 0
      %6218 = vmatpush1.bf16.msra.mxu0 0
      %6219 = vmatprep.subr.bf16.mxu0 0
      %6220 = vmatpush1.bf16.msra.mxu0 0
      %6221 = vmatprep.subr.bf16.mxu0 0
      %6222 = vmatpush1.bf16.msra.mxu0 0
      %6223 = vmatprep.subr.bf16.mxu0 %v6119
      %6224 = vmatpush1.bf16.msra.mxu0 %v6116
      %6225 = vmatprep.subr.bf16.mxu0 0
      %6226 = vmatpush2.bf16.msra.mxu0 0
      %6227 = vmatprep.subr.bf16.mxu0 0
      %6228 = vmatpush2.bf16.msra.mxu0 0
      %6229 = vmatprep.subr.bf16.mxu0 0
      %6230 = vmatpush2.bf16.msra.mxu0 0
      %6231 = vmatprep.subr.bf16.mxu0 0
      %6232 = vmatpush2.bf16.msra.mxu0 0
      %6233 = vmatprep.subr.bf16.mxu0 0
      %6234 = vmatpush2.bf16.msra.mxu0 0
      %6235 = vmatprep.subr.bf16.mxu0 0
      %6236 = vmatpush2.bf16.msra.mxu0 0
      %6237 = vmatprep.subr.bf16.mxu0 0
      %6238 = vmatpush2.bf16.msra.mxu0 0
      %6239 = vmatprep.subr.bf16.mxu0 0
      %6240 = vmatpush2.bf16.msra.mxu0 0
      %6241 = vmatprep.mubr.bf16.mxu0 0
      %6242 = vmatmul.mubr.bf16.gmra.mxu0 %v6101
      %v6243 = vpop.f32.mrf.mxu0
      %v6244 = vadd.f32 0.0, %v6243
      %v6245 = vpop.f32.mrf.mxu0
      %v6246 = vadd.f32 0.0, %v6245
      %v6247 = vpop.f32.mrf.mxu0
      %v6248 = vpop.f32.mrf.mxu0
      %6249 = vdwg.mxu0
      %6250 = vmatprep.subr.bf16.mxu0 0
      %6251 = vmatpush1.bf16.msra.mxu0 0
      %6252 = vmatprep.subr.bf16.mxu0 0
      %6253 = vmatpush1.bf16.msra.mxu0 0
      %6254 = vmatprep.subr.bf16.mxu0 0
      %6255 = vmatpush1.bf16.msra.mxu0 0
      %6256 = vmatprep.subr.bf16.mxu0 0
      %6257 = vmatpush1.bf16.msra.mxu0 0
      %6258 = vmatprep.subr.bf16.mxu0 0
      %6259 = vmatpush1.bf16.msra.mxu0 0
      %6260 = vmatprep.subr.bf16.mxu0 0
      %6261 = vmatpush1.bf16.msra.mxu0 0
      %6262 = vmatprep.subr.bf16.mxu0 0
      %6263 = vmatpush1.bf16.msra.mxu0 0
      %6264 = vmatprep.subr.bf16.mxu0 %v6125
      %6265 = vmatpush1.bf16.msra.mxu0 %v6122
      %6266 = vmatprep.subr.bf16.mxu0 0
      %6267 = vmatpush2.bf16.msra.mxu0 0
      %6268 = vmatprep.subr.bf16.mxu0 0
      %6269 = vmatpush2.bf16.msra.mxu0 0
      %6270 = vmatprep.subr.bf16.mxu0 0
      %6271 = vmatpush2.bf16.msra.mxu0 0
      %6272 = vmatprep.subr.bf16.mxu0 0
      %6273 = vmatpush2.bf16.msra.mxu0 0
      %6274 = vmatprep.subr.bf16.mxu0 0
      %6275 = vmatpush2.bf16.msra.mxu0 0
      %6276 = vmatprep.subr.bf16.mxu0 0
      %6277 = vmatpush2.bf16.msra.mxu0 0
      %6278 = vmatprep.subr.bf16.mxu0 0
      %6279 = vmatpush2.bf16.msra.mxu0 0
      %6280 = vmatprep.subr.bf16.mxu0 0
      %6281 = vmatpush2.bf16.msra.mxu0 0
      %6282 = vmatprep.mubr.bf16.mxu0 0
      %6283 = vmatmul.mubr.bf16.gmra.mxu0 %v6101
      %v6284 = vpop.f32.mrf.mxu0
      %v6285 = vadd.f32 0.0, %v6284
      %v6286 = vpop.f32.mrf.mxu0
      %v6287 = vadd.f32 0.0, %v6286
      %v6288 = vpop.f32.mrf.mxu0
      %v6289 = vpop.f32.mrf.mxu0
      %6290 = vdwg.mxu0
      %v6291 = vadd.f32 %v6016, %v6162
      %v6292 = vadd.f32 %v6017, %v6164
      %v6293 = vadd.f32 %v6018, %v6203
      %v6294 = vadd.f32 %v6019, %v6205
      %v6295 = vadd.f32 %v6020, %v6244
      %v6296 = vadd.f32 %v6021, %v6246
      %v6297 = vadd.f32 %v6022, %v6285
      %v6298 = vadd.f32 %v6023, %v6287
      %s6299 = scalar_lea.vmem %s2, 44
      %v6300 = vld [vmem:[%s6299] sm:$0x3]
      %v6301 = vld [vmem:[#allocation2 + $0x2] sm:$0xff]
      %v6302 = vld [vmem:[#allocation2 + $0xa] sm:$0xff]
      %v6303 = vld [vmem:[#allocation2 + $0x12] sm:$0x3]
      %v6307 = vcombine.high %v6301, %v6301
      %v6309 = vunpack.c.l.s4 1983009808
      %v6310 = vunpack.c.0.s8 %v6309
      %v6311 = vlaneseq
      %v6312 = vshrl.u32 %v6311, 7
      %v6313 = vsub.s32 %v6310, %v6312
      %v6314 = vrot.slane %v6301, %v6313
      %v6316 = vunpack.c.l.s4 1983009808
      %v6317 = vunpack.c.0.s8 %v6316
      %v6318 = vlaneseq
      %v6319 = vshrl.u32 %v6318, 7
      %v6320 = vsub.s32 %v6317, %v6319
      %v6321 = vrot.slane %v6307, %v6320
      %v6322 = vcombine.high %v6314, %v6314
      %v6323 = vcombine.high %v6321, %v6321
      %v6324 = vcombine.high %v6302, %v6302
      %v6326 = vunpack.c.l.s4 1983009808
      %v6327 = vunpack.c.0.s8 %v6326
      %v6328 = vlaneseq
      %v6329 = vshrl.u32 %v6328, 7
      %v6330 = vsub.s32 %v6327, %v6329
      %v6331 = vrot.slane %v6302, %v6330
      %v6333 = vunpack.c.l.s4 1983009808
      %v6334 = vunpack.c.0.s8 %v6333
      %v6335 = vlaneseq
      %v6336 = vshrl.u32 %v6335, 7
      %v6337 = vsub.s32 %v6334, %v6336
      %v6338 = vrot.slane %v6324, %v6337
      %v6339 = vcombine.high %v6331, %v6331
      %v6340 = vcombine.high %v6338, %v6338
      %v6342 = vunpack.c.l.s4 1983009808
      %v6343 = vunpack.c.0.s8 %v6342
      %v6344 = vlaneseq
      %v6345 = vshrl.u32 %v6344, 7
      %v6346 = vsub.s32 %v6343, %v6345
      %v6347 = vrot.slane %v6303, %v6346
      %6348 = vrot.lane.b32.xlu0 %v6314, 45
      %v6349 = vpop.permute.xlu0 %6348
      %6350 = vrot.lane.b32.xlu0 %v6322, 45
      %v6351 = vpop.permute.xlu0 %6350
      %6352 = vrot.lane.b32.xlu0 %v6321, 45
      %v6353 = vpop.permute.xlu0 %6352
      %6354 = vrot.lane.b32.xlu0 %v6323, 45
      %v6355 = vpop.permute.xlu0 %6354
      %6356 = vrot.lane.b32.xlu0 %v6331, 45
      %v6357 = vpop.permute.xlu0 %6356
      %6358 = vrot.lane.b32.xlu0 %v6339, 45
      %v6359 = vpop.permute.xlu0 %6358
      %6360 = vrot.lane.b32.xlu0 %v6338, 45
      %v6361 = vpop.permute.xlu0 %6360
      %6362 = vrot.lane.b32.xlu0 %v6340, 45
      %v6363 = vpop.permute.xlu0 %6362
      %6364 = vrot.lane.b32.xlu0 %v6347, 45
      %v6365 = vpop.permute.xlu0 %6364
      %vm6366 = vcmask 367616
      %v6367 = vsel %vm6366, %v6349, %v6351
      %v6368 = vsel %vm6366, %v6351, %v6353
      %v6369 = vsel %vm6366, %v6353, %v6355
      %v6370 = vsel %vm6366, %v6355, %v6357
      %v6371 = vsel %vm6366, %v6357, %v6359
      %v6372 = vsel %vm6366, %v6359, %v6361
      %v6373 = vsel %vm6366, %v6361, %v6363
      %v6374 = vsel %vm6366, %v6363, %v6365
      %v6376 = vsel %vm415, %v6300, 0
      %v6379 = vsel %vm419, %v6367, 0
      %v6382 = vsel %vm419, %v6368, 0
      %v6385 = vsel %vm419, %v6369, 0
      %v6388 = vsel %vm419, %v6370, 0
      %v6391 = vsel %vm419, %v6371, 0
      %v6394 = vsel %vm419, %v6372, 0
      %v6397 = vsel %vm419, %v6373, 0
      %v6400 = vsel %vm419, %v6374, 0
      %6402 = vmatprep.subr.bf16.mxu0 0
      %6403 = vmatpush1.bf16.msra.mxu0 0
      %6404 = vmatprep.subr.bf16.mxu0 0
      %6405 = vmatpush1.bf16.msra.mxu0 0
      %6406 = vmatprep.subr.bf16.mxu0 0
      %6407 = vmatpush1.bf16.msra.mxu0 0
      %6408 = vmatprep.subr.bf16.mxu0 0
      %6409 = vmatpush1.bf16.msra.mxu0 0
      %6410 = vmatprep.subr.bf16.mxu0 0
      %6411 = vmatpush1.bf16.msra.mxu0 0
      %6412 = vmatprep.subr.bf16.mxu0 0
      %6413 = vmatpush1.bf16.msra.mxu0 0
      %6414 = vmatprep.subr.bf16.mxu0 0
      %6415 = vmatpush1.bf16.msra.mxu0 0
      %6416 = vmatprep.subr.bf16.mxu0 %v6382
      %6417 = vmatpush1.bf16.msra.mxu0 %v6379
      %6418 = vmatprep.subr.bf16.mxu0 0
      %6419 = vmatpush2.bf16.msra.mxu0 0
      %6420 = vmatprep.subr.bf16.mxu0 0
      %6421 = vmatpush2.bf16.msra.mxu0 0
      %6422 = vmatprep.subr.bf16.mxu0 0
      %6423 = vmatpush2.bf16.msra.mxu0 0
      %6424 = vmatprep.subr.bf16.mxu0 0
      %6425 = vmatpush2.bf16.msra.mxu0 0
      %6426 = vmatprep.subr.bf16.mxu0 0
      %6427 = vmatpush2.bf16.msra.mxu0 0
      %6428 = vmatprep.subr.bf16.mxu0 0
      %6429 = vmatpush2.bf16.msra.mxu0 0
      %6430 = vmatprep.subr.bf16.mxu0 0
      %6431 = vmatpush2.bf16.msra.mxu0 0
      %6432 = vmatprep.subr.bf16.mxu0 0
      %6433 = vmatpush2.bf16.msra.mxu0 0
      %6434 = vmatprep.mubr.bf16.mxu0 0
      %6435 = vmatmul.mubr.bf16.gmra.mxu0 %v6376
      %v6436 = vpop.f32.mrf.mxu0
      %v6437 = vadd.f32 0.0, %v6436
      %v6438 = vpop.f32.mrf.mxu0
      %v6439 = vadd.f32 0.0, %v6438
      %v6440 = vpop.f32.mrf.mxu0
      %v6441 = vpop.f32.mrf.mxu0
      %6442 = vdwg.mxu0
      %6443 = vmatprep.subr.bf16.mxu0 0
      %6444 = vmatpush1.bf16.msra.mxu0 0
      %6445 = vmatprep.subr.bf16.mxu0 0
      %6446 = vmatpush1.bf16.msra.mxu0 0
      %6447 = vmatprep.subr.bf16.mxu0 0
      %6448 = vmatpush1.bf16.msra.mxu0 0
      %6449 = vmatprep.subr.bf16.mxu0 0
      %6450 = vmatpush1.bf16.msra.mxu0 0
      %6451 = vmatprep.subr.bf16.mxu0 0
      %6452 = vmatpush1.bf16.msra.mxu0 0
      %6453 = vmatprep.subr.bf16.mxu0 0
      %6454 = vmatpush1.bf16.msra.mxu0 0
      %6455 = vmatprep.subr.bf16.mxu0 0
      %6456 = vmatpush1.bf16.msra.mxu0 0
      %6457 = vmatprep.subr.bf16.mxu0 %v6388
      %6458 = vmatpush1.bf16.msra.mxu0 %v6385
      %6459 = vmatprep.subr.bf16.mxu0 0
      %6460 = vmatpush2.bf16.msra.mxu0 0
      %6461 = vmatprep.subr.bf16.mxu0 0
      %6462 = vmatpush2.bf16.msra.mxu0 0
      %6463 = vmatprep.subr.bf16.mxu0 0
      %6464 = vmatpush2.bf16.msra.mxu0 0
      %6465 = vmatprep.subr.bf16.mxu0 0
      %6466 = vmatpush2.bf16.msra.mxu0 0
      %6467 = vmatprep.subr.bf16.mxu0 0
      %6468 = vmatpush2.bf16.msra.mxu0 0
      %6469 = vmatprep.subr.bf16.mxu0 0
      %6470 = vmatpush2.bf16.msra.mxu0 0
      %6471 = vmatprep.subr.bf16.mxu0 0
      %6472 = vmatpush2.bf16.msra.mxu0 0
      %6473 = vmatprep.subr.bf16.mxu0 0
      %6474 = vmatpush2.bf16.msra.mxu0 0
      %6475 = vmatprep.mubr.bf16.mxu0 0
      %6476 = vmatmul.mubr.bf16.gmra.mxu0 %v6376
      %v6477 = vpop.f32.mrf.mxu0
      %v6478 = vadd.f32 0.0, %v6477
      %v6479 = vpop.f32.mrf.mxu0
      %v6480 = vadd.f32 0.0, %v6479
      %v6481 = vpop.f32.mrf.mxu0
      %v6482 = vpop.f32.mrf.mxu0
      %6483 = vdwg.mxu0
      %6484 = vmatprep.subr.bf16.mxu0 0
      %6485 = vmatpush1.bf16.msra.mxu0 0
      %6486 = vmatprep.subr.bf16.mxu0 0
      %6487 = vmatpush1.bf16.msra.mxu0 0
      %6488 = vmatprep.subr.bf16.mxu0 0
      %6489 = vmatpush1.bf16.msra.mxu0 0
      %6490 = vmatprep.subr.bf16.mxu0 0
      %6491 = vmatpush1.bf16.msra.mxu0 0
      %6492 = vmatprep.subr.bf16.mxu0 0
      %6493 = vmatpush1.bf16.msra.mxu0 0
      %6494 = vmatprep.subr.bf16.mxu0 0
      %6495 = vmatpush1.bf16.msra.mxu0 0
      %6496 = vmatprep.subr.bf16.mxu0 0
      %6497 = vmatpush1.bf16.msra.mxu0 0
      %6498 = vmatprep.subr.bf16.mxu0 %v6394
      %6499 = vmatpush1.bf16.msra.mxu0 %v6391
      %6500 = vmatprep.subr.bf16.mxu0 0
      %6501 = vmatpush2.bf16.msra.mxu0 0
      %6502 = vmatprep.subr.bf16.mxu0 0
      %6503 = vmatpush2.bf16.msra.mxu0 0
      %6504 = vmatprep.subr.bf16.mxu0 0
      %6505 = vmatpush2.bf16.msra.mxu0 0
      %6506 = vmatprep.subr.bf16.mxu0 0
      %6507 = vmatpush2.bf16.msra.mxu0 0
      %6508 = vmatprep.subr.bf16.mxu0 0
      %6509 = vmatpush2.bf16.msra.mxu0 0
      %6510 = vmatprep.subr.bf16.mxu0 0
      %6511 = vmatpush2.bf16.msra.mxu0 0
      %6512 = vmatprep.subr.bf16.mxu0 0
      %6513 = vmatpush2.bf16.msra.mxu0 0
      %6514 = vmatprep.subr.bf16.mxu0 0
      %6515 = vmatpush2.bf16.msra.mxu0 0
      %6516 = vmatprep.mubr.bf16.mxu0 0
      %6517 = vmatmul.mubr.bf16.gmra.mxu0 %v6376
      %v6518 = vpop.f32.mrf.mxu0
      %v6519 = vadd.f32 0.0, %v6518
      %v6520 = vpop.f32.mrf.mxu0
      %v6521 = vadd.f32 0.0, %v6520
      %v6522 = vpop.f32.mrf.mxu0
      %v6523 = vpop.f32.mrf.mxu0
      %6524 = vdwg.mxu0
      %6525 = vmatprep.subr.bf16.mxu0 0
      %6526 = vmatpush1.bf16.msra.mxu0 0
      %6527 = vmatprep.subr.bf16.mxu0 0
      %6528 = vmatpush1.bf16.msra.mxu0 0
      %6529 = vmatprep.subr.bf16.mxu0 0
      %6530 = vmatpush1.bf16.msra.mxu0 0
      %6531 = vmatprep.subr.bf16.mxu0 0
      %6532 = vmatpush1.bf16.msra.mxu0 0
      %6533 = vmatprep.subr.bf16.mxu0 0
      %6534 = vmatpush1.bf16.msra.mxu0 0
      %6535 = vmatprep.subr.bf16.mxu0 0
      %6536 = vmatpush1.bf16.msra.mxu0 0
      %6537 = vmatprep.subr.bf16.mxu0 0
      %6538 = vmatpush1.bf16.msra.mxu0 0
      %6539 = vmatprep.subr.bf16.mxu0 %v6400
      %6540 = vmatpush1.bf16.msra.mxu0 %v6397
      %6541 = vmatprep.subr.bf16.mxu0 0
      %6542 = vmatpush2.bf16.msra.mxu0 0
      %6543 = vmatprep.subr.bf16.mxu0 0
      %6544 = vmatpush2.bf16.msra.mxu0 0
      %6545 = vmatprep.subr.bf16.mxu0 0
      %6546 = vmatpush2.bf16.msra.mxu0 0
      %6547 = vmatprep.subr.bf16.mxu0 0
      %6548 = vmatpush2.bf16.msra.mxu0 0
      %6549 = vmatprep.subr.bf16.mxu0 0
      %6550 = vmatpush2.bf16.msra.mxu0 0
      %6551 = vmatprep.subr.bf16.mxu0 0
      %6552 = vmatpush2.bf16.msra.mxu0 0
      %6553 = vmatprep.subr.bf16.mxu0 0
      %6554 = vmatpush2.bf16.msra.mxu0 0
      %6555 = vmatprep.subr.bf16.mxu0 0
      %6556 = vmatpush2.bf16.msra.mxu0 0
      %6557 = vmatprep.mubr.bf16.mxu0 0
      %6558 = vmatmul.mubr.bf16.gmra.mxu0 %v6376
      %v6559 = vpop.f32.mrf.mxu0
      %v6560 = vadd.f32 0.0, %v6559
      %v6561 = vpop.f32.mrf.mxu0
      %v6562 = vadd.f32 0.0, %v6561
      %v6563 = vpop.f32.mrf.mxu0
      %v6564 = vpop.f32.mrf.mxu0
      %6565 = vdwg.mxu0
      %v6566 = vadd.f32 %v6291, %v6437
      %v6567 = vadd.f32 %v6292, %v6439
      %v6568 = vadd.f32 %v6293, %v6478
      %v6569 = vadd.f32 %v6294, %v6480
      %v6570 = vadd.f32 %v6295, %v6519
      %v6571 = vadd.f32 %v6296, %v6521
      %v6572 = vadd.f32 %v6297, %v6560
      %v6573 = vadd.f32 %v6298, %v6562
      %s6574 = scalar_lea.vmem %s2, 46
      %v6575 = vld [vmem:[%s6574] sm:$0x3]
      %v6576 = vld [vmem:[#allocation2 + $0x2] sm:$0xff]
      %v6577 = vld [vmem:[#allocation2 + $0xa] sm:$0xff]
      %v6578 = vld [vmem:[#allocation2 + $0x12] sm:$0x3]
      %v6582 = vcombine.high %v6576, %v6576
      %v6584 = vunpack.c.l.s4 1983009808
      %v6585 = vunpack.c.0.s8 %v6584
      %v6586 = vlaneseq
      %v6587 = vshrl.u32 %v6586, 7
      %v6588 = vsub.s32 %v6585, %v6587
      %v6589 = vrot.slane %v6576, %v6588
      %v6591 = vunpack.c.l.s4 1983009808
      %v6592 = vunpack.c.0.s8 %v6591
      %v6593 = vlaneseq
      %v6594 = vshrl.u32 %v6593, 7
      %v6595 = vsub.s32 %v6592, %v6594
      %v6596 = vrot.slane %v6582, %v6595
      %v6597 = vcombine.high %v6589, %v6589
      %v6598 = vcombine.high %v6596, %v6596
      %v6599 = vcombine.high %v6577, %v6577
      %v6601 = vunpack.c.l.s4 1983009808
      %v6602 = vunpack.c.0.s8 %v6601
      %v6603 = vlaneseq
      %v6604 = vshrl.u32 %v6603, 7
      %v6605 = vsub.s32 %v6602, %v6604
      %v6606 = vrot.slane %v6577, %v6605
      %v6608 = vunpack.c.l.s4 1983009808
      %v6609 = vunpack.c.0.s8 %v6608
      %v6610 = vlaneseq
      %v6611 = vshrl.u32 %v6610, 7
      %v6612 = vsub.s32 %v6609, %v6611
      %v6613 = vrot.slane %v6599, %v6612
      %v6614 = vcombine.high %v6606, %v6606
      %v6615 = vcombine.high %v6613, %v6613
      %v6617 = vunpack.c.l.s4 1983009808
      %v6618 = vunpack.c.0.s8 %v6617
      %v6619 = vlaneseq
      %v6620 = vshrl.u32 %v6619, 7
      %v6621 = vsub.s32 %v6618, %v6620
      %v6622 = vrot.slane %v6578, %v6621
      %6623 = vrot.lane.b32.xlu0 %v6589, 44
      %v6624 = vpop.permute.xlu0 %6623
      %6625 = vrot.lane.b32.xlu0 %v6597, 44
      %v6626 = vpop.permute.xlu0 %6625
      %6627 = vrot.lane.b32.xlu0 %v6596, 44
      %v6628 = vpop.permute.xlu0 %6627
      %6629 = vrot.lane.b32.xlu0 %v6598, 44
      %v6630 = vpop.permute.xlu0 %6629
      %6631 = vrot.lane.b32.xlu0 %v6606, 44
      %v6632 = vpop.permute.xlu0 %6631
      %6633 = vrot.lane.b32.xlu0 %v6614, 44
      %v6634 = vpop.permute.xlu0 %6633
      %6635 = vrot.lane.b32.xlu0 %v6613, 44
      %v6636 = vpop.permute.xlu0 %6635
      %6637 = vrot.lane.b32.xlu0 %v6615, 44
      %v6638 = vpop.permute.xlu0 %6637
      %6639 = vrot.lane.b32.xlu0 %v6622, 44
      %v6640 = vpop.permute.xlu0 %6639
      %vm6641 = vcmask 359424
      %v6642 = vsel %vm6641, %v6624, %v6626
      %v6643 = vsel %vm6641, %v6626, %v6628
      %v6644 = vsel %vm6641, %v6628, %v6630
      %v6645 = vsel %vm6641, %v6630, %v6632
      %v6646 = vsel %vm6641, %v6632, %v6634
      %v6647 = vsel %vm6641, %v6634, %v6636
      %v6648 = vsel %vm6641, %v6636, %v6638
      %v6649 = vsel %vm6641, %v6638, %v6640
      %v6651 = vsel %vm415, %v6575, 0
      %v6654 = vsel %vm419, %v6642, 0
      %v6657 = vsel %vm419, %v6643, 0
      %v6660 = vsel %vm419, %v6644, 0
      %v6663 = vsel %vm419, %v6645, 0
      %v6666 = vsel %vm419, %v6646, 0
      %v6669 = vsel %vm419, %v6647, 0
      %v6672 = vsel %vm419, %v6648, 0
      %v6675 = vsel %vm419, %v6649, 0
      %6677 = vmatprep.subr.bf16.mxu0 0
      %6678 = vmatpush1.bf16.msra.mxu0 0
      %6679 = vmatprep.subr.bf16.mxu0 0
      %6680 = vmatpush1.bf16.msra.mxu0 0
      %6681 = vmatprep.subr.bf16.mxu0 0
      %6682 = vmatpush1.bf16.msra.mxu0 0
      %6683 = vmatprep.subr.bf16.mxu0 0
      %6684 = vmatpush1.bf16.msra.mxu0 0
      %6685 = vmatprep.subr.bf16.mxu0 0
      %6686 = vmatpush1.bf16.msra.mxu0 0
      %6687 = vmatprep.subr.bf16.mxu0 0
      %6688 = vmatpush1.bf16.msra.mxu0 0
      %6689 = vmatprep.subr.bf16.mxu0 0
      %6690 = vmatpush1.bf16.msra.mxu0 0
      %6691 = vmatprep.subr.bf16.mxu0 %v6657
      %6692 = vmatpush1.bf16.msra.mxu0 %v6654
      %6693 = vmatprep.subr.bf16.mxu0 0
      %6694 = vmatpush2.bf16.msra.mxu0 0
      %6695 = vmatprep.subr.bf16.mxu0 0
      %6696 = vmatpush2.bf16.msra.mxu0 0
      %6697 = vmatprep.subr.bf16.mxu0 0
      %6698 = vmatpush2.bf16.msra.mxu0 0
      %6699 = vmatprep.subr.bf16.mxu0 0
      %6700 = vmatpush2.bf16.msra.mxu0 0
      %6701 = vmatprep.subr.bf16.mxu0 0
      %6702 = vmatpush2.bf16.msra.mxu0 0
      %6703 = vmatprep.subr.bf16.mxu0 0
      %6704 = vmatpush2.bf16.msra.mxu0 0
      %6705 = vmatprep.subr.bf16.mxu0 0
      %6706 = vmatpush2.bf16.msra.mxu0 0
      %6707 = vmatprep.subr.bf16.mxu0 0
      %6708 = vmatpush2.bf16.msra.mxu0 0
      %6709 = vmatprep.mubr.bf16.mxu0 0
      %6710 = vmatmul.mubr.bf16.gmra.mxu0 %v6651
      %v6711 = vpop.f32.mrf.mxu0
      %v6712 = vadd.f32 0.0, %v6711
      %v6713 = vpop.f32.mrf.mxu0
      %v6714 = vadd.f32 0.0, %v6713
      %v6715 = vpop.f32.mrf.mxu0
      %v6716 = vpop.f32.mrf.mxu0
      %6717 = vdwg.mxu0
      %6718 = vmatprep.subr.bf16.mxu0 0
      %6719 = vmatpush1.bf16.msra.mxu0 0
      %6720 = vmatprep.subr.bf16.mxu0 0
      %6721 = vmatpush1.bf16.msra.mxu0 0
      %6722 = vmatprep.subr.bf16.mxu0 0
      %6723 = vmatpush1.bf16.msra.mxu0 0
      %6724 = vmatprep.subr.bf16.mxu0 0
      %6725 = vmatpush1.bf16.msra.mxu0 0
      %6726 = vmatprep.subr.bf16.mxu0 0
      %6727 = vmatpush1.bf16.msra.mxu0 0
      %6728 = vmatprep.subr.bf16.mxu0 0
      %6729 = vmatpush1.bf16.msra.mxu0 0
      %6730 = vmatprep.subr.bf16.mxu0 0
      %6731 = vmatpush1.bf16.msra.mxu0 0
      %6732 = vmatprep.subr.bf16.mxu0 %v6663
      %6733 = vmatpush1.bf16.msra.mxu0 %v6660
      %6734 = vmatprep.subr.bf16.mxu0 0
      %6735 = vmatpush2.bf16.msra.mxu0 0
      %6736 = vmatprep.subr.bf16.mxu0 0
      %6737 = vmatpush2.bf16.msra.mxu0 0
      %6738 = vmatprep.subr.bf16.mxu0 0
      %6739 = vmatpush2.bf16.msra.mxu0 0
      %6740 = vmatprep.subr.bf16.mxu0 0
      %6741 = vmatpush2.bf16.msra.mxu0 0
      %6742 = vmatprep.subr.bf16.mxu0 0
      %6743 = vmatpush2.bf16.msra.mxu0 0
      %6744 = vmatprep.subr.bf16.mxu0 0
      %6745 = vmatpush2.bf16.msra.mxu0 0
      %6746 = vmatprep.subr.bf16.mxu0 0
      %6747 = vmatpush2.bf16.msra.mxu0 0
      %6748 = vmatprep.subr.bf16.mxu0 0
      %6749 = vmatpush2.bf16.msra.mxu0 0
      %6750 = vmatprep.mubr.bf16.mxu0 0
      %6751 = vmatmul.mubr.bf16.gmra.mxu0 %v6651
      %v6752 = vpop.f32.mrf.mxu0
      %v6753 = vadd.f32 0.0, %v6752
      %v6754 = vpop.f32.mrf.mxu0
      %v6755 = vadd.f32 0.0, %v6754
      %v6756 = vpop.f32.mrf.mxu0
      %v6757 = vpop.f32.mrf.mxu0
      %6758 = vdwg.mxu0
      %6759 = vmatprep.subr.bf16.mxu0 0
      %6760 = vmatpush1.bf16.msra.mxu0 0
      %6761 = vmatprep.subr.bf16.mxu0 0
      %6762 = vmatpush1.bf16.msra.mxu0 0
      %6763 = vmatprep.subr.bf16.mxu0 0
      %6764 = vmatpush1.bf16.msra.mxu0 0
      %6765 = vmatprep.subr.bf16.mxu0 0
      %6766 = vmatpush1.bf16.msra.mxu0 0
      %6767 = vmatprep.subr.bf16.mxu0 0
      %6768 = vmatpush1.bf16.msra.mxu0 0
      %6769 = vmatprep.subr.bf16.mxu0 0
      %6770 = vmatpush1.bf16.msra.mxu0 0
      %6771 = vmatprep.subr.bf16.mxu0 0
      %6772 = vmatpush1.bf16.msra.mxu0 0
      %6773 = vmatprep.subr.bf16.mxu0 %v6669
      %6774 = vmatpush1.bf16.msra.mxu0 %v6666
      %6775 = vmatprep.subr.bf16.mxu0 0
      %6776 = vmatpush2.bf16.msra.mxu0 0
      %6777 = vmatprep.subr.bf16.mxu0 0
      %6778 = vmatpush2.bf16.msra.mxu0 0
      %6779 = vmatprep.subr.bf16.mxu0 0
      %6780 = vmatpush2.bf16.msra.mxu0 0
      %6781 = vmatprep.subr.bf16.mxu0 0
      %6782 = vmatpush2.bf16.msra.mxu0 0
      %6783 = vmatprep.subr.bf16.mxu0 0
      %6784 = vmatpush2.bf16.msra.mxu0 0
      %6785 = vmatprep.subr.bf16.mxu0 0
      %6786 = vmatpush2.bf16.msra.mxu0 0
      %6787 = vmatprep.subr.bf16.mxu0 0
      %6788 = vmatpush2.bf16.msra.mxu0 0
      %6789 = vmatprep.subr.bf16.mxu0 0
      %6790 = vmatpush2.bf16.msra.mxu0 0
      %6791 = vmatprep.mubr.bf16.mxu0 0
      %6792 = vmatmul.mubr.bf16.gmra.mxu0 %v6651
      %v6793 = vpop.f32.mrf.mxu0
      %v6794 = vadd.f32 0.0, %v6793
      %v6795 = vpop.f32.mrf.mxu0
      %v6796 = vadd.f32 0.0, %v6795
      %v6797 = vpop.f32.mrf.mxu0
      %v6798 = vpop.f32.mrf.mxu0
      %6799 = vdwg.mxu0
      %6800 = vmatprep.subr.bf16.mxu0 0
      %6801 = vmatpush1.bf16.msra.mxu0 0
      %6802 = vmatprep.subr.bf16.mxu0 0
      %6803 = vmatpush1.bf16.msra.mxu0 0
      %6804 = vmatprep.subr.bf16.mxu0 0
      %6805 = vmatpush1.bf16.msra.mxu0 0
      %6806 = vmatprep.subr.bf16.mxu0 0
      %6807 = vmatpush1.bf16.msra.mxu0 0
      %6808 = vmatprep.subr.bf16.mxu0 0
      %6809 = vmatpush1.bf16.msra.mxu0 0
      %6810 = vmatprep.subr.bf16.mxu0 0
      %6811 = vmatpush1.bf16.msra.mxu0 0
      %6812 = vmatprep.subr.bf16.mxu0 0
      %6813 = vmatpush1.bf16.msra.mxu0 0
      %6814 = vmatprep.subr.bf16.mxu0 %v6675
      %6815 = vmatpush1.bf16.msra.mxu0 %v6672
      %6816 = vmatprep.subr.bf16.mxu0 0
      %6817 = vmatpush2.bf16.msra.mxu0 0
      %6818 = vmatprep.subr.bf16.mxu0 0
      %6819 = vmatpush2.bf16.msra.mxu0 0
      %6820 = vmatprep.subr.bf16.mxu0 0
      %6821 = vmatpush2.bf16.msra.mxu0 0
      %6822 = vmatprep.subr.bf16.mxu0 0
      %6823 = vmatpush2.bf16.msra.mxu0 0
      %6824 = vmatprep.subr.bf16.mxu0 0
      %6825 = vmatpush2.bf16.msra.mxu0 0
      %6826 = vmatprep.subr.bf16.mxu0 0
      %6827 = vmatpush2.bf16.msra.mxu0 0
      %6828 = vmatprep.subr.bf16.mxu0 0
      %6829 = vmatpush2.bf16.msra.mxu0 0
      %6830 = vmatprep.subr.bf16.mxu0 0
      %6831 = vmatpush2.bf16.msra.mxu0 0
      %6832 = vmatprep.mubr.bf16.mxu0 0
      %6833 = vmatmul.mubr.bf16.gmra.mxu0 %v6651
      %v6834 = vpop.f32.mrf.mxu0
      %v6835 = vadd.f32 0.0, %v6834
      %v6836 = vpop.f32.mrf.mxu0
      %v6837 = vadd.f32 0.0, %v6836
      %v6838 = vpop.f32.mrf.mxu0
      %v6839 = vpop.f32.mrf.mxu0
      %6840 = vdwg.mxu0
      %v6841 = vadd.f32 %v6566, %v6712
      %v6842 = vadd.f32 %v6567, %v6714
      %v6843 = vadd.f32 %v6568, %v6753
      %v6844 = vadd.f32 %v6569, %v6755
      %v6845 = vadd.f32 %v6570, %v6794
      %v6846 = vadd.f32 %v6571, %v6796
      %v6847 = vadd.f32 %v6572, %v6835
      %v6848 = vadd.f32 %v6573, %v6837
      %s6849 = scalar_lea.vmem %s2, 48
      %v6850 = vld [vmem:[%s6849] sm:$0x3]
      %v6851 = vld [vmem:[#allocation2 + $0x2] sm:$0xff]
      %v6852 = vld [vmem:[#allocation2 + $0xa] sm:$0xff]
      %v6853 = vld [vmem:[#allocation2 + $0x12] sm:$0x3]
      %v6857 = vcombine.high %v6851, %v6851
      %v6859 = vunpack.c.l.s4 1983009808
      %v6860 = vunpack.c.0.s8 %v6859
      %v6861 = vlaneseq
      %v6862 = vshrl.u32 %v6861, 7
      %v6863 = vsub.s32 %v6860, %v6862
      %v6864 = vrot.slane %v6851, %v6863
      %v6866 = vunpack.c.l.s4 1983009808
      %v6867 = vunpack.c.0.s8 %v6866
      %v6868 = vlaneseq
      %v6869 = vshrl.u32 %v6868, 7
      %v6870 = vsub.s32 %v6867, %v6869
      %v6871 = vrot.slane %v6857, %v6870
      %v6872 = vcombine.high %v6864, %v6864
      %v6873 = vcombine.high %v6871, %v6871
      %v6874 = vcombine.high %v6852, %v6852
      %v6876 = vunpack.c.l.s4 1983009808
      %v6877 = vunpack.c.0.s8 %v6876
      %v6878 = vlaneseq
      %v6879 = vshrl.u32 %v6878, 7
      %v6880 = vsub.s32 %v6877, %v6879
      %v6881 = vrot.slane %v6852, %v6880
      %v6883 = vunpack.c.l.s4 1983009808
      %v6884 = vunpack.c.0.s8 %v6883
      %v6885 = vlaneseq
      %v6886 = vshrl.u32 %v6885, 7
      %v6887 = vsub.s32 %v6884, %v6886
      %v6888 = vrot.slane %v6874, %v6887
      %v6889 = vcombine.high %v6881, %v6881
      %v6890 = vcombine.high %v6888, %v6888
      %v6892 = vunpack.c.l.s4 1983009808
      %v6893 = vunpack.c.0.s8 %v6892
      %v6894 = vlaneseq
      %v6895 = vshrl.u32 %v6894, 7
      %v6896 = vsub.s32 %v6893, %v6895
      %v6897 = vrot.slane %v6853, %v6896
      %6898 = vrot.lane.b32.xlu0 %v6864, 36
      %v6899 = vpop.permute.xlu0 %6898
      %6900 = vrot.lane.b32.xlu0 %v6872, 36
      %v6901 = vpop.permute.xlu0 %6900
      %6902 = vrot.lane.b32.xlu0 %v6871, 36
      %v6903 = vpop.permute.xlu0 %6902
      %6904 = vrot.lane.b32.xlu0 %v6873, 36
      %v6905 = vpop.permute.xlu0 %6904
      %6906 = vrot.lane.b32.xlu0 %v6881, 36
      %v6907 = vpop.permute.xlu0 %6906
      %6908 = vrot.lane.b32.xlu0 %v6889, 36
      %v6909 = vpop.permute.xlu0 %6908
      %6910 = vrot.lane.b32.xlu0 %v6888, 36
      %v6911 = vpop.permute.xlu0 %6910
      %6912 = vrot.lane.b32.xlu0 %v6890, 36
      %v6913 = vpop.permute.xlu0 %6912
      %6914 = vrot.lane.b32.xlu0 %v6897, 36
      %v6915 = vpop.permute.xlu0 %6914
      %vm6916 = vcmask 293888
      %v6917 = vsel %vm6916, %v6899, %v6901
      %v6918 = vsel %vm6916, %v6901, %v6903
      %v6919 = vsel %vm6916, %v6903, %v6905
      %v6920 = vsel %vm6916, %v6905, %v6907
      %v6921 = vsel %vm6916, %v6907, %v6909
      %v6922 = vsel %vm6916, %v6909, %v6911
      %v6923 = vsel %vm6916, %v6911, %v6913
      %v6924 = vsel %vm6916, %v6913, %v6915
      %v6926 = vsel %vm415, %v6850, 0
      %v6929 = vsel %vm419, %v6917, 0
      %v6932 = vsel %vm419, %v6918, 0
      %v6935 = vsel %vm419, %v6919, 0
      %v6938 = vsel %vm419, %v6920, 0
      %v6941 = vsel %vm419, %v6921, 0
      %v6944 = vsel %vm419, %v6922, 0
      %v6947 = vsel %vm419, %v6923, 0
      %v6950 = vsel %vm419, %v6924, 0
      %6952 = vmatprep.subr.bf16.mxu0 0
      %6953 = vmatpush1.bf16.msra.mxu0 0
      %6954 = vmatprep.subr.bf16.mxu0 0
      %6955 = vmatpush1.bf16.msra.mxu0 0
      %6956 = vmatprep.subr.bf16.mxu0 0
      %6957 = vmatpush1.bf16.msra.mxu0 0
      %6958 = vmatprep.subr.bf16.mxu0 0
      %6959 = vmatpush1.bf16.msra.mxu0 0
      %6960 = vmatprep.subr.bf16.mxu0 0
      %6961 = vmatpush1.bf16.msra.mxu0 0
      %6962 = vmatprep.subr.bf16.mxu0 0
      %6963 = vmatpush1.bf16.msra.mxu0 0
      %6964 = vmatprep.subr.bf16.mxu0 0
      %6965 = vmatpush1.bf16.msra.mxu0 0
      %6966 = vmatprep.subr.bf16.mxu0 %v6932
      %6967 = vmatpush1.bf16.msra.mxu0 %v6929
      %6968 = vmatprep.subr.bf16.mxu0 0
      %6969 = vmatpush2.bf16.msra.mxu0 0
      %6970 = vmatprep.subr.bf16.mxu0 0
      %6971 = vmatpush2.bf16.msra.mxu0 0
      %6972 = vmatprep.subr.bf16.mxu0 0
      %6973 = vmatpush2.bf16.msra.mxu0 0
      %6974 = vmatprep.subr.bf16.mxu0 0
      %6975 = vmatpush2.bf16.msra.mxu0 0
      %6976 = vmatprep.subr.bf16.mxu0 0
      %6977 = vmatpush2.bf16.msra.mxu0 0
      %6978 = vmatprep.subr.bf16.mxu0 0
      %6979 = vmatpush2.bf16.msra.mxu0 0
      %6980 = vmatprep.subr.bf16.mxu0 0
      %6981 = vmatpush2.bf16.msra.mxu0 0
      %6982 = vmatprep.subr.bf16.mxu0 0
      %6983 = vmatpush2.bf16.msra.mxu0 0
      %6984 = vmatprep.mubr.bf16.mxu0 0
      %6985 = vmatmul.mubr.bf16.gmra.mxu0 %v6926
      %v6986 = vpop.f32.mrf.mxu0
      %v6987 = vadd.f32 0.0, %v6986
      %v6988 = vpop.f32.mrf.mxu0
      %v6989 = vadd.f32 0.0, %v6988
      %v6990 = vpop.f32.mrf.mxu0
      %v6991 = vpop.f32.mrf.mxu0
      %6992 = vdwg.mxu0
      %6993 = vmatprep.subr.bf16.mxu0 0
      %6994 = vmatpush1.bf16.msra.mxu0 0
      %6995 = vmatprep.subr.bf16.mxu0 0
      %6996 = vmatpush1.bf16.msra.mxu0 0
      %6997 = vmatprep.subr.bf16.mxu0 0
      %6998 = vmatpush1.bf16.msra.mxu0 0
      %6999 = vmatprep.subr.bf16.mxu0 0
      %7000 = vmatpush1.bf16.msra.mxu0 0
      %7001 = vmatprep.subr.bf16.mxu0 0
      %7002 = vmatpush1.bf16.msra.mxu0 0
      %7003 = vmatprep.subr.bf16.mxu0 0
      %7004 = vmatpush1.bf16.msra.mxu0 0
      %7005 = vmatprep.subr.bf16.mxu0 0
      %7006 = vmatpush1.bf16.msra.mxu0 0
      %7007 = vmatprep.subr.bf16.mxu0 %v6938
      %7008 = vmatpush1.bf16.msra.mxu0 %v6935
      %7009 = vmatprep.subr.bf16.mxu0 0
      %7010 = vmatpush2.bf16.msra.mxu0 0
      %7011 = vmatprep.subr.bf16.mxu0 0
      %7012 = vmatpush2.bf16.msra.mxu0 0
      %7013 = vmatprep.subr.bf16.mxu0 0
      %7014 = vmatpush2.bf16.msra.mxu0 0
      %7015 = vmatprep.subr.bf16.mxu0 0
      %7016 = vmatpush2.bf16.msra.mxu0 0
      %7017 = vmatprep.subr.bf16.mxu0 0
      %7018 = vmatpush2.bf16.msra.mxu0 0
      %7019 = vmatprep.subr.bf16.mxu0 0
      %7020 = vmatpush2.bf16.msra.mxu0 0
      %7021 = vmatprep.subr.bf16.mxu0 0
      %7022 = vmatpush2.bf16.msra.mxu0 0
      %7023 = vmatprep.subr.bf16.mxu0 0
      %7024 = vmatpush2.bf16.msra.mxu0 0
      %7025 = vmatprep.mubr.bf16.mxu0 0
      %7026 = vmatmul.mubr.bf16.gmra.mxu0 %v6926
      %v7027 = vpop.f32.mrf.mxu0
      %v7028 = vadd.f32 0.0, %v7027
      %v7029 = vpop.f32.mrf.mxu0
      %v7030 = vadd.f32 0.0, %v7029
      %v7031 = vpop.f32.mrf.mxu0
      %v7032 = vpop.f32.mrf.mxu0
      %7033 = vdwg.mxu0
      %7034 = vmatprep.subr.bf16.mxu0 0
      %7035 = vmatpush1.bf16.msra.mxu0 0
      %7036 = vmatprep.subr.bf16.mxu0 0
      %7037 = vmatpush1.bf16.msra.mxu0 0
      %7038 = vmatprep.subr.bf16.mxu0 0
      %7039 = vmatpush1.bf16.msra.mxu0 0
      %7040 = vmatprep.subr.bf16.mxu0 0
      %7041 = vmatpush1.bf16.msra.mxu0 0
      %7042 = vmatprep.subr.bf16.mxu0 0
      %7043 = vmatpush1.bf16.msra.mxu0 0
      %7044 = vmatprep.subr.bf16.mxu0 0
      %7045 = vmatpush1.bf16.msra.mxu0 0
      %7046 = vmatprep.subr.bf16.mxu0 0
      %7047 = vmatpush1.bf16.msra.mxu0 0
      %7048 = vmatprep.subr.bf16.mxu0 %v6944
      %7049 = vmatpush1.bf16.msra.mxu0 %v6941
      %7050 = vmatprep.subr.bf16.mxu0 0
      %7051 = vmatpush2.bf16.msra.mxu0 0
      %7052 = vmatprep.subr.bf16.mxu0 0
      %7053 = vmatpush2.bf16.msra.mxu0 0
      %7054 = vmatprep.subr.bf16.mxu0 0
      %7055 = vmatpush2.bf16.msra.mxu0 0
      %7056 = vmatprep.subr.bf16.mxu0 0
      %7057 = vmatpush2.bf16.msra.mxu0 0
      %7058 = vmatprep.subr.bf16.mxu0 0
      %7059 = vmatpush2.bf16.msra.mxu0 0
      %7060 = vmatprep.subr.bf16.mxu0 0
      %7061 = vmatpush2.bf16.msra.mxu0 0
      %7062 = vmatprep.subr.bf16.mxu0 0
      %7063 = vmatpush2.bf16.msra.mxu0 0
      %7064 = vmatprep.subr.bf16.mxu0 0
      %7065 = vmatpush2.bf16.msra.mxu0 0
      %7066 = vmatprep.mubr.bf16.mxu0 0
      %7067 = vmatmul.mubr.bf16.gmra.mxu0 %v6926
      %v7068 = vpop.f32.mrf.mxu0
      %v7069 = vadd.f32 0.0, %v7068
      %v7070 = vpop.f32.mrf.mxu0
      %v7071 = vadd.f32 0.0, %v7070
      %v7072 = vpop.f32.mrf.mxu0
      %v7073 = vpop.f32.mrf.mxu0
      %7074 = vdwg.mxu0
      %7075 = vmatprep.subr.bf16.mxu0 0
      %7076 = vmatpush1.bf16.msra.mxu0 0
      %7077 = vmatprep.subr.bf16.mxu0 0
      %7078 = vmatpush1.bf16.msra.mxu0 0
      %7079 = vmatprep.subr.bf16.mxu0 0
      %7080 = vmatpush1.bf16.msra.mxu0 0
      %7081 = vmatprep.subr.bf16.mxu0 0
      %7082 = vmatpush1.bf16.msra.mxu0 0
      %7083 = vmatprep.subr.bf16.mxu0 0
      %7084 = vmatpush1.bf16.msra.mxu0 0
      %7085 = vmatprep.subr.bf16.mxu0 0
      %7086 = vmatpush1.bf16.msra.mxu0 0
      %7087 = vmatprep.subr.bf16.mxu0 0
      %7088 = vmatpush1.bf16.msra.mxu0 0
      %7089 = vmatprep.subr.bf16.mxu0 %v6950
      %7090 = vmatpush1.bf16.msra.mxu0 %v6947
      %7091 = vmatprep.subr.bf16.mxu0 0
      %7092 = vmatpush2.bf16.msra.mxu0 0
      %7093 = vmatprep.subr.bf16.mxu0 0
      %7094 = vmatpush2.bf16.msra.mxu0 0
      %7095 = vmatprep.subr.bf16.mxu0 0
      %7096 = vmatpush2.bf16.msra.mxu0 0
      %7097 = vmatprep.subr.bf16.mxu0 0
      %7098 = vmatpush2.bf16.msra.mxu0 0
      %7099 = vmatprep.subr.bf16.mxu0 0
      %7100 = vmatpush2.bf16.msra.mxu0 0
      %7101 = vmatprep.subr.bf16.mxu0 0
      %7102 = vmatpush2.bf16.msra.mxu0 0
      %7103 = vmatprep.subr.bf16.mxu0 0
      %7104 = vmatpush2.bf16.msra.mxu0 0
      %7105 = vmatprep.subr.bf16.mxu0 0
      %7106 = vmatpush2.bf16.msra.mxu0 0
      %7107 = vmatprep.mubr.bf16.mxu0 0
      %7108 = vmatmul.mubr.bf16.gmra.mxu0 %v6926
      %v7109 = vpop.f32.mrf.mxu0
      %v7110 = vadd.f32 0.0, %v7109
      %v7111 = vpop.f32.mrf.mxu0
      %v7112 = vadd.f32 0.0, %v7111
      %v7113 = vpop.f32.mrf.mxu0
      %v7114 = vpop.f32.mrf.mxu0
      %7115 = vdwg.mxu0
      %v7116 = vadd.f32 %v6841, %v6987
      %v7117 = vadd.f32 %v6842, %v6989
      %v7118 = vadd.f32 %v6843, %v7028
      %v7119 = vadd.f32 %v6844, %v7030
      %v7120 = vadd.f32 %v6845, %v7069
      %v7121 = vadd.f32 %v6846, %v7071
      %v7122 = vadd.f32 %v6847, %v7110
      %v7123 = vadd.f32 %v6848, %v7112
      %s7124 = scalar_lea.vmem %s2, 50
      %v7125 = vld [vmem:[%s7124] sm:$0x3]
      %v7126 = vld [vmem:[#allocation2 + $0x2] sm:$0xff]
      %v7127 = vld [vmem:[#allocation2 + $0xa] sm:$0xff]
      %v7128 = vld [vmem:[#allocation2 + $0x12] sm:$0x3]
      %v7132 = vcombine.high %v7126, %v7126
      %v7134 = vunpack.c.l.s4 1983009808
      %v7135 = vunpack.c.0.s8 %v7134
      %v7136 = vlaneseq
      %v7137 = vshrl.u32 %v7136, 7
      %v7138 = vsub.s32 %v7135, %v7137
      %v7139 = vrot.slane %v7126, %v7138
      %v7141 = vunpack.c.l.s4 1983009808
      %v7142 = vunpack.c.0.s8 %v7141
      %v7143 = vlaneseq
      %v7144 = vshrl.u32 %v7143, 7
      %v7145 = vsub.s32 %v7142, %v7144
      %v7146 = vrot.slane %v7132, %v7145
      %v7147 = vcombine.high %v7139, %v7139
      %v7148 = vcombine.high %v7146, %v7146
      %v7149 = vcombine.high %v7127, %v7127
      %v7151 = vunpack.c.l.s4 1983009808
      %v7152 = vunpack.c.0.s8 %v7151
      %v7153 = vlaneseq
      %v7154 = vshrl.u32 %v7153, 7
      %v7155 = vsub.s32 %v7152, %v7154
      %v7156 = vrot.slane %v7127, %v7155
      %v7158 = vunpack.c.l.s4 1983009808
      %v7159 = vunpack.c.0.s8 %v7158
      %v7160 = vlaneseq
      %v7161 = vshrl.u32 %v7160, 7
      %v7162 = vsub.s32 %v7159, %v7161
      %v7163 = vrot.slane %v7149, %v7162
      %v7164 = vcombine.high %v7156, %v7156
      %v7165 = vcombine.high %v7163, %v7163
      %v7167 = vunpack.c.l.s4 1983009808
      %v7168 = vunpack.c.0.s8 %v7167
      %v7169 = vlaneseq
      %v7170 = vshrl.u32 %v7169, 7
      %v7171 = vsub.s32 %v7168, %v7170
      %v7172 = vrot.slane %v7128, %v7171
      %7173 = vrot.lane.b32.xlu0 %v7139, 35
      %v7174 = vpop.permute.xlu0 %7173
      %7175 = vrot.lane.b32.xlu0 %v7147, 35
      %v7176 = vpop.permute.xlu0 %7175
      %7177 = vrot.lane.b32.xlu0 %v7146, 35
      %v7178 = vpop.permute.xlu0 %7177
      %7179 = vrot.lane.b32.xlu0 %v7148, 35
      %v7180 = vpop.permute.xlu0 %7179
      %7181 = vrot.lane.b32.xlu0 %v7156, 35
      %v7182 = vpop.permute.xlu0 %7181
      %7183 = vrot.lane.b32.xlu0 %v7164, 35
      %v7184 = vpop.permute.xlu0 %7183
      %7185 = vrot.lane.b32.xlu0 %v7163, 35
      %v7186 = vpop.permute.xlu0 %7185
      %7187 = vrot.lane.b32.xlu0 %v7165, 35
      %v7188 = vpop.permute.xlu0 %7187
      %7189 = vrot.lane.b32.xlu0 %v7172, 35
      %v7190 = vpop.permute.xlu0 %7189
      %vm7191 = vcmask 285696
      %v7192 = vsel %vm7191, %v7174, %v7176
      %v7193 = vsel %vm7191, %v7176, %v7178
      %v7194 = vsel %vm7191, %v7178, %v7180
      %v7195 = vsel %vm7191, %v7180, %v7182
      %v7196 = vsel %vm7191, %v7182, %v7184
      %v7197 = vsel %vm7191, %v7184, %v7186
      %v7198 = vsel %vm7191, %v7186, %v7188
      %v7199 = vsel %vm7191, %v7188, %v7190
      %v7201 = vsel %vm415, %v7125, 0
      %v7204 = vsel %vm419, %v7192, 0
      %v7207 = vsel %vm419, %v7193, 0
      %v7210 = vsel %vm419, %v7194, 0
      %v7213 = vsel %vm419, %v7195, 0
      %v7216 = vsel %vm419, %v7196, 0
      %v7219 = vsel %vm419, %v7197, 0
      %v7222 = vsel %vm419, %v7198, 0
      %v7225 = vsel %vm419, %v7199, 0
      %7227 = vmatprep.subr.bf16.mxu0 0
      %7228 = vmatpush1.bf16.msra.mxu0 0
      %7229 = vmatprep.subr.bf16.mxu0 0
      %7230 = vmatpush1.bf16.msra.mxu0 0
      %7231 = vmatprep.subr.bf16.mxu0 0
      %7232 = vmatpush1.bf16.msra.mxu0 0
      %7233 = vmatprep.subr.bf16.mxu0 0
      %7234 = vmatpush1.bf16.msra.mxu0 0
      %7235 = vmatprep.subr.bf16.mxu0 0
      %7236 = vmatpush1.bf16.msra.mxu0 0
      %7237 = vmatprep.subr.bf16.mxu0 0
      %7238 = vmatpush1.bf16.msra.mxu0 0
      %7239 = vmatprep.subr.bf16.mxu0 0
      %7240 = vmatpush1.bf16.msra.mxu0 0
      %7241 = vmatprep.subr.bf16.mxu0 %v7207
      %7242 = vmatpush1.bf16.msra.mxu0 %v7204
      %7243 = vmatprep.subr.bf16.mxu0 0
      %7244 = vmatpush2.bf16.msra.mxu0 0
      %7245 = vmatprep.subr.bf16.mxu0 0
      %7246 = vmatpush2.bf16.msra.mxu0 0
      %7247 = vmatprep.subr.bf16.mxu0 0
      %7248 = vmatpush2.bf16.msra.mxu0 0
      %7249 = vmatprep.subr.bf16.mxu0 0
      %7250 = vmatpush2.bf16.msra.mxu0 0
      %7251 = vmatprep.subr.bf16.mxu0 0
      %7252 = vmatpush2.bf16.msra.mxu0 0
      %7253 = vmatprep.subr.bf16.mxu0 0
      %7254 = vmatpush2.bf16.msra.mxu0 0
      %7255 = vmatprep.subr.bf16.mxu0 0
      %7256 = vmatpush2.bf16.msra.mxu0 0
      %7257 = vmatprep.subr.bf16.mxu0 0
      %7258 = vmatpush2.bf16.msra.mxu0 0
      %7259 = vmatprep.mubr.bf16.mxu0 0
      %7260 = vmatmul.mubr.bf16.gmra.mxu0 %v7201
      %v7261 = vpop.f32.mrf.mxu0
      %v7262 = vadd.f32 0.0, %v7261
      %v7263 = vpop.f32.mrf.mxu0
      %v7264 = vadd.f32 0.0, %v7263
      %v7265 = vpop.f32.mrf.mxu0
      %v7266 = vpop.f32.mrf.mxu0
      %7267 = vdwg.mxu0
      %7268 = vmatprep.subr.bf16.mxu0 0
      %7269 = vmatpush1.bf16.msra.mxu0 0
      %7270 = vmatprep.subr.bf16.mxu0 0
      %7271 = vmatpush1.bf16.msra.mxu0 0
      %7272 = vmatprep.subr.bf16.mxu0 0
      %7273 = vmatpush1.bf16.msra.mxu0 0
      %7274 = vmatprep.subr.bf16.mxu0 0
      %7275 = vmatpush1.bf16.msra.mxu0 0
      %7276 = vmatprep.subr.bf16.mxu0 0
      %7277 = vmatpush1.bf16.msra.mxu0 0
      %7278 = vmatprep.subr.bf16.mxu0 0
      %7279 = vmatpush1.bf16.msra.mxu0 0
      %7280 = vmatprep.subr.bf16.mxu0 0
      %7281 = vmatpush1.bf16.msra.mxu0 0
      %7282 = vmatprep.subr.bf16.mxu0 %v7213
      %7283 = vmatpush1.bf16.msra.mxu0 %v7210
      %7284 = vmatprep.subr.bf16.mxu0 0
      %7285 = vmatpush2.bf16.msra.mxu0 0
      %7286 = vmatprep.subr.bf16.mxu0 0
      %7287 = vmatpush2.bf16.msra.mxu0 0
      %7288 = vmatprep.subr.bf16.mxu0 0
      %7289 = vmatpush2.bf16.msra.mxu0 0
      %7290 = vmatprep.subr.bf16.mxu0 0
      %7291 = vmatpush2.bf16.msra.mxu0 0
      %7292 = vmatprep.subr.bf16.mxu0 0
      %7293 = vmatpush2.bf16.msra.mxu0 0
      %7294 = vmatprep.subr.bf16.mxu0 0
      %7295 = vmatpush2.bf16.msra.mxu0 0
      %7296 = vmatprep.subr.bf16.mxu0 0
      %7297 = vmatpush2.bf16.msra.mxu0 0
      %7298 = vmatprep.subr.bf16.mxu0 0
      %7299 = vmatpush2.bf16.msra.mxu0 0
      %7300 = vmatprep.mubr.bf16.mxu0 0
      %7301 = vmatmul.mubr.bf16.gmra.mxu0 %v7201
      %v7302 = vpop.f32.mrf.mxu0
      %v7303 = vadd.f32 0.0, %v7302
      %v7304 = vpop.f32.mrf.mxu0
      %v7305 = vadd.f32 0.0, %v7304
      %v7306 = vpop.f32.mrf.mxu0
      %v7307 = vpop.f32.mrf.mxu0
      %7308 = vdwg.mxu0
      %7309 = vmatprep.subr.bf16.mxu0 0
      %7310 = vmatpush1.bf16.msra.mxu0 0
      %7311 = vmatprep.subr.bf16.mxu0 0
      %7312 = vmatpush1.bf16.msra.mxu0 0
      %7313 = vmatprep.subr.bf16.mxu0 0
      %7314 = vmatpush1.bf16.msra.mxu0 0
      %7315 = vmatprep.subr.bf16.mxu0 0
      %7316 = vmatpush1.bf16.msra.mxu0 0
      %7317 = vmatprep.subr.bf16.mxu0 0
      %7318 = vmatpush1.bf16.msra.mxu0 0
      %7319 = vmatprep.subr.bf16.mxu0 0
      %7320 = vmatpush1.bf16.msra.mxu0 0
      %7321 = vmatprep.subr.bf16.mxu0 0
      %7322 = vmatpush1.bf16.msra.mxu0 0
      %7323 = vmatprep.subr.bf16.mxu0 %v7219
      %7324 = vmatpush1.bf16.msra.mxu0 %v7216
      %7325 = vmatprep.subr.bf16.mxu0 0
      %7326 = vmatpush2.bf16.msra.mxu0 0
      %7327 = vmatprep.subr.bf16.mxu0 0
      %7328 = vmatpush2.bf16.msra.mxu0 0
      %7329 = vmatprep.subr.bf16.mxu0 0
      %7330 = vmatpush2.bf16.msra.mxu0 0
      %7331 = vmatprep.subr.bf16.mxu0 0
      %7332 = vmatpush2.bf16.msra.mxu0 0
      %7333 = vmatprep.subr.bf16.mxu0 0
      %7334 = vmatpush2.bf16.msra.mxu0 0
      %7335 = vmatprep.subr.bf16.mxu0 0
      %7336 = vmatpush2.bf16.msra.mxu0 0
      %7337 = vmatprep.subr.bf16.mxu0 0
      %7338 = vmatpush2.bf16.msra.mxu0 0
      %7339 = vmatprep.subr.bf16.mxu0 0
      %7340 = vmatpush2.bf16.msra.mxu0 0
      %7341 = vmatprep.mubr.bf16.mxu0 0
      %7342 = vmatmul.mubr.bf16.gmra.mxu0 %v7201
      %v7343 = vpop.f32.mrf.mxu0
      %v7344 = vadd.f32 0.0, %v7343
      %v7345 = vpop.f32.mrf.mxu0
      %v7346 = vadd.f32 0.0, %v7345
      %v7347 = vpop.f32.mrf.mxu0
      %v7348 = vpop.f32.mrf.mxu0
      %7349 = vdwg.mxu0
      %7350 = vmatprep.subr.bf16.mxu0 0
      %7351 = vmatpush1.bf16.msra.mxu0 0
      %7352 = vmatprep.subr.bf16.mxu0 0
      %7353 = vmatpush1.bf16.msra.mxu0 0
      %7354 = vmatprep.subr.bf16.mxu0 0
      %7355 = vmatpush1.bf16.msra.mxu0 0
      %7356 = vmatprep.subr.bf16.mxu0 0
      %7357 = vmatpush1.bf16.msra.mxu0 0
      %7358 = vmatprep.subr.bf16.mxu0 0
      %7359 = vmatpush1.bf16.msra.mxu0 0
      %7360 = vmatprep.subr.bf16.mxu0 0
      %7361 = vmatpush1.bf16.msra.mxu0 0
      %7362 = vmatprep.subr.bf16.mxu0 0
      %7363 = vmatpush1.bf16.msra.mxu0 0
      %7364 = vmatprep.subr.bf16.mxu0 %v7225
      %7365 = vmatpush1.bf16.msra.mxu0 %v7222
      %7366 = vmatprep.subr.bf16.mxu0 0
      %7367 = vmatpush2.bf16.msra.mxu0 0
      %7368 = vmatprep.subr.bf16.mxu0 0
      %7369 = vmatpush2.bf16.msra.mxu0 0
      %7370 = vmatprep.subr.bf16.mxu0 0
      %7371 = vmatpush2.bf16.msra.mxu0 0
      %7372 = vmatprep.subr.bf16.mxu0 0
      %7373 = vmatpush2.bf16.msra.mxu0 0
      %7374 = vmatprep.subr.bf16.mxu0 0
      %7375 = vmatpush2.bf16.msra.mxu0 0
      %7376 = vmatprep.subr.bf16.mxu0 0
      %7377 = vmatpush2.bf16.msra.mxu0 0
      %7378 = vmatprep.subr.bf16.mxu0 0
      %7379 = vmatpush2.bf16.msra.mxu0 0
      %7380 = vmatprep.subr.bf16.mxu0 0
      %7381 = vmatpush2.bf16.msra.mxu0 0
      %7382 = vmatprep.mubr.bf16.mxu0 0
      %7383 = vmatmul.mubr.bf16.gmra.mxu0 %v7201
      %v7384 = vpop.f32.mrf.mxu0
      %v7385 = vadd.f32 0.0, %v7384
      %v7386 = vpop.f32.mrf.mxu0
      %v7387 = vadd.f32 0.0, %v7386
      %v7388 = vpop.f32.mrf.mxu0
      %v7389 = vpop.f32.mrf.mxu0
      %7390 = vdwg.mxu0
      %v7391 = vadd.f32 %v7116, %v7262
      %v7392 = vadd.f32 %v7117, %v7264
      %v7393 = vadd.f32 %v7118, %v7303
      %v7394 = vadd.f32 %v7119, %v7305
      %v7395 = vadd.f32 %v7120, %v7344
      %v7396 = vadd.f32 %v7121, %v7346
      %v7397 = vadd.f32 %v7122, %v7385
      %v7398 = vadd.f32 %v7123, %v7387
      %s7399 = scalar_lea.vmem %s2, 52
      %v7400 = vld [vmem:[%s7399] sm:$0x3]
      %v7401 = vld [vmem:[#allocation2 + $0x2] sm:$0xff]
      %v7402 = vld [vmem:[#allocation2 + $0xa] sm:$0xff]
      %v7403 = vld [vmem:[#allocation2 + $0x12] sm:$0x3]
      %v7407 = vcombine.high %v7401, %v7401
      %v7409 = vunpack.c.l.s4 1983009808
      %v7410 = vunpack.c.0.s8 %v7409
      %v7411 = vlaneseq
      %v7412 = vshrl.u32 %v7411, 7
      %v7413 = vsub.s32 %v7410, %v7412
      %v7414 = vrot.slane %v7401, %v7413
      %v7416 = vunpack.c.l.s4 1983009808
      %v7417 = vunpack.c.0.s8 %v7416
      %v7418 = vlaneseq
      %v7419 = vshrl.u32 %v7418, 7
      %v7420 = vsub.s32 %v7417, %v7419
      %v7421 = vrot.slane %v7407, %v7420
      %v7422 = vcombine.high %v7414, %v7414
      %v7423 = vcombine.high %v7421, %v7421
      %v7424 = vcombine.high %v7402, %v7402
      %v7426 = vunpack.c.l.s4 1983009808
      %v7427 = vunpack.c.0.s8 %v7426
      %v7428 = vlaneseq
      %v7429 = vshrl.u32 %v7428, 7
      %v7430 = vsub.s32 %v7427, %v7429
      %v7431 = vrot.slane %v7402, %v7430
      %v7433 = vunpack.c.l.s4 1983009808
      %v7434 = vunpack.c.0.s8 %v7433
      %v7435 = vlaneseq
      %v7436 = vshrl.u32 %v7435, 7
      %v7437 = vsub.s32 %v7434, %v7436
      %v7438 = vrot.slane %v7424, %v7437
      %v7439 = vcombine.high %v7431, %v7431
      %v7440 = vcombine.high %v7438, %v7438
      %v7442 = vunpack.c.l.s4 1983009808
      %v7443 = vunpack.c.0.s8 %v7442
      %v7444 = vlaneseq
      %v7445 = vshrl.u32 %v7444, 7
      %v7446 = vsub.s32 %v7443, %v7445
      %v7447 = vrot.slane %v7403, %v7446
      %7448 = vrot.lane.b32.xlu0 %v7414, 34
      %v7449 = vpop.permute.xlu0 %7448
      %7450 = vrot.lane.b32.xlu0 %v7422, 34
      %v7451 = vpop.permute.xlu0 %7450
      %7452 = vrot.lane.b32.xlu0 %v7421, 34
      %v7453 = vpop.permute.xlu0 %7452
      %7454 = vrot.lane.b32.xlu0 %v7423, 34
      %v7455 = vpop.permute.xlu0 %7454
      %7456 = vrot.lane.b32.xlu0 %v7431, 34
      %v7457 = vpop.permute.xlu0 %7456
      %7458 = vrot.lane.b32.xlu0 %v7439, 34
      %v7459 = vpop.permute.xlu0 %7458
      %7460 = vrot.lane.b32.xlu0 %v7438, 34
      %v7461 = vpop.permute.xlu0 %7460
      %7462 = vrot.lane.b32.xlu0 %v7440, 34
      %v7463 = vpop.permute.xlu0 %7462
      %7464 = vrot.lane.b32.xlu0 %v7447, 34
      %v7465 = vpop.permute.xlu0 %7464
      %vm7466 = vcmask 277504
      %v7467 = vsel %vm7466, %v7449, %v7451
      %v7468 = vsel %vm7466, %v7451, %v7453
      %v7469 = vsel %vm7466, %v7453, %v7455
      %v7470 = vsel %vm7466, %v7455, %v7457
      %v7471 = vsel %vm7466, %v7457, %v7459
      %v7472 = vsel %vm7466, %v7459, %v7461
      %v7473 = vsel %vm7466, %v7461, %v7463
      %v7474 = vsel %vm7466, %v7463, %v7465
      %v7476 = vsel %vm415, %v7400, 0
      %v7479 = vsel %vm419, %v7467, 0
      %v7482 = vsel %vm419, %v7468, 0
      %v7485 = vsel %vm419, %v7469, 0
      %v7488 = vsel %vm419, %v7470, 0
      %v7491 = vsel %vm419, %v7471, 0
      %v7494 = vsel %vm419, %v7472, 0
      %v7497 = vsel %vm419, %v7473, 0
      %v7500 = vsel %vm419, %v7474, 0
      %7502 = vmatprep.subr.bf16.mxu0 0
      %7503 = vmatpush1.bf16.msra.mxu0 0
      %7504 = vmatprep.subr.bf16.mxu0 0
      %7505 = vmatpush1.bf16.msra.mxu0 0
      %7506 = vmatprep.subr.bf16.mxu0 0
      %7507 = vmatpush1.bf16.msra.mxu0 0
      %7508 = vmatprep.subr.bf16.mxu0 0
      %7509 = vmatpush1.bf16.msra.mxu0 0
      %7510 = vmatprep.subr.bf16.mxu0 0
      %7511 = vmatpush1.bf16.msra.mxu0 0
      %7512 = vmatprep.subr.bf16.mxu0 0
      %7513 = vmatpush1.bf16.msra.mxu0 0
      %7514 = vmatprep.subr.bf16.mxu0 0
      %7515 = vmatpush1.bf16.msra.mxu0 0
      %7516 = vmatprep.subr.bf16.mxu0 %v7482
      %7517 = vmatpush1.bf16.msra.mxu0 %v7479
      %7518 = vmatprep.subr.bf16.mxu0 0
      %7519 = vmatpush2.bf16.msra.mxu0 0
      %7520 = vmatprep.subr.bf16.mxu0 0
      %7521 = vmatpush2.bf16.msra.mxu0 0
      %7522 = vmatprep.subr.bf16.mxu0 0
      %7523 = vmatpush2.bf16.msra.mxu0 0
      %7524 = vmatprep.subr.bf16.mxu0 0
      %7525 = vmatpush2.bf16.msra.mxu0 0
      %7526 = vmatprep.subr.bf16.mxu0 0
      %7527 = vmatpush2.bf16.msra.mxu0 0
      %7528 = vmatprep.subr.bf16.mxu0 0
      %7529 = vmatpush2.bf16.msra.mxu0 0
      %7530 = vmatprep.subr.bf16.mxu0 0
      %7531 = vmatpush2.bf16.msra.mxu0 0
      %7532 = vmatprep.subr.bf16.mxu0 0
      %7533 = vmatpush2.bf16.msra.mxu0 0
      %7534 = vmatprep.mubr.bf16.mxu0 0
      %7535 = vmatmul.mubr.bf16.gmra.mxu0 %v7476
      %v7536 = vpop.f32.mrf.mxu0
      %v7537 = vadd.f32 0.0, %v7536
      %v7538 = vpop.f32.mrf.mxu0
      %v7539 = vadd.f32 0.0, %v7538
      %v7540 = vpop.f32.mrf.mxu0
      %v7541 = vpop.f32.mrf.mxu0
      %7542 = vdwg.mxu0
      %7543 = vmatprep.subr.bf16.mxu0 0
      %7544 = vmatpush1.bf16.msra.mxu0 0
      %7545 = vmatprep.subr.bf16.mxu0 0
      %7546 = vmatpush1.bf16.msra.mxu0 0
      %7547 = vmatprep.subr.bf16.mxu0 0
      %7548 = vmatpush1.bf16.msra.mxu0 0
      %7549 = vmatprep.subr.bf16.mxu0 0
      %7550 = vmatpush1.bf16.msra.mxu0 0
      %7551 = vmatprep.subr.bf16.mxu0 0
      %7552 = vmatpush1.bf16.msra.mxu0 0
      %7553 = vmatprep.subr.bf16.mxu0 0
      %7554 = vmatpush1.bf16.msra.mxu0 0
      %7555 = vmatprep.subr.bf16.mxu0 0
      %7556 = vmatpush1.bf16.msra.mxu0 0
      %7557 = vmatprep.subr.bf16.mxu0 %v7488
      %7558 = vmatpush1.bf16.msra.mxu0 %v7485
      %7559 = vmatprep.subr.bf16.mxu0 0
      %7560 = vmatpush2.bf16.msra.mxu0 0
      %7561 = vmatprep.subr.bf16.mxu0 0
      %7562 = vmatpush2.bf16.msra.mxu0 0
      %7563 = vmatprep.subr.bf16.mxu0 0
      %7564 = vmatpush2.bf16.msra.mxu0 0
      %7565 = vmatprep.subr.bf16.mxu0 0
      %7566 = vmatpush2.bf16.msra.mxu0 0
      %7567 = vmatprep.subr.bf16.mxu0 0
      %7568 = vmatpush2.bf16.msra.mxu0 0
      %7569 = vmatprep.subr.bf16.mxu0 0
      %7570 = vmatpush2.bf16.msra.mxu0 0
      %7571 = vmatprep.subr.bf16.mxu0 0
      %7572 = vmatpush2.bf16.msra.mxu0 0
      %7573 = vmatprep.subr.bf16.mxu0 0
      %7574 = vmatpush2.bf16.msra.mxu0 0
      %7575 = vmatprep.mubr.bf16.mxu0 0
      %7576 = vmatmul.mubr.bf16.gmra.mxu0 %v7476
      %v7577 = vpop.f32.mrf.mxu0
      %v7578 = vadd.f32 0.0, %v7577
      %v7579 = vpop.f32.mrf.mxu0
      %v7580 = vadd.f32 0.0, %v7579
      %v7581 = vpop.f32.mrf.mxu0
      %v7582 = vpop.f32.mrf.mxu0
      %7583 = vdwg.mxu0
      %7584 = vmatprep.subr.bf16.mxu0 0
      %7585 = vmatpush1.bf16.msra.mxu0 0
      %7586 = vmatprep.subr.bf16.mxu0 0
      %7587 = vmatpush1.bf16.msra.mxu0 0
      %7588 = vmatprep.subr.bf16.mxu0 0
      %7589 = vmatpush1.bf16.msra.mxu0 0
      %7590 = vmatprep.subr.bf16.mxu0 0
      %7591 = vmatpush1.bf16.msra.mxu0 0
      %7592 = vmatprep.subr.bf16.mxu0 0
      %7593 = vmatpush1.bf16.msra.mxu0 0
      %7594 = vmatprep.subr.bf16.mxu0 0
      %7595 = vmatpush1.bf16.msra.mxu0 0
      %7596 = vmatprep.subr.bf16.mxu0 0
      %7597 = vmatpush1.bf16.msra.mxu0 0
      %7598 = vmatprep.subr.bf16.mxu0 %v7494
      %7599 = vmatpush1.bf16.msra.mxu0 %v7491
      %7600 = vmatprep.subr.bf16.mxu0 0
      %7601 = vmatpush2.bf16.msra.mxu0 0
      %7602 = vmatprep.subr.bf16.mxu0 0
      %7603 = vmatpush2.bf16.msra.mxu0 0
      %7604 = vmatprep.subr.bf16.mxu0 0
      %7605 = vmatpush2.bf16.msra.mxu0 0
      %7606 = vmatprep.subr.bf16.mxu0 0
      %7607 = vmatpush2.bf16.msra.mxu0 0
      %7608 = vmatprep.subr.bf16.mxu0 0
      %7609 = vmatpush2.bf16.msra.mxu0 0
      %7610 = vmatprep.subr.bf16.mxu0 0
      %7611 = vmatpush2.bf16.msra.mxu0 0
      %7612 = vmatprep.subr.bf16.mxu0 0
      %7613 = vmatpush2.bf16.msra.mxu0 0
      %7614 = vmatprep.subr.bf16.mxu0 0
      %7615 = vmatpush2.bf16.msra.mxu0 0
      %7616 = vmatprep.mubr.bf16.mxu0 0
      %7617 = vmatmul.mubr.bf16.gmra.mxu0 %v7476
      %v7618 = vpop.f32.mrf.mxu0
      %v7619 = vadd.f32 0.0, %v7618
      %v7620 = vpop.f32.mrf.mxu0
      %v7621 = vadd.f32 0.0, %v7620
      %v7622 = vpop.f32.mrf.mxu0
      %v7623 = vpop.f32.mrf.mxu0
      %7624 = vdwg.mxu0
      %7625 = vmatprep.subr.bf16.mxu0 0
      %7626 = vmatpush1.bf16.msra.mxu0 0
      %7627 = vmatprep.subr.bf16.mxu0 0
      %7628 = vmatpush1.bf16.msra.mxu0 0
      %7629 = vmatprep.subr.bf16.mxu0 0
      %7630 = vmatpush1.bf16.msra.mxu0 0
      %7631 = vmatprep.subr.bf16.mxu0 0
      %7632 = vmatpush1.bf16.msra.mxu0 0
      %7633 = vmatprep.subr.bf16.mxu0 0
      %7634 = vmatpush1.bf16.msra.mxu0 0
      %7635 = vmatprep.subr.bf16.mxu0 0
      %7636 = vmatpush1.bf16.msra.mxu0 0
      %7637 = vmatprep.subr.bf16.mxu0 0
      %7638 = vmatpush1.bf16.msra.mxu0 0
      %7639 = vmatprep.subr.bf16.mxu0 %v7500
      %7640 = vmatpush1.bf16.msra.mxu0 %v7497
      %7641 = vmatprep.subr.bf16.mxu0 0
      %7642 = vmatpush2.bf16.msra.mxu0 0
      %7643 = vmatprep.subr.bf16.mxu0 0
      %7644 = vmatpush2.bf16.msra.mxu0 0
      %7645 = vmatprep.subr.bf16.mxu0 0
      %7646 = vmatpush2.bf16.msra.mxu0 0
      %7647 = vmatprep.subr.bf16.mxu0 0
      %7648 = vmatpush2.bf16.msra.mxu0 0
      %7649 = vmatprep.subr.bf16.mxu0 0
      %7650 = vmatpush2.bf16.msra.mxu0 0
      %7651 = vmatprep.subr.bf16.mxu0 0
      %7652 = vmatpush2.bf16.msra.mxu0 0
      %7653 = vmatprep.subr.bf16.mxu0 0
      %7654 = vmatpush2.bf16.msra.mxu0 0
      %7655 = vmatprep.subr.bf16.mxu0 0
      %7656 = vmatpush2.bf16.msra.mxu0 0
      %7657 = vmatprep.mubr.bf16.mxu0 0
      %7658 = vmatmul.mubr.bf16.gmra.mxu0 %v7476
      %v7659 = vpop.f32.mrf.mxu0
      %v7660 = vadd.f32 0.0, %v7659
      %v7661 = vpop.f32.mrf.mxu0
      %v7662 = vadd.f32 0.0, %v7661
      %v7663 = vpop.f32.mrf.mxu0
      %v7664 = vpop.f32.mrf.mxu0
      %7665 = vdwg.mxu0
      %v7666 = vadd.f32 %v7391, %v7537
      %v7667 = vadd.f32 %v7392, %v7539
      %v7668 = vadd.f32 %v7393, %v7578
      %v7669 = vadd.f32 %v7394, %v7580
      %v7670 = vadd.f32 %v7395, %v7619
      %v7671 = vadd.f32 %v7396, %v7621
      %v7672 = vadd.f32 %v7397, %v7660
      %v7673 = vadd.f32 %v7398, %v7662
      %v7682 = vcombine.low %v7666, %v7667
      %v7683 = vcombine.low %v7668, %v7669
      %v7684 = vcombine.low %v7670, %v7671
      %v7685 = vcombine.low %v7672, %v7673
      %7690 = vst [vmem:[%s321] sm:$0xff] %v7682
      %7691 = vst [vmem:[%s321 + $0x8] sm:$0xff] %v7683
      %7692 = vst [vmem:[%s321 + $0x10] sm:$0xff] %v7684
      %7693 = vst [vmem:[%s321 + $0x18] sm:$0xff] %v7685
      %v7694 = vld [vmem:[%s315] sm:$0xff]
      %v7695 = vunpack.c.l.bf16 %v7694
      %v7696 = vunpack.c.h.bf16 %v7694
      %v7699 = vlaneseq
      %v7700 = vshrl.u32 %v7699, 7
      %v7701 = vsub.s32 0, %v7700
      %v7702 = vrot.slane %v7695, %v7701
      %v7703 = vlaneseq
      %v7704 = vshrl.u32 %v7703, 7
      %v7705 = vsub.s32 2, %v7704
      %v7706 = vrot.slane %v7695, %v7705
      %v7707 = vlaneseq
      %v7708 = vshrl.u32 %v7707, 7
      %v7709 = vsub.s32 4, %v7708
      %v7710 = vrot.slane %v7695, %v7709
      %v7711 = vlaneseq
      %v7712 = vshrl.u32 %v7711, 7
      %v7713 = vsub.s32 6, %v7712
      %v7714 = vrot.slane %v7695, %v7713
      %v7715 = vlaneseq
      %v7716 = vshrl.u32 %v7715, 7
      %v7717 = vsub.s32 0, %v7716
      %v7718 = vrot.slane %v7696, %v7717
      %v7719 = vlaneseq
      %v7720 = vshrl.u32 %v7719, 7
      %v7721 = vsub.s32 2, %v7720
      %v7722 = vrot.slane %v7696, %v7721
      %v7723 = vlaneseq
      %v7724 = vshrl.u32 %v7723, 7
      %v7725 = vsub.s32 4, %v7724
      %v7726 = vrot.slane %v7696, %v7725
      %v7727 = vlaneseq
      %v7728 = vshrl.u32 %v7727, 7
      %v7729 = vsub.s32 6, %v7728
      %v7730 = vrot.slane %v7696, %v7729
      %v7739 = vlaneseq
      %v7740 = vshrl.u32 %v7739, 7
      %v7741 = vsub.s32 0, %v7740
      %v7742 = vrot.slane %v7702, %v7741
      %v7743 = vlaneseq
      %v7744 = vshrl.u32 %v7743, 7
      %v7745 = vsub.s32 0, %v7744
      %v7746 = vrot.slane %v7706, %v7745
      %v7747 = vlaneseq
      %v7748 = vshrl.u32 %v7747, 7
      %v7749 = vsub.s32 0, %v7748
      %v7750 = vrot.slane %v7710, %v7749
      %v7751 = vlaneseq
      %v7752 = vshrl.u32 %v7751, 7
      %v7753 = vsub.s32 0, %v7752
      %v7754 = vrot.slane %v7714, %v7753
      %v7755 = vlaneseq
      %v7756 = vshrl.u32 %v7755, 7
      %v7757 = vsub.s32 0, %v7756
      %v7758 = vrot.slane %v7718, %v7757
      %v7759 = vlaneseq
      %v7760 = vshrl.u32 %v7759, 7
      %v7761 = vsub.s32 0, %v7760
      %v7762 = vrot.slane %v7722, %v7761
      %v7763 = vlaneseq
      %v7764 = vshrl.u32 %v7763, 7
      %v7765 = vsub.s32 0, %v7764
      %v7766 = vrot.slane %v7726, %v7765
      %v7767 = vlaneseq
      %v7768 = vshrl.u32 %v7767, 7
      %v7769 = vsub.s32 0, %v7768
      %v7770 = vrot.slane %v7730, %v7769
      %v7771 = vmul.f32 %v7666, %v7742
      %v7772 = vmul.f32 %v7667, %v7746
      %v7773 = vmul.f32 %v7668, %v7750
      %v7774 = vmul.f32 %v7669, %v7754
      %v7775 = vmul.f32 %v7670, %v7758
      %v7776 = vmul.f32 %v7671, %v7762
      %v7777 = vmul.f32 %v7672, %v7766
      %v7778 = vmul.f32 %v7673, %v7770
      %vm7779 = vcmask 1043456
      %v7780 = vsel %vm7779, %v7771, 0.0
      %v7781 = vsel %vm7779, %v7772, 0.0
      %v7782 = vadd.f32 %v7780, %v7781
      %v7783 = vsel %vm7779, %v7773, 0.0
      %v7784 = vadd.f32 %v7782, %v7783
      %v7785 = vsel %vm7779, %v7774, 0.0
      %v7786 = vadd.f32 %v7784, %v7785
      %v7787 = vsel %vm7779, %v7775, 0.0
      %v7788 = vadd.f32 %v7786, %v7787
      %v7789 = vsel %vm7779, %v7776, 0.0
      %v7790 = vadd.f32 %v7788, %v7789
      %v7791 = vsel %vm7779, %v7777, 0.0
      %v7792 = vadd.f32 %v7790, %v7791
      %v7793 = vsel %vm7779, %v7778, 0.0
      %v7794 = vadd.f32 %v7792, %v7793
      %7795 = vadd.xlane.f32.xlu0 %v7794
      %v7796 = vpop.xlane.xlu0 %7795
      %vm7797 = vcmask 3072
      %7798 = vst.msk [vmem:[%s326] sm:$0xf] %vm7797, %v7796
      %v7799 = vmul.f32 %v7771, %v7666
      %v7800 = vmul.f32 %v7772, %v7667
      %v7801 = vmul.f32 %v7773, %v7668
      %v7802 = vmul.f32 %v7774, %v7669
      %v7803 = vmul.f32 %v7775, %v7670
      %v7804 = vmul.f32 %v7776, %v7671
      %v7805 = vmul.f32 %v7777, %v7672
      %v7806 = vmul.f32 %v7778, %v7673
      %v7807 = vsel %vm7779, %v7799, 0.0
      %v7808 = vsel %vm7779, %v7800, 0.0
      %v7809 = vadd.f32 %v7807, %v7808
      %v7810 = vsel %vm7779, %v7801, 0.0
      %v7811 = vadd.f32 %v7809, %v7810
      %v7812 = vsel %vm7779, %v7802, 0.0
      %v7813 = vadd.f32 %v7811, %v7812
      %v7814 = vsel %vm7779, %v7803, 0.0
      %v7815 = vadd.f32 %v7813, %v7814
      %v7816 = vsel %vm7779, %v7804, 0.0
      %v7817 = vadd.f32 %v7815, %v7816
      %v7818 = vsel %vm7779, %v7805, 0.0
      %v7819 = vadd.f32 %v7817, %v7818
      %v7820 = vsel %vm7779, %v7806, 0.0
      %v7821 = vadd.f32 %v7819, %v7820
      %7822 = vadd.xlane.f32.xlu0 %v7821
      %v7823 = vpop.xlane.xlu0 %7822
      %7824 = vst.msk [vmem:[%s330] sm:$0xf] %vm7797, %v7823
      %s7825 = smul.u32 8, %s18
      %p7826 = scmp.lt.s32.totalorder %s7825, 15
      %s7827 = scalar_select %p7826, %s7825, 15
      %s7828 = smul.addr %s7827, 4
      %s7829 = scalar_lea.vmem %s4, %s7828
      %p7830 = scmp.lt.s32.totalorder %s18, 1
      %s7831 = scalar_select %p7830, %s18, 1
      %s7832 = smul.addr %s7831, 4
      %s7833 = scalar_lea.vmem %s5, %s7832
      %p7834 = scmp.lt.s32.totalorder %s18, 1
      %s7835 = scalar_select %p7834, %s18, 1
      %s7836 = smul.addr %s7835, 4
      %s7837 = scalar_lea.vmem %s6, %s7836
      // Predicated region
      $region37: #{luconv_forward.2} parent=35 // pred_check
        %p7838 = pneg %p139
      $region38: #{luconv_forward.2} parent=35 // pred_check_branch
        %7840 = sbr.rel (%p7838) target = $region40
      $region39: #{luconv_forward.2} parent=35 // pred_region
        %s7841 = smul.u32 8, %s18
      $region40: #{luconv_forward.2} parent=35 // pred_fallthru
        _
      // Predicated region
      $region41: #{luconv_forward.2} parent=35 // pred_check
        %p7842 = pneg %p165
      $region42: #{luconv_forward.2} parent=35 // pred_check_branch
        %7844 = sbr.rel (%p7842) target = $region44
      $region43: #{luconv_forward.2} parent=35 // pred_region
        _
      $region44: #{luconv_forward.2} parent=35 // pred_fallthru
        _
      // Predicated region
      $region45: #{luconv_forward.2} parent=35 // pred_check
        %p7845 = pneg %p191
      $region46: #{luconv_forward.2} parent=35 // pred_check_branch
        %7847 = sbr.rel (%p7845) target = $region48
      $region47: #{luconv_forward.2} parent=35 // pred_region
        _
      $region48: #{luconv_forward.2} parent=35 // pred_fallthru
        _
    $region36: #{luconv_forward.2} parent=5 // pred_fallthru
      _
    %p7848 = scmp.le.s32.totalorder 2, %s13
    // Predicated region
    $region49: #{luconv_forward.2} parent=5 // pred_check
      %p7849 = pneg %p7848
    $region50: #{luconv_forward.2} parent=5 // pred_check_branch
      %7851 = sbr.rel (%p7849) target = $region52
    $region51: #{luconv_forward.2} parent=5 // pred_region
      %s7852 = ssub.s32 %s13, 2
      // Predicated region
      $region53: #{luconv_forward.2} parent=51 // pred_check
        %p7853 = pneg %p145
      $region54: #{luconv_forward.2} parent=51 // pred_check_branch
        %7855 = sbr.rel (%p7853) target = $region56
      $region55: #{luconv_forward.2} parent=51 // pred_region
        %s7856 = smul.u32 8, %s19
        %p7857 = scmp.lt.s32.totalorder %s7856, 15
        %s7858 = scalar_select %p7857, %s7856, 15
        %s7859 = smul.addr %s7858, 4
        %s7860 = scalar_lea.vmem %s4, %s7859
      $region56: #{luconv_forward.2} parent=51 // pred_fallthru
        _
      // Predicated region
      $region57: #{luconv_forward.2} parent=51 // pred_check
        %p7861 = pneg %p171
      $region58: #{luconv_forward.2} parent=51 // pred_check_branch
        %7863 = sbr.rel (%p7861) target = $region60
      $region59: #{luconv_forward.2} parent=51 // pred_region
        %p7864 = scmp.lt.s32.totalorder %s19, 1
        %s7865 = scalar_select %p7864, %s19, 1
        %s7866 = smul.addr %s7865, 4
        %s7867 = scalar_lea.vmem %s5, %s7866
      $region60: #{luconv_forward.2} parent=51 // pred_fallthru
        _
      // Predicated region
      $region61: #{luconv_forward.2} parent=51 // pred_check
        %p7868 = pneg %p197
      $region62: #{luconv_forward.2} parent=51 // pred_check_branch
        %7870 = sbr.rel (%p7868) target = $region64
      $region63: #{luconv_forward.2} parent=51 // pred_region
        %p7871 = scmp.lt.s32.totalorder %s19, 1
        %s7872 = scalar_select %p7871, %s19, 1
        %s7873 = smul.addr %s7872, 4
        %s7874 = scalar_lea.vmem %s6, %s7873
      $region64: #{luconv_forward.2} parent=51 // pred_fallthru
        _
    $region52: #{luconv_forward.2} parent=5 // pred_fallthru
      _
  $region6: #{luconv_forward.2} parent=0 // loop_footer
    %s17 = sadd.s32 1, %s13
  $region7: #{luconv_forward.2} parent=0 // loop_footer_branch
    %12 = sbr.rel target = $region3
  $region8: #{luconv_forward.2} parent=0 // loop_exit
    _

</llo_original>
